<compile_context>
chip_gen: v7x
topology: tpu7x:2x2x1
jax: 0.10.0
libtpu: 0.0.40
codegen_flags: <defaults>
</compile_context>

<pallas_src>
import functools
import math

import jax
import jax.numpy as jnp
from jax import lax
from jax.experimental import pallas as pl
from jax.experimental.pallas import tpu as pltpu

LRELU_SLOPE = 0.2   # nn.LeakyReLU(0.2, True)
BN_EPS = 1e-5       # nn.BatchNorm2d default
LANE = 128


def _round_up(x, m):
    return (x + m - 1) // m * m


# ---------------------------------------------------------------------------
# Pallas kernels
# ---------------------------------------------------------------------------
def conv_bn_lrelu_kernel(p_ref, w_ref, g_ref, b_ref, o_ref, *, inv_m):
    """Fused (im2col-conv) matmul + training-mode BN + LeakyReLU for one
    128-wide Cout block.  All rows (M) are resident, so batch stats are exact
    in a single grid step.  Padded rows are zero -> contribute 0 to sum/sumsq.
    """
    y = jnp.dot(p_ref[...], w_ref[...], preferred_element_type=jnp.float32)
    s = jnp.sum(y, axis=0, keepdims=True)          # (1, 128)
    sq = jnp.sum(y * y, axis=0, keepdims=True)
    mean = s * inv_m
    var = sq * inv_m - mean * mean                 # biased variance (BN forward)
    scale = g_ref[...] * lax.rsqrt(var + BN_EPS)   # rsqrt -> EUP slot
    shift = b_ref[...] - mean * scale
    yn = y * scale + shift                         # f32 epilogue
    o_ref[...] = jnp.where(yn > 0, yn, LRELU_SLOPE * yn).astype(o_ref.dtype)


def tail_kernel(p_ref, w_ref, b_ref, o_ref):
    """Fused conv4 + fc_mu / fc_sig heads: one matmul on pre-folded weights."""
    o_ref[...] = (
        jnp.dot(p_ref[...], w_ref[...], preferred_element_type=jnp.float32)
        + b_ref[...]
    )


# ---------------------------------------------------------------------------
# pallas_call wrappers
# ---------------------------------------------------------------------------
def _call_conv_bn_lrelu(patches, w2d, g2d, b2d, true_m):
    m_pad, k_pad = patches.shape
    cout_pad = w2d.shape[1]
    grid = (cout_pad // LANE,)  # 1 or 2 steps; "parallel" -> both TCs on v7x
    kernel = functools.partial(conv_bn_lrelu_kernel, inv_m=1.0 / float(true_m))
    return pl.pallas_call(
        kernel,
        out_shape=jax.ShapeDtypeStruct((m_pad, cout_pad), jnp.bfloat16),
        grid=grid,
        in_specs=[
            pl.BlockSpec((m_pad, k_pad), lambda j: (0, 0)),   # all rows resident
            pl.BlockSpec((k_pad, LANE), lambda j: (0, j)),    # Cout block of W
            pl.BlockSpec((1, LANE), lambda j: (0, j)),        # gamma (f32)
            pl.BlockSpec((1, LANE), lambda j: (0, j)),        # beta  (f32)
        ],
        out_specs=pl.BlockSpec((m_pad, LANE), lambda j: (0, j)),
        compiler_params=pltpu.CompilerParams(dimension_semantics=("parallel",)),
    )(patches, w2d, g2d, b2d)


def _call_tail(patches, w_fold, b_fold):
    m_pad = patches.shape[0]
    cout = w_fold.shape[1]
    vmem = pl.BlockSpec(memory_space=pltpu.MemorySpace.VMEM)
    return pl.pallas_call(
        tail_kernel,
        out_shape=jax.ShapeDtypeStruct((m_pad, cout), jnp.float32),
        in_specs=[vmem, vmem, vmem],
        out_specs=vmem,
    )(patches, w_fold, b_fold)


# ---------------------------------------------------------------------------
# im2col (one XLA op; rows are channel-major (cin, kh, kw), lane-dense NHWC)
# ---------------------------------------------------------------------------
def _im2col(x_nhwc, ksize, stride, pad):
    patches = lax.conv_general_dilated_patches(
        x_nhwc,
        filter_shape=(ksize, ksize),
        window_strides=(stride, stride),
        padding=[(pad, pad), (pad, pad)],
        dimension_numbers=("NHWC", "HWIO", "NHWC"),
    )
    n, ho, wo, k = patches.shape
    return patches.reshape(n * ho * wo, k), ho, wo


# ---------------------------------------------------------------------------
# Layers
# ---------------------------------------------------------------------------
def conv_bn_lrelu_layer(x_nhwc, layer, cout, ksize, stride, pad):
    n = x_nhwc.shape[0]
    patches, ho, wo = _im2col(x_nhwc, ksize, stride, pad)     # bf16, (M, K)
    m, k = patches.shape
    k_pad, cout_pad = layer["w2d"].shape
    m_pad = _round_up(m, 8)
    patches = jnp.pad(patches, ((0, m_pad - m), (0, k_pad - k)))
    out = _call_conv_bn_lrelu(patches, layer["w2d"], layer["gamma"],
                              layer["beta"], m)
    return out[:m, :cout].reshape(n, ho, wo, cout)            # NHWC bf16


def tail_layer(x_nhwc, tail_w, tail_b, z, ksize, stride, pad):
    n = x_nhwc.shape[0]
    patches, ho, wo = _im2col(x_nhwc, ksize, stride, pad)
    m, k = patches.shape
    k_pad = tail_w.shape[0]
    m_pad = _round_up(m, 8)
    patches = jnp.pad(patches, ((0, m_pad - m), (0, k_pad - k)))
    out = _call_tail(patches, tail_w, tail_b)[:m]
    mu = out[:, :z].reshape(n, ho, wo, z).transpose(0, 3, 1, 2)        # NCHW f32
    logvar = out[:, z:2 * z].reshape(n, ho, wo, z).transpose(0, 3, 1, 2)
    return mu, logvar


# ---------------------------------------------------------------------------
# Static config + parameter init (mirrors the PyTorch module)
# ---------------------------------------------------------------------------
def encoder_config(num_in_channels=1, z_size=2, num_filters=64):
    # (cin, cout, kernel, stride, pad, has_bn) -- static Python ints only.
    return (
        (num_in_channels, num_filters, 5, 2, 1, True),
        (num_filters, 2 * num_filters, 4, 2, 1, True),
        (2 * num_filters, 4 * num_filters, 4, 2, 1, True),
        (4 * num_filters, z_size, 3, 1, 0, False),
    )


def _xavier_normal(key, cout, cin, kh, kw):
    fan_in, fan_out = cin * kh * kw, cout * kh * kw
    std = math.sqrt(2.0 / (fan_in + fan_out))
    return std * jax.random.normal(key, (cout, cin, kh, kw), jnp.float32)


def init_params(key, cfg, z_size=2):
    params = {"convs": []}
    for (cin, cout, k, _s, _p, has_bn) in cfg:
        key, kw_, kbn = jax.random.split(key, 3)
        layer = {"w": _xavier_normal(kw_, cout, cin, k, k)}
        if has_bn:
            # Conv bias omitted: it cancels exactly in the BN mean subtraction.
            layer["gamma"] = 1.0 + 0.02 * jax.random.normal(kbn, (cout,), jnp.float32)
            layer["beta"] = jnp.zeros((cout,), jnp.float32)
        else:
            layer["b"] = jnp.zeros((cout,), jnp.float32)
        params["convs"].append(layer)
    key, k1, k2 = jax.random.split(key, 3)
    params["fc_mu_w"] = _xavier_normal(k1, z_size, z_size, 1, 1)
    params["fc_mu_b"] = jnp.zeros((z_size,), jnp.float32)
    params["fc_sig_w"] = _xavier_normal(k2, z_size, z_size, 1, 1)
    params["fc_sig_b"] = jnp.zeros((z_size,), jnp.float32)
    return params


def prepare_params(params, cfg, z_size=2):
    """One-time (outside jit) weight reshape / pad / tail fold."""
    prepared = {"convs": []}
    for layer, (cin, cout, k, _s, _p, _bn) in zip(params["convs"][:-1], cfg[:-1]):
        kdim = cin * k * k
        k_pad = _round_up(kdim, LANE)
        cout_pad = _round_up(cout, LANE)
        # Row layout of conv_general_dilated_patches is (cin, kh, kw) -> match.
        w2d = layer["w"].reshape(cout, kdim).T
        w2d = jnp.pad(w2d, ((0, k_pad - kdim), (0, cout_pad - cout)))
        g2d = jnp.pad(layer["gamma"].reshape(1, cout), ((0, 0), (0, cout_pad - cout)))
        b2d = jnp.pad(layer["beta"].reshape(1, cout), ((0, 0), (0, cout_pad - cout)))
        prepared["convs"].append({
            "w2d": w2d.astype(jnp.bfloat16),
            "gamma": g2d.astype(jnp.float32),
            "beta": b2d.astype(jnp.float32),
        })

    # Tail: fold conv4 + 1x1 fc_mu / fc_sig into a single (K4, 2z) matmul.
    cin4, _cout4, k4, _s4, _p4, _ = cfg[-1]
    last = params["convs"][-1]
    z = z_size
    k4dim = cin4 * k4 * k4
    w4_2d = last["w"].reshape(z, k4dim).T.astype(jnp.float32)       # (K4, z)
    wmu_2d = params["fc_mu_w"].reshape(z, z).T                      # (in, out)
    wsig_2d = params["fc_sig_w"].reshape(z, z).T
    # mu = (p @ W4 + b4) @ Wmu + bmu = p @ (W4 @ Wmu) + (b4 @ Wmu + bmu)
    w_fold = jnp.concatenate([w4_2d @ wmu_2d, w4_2d @ wsig_2d], axis=1)       # (K4, 2z)
    b_fold = jnp.concatenate([last["b"] @ wmu_2d + params["fc_mu_b"],
                              last["b"] @ wsig_2d + params["fc_sig_b"]])      # (2z,)
    out_pad = _round_up(2 * z, LANE)
    k4_pad = _round_up(k4dim, LANE)
    prepared["tail_w"] = jnp.pad(
        w_fold, ((0, k4_pad - k4dim), (0, out_pad - 2 * z))).astype(jnp.bfloat16)
    prepared["tail_b"] = jnp.pad(
        b_fold.reshape(1, 2 * z), ((0, 0), (0, out_pad - 2 * z))).astype(jnp.float32)
    return prepared


# ---------------------------------------------------------------------------
# Forward pass (== encoder.forward): returns (mu, logvar), each NCHW
# ---------------------------------------------------------------------------
def encoder_forward(prepared, x_nchw, *, cfg, z_size=2):
    h = jnp.transpose(x_nchw, (0, 2, 3, 1)).astype(jnp.bfloat16)   # NCHW -> NHWC once
    for layer, (_cin, cout, k, s, p, _bn) in zip(prepared["convs"], cfg[:-1]):
        h = conv_bn_lrelu_layer(h, layer, cout, k, s, p)
    _cin4, _cout4, k4, s4, p4, _ = cfg[-1]
    return tail_layer(h, prepared["tail_w"], prepared["tail_b"], z_size, k4, s4, p4)


# ---------------------------------------------------------------------------
# Pure-JAX f32 reference (training-mode BN) for a sanity check
# ---------------------------------------------------------------------------
def _reference_forward(params, x, cfg):
    dn = ("NCHW", "OIHW", "NCHW")
    h = x
    for layer, (_cin, _cout, _k, s, p, _bn) in zip(params["convs"][:-1], cfg[:-1]):
        y = lax.conv_general_dilated(h, layer["w"], (s, s), [(p, p), (p, p)],
                                     dimension_numbers=dn)
        mean = jnp.mean(y, axis=(0, 2, 3), keepdims=True)
        var = jnp.var(y, axis=(0, 2, 3), keepdims=True)
        yn = (y - mean) * lax.rsqrt(var + BN_EPS)
        yn = yn * layer["gamma"].reshape(1, -1, 1, 1) + layer["beta"].reshape(1, -1, 1, 1)
        h = jnp.where(yn > 0, yn, LRELU_SLOPE * yn)
    last = params["convs"][-1]
    _, _, _k4, s4, p4, _ = cfg[-1]
    z_ = lax.conv_general_dilated(h, last["w"], (s4, s4), [(p4, p4), (p4, p4)],
                                  dimension_numbers=dn) + last["b"].reshape(1, -1, 1, 1)
    mu = lax.conv_general_dilated(z_, params["fc_mu_w"], (1, 1), [(0, 0), (0, 0)],
                                  dimension_numbers=dn) + params["fc_mu_b"].reshape(1, -1, 1, 1)
    lv = lax.conv_general_dilated(z_, params["fc_sig_w"], (1, 1), [(0, 0), (0, 0)],
                                  dimension_numbers=dn) + params["fc_sig_b"].reshape(1, -1, 1, 1)
    return mu, lv


if __name__ == "__main__":
    # batch=2, 1 input channel, 32x32 spatial (smallest size that leaves a
    # 1x1 latent map for this conv stack: 32 -> 15 -> 7 -> 3 -> 1).
    key = jax.random.PRNGKey(0)
    kx, kp = jax.random.split(key)
    x = jax.random.normal(kx, (2, 1, 32, 32), jnp.float32)

    cfg = encoder_config(num_in_channels=1, z_size=2, num_filters=64)
    params = init_params(kp, cfg, z_size=2)
    prepared = prepare_params(params, cfg, z_size=2)   # one-time, outside jit

    fwd = jax.jit(functools.partial(encoder_forward, cfg=cfg, z_size=2))
    mu, logvar = fwd(prepared, x)
    jax.block_until_ready((mu, logvar))

    assert mu.shape == (2, 2, 1, 1) and logvar.shape == (2, 2, 1, 1)
    assert bool(jnp.all(jnp.isfinite(mu))) and bool(jnp.all(jnp.isfinite(logvar)))

    # Loose sanity check vs. an f32 XLA reference (kernel matmuls are bf16).
    mu_ref, lv_ref = _reference_forward(params, x, cfg)
    err = max(float(jnp.max(jnp.abs(mu - mu_ref))),
              float(jnp.max(jnp.abs(logvar - lv_ref))))
    assert err < 0.25, f"mismatch vs f32 reference: max abs err = {err}"

    print("KERNEL_OK")
</pallas_src>

<mosaic_0001>
module attributes {stable_mosaic.version = 11 : i64} {
  func.func @conv_bn_lrelu_kernel(%arg0: i32, %arg1: memref<456x128xbf16, #tpu.memory_space<vmem>>, %arg2: memref<128x128xbf16, #tpu.memory_space<vmem>>, %arg3: memref<1x128xf32, #tpu.memory_space<vmem>>, %arg4: memref<1x128xf32, #tpu.memory_space<vmem>>, %arg5: memref<456x128xbf16, #tpu.memory_space<vmem>>) attributes {dimension_semantics = [#tpu.dimension_semantics<parallel>], iteration_bounds = array<i64: 1>, scalar_prefetch = 0 : i64, scratch_operands = 0 : i64, tpu.core_type = #tpu.core_type<tc>, window_params = [{pipeline_mode = #tpu.pipeline_mode<synchronous>, transform_indices = @transform_0, window_bounds = array<i64: 456, 128>}, {transform_indices = @transform_1, window_bounds = array<i64: 128, 128>}, {transform_indices = @transform_2, window_bounds = array<i64: 1, 128>}, {transform_indices = @transform_3, window_bounds = array<i64: 1, 128>}, {transform_indices = @transform_4, window_bounds = array<i64: 456, 128>}]} {
    %c0 = arith.constant 0 : index
    %c0_0 = arith.constant 0 : index
    %0 = vector.load %arg1[%c0, %c0_0] : memref<456x128xbf16, #tpu.memory_space<vmem>>, vector<456x128xbf16>
    %c0_1 = arith.constant 0 : index
    %c0_2 = arith.constant 0 : index
    %1 = vector.load %arg2[%c0_1, %c0_2] : memref<128x128xbf16, #tpu.memory_space<vmem>>, vector<128x128xbf16>
    %cst = arith.constant dense<0.000000e+00> : vector<456x128xf32>
    %2 = tpu.matmul %0, %1, %cst {dimension_numbers = #tpu.dot_dimension_numbers<[1], [0], [0], [1], [0, 0, 1, 1], [], []>} : vector<456x128xbf16>, vector<128x128xbf16>, vector<456x128xf32> -> vector<456x128xf32>
    %cst_3 = arith.constant dense<0.000000e+00> : vector<128xf32>
    %3 = vector.multi_reduction <add>, %2, %cst_3 [0] : vector<456x128xf32> to vector<128xf32>
    %4 = vector.shape_cast %3 : vector<128xf32> to vector<1x128xf32>
    %5 = arith.mulf %2, %2 : vector<456x128xf32>
    %cst_4 = arith.constant dense<0.000000e+00> : vector<128xf32>
    %6 = vector.multi_reduction <add>, %5, %cst_4 [0] : vector<456x128xf32> to vector<128xf32>
    %7 = vector.shape_cast %6 : vector<128xf32> to vector<1x128xf32>
    %cst_5 = arith.constant 0.00222222228 : f32
    %8 = vector.broadcast %cst_5 : f32 to vector<1x128xf32>
    %9 = arith.mulf %4, %8 : vector<1x128xf32>
    %cst_6 = arith.constant 0.00222222228 : f32
    %10 = vector.broadcast %cst_6 : f32 to vector<1x128xf32>
    %11 = arith.mulf %7, %10 : vector<1x128xf32>
    %12 = arith.mulf %9, %9 : vector<1x128xf32>
    %13 = arith.subf %11, %12 : vector<1x128xf32>
    %c0_7 = arith.constant 0 : index
    %c0_8 = arith.constant 0 : index
    %14 = vector.load %arg3[%c0_7, %c0_8] : memref<1x128xf32, #tpu.memory_space<vmem>>, vector<1x128xf32>
    %cst_9 = arith.constant 9.99999974E-6 : f32
    %15 = vector.broadcast %cst_9 : f32 to vector<1x128xf32>
    %16 = arith.addf %13, %15 : vector<1x128xf32>
    %17 = math.rsqrt %16 : vector<1x128xf32>
    %18 = arith.mulf %14, %17 : vector<1x128xf32>
    %c0_10 = arith.constant 0 : index
    %c0_11 = arith.constant 0 : index
    %19 = vector.load %arg4[%c0_10, %c0_11] : memref<1x128xf32, #tpu.memory_space<vmem>>, vector<1x128xf32>
    %20 = arith.mulf %9, %18 : vector<1x128xf32>
    %21 = arith.subf %19, %20 : vector<1x128xf32>
    %22 = vector.broadcast %18 : vector<1x128xf32> to vector<456x128xf32>
    %23 = arith.mulf %2, %22 : vector<456x128xf32>
    %24 = vector.broadcast %21 : vector<1x128xf32> to vector<456x128xf32>
    %25 = arith.addf %23, %24 : vector<456x128xf32>
    %cst_12 = arith.constant 0.000000e+00 : f32
    %26 = vector.broadcast %cst_12 : f32 to vector<456x128xf32>
    %27 = arith.cmpf ogt, %25, %26 : vector<456x128xf32>
    %cst_13 = arith.constant 2.000000e-01 : f32
    %28 = vector.broadcast %cst_13 : f32 to vector<456x128xf32>
    %29 = arith.mulf %28, %25 : vector<456x128xf32>
    %30 = arith.select %27, %25, %29 : vector<456x128xi1>, vector<456x128xf32>
    %31 = arith.truncf %30 : vector<456x128xf32> to vector<456x128xbf16>
    %c0_14 = arith.constant 0 : index
    %c0_15 = arith.constant 0 : index
    %32 = vector.load %arg5[%c0_14, %c0_15] : memref<456x128xbf16, #tpu.memory_space<vmem>>, vector<456x128xbf16>
    tpu.vector_store %arg5[%c0_14, %c0_15], %31 {strides = array<i32>} : memref<456x128xbf16, #tpu.memory_space<vmem>>, vector<456x128xbf16>,
    return
  }
  func.func @transform_0(%arg0: i32) -> (i32, i32) {
    %c0_i32 = arith.constant 0 : i32
    %c0_i32_0 = arith.constant 0 : i32
    %c0_i32_1 = arith.constant 0 : i32
    return %c0_i32, %c0_i32_0 : i32, i32
  }
  func.func @transform_1(%arg0: i32) -> (i32, i32) {
    %c0_i32 = arith.constant 0 : i32
    %c0_i32_0 = arith.constant 0 : i32
    return %c0_i32, %arg0 : i32, i32
  }
  func.func @transform_2(%arg0: i32) -> (i32, i32) {
    %c0_i32 = arith.constant 0 : i32
    %c0_i32_0 = arith.constant 0 : i32
    return %c0_i32, %arg0 : i32, i32
  }
  func.func @transform_3(%arg0: i32) -> (i32, i32) {
    %c0_i32 = arith.constant 0 : i32
    %c0_i32_0 = arith.constant 0 : i32
    return %c0_i32, %arg0 : i32, i32
  }
  func.func @transform_4(%arg0: i32) -> (i32, i32) {
    %c0_i32 = arith.constant 0 : i32
    %c0_i32_0 = arith.constant 0 : i32
    return %c0_i32, %arg0 : i32, i32
  }
}

module attributes {stable_mosaic.version = 11 : i64} {
  func.func @conv_bn_lrelu_kernel(%arg0: i32, %arg1: memref<104x1024xbf16, #tpu.memory_space<vmem>>, %arg2: memref<1024x128xbf16, #tpu.memory_space<vmem>>, %arg3: memref<1x128xf32, #tpu.memory_space<vmem>>, %arg4: memref<1x128xf32, #tpu.memory_space<vmem>>, %arg5: memref<104x128xbf16, #tpu.memory_space<vmem>>) attributes {dimension_semantics = [#tpu.dimension_semantics<parallel>], iteration_bounds = array<i64: 1>, scalar_prefetch = 0 : i64, scratch_operands = 0 : i64, tpu.core_type = #tpu.core_type<tc>, window_params = [{pipeline_mode = #tpu.pipeline_mode<synchronous>, transform_indices = @transform_0, window_bounds = array<i64: 104, 1024>}, {transform_indices = @transform_1, window_bounds = array<i64: 1024, 128>}, {transform_indices = @transform_2, window_bounds = array<i64: 1, 128>}, {transform_indices = @transform_3, window_bounds = array<i64: 1, 128>}, {transform_indices = @transform_4, window_bounds = array<i64: 104, 128>}]} {
    %c0 = arith.constant 0 : index
    %c0_0 = arith.constant 0 : index
    %0 = vector.load %arg1[%c0, %c0_0] : memref<104x1024xbf16, #tpu.memory_space<vmem>>, vector<104x1024xbf16>
    %c0_1 = arith.constant 0 : index
    %c0_2 = arith.constant 0 : index
    %1 = vector.load %arg2[%c0_1, %c0_2] : memref<1024x128xbf16, #tpu.memory_space<vmem>>, vector<1024x128xbf16>
    %cst = arith.constant dense<0.000000e+00> : vector<104x128xf32>
    %2 = tpu.matmul %0, %1, %cst {dimension_numbers = #tpu.dot_dimension_numbers<[1], [0], [0], [1], [0, 0, 1, 1], [], []>} : vector<104x1024xbf16>, vector<1024x128xbf16>, vector<104x128xf32> -> vector<104x128xf32>
    %cst_3 = arith.constant dense<0.000000e+00> : vector<128xf32>
    %3 = vector.multi_reduction <add>, %2, %cst_3 [0] : vector<104x128xf32> to vector<128xf32>
    %4 = vector.shape_cast %3 : vector<128xf32> to vector<1x128xf32>
    %5 = arith.mulf %2, %2 : vector<104x128xf32>
    %cst_4 = arith.constant dense<0.000000e+00> : vector<128xf32>
    %6 = vector.multi_reduction <add>, %5, %cst_4 [0] : vector<104x128xf32> to vector<128xf32>
    %7 = vector.shape_cast %6 : vector<128xf32> to vector<1x128xf32>
    %cst_5 = arith.constant 0.0102040814 : f32
    %8 = vector.broadcast %cst_5 : f32 to vector<1x128xf32>
    %9 = arith.mulf %4, %8 : vector<1x128xf32>
    %cst_6 = arith.constant 0.0102040814 : f32
    %10 = vector.broadcast %cst_6 : f32 to vector<1x128xf32>
    %11 = arith.mulf %7, %10 : vector<1x128xf32>
    %12 = arith.mulf %9, %9 : vector<1x128xf32>
    %13 = arith.subf %11, %12 : vector<1x128xf32>
    %c0_7 = arith.constant 0 : index
    %c0_8 = arith.constant 0 : index
    %14 = vector.load %arg3[%c0_7, %c0_8] : memref<1x128xf32, #tpu.memory_space<vmem>>, vector<1x128xf32>
    %cst_9 = arith.constant 9.99999974E-6 : f32
    %15 = vector.broadcast %cst_9 : f32 to vector<1x128xf32>
    %16 = arith.addf %13, %15 : vector<1x128xf32>
    %17 = math.rsqrt %16 : vector<1x128xf32>
    %18 = arith.mulf %14, %17 : vector<1x128xf32>
    %c0_10 = arith.constant 0 : index
    %c0_11 = arith.constant 0 : index
    %19 = vector.load %arg4[%c0_10, %c0_11] : memref<1x128xf32, #tpu.memory_space<vmem>>, vector<1x128xf32>
    %20 = arith.mulf %9, %18 : vector<1x128xf32>
    %21 = arith.subf %19, %20 : vector<1x128xf32>
    %22 = vector.broadcast %18 : vector<1x128xf32> to vector<104x128xf32>
    %23 = arith.mulf %2, %22 : vector<104x128xf32>
    %24 = vector.broadcast %21 : vector<1x128xf32> to vector<104x128xf32>
    %25 = arith.addf %23, %24 : vector<104x128xf32>
    %cst_12 = arith.constant 0.000000e+00 : f32
    %26 = vector.broadcast %cst_12 : f32 to vector<104x128xf32>
    %27 = arith.cmpf ogt, %25, %26 : vector<104x128xf32>
    %cst_13 = arith.constant 2.000000e-01 : f32
    %28 = vector.broadcast %cst_13 : f32 to vector<104x128xf32>
    %29 = arith.mulf %28, %25 : vector<104x128xf32>
    %30 = arith.select %27, %25, %29 : vector<104x128xi1>, vector<104x128xf32>
    %31 = arith.truncf %30 : vector<104x128xf32> to vector<104x128xbf16>
    %c0_14 = arith.constant 0 : index
    %c0_15 = arith.constant 0 : index
    %32 = vector.load %arg5[%c0_14, %c0_15] : memref<104x128xbf16, #tpu.memory_space<vmem>>, vector<104x128xbf16>
    tpu.vector_store %arg5[%c0_14, %c0_15], %31 {strides = array<i32>} : memref<104x128xbf16, #tpu.memory_space<vmem>>, vector<104x128xbf16>,
    return
  }
  func.func @transform_0(%arg0: i32) -> (i32, i32) {
    %c0_i32 = arith.constant 0 : i32
    %c0_i32_0 = arith.constant 0 : i32
    %c0_i32_1 = arith.constant 0 : i32
    return %c0_i32, %c0_i32_0 : i32, i32
  }
  func.func @transform_1(%arg0: i32) -> (i32, i32) {
    %c0_i32 = arith.constant 0 : i32
    %c0_i32_0 = arith.constant 0 : i32
    return %c0_i32, %arg0 : i32, i32
  }
  func.func @transform_2(%arg0: i32) -> (i32, i32) {
    %c0_i32 = arith.constant 0 : i32
    %c0_i32_0 = arith.constant 0 : i32
    return %c0_i32, %arg0 : i32, i32
  }
  func.func @transform_3(%arg0: i32) -> (i32, i32) {
    %c0_i32 = arith.constant 0 : i32
    %c0_i32_0 = arith.constant 0 : i32
    return %c0_i32, %arg0 : i32, i32
  }
  func.func @transform_4(%arg0: i32) -> (i32, i32) {
    %c0_i32 = arith.constant 0 : i32
    %c0_i32_0 = arith.constant 0 : i32
    return %c0_i32, %arg0 : i32, i32
  }
}

module attributes {stable_mosaic.version = 11 : i64} {
  func.func @conv_bn_lrelu_kernel(%arg0: i32, %arg1: memref<24x2048xbf16, #tpu.memory_space<vmem>>, %arg2: memref<2048x128xbf16, #tpu.memory_space<vmem>>, %arg3: memref<1x128xf32, #tpu.memory_space<vmem>>, %arg4: memref<1x128xf32, #tpu.memory_space<vmem>>, %arg5: memref<24x128xbf16, #tpu.memory_space<vmem>>) attributes {dimension_semantics = [#tpu.dimension_semantics<parallel>], iteration_bounds = array<i64: 2>, scalar_prefetch = 0 : i64, scratch_operands = 0 : i64, tpu.core_type = #tpu.core_type<tc>, window_params = [{pipeline_mode = #tpu.pipeline_mode<synchronous>, transform_indices = @transform_0, window_bounds = array<i64: 24, 2048>}, {transform_indices = @transform_1, window_bounds = array<i64: 2048, 128>}, {transform_indices = @transform_2, window_bounds = array<i64: 1, 128>}, {transform_indices = @transform_3, window_bounds = array<i64: 1, 128>}, {transform_indices = @transform_4, window_bounds = array<i64: 24, 128>}]} {
    %c0 = arith.constant 0 : index
    %c0_0 = arith.constant 0 : index
    %0 = vector.load %arg1[%c0, %c0_0] : memref<24x2048xbf16, #tpu.memory_space<vmem>>, vector<24x2048xbf16>
    %c0_1 = arith.constant 0 : index
    %c0_2 = arith.constant 0 : index
    %1 = vector.load %arg2[%c0_1, %c0_2] : memref<2048x128xbf16, #tpu.memory_space<vmem>>, vector<2048x128xbf16>
    %cst = arith.constant dense<0.000000e+00> : vector<24x128xf32>
    %2 = tpu.matmul %0, %1, %cst {dimension_numbers = #tpu.dot_dimension_numbers<[1], [0], [0], [1], [0, 0, 1, 1], [], []>} : vector<24x2048xbf16>, vector<2048x128xbf16>, vector<24x128xf32> -> vector<24x128xf32>
    %cst_3 = arith.constant dense<0.000000e+00> : vector<128xf32>
    %3 = vector.multi_reduction <add>, %2, %cst_3 [0] : vector<24x128xf32> to vector<128xf32>
    %4 = vector.shape_cast %3 : vector<128xf32> to vector<1x128xf32>
    %5 = arith.mulf %2, %2 : vector<24x128xf32>
    %cst_4 = arith.constant dense<0.000000e+00> : vector<128xf32>
    %6 = vector.multi_reduction <add>, %5, %cst_4 [0] : vector<24x128xf32> to vector<128xf32>
    %7 = vector.shape_cast %6 : vector<128xf32> to vector<1x128xf32>
    %cst_5 = arith.constant 0.055555556 : f32
    %8 = vector.broadcast %cst_5 : f32 to vector<1x128xf32>
    %9 = arith.mulf %4, %8 : vector<1x128xf32>
    %cst_6 = arith.constant 0.055555556 : f32
    %10 = vector.broadcast %cst_6 : f32 to vector<1x128xf32>
    %11 = arith.mulf %7, %10 : vector<1x128xf32>
    %12 = arith.mulf %9, %9 : vector<1x128xf32>
    %13 = arith.subf %11, %12 : vector<1x128xf32>
    %c0_7 = arith.constant 0 : index
    %c0_8 = arith.constant 0 : index
    %14 = vector.load %arg3[%c0_7, %c0_8] : memref<1x128xf32, #tpu.memory_space<vmem>>, vector<1x128xf32>
    %cst_9 = arith.constant 9.99999974E-6 : f32
    %15 = vector.broadcast %cst_9 : f32 to vector<1x128xf32>
    %16 = arith.addf %13, %15 : vector<1x128xf32>
    %17 = math.rsqrt %16 : vector<1x128xf32>
    %18 = arith.mulf %14, %17 : vector<1x128xf32>
    %c0_10 = arith.constant 0 : index
    %c0_11 = arith.constant 0 : index
    %19 = vector.load %arg4[%c0_10, %c0_11] : memref<1x128xf32, #tpu.memory_space<vmem>>, vector<1x128xf32>
    %20 = arith.mulf %9, %18 : vector<1x128xf32>
    %21 = arith.subf %19, %20 : vector<1x128xf32>
    %22 = vector.broadcast %18 : vector<1x128xf32> to vector<24x128xf32>
    %23 = arith.mulf %2, %22 : vector<24x128xf32>
    %24 = vector.broadcast %21 : vector<1x128xf32> to vector<24x128xf32>
    %25 = arith.addf %23, %24 : vector<24x128xf32>
    %cst_12 = arith.constant 0.000000e+00 : f32
    %26 = vector.broadcast %cst_12 : f32 to vector<24x128xf32>
    %27 = arith.cmpf ogt, %25, %26 : vector<24x128xf32>
    %cst_13 = arith.constant 2.000000e-01 : f32
    %28 = vector.broadcast %cst_13 : f32 to vector<24x128xf32>
    %29 = arith.mulf %28, %25 : vector<24x128xf32>
    %30 = arith.select %27, %25, %29 : vector<24x128xi1>, vector<24x128xf32>
    %31 = arith.truncf %30 : vector<24x128xf32> to vector<24x128xbf16>
    %c0_14 = arith.constant 0 : index
    %c0_15 = arith.constant 0 : index
    %32 = vector.load %arg5[%c0_14, %c0_15] : memref<24x128xbf16, #tpu.memory_space<vmem>>, vector<24x128xbf16>
    tpu.vector_store %arg5[%c0_14, %c0_15], %31 {strides = array<i32>} : memref<24x128xbf16, #tpu.memory_space<vmem>>, vector<24x128xbf16>,
    return
  }
  func.func @transform_0(%arg0: i32) -> (i32, i32) {
    %c0_i32 = arith.constant 0 : i32
    %c0_i32_0 = arith.constant 0 : i32
    %c0_i32_1 = arith.constant 0 : i32
    return %c0_i32, %c0_i32_0 : i32, i32
  }
  func.func @transform_1(%arg0: i32) -> (i32, i32) {
    %c0_i32 = arith.constant 0 : i32
    %c0_i32_0 = arith.constant 0 : i32
    return %c0_i32, %arg0 : i32, i32
  }
  func.func @transform_2(%arg0: i32) -> (i32, i32) {
    %c0_i32 = arith.constant 0 : i32
    %c0_i32_0 = arith.constant 0 : i32
    return %c0_i32, %arg0 : i32, i32
  }
  func.func @transform_3(%arg0: i32) -> (i32, i32) {
    %c0_i32 = arith.constant 0 : i32
    %c0_i32_0 = arith.constant 0 : i32
    return %c0_i32, %arg0 : i32, i32
  }
  func.func @transform_4(%arg0: i32) -> (i32, i32) {
    %c0_i32 = arith.constant 0 : i32
    %c0_i32_0 = arith.constant 0 : i32
    return %c0_i32, %arg0 : i32, i32
  }
}

module attributes {stable_mosaic.version = 11 : i64} {
  func.func @tail_kernel(%arg0: memref<8x2304xbf16, #tpu.memory_space<vmem>>, %arg1: memref<2304x128xbf16, #tpu.memory_space<vmem>>, %arg2: memref<1x128xf32, #tpu.memory_space<vmem>>, %arg3: memref<8x128xf32, #tpu.memory_space<vmem>>) attributes {dimension_semantics = [], scalar_prefetch = 0 : i64, scratch_operands = 0 : i64, tpu.core_type = #tpu.core_type<tc>} {
    %c0 = arith.constant 0 : index
    %c0_0 = arith.constant 0 : index
    %0 = vector.load %arg0[%c0, %c0_0] : memref<8x2304xbf16, #tpu.memory_space<vmem>>, vector<8x2304xbf16>
    %c0_1 = arith.constant 0 : index
    %c0_2 = arith.constant 0 : index
    %1 = vector.load %arg1[%c0_1, %c0_2] : memref<2304x128xbf16, #tpu.memory_space<vmem>>, vector<2304x128xbf16>
    %cst = arith.constant dense<0.000000e+00> : vector<8x128xf32>
    %2 = tpu.matmul %0, %1, %cst {dimension_numbers = #tpu.dot_dimension_numbers<[1], [0], [0], [1], [0, 0, 1, 1], [], []>} : vector<8x2304xbf16>, vector<2304x128xbf16>, vector<8x128xf32> -> vector<8x128xf32>
    %c0_3 = arith.constant 0 : index
    %c0_4 = arith.constant 0 : index
    %3 = vector.load %arg2[%c0_3, %c0_4] : memref<1x128xf32, #tpu.memory_space<vmem>>, vector<1x128xf32>
    %4 = vector.broadcast %3 : vector<1x128xf32> to vector<8x128xf32>
    %5 = arith.addf %2, %4 : vector<8x128xf32>
    %c0_5 = arith.constant 0 : index
    %c0_6 = arith.constant 0 : index
    %6 = vector.load %arg3[%c0_5, %c0_6] : memref<8x128xf32, #tpu.memory_space<vmem>>, vector<8x128xf32>
    tpu.vector_store %arg3[%c0_5, %c0_6], %5 {strides = array<i32>} : memref<8x128xf32, #tpu.memory_space<vmem>>, vector<8x128xf32>,
    return
  }
}

</mosaic_0001>

<llo_original>
// kernel: encoder_forward.4
$region0: #{encoder_forward.4}
  #allocation0 [shape = 'u32[]', space=smem, size = 0x4, offset = 0x4, fixed_abs, tag = 'smem constant byte address 0x4 - core index']
  #allocation1 [shape = 'u32[144,128]{1,0:T(1,128)}', space=vmem, size = 0x12000, scoped, tag = 'internal scratch']
  %s0 = inlined_call_operand.vmem [shape: bf16[456,128], index: 0, kind: input, shape index: {}]
  %s1 = inlined_call_operand.vmem [shape: bf16[128,128], index: 1, kind: input, shape index: {}]
  %s2 = inlined_call_operand.vmem [shape: f32[1,128], index: 2, kind: input, shape index: {}]
  %s3 = inlined_call_operand.vmem [shape: f32[1,128], index: 3, kind: input, shape index: {}]
  %s4 = inlined_call_operand.vmem [shape: bf16[456,128], index: 4, kind: output, shape index: {}]
  %s5 = sld [smem:[#allocation0]]
  $region26: #{encoder_forward.4} parent=0
    _
  %s7 = ssub.s32 1, %s5
  %s8 = scalar_select 0, %s7, %s5
  // Predicated region
  $region2: #{encoder_forward.4} parent=0 // pred_check
    _
  $region3: #{encoder_forward.4} parent=0 // pred_check_branch
    %10 = sbr.rel (0) target = $region5
  $region4: #{encoder_forward.4} parent=0 // pred_region
    _
  $region5: #{encoder_forward.4} parent=0 // pred_fallthru
    _
  // Predicated region
  $region6: #{encoder_forward.4} parent=0 // pred_check
    _
  $region7: #{encoder_forward.4} parent=0 // pred_check_branch
    %12 = sbr.rel (0) target = $region9
  $region8: #{encoder_forward.4} parent=0 // pred_region
    _
  $region9: #{encoder_forward.4} parent=0 // pred_fallthru
    _
  // Predicated region
  $region10: #{encoder_forward.4} parent=0 // pred_check
    _
  $region11: #{encoder_forward.4} parent=0 // pred_check_branch
    %14 = sbr.rel (0) target = $region13
  $region12: #{encoder_forward.4} parent=0 // pred_region
    _
  $region13: #{encoder_forward.4} parent=0 // pred_fallthru
    _
  // Predicated region
  $region14: #{encoder_forward.4} parent=0 // pred_check
    _
  $region15: #{encoder_forward.4} parent=0 // pred_check_branch
    %16 = sbr.rel (0) target = $region17
  $region16: #{encoder_forward.4} parent=0 // pred_region
    _
  $region17: #{encoder_forward.4} parent=0 // pred_fallthru
    _
  %v18 = vld [vmem:[%s0] sm:$0xf]
  %v19 = vld [vmem:[%s0 + $0x4] sm:$0xf]
  %v20 = vld [vmem:[%s0 + $0x8] sm:$0xf]
  %v21 = vld [vmem:[%s0 + $0xc] sm:$0xf]
  %v22 = vld [vmem:[%s0 + $0x10] sm:$0xf]
  %v23 = vld [vmem:[%s0 + $0x14] sm:$0xf]
  %v24 = vld [vmem:[%s0 + $0x18] sm:$0xf]
  %v25 = vld [vmem:[%s0 + $0x1c] sm:$0xf]
  %v26 = vld [vmem:[%s0 + $0x20] sm:$0xf]
  %v27 = vld [vmem:[%s0 + $0x24] sm:$0xf]
  %v28 = vld [vmem:[%s0 + $0x28] sm:$0xf]
  %v29 = vld [vmem:[%s0 + $0x2c] sm:$0xf]
  %v30 = vld [vmem:[%s0 + $0x30] sm:$0xf]
  %v31 = vld [vmem:[%s0 + $0x34] sm:$0xf]
  %v32 = vld [vmem:[%s0 + $0x38] sm:$0xf]
  %v33 = vld [vmem:[%s0 + $0x3c] sm:$0xf]
  %v34 = vld [vmem:[%s0 + $0x40] sm:$0xf]
  %v35 = vld [vmem:[%s0 + $0x44] sm:$0xf]
  %v36 = vld [vmem:[%s0 + $0x48] sm:$0xf]
  %v37 = vld [vmem:[%s0 + $0x4c] sm:$0xf]
  %v38 = vld [vmem:[%s0 + $0x50] sm:$0xf]
  %v39 = vld [vmem:[%s0 + $0x54] sm:$0xf]
  %v40 = vld [vmem:[%s0 + $0x58] sm:$0xf]
  %v41 = vld [vmem:[%s0 + $0x5c] sm:$0xf]
  %v42 = vld [vmem:[%s0 + $0x60] sm:$0xf]
  %v43 = vld [vmem:[%s0 + $0x64] sm:$0xf]
  %v44 = vld [vmem:[%s0 + $0x68] sm:$0xf]
  %v45 = vld [vmem:[%s0 + $0x6c] sm:$0xf]
  %v46 = vld [vmem:[%s0 + $0x70] sm:$0xf]
  %v47 = vld [vmem:[%s0 + $0x74] sm:$0xf]
  %v48 = vld [vmem:[%s0 + $0x78] sm:$0xf]
  %v49 = vld [vmem:[%s0 + $0x7c] sm:$0xf]
  %v50 = vld [vmem:[%s0 + $0x80] sm:$0xf]
  %v51 = vld [vmem:[%s0 + $0x84] sm:$0xf]
  %v52 = vld [vmem:[%s0 + $0x88] sm:$0xf]
  %v53 = vld [vmem:[%s0 + $0x8c] sm:$0xf]
  %v54 = vld [vmem:[%s0 + $0x90] sm:$0xf]
  %v55 = vld [vmem:[%s0 + $0x94] sm:$0xf]
  %v56 = vld [vmem:[%s0 + $0x98] sm:$0xf]
  %v57 = vld [vmem:[%s0 + $0x9c] sm:$0xf]
  %v58 = vld [vmem:[%s0 + $0xa0] sm:$0xf]
  %v59 = vld [vmem:[%s0 + $0xa4] sm:$0xf]
  %v60 = vld [vmem:[%s0 + $0xa8] sm:$0xf]
  %v61 = vld [vmem:[%s0 + $0xac] sm:$0xf]
  %v62 = vld [vmem:[%s0 + $0xb0] sm:$0xf]
  %v63 = vld [vmem:[%s0 + $0xb4] sm:$0xf]
  %v64 = vld [vmem:[%s0 + $0xb8] sm:$0xf]
  %v65 = vld [vmem:[%s0 + $0xbc] sm:$0xf]
  %v66 = vld [vmem:[%s0 + $0xc0] sm:$0xf]
  %v67 = vld [vmem:[%s0 + $0xc4] sm:$0xf]
  %v68 = vld [vmem:[%s0 + $0xc8] sm:$0xf]
  %v69 = vld [vmem:[%s0 + $0xcc] sm:$0xf]
  %v70 = vld [vmem:[%s0 + $0xd0] sm:$0xf]
  %v71 = vld [vmem:[%s0 + $0xd4] sm:$0xf]
  %v72 = vld [vmem:[%s0 + $0xd8] sm:$0xf]
  %v73 = vld [vmem:[%s0 + $0xdc] sm:$0xf]
  %v74 = vld [vmem:[%s0 + $0xe0] sm:$0xf]
  %v75 = vld [vmem:[%s1] sm:$0xf]
  %v76 = vld [vmem:[%s1 + $0x4] sm:$0xf]
  %v77 = vld [vmem:[%s1 + $0x8] sm:$0xf]
  %v78 = vld [vmem:[%s1 + $0xc] sm:$0xf]
  %v79 = vld [vmem:[%s1 + $0x10] sm:$0xf]
  %v80 = vld [vmem:[%s1 + $0x14] sm:$0xf]
  %v81 = vld [vmem:[%s1 + $0x18] sm:$0xf]
  %v82 = vld [vmem:[%s1 + $0x1c] sm:$0xf]
  %v83 = vld [vmem:[%s1 + $0x20] sm:$0xf]
  %v84 = vld [vmem:[%s1 + $0x24] sm:$0xf]
  %v85 = vld [vmem:[%s1 + $0x28] sm:$0xf]
  %v86 = vld [vmem:[%s1 + $0x2c] sm:$0xf]
  %v87 = vld [vmem:[%s1 + $0x30] sm:$0xf]
  %v88 = vld [vmem:[%s1 + $0x34] sm:$0xf]
  %v89 = vld [vmem:[%s1 + $0x38] sm:$0xf]
  %v90 = vld [vmem:[%s1 + $0x3c] sm:$0xf]
  %v148 = vunpack.c.l.b16 %v18
  %v149 = vunpack.c.l.b16 %v19
  %v150 = vunpack.c.l.b16 %v20
  %v151 = vunpack.c.l.b16 %v21
  %v152 = vunpack.c.l.b16 %v22
  %v153 = vunpack.c.l.b16 %v23
  %v154 = vunpack.c.l.b16 %v24
  %v155 = vunpack.c.l.b16 %v25
  %v156 = vunpack.c.l.b16 %v26
  %v157 = vunpack.c.l.b16 %v27
  %v158 = vunpack.c.l.b16 %v28
  %v159 = vunpack.c.l.b16 %v29
  %v160 = vunpack.c.l.b16 %v30
  %v161 = vunpack.c.l.b16 %v31
  %v162 = vunpack.c.l.b16 %v32
  %v163 = vunpack.c.l.b16 %v33
  %v164 = vunpack.c.l.b16 %v34
  %v165 = vunpack.c.l.b16 %v35
  %v166 = vunpack.c.l.b16 %v36
  %v167 = vunpack.c.l.b16 %v37
  %v168 = vunpack.c.l.b16 %v38
  %v169 = vunpack.c.l.b16 %v39
  %v170 = vunpack.c.l.b16 %v40
  %v171 = vunpack.c.l.b16 %v41
  %v172 = vunpack.c.l.b16 %v42
  %v173 = vunpack.c.l.b16 %v43
  %v174 = vunpack.c.l.b16 %v44
  %v175 = vunpack.c.l.b16 %v45
  %v176 = vunpack.c.l.b16 %v46
  %v177 = vunpack.c.l.b16 %v47
  %v178 = vunpack.c.l.b16 %v48
  %v179 = vunpack.c.l.b16 %v49
  %v180 = vunpack.c.l.b16 %v50
  %v181 = vunpack.c.l.b16 %v51
  %v182 = vunpack.c.l.b16 %v52
  %v183 = vunpack.c.l.b16 %v53
  %v184 = vunpack.c.l.b16 %v54
  %v185 = vunpack.c.l.b16 %v55
  %v186 = vunpack.c.l.b16 %v56
  %v187 = vunpack.c.l.b16 %v57
  %v188 = vunpack.c.l.b16 %v58
  %v189 = vunpack.c.l.b16 %v59
  %v190 = vunpack.c.l.b16 %v60
  %v191 = vunpack.c.l.b16 %v61
  %v192 = vunpack.c.l.b16 %v62
  %v193 = vunpack.c.l.b16 %v63
  %v194 = vunpack.c.l.b16 %v64
  %v195 = vunpack.c.l.b16 %v65
  %v196 = vunpack.c.l.b16 %v66
  %v197 = vunpack.c.l.b16 %v67
  %v198 = vunpack.c.l.b16 %v68
  %v199 = vunpack.c.l.b16 %v69
  %v200 = vunpack.c.l.b16 %v70
  %v201 = vunpack.c.l.b16 %v71
  %v202 = vunpack.c.l.b16 %v72
  %v203 = vunpack.c.l.b16 %v73
  %v204 = vunpack.c.l.b16 %v74
  %v205 = vpack.c.b16 %v149, %v148
  %v206 = vpack.c.b16 %v151, %v150
  %v207 = vpack.c.b16 %v153, %v152
  %v208 = vpack.c.b16 %v155, %v154
  %v209 = vpack.c.b16 %v157, %v156
  %v210 = vpack.c.b16 %v159, %v158
  %v211 = vpack.c.b16 %v161, %v160
  %v212 = vpack.c.b16 %v163, %v162
  %v213 = vpack.c.b16 %v165, %v164
  %v214 = vpack.c.b16 %v167, %v166
  %v215 = vpack.c.b16 %v169, %v168
  %v216 = vpack.c.b16 %v171, %v170
  %v217 = vpack.c.b16 %v173, %v172
  %v218 = vpack.c.b16 %v175, %v174
  %v219 = vpack.c.b16 %v177, %v176
  %v220 = vpack.c.b16 %v179, %v178
  %v221 = vpack.c.b16 %v181, %v180
  %v222 = vpack.c.b16 %v183, %v182
  %v223 = vpack.c.b16 %v185, %v184
  %v224 = vpack.c.b16 %v187, %v186
  %v225 = vpack.c.b16 %v189, %v188
  %v226 = vpack.c.b16 %v191, %v190
  %v227 = vpack.c.b16 %v193, %v192
  %v228 = vpack.c.b16 %v195, %v194
  %v229 = vpack.c.b16 %v197, %v196
  %v230 = vpack.c.b16 %v199, %v198
  %v231 = vpack.c.b16 %v201, %v200
  %v232 = vpack.c.b16 %v203, %v202
  %v233 = vpack.c.b16 %v204, %v204
  %v279 = vunpack.c.l.b16 %v75
  %v280 = vunpack.c.l.b16 %v76
  %v281 = vunpack.c.l.b16 %v77
  %v282 = vunpack.c.l.b16 %v78
  %v283 = vunpack.c.l.b16 %v79
  %v284 = vunpack.c.l.b16 %v80
  %v285 = vunpack.c.l.b16 %v81
  %v286 = vunpack.c.l.b16 %v82
  %v287 = vunpack.c.l.b16 %v83
  %v288 = vunpack.c.l.b16 %v84
  %v289 = vunpack.c.l.b16 %v85
  %v290 = vunpack.c.l.b16 %v86
  %v291 = vunpack.c.l.b16 %v87
  %v292 = vunpack.c.l.b16 %v88
  %v293 = vunpack.c.l.b16 %v89
  %v294 = vunpack.c.l.b16 %v90
  %v295 = vpack.c.b16 %v280, %v279
  %v296 = vpack.c.b16 %v282, %v281
  %v297 = vpack.c.b16 %v284, %v283
  %v298 = vpack.c.b16 %v286, %v285
  %v299 = vpack.c.b16 %v288, %v287
  %v300 = vpack.c.b16 %v290, %v289
  %v301 = vpack.c.b16 %v292, %v291
  %v302 = vpack.c.b16 %v294, %v293
  %311 = vmatprep.subr.bf16.mxu0 0
  %312 = vmatpush1.bf16.msra.mxu0 %v295
  %313 = vmatprep.subr.bf16.mxu0 0
  %314 = vmatpush1.bf16.msra.mxu0 %v296
  %315 = vmatprep.subr.bf16.mxu0 0
  %316 = vmatpush1.bf16.msra.mxu0 %v297
  %317 = vmatprep.subr.bf16.mxu0 0
  %318 = vmatpush1.bf16.msra.mxu0 %v298
  %319 = vmatprep.subr.bf16.mxu0 0
  %320 = vmatpush1.bf16.msra.mxu0 %v299
  %321 = vmatprep.subr.bf16.mxu0 0
  %322 = vmatpush1.bf16.msra.mxu0 %v300
  %323 = vmatprep.subr.bf16.mxu0 0
  %324 = vmatpush1.bf16.msra.mxu0 %v301
  %325 = vmatprep.subr.bf16.mxu0 0
  %326 = vmatpush1.bf16.msra.mxu0 %v302
  %327 = vmatprep.subr.bf16.mxu0 0
  %328 = vmatpush1.bf16.msra.mxu0 0
  %329 = vmatprep.subr.bf16.mxu0 0
  %330 = vmatpush1.bf16.msra.mxu0 0
  %331 = vmatprep.subr.bf16.mxu0 0
  %332 = vmatpush1.bf16.msra.mxu0 0
  %333 = vmatprep.subr.bf16.mxu0 0
  %334 = vmatpush1.bf16.msra.mxu0 0
  %335 = vmatprep.subr.bf16.mxu0 0
  %336 = vmatpush1.bf16.msra.mxu0 0
  %337 = vmatprep.subr.bf16.mxu0 0
  %338 = vmatpush1.bf16.msra.mxu0 0
  %339 = vmatprep.subr.bf16.mxu0 0
  %340 = vmatpush1.bf16.msra.mxu0 0
  %341 = vmatprep.subr.bf16.mxu0 0
  %342 = vmatpush1.bf16.msra.mxu0 0
  %343 = vmatprep.mubr.bf16.mxu0 0
  %344 = vmatmul.mubr.bf16.gmra.mrb[0].mxu0 %v205
  %v345 = vpop.f32.mrb[0].mxu0
  %v346 = vadd.f32 0.0, %v345
  %v347 = vpop.f32.mrb[0].mxu0
  %v348 = vpop.f32.mrb[0].mxu0
  %v349 = vadd.f32 0.0, %v348
  %v350 = vpop.f32.mrb[0].mxu0
  %351 = vmatprep.mubr.bf16.mxu0 0
  %352 = vmatmul.mubr.bf16.gmra.mrb[0].mxu0 %v206
  %v353 = vpop.f32.mrb[0].mxu0
  %v354 = vadd.f32 0.0, %v353
  %v355 = vpop.f32.mrb[0].mxu0
  %v356 = vpop.f32.mrb[0].mxu0
  %v357 = vadd.f32 0.0, %v356
  %v358 = vpop.f32.mrb[0].mxu0
  %359 = vmatprep.mubr.bf16.mxu0 0
  %360 = vmatmul.mubr.bf16.gmra.mrb[0].mxu0 %v207
  %v361 = vpop.f32.mrb[0].mxu0
  %v362 = vadd.f32 0.0, %v361
  %v363 = vpop.f32.mrb[0].mxu0
  %v364 = vpop.f32.mrb[0].mxu0
  %v365 = vadd.f32 0.0, %v364
  %v366 = vpop.f32.mrb[0].mxu0
  %367 = vmatprep.mubr.bf16.mxu0 0
  %368 = vmatmul.mubr.bf16.gmra.mrb[0].mxu0 %v208
  %v369 = vpop.f32.mrb[0].mxu0
  %v370 = vadd.f32 0.0, %v369
  %v371 = vpop.f32.mrb[0].mxu0
  %v372 = vpop.f32.mrb[0].mxu0
  %v373 = vadd.f32 0.0, %v372
  %v374 = vpop.f32.mrb[0].mxu0
  %375 = vmatprep.mubr.bf16.mxu0 0
  %376 = vmatmul.mubr.bf16.gmra.mrb[0].mxu0 %v209
  %v377 = vpop.f32.mrb[0].mxu0
  %v378 = vadd.f32 0.0, %v377
  %v379 = vpop.f32.mrb[0].mxu0
  %v380 = vpop.f32.mrb[0].mxu0
  %v381 = vadd.f32 0.0, %v380
  %v382 = vpop.f32.mrb[0].mxu0
  %383 = vmatprep.mubr.bf16.mxu0 0
  %384 = vmatmul.mubr.bf16.gmra.mrb[0].mxu0 %v210
  %v385 = vpop.f32.mrb[0].mxu0
  %v386 = vadd.f32 0.0, %v385
  %v387 = vpop.f32.mrb[0].mxu0
  %v388 = vpop.f32.mrb[0].mxu0
  %v389 = vadd.f32 0.0, %v388
  %v390 = vpop.f32.mrb[0].mxu0
  %391 = vmatprep.mubr.bf16.mxu0 0
  %392 = vmatmul.mubr.bf16.gmra.mrb[0].mxu0 %v211
  %v393 = vpop.f32.mrb[0].mxu0
  %v394 = vadd.f32 0.0, %v393
  %v395 = vpop.f32.mrb[0].mxu0
  %v396 = vpop.f32.mrb[0].mxu0
  %v397 = vadd.f32 0.0, %v396
  %v398 = vpop.f32.mrb[0].mxu0
  %399 = vmatprep.mubr.bf16.mxu0 0
  %400 = vmatmul.mubr.bf16.gmra.mrb[0].mxu0 %v212
  %v401 = vpop.f32.mrb[0].mxu0
  %v402 = vadd.f32 0.0, %v401
  %v403 = vpop.f32.mrb[0].mxu0
  %v404 = vpop.f32.mrb[0].mxu0
  %v405 = vadd.f32 0.0, %v404
  %v406 = vpop.f32.mrb[0].mxu0
  %407 = vmatprep.mubr.bf16.mxu0 0
  %408 = vmatmul.mubr.bf16.gmra.mrb[0].mxu0 %v213
  %v409 = vpop.f32.mrb[0].mxu0
  %v410 = vadd.f32 0.0, %v409
  %v411 = vpop.f32.mrb[0].mxu0
  %v412 = vpop.f32.mrb[0].mxu0
  %v413 = vadd.f32 0.0, %v412
  %v414 = vpop.f32.mrb[0].mxu0
  %415 = vmatprep.mubr.bf16.mxu0 0
  %416 = vmatmul.mubr.bf16.gmra.mrb[0].mxu0 %v214
  %v417 = vpop.f32.mrb[0].mxu0
  %v418 = vadd.f32 0.0, %v417
  %v419 = vpop.f32.mrb[0].mxu0
  %v420 = vpop.f32.mrb[0].mxu0
  %v421 = vadd.f32 0.0, %v420
  %v422 = vpop.f32.mrb[0].mxu0
  %423 = vmatprep.mubr.bf16.mxu0 0
  %424 = vmatmul.mubr.bf16.gmra.mrb[0].mxu0 %v215
  %v425 = vpop.f32.mrb[0].mxu0
  %v426 = vadd.f32 0.0, %v425
  %v427 = vpop.f32.mrb[0].mxu0
  %v428 = vpop.f32.mrb[0].mxu0
  %v429 = vadd.f32 0.0, %v428
  %v430 = vpop.f32.mrb[0].mxu0
  %431 = vmatprep.mubr.bf16.mxu0 0
  %432 = vmatmul.mubr.bf16.gmra.mrb[0].mxu0 %v216
  %v433 = vpop.f32.mrb[0].mxu0
  %v434 = vadd.f32 0.0, %v433
  %v435 = vpop.f32.mrb[0].mxu0
  %v436 = vpop.f32.mrb[0].mxu0
  %v437 = vadd.f32 0.0, %v436
  %v438 = vpop.f32.mrb[0].mxu0
  %439 = vmatprep.mubr.bf16.mxu0 0
  %440 = vmatmul.mubr.bf16.gmra.mrb[0].mxu0 %v217
  %v441 = vpop.f32.mrb[0].mxu0
  %v442 = vadd.f32 0.0, %v441
  %v443 = vpop.f32.mrb[0].mxu0
  %v444 = vpop.f32.mrb[0].mxu0
  %v445 = vadd.f32 0.0, %v444
  %v446 = vpop.f32.mrb[0].mxu0
  %447 = vmatprep.mubr.bf16.mxu0 0
  %448 = vmatmul.mubr.bf16.gmra.mrb[0].mxu0 %v218
  %v449 = vpop.f32.mrb[0].mxu0
  %v450 = vadd.f32 0.0, %v449
  %v451 = vpop.f32.mrb[0].mxu0
  %v452 = vpop.f32.mrb[0].mxu0
  %v453 = vadd.f32 0.0, %v452
  %v454 = vpop.f32.mrb[0].mxu0
  %455 = vmatprep.mubr.bf16.mxu0 0
  %456 = vmatmul.mubr.bf16.gmra.mrb[0].mxu0 %v219
  %v457 = vpop.f32.mrb[0].mxu0
  %v458 = vadd.f32 0.0, %v457
  %v459 = vpop.f32.mrb[0].mxu0
  %v460 = vpop.f32.mrb[0].mxu0
  %v461 = vadd.f32 0.0, %v460
  %v462 = vpop.f32.mrb[0].mxu0
  %463 = vmatprep.mubr.bf16.mxu0 0
  %464 = vmatmul.mubr.bf16.gmra.mrb[0].mxu0 %v220
  %v465 = vpop.f32.mrb[0].mxu0
  %v466 = vadd.f32 0.0, %v465
  %v467 = vpop.f32.mrb[0].mxu0
  %v468 = vpop.f32.mrb[0].mxu0
  %v469 = vadd.f32 0.0, %v468
  %v470 = vpop.f32.mrb[0].mxu0
  %471 = vmatprep.mubr.bf16.mxu0 0
  %472 = vmatmul.mubr.bf16.gmra.mrb[0].mxu0 %v221
  %v473 = vpop.f32.mrb[0].mxu0
  %v474 = vadd.f32 0.0, %v473
  %v475 = vpop.f32.mrb[0].mxu0
  %v476 = vpop.f32.mrb[0].mxu0
  %v477 = vadd.f32 0.0, %v476
  %v478 = vpop.f32.mrb[0].mxu0
  %479 = vmatprep.mubr.bf16.mxu0 0
  %480 = vmatmul.mubr.bf16.gmra.mrb[0].mxu0 %v222
  %v481 = vpop.f32.mrb[0].mxu0
  %v482 = vadd.f32 0.0, %v481
  %v483 = vpop.f32.mrb[0].mxu0
  %v484 = vpop.f32.mrb[0].mxu0
  %v485 = vadd.f32 0.0, %v484
  %v486 = vpop.f32.mrb[0].mxu0
  %487 = vmatprep.mubr.bf16.mxu0 0
  %488 = vmatmul.mubr.bf16.gmra.mrb[0].mxu0 %v223
  %v489 = vpop.f32.mrb[0].mxu0
  %v490 = vadd.f32 0.0, %v489
  %v491 = vpop.f32.mrb[0].mxu0
  %v492 = vpop.f32.mrb[0].mxu0
  %v493 = vadd.f32 0.0, %v492
  %v494 = vpop.f32.mrb[0].mxu0
  %495 = vmatprep.mubr.bf16.mxu0 0
  %496 = vmatmul.mubr.bf16.gmra.mrb[0].mxu0 %v224
  %v497 = vpop.f32.mrb[0].mxu0
  %v498 = vadd.f32 0.0, %v497
  %v499 = vpop.f32.mrb[0].mxu0
  %v500 = vpop.f32.mrb[0].mxu0
  %v501 = vadd.f32 0.0, %v500
  %v502 = vpop.f32.mrb[0].mxu0
  %503 = vmatprep.mubr.bf16.mxu0 0
  %504 = vmatmul.mubr.bf16.gmra.mrb[0].mxu0 %v225
  %v505 = vpop.f32.mrb[0].mxu0
  %v506 = vadd.f32 0.0, %v505
  %v507 = vpop.f32.mrb[0].mxu0
  %v508 = vpop.f32.mrb[0].mxu0
  %v509 = vadd.f32 0.0, %v508
  %v510 = vpop.f32.mrb[0].mxu0
  %511 = vmatprep.mubr.bf16.mxu0 0
  %512 = vmatmul.mubr.bf16.gmra.mrb[0].mxu0 %v226
  %v513 = vpop.f32.mrb[0].mxu0
  %v514 = vadd.f32 0.0, %v513
  %v515 = vpop.f32.mrb[0].mxu0
  %v516 = vpop.f32.mrb[0].mxu0
  %v517 = vadd.f32 0.0, %v516
  %v518 = vpop.f32.mrb[0].mxu0
  %519 = vmatprep.mubr.bf16.mxu0 0
  %520 = vmatmul.mubr.bf16.gmra.mrb[0].mxu0 %v227
  %v521 = vpop.f32.mrb[0].mxu0
  %v522 = vadd.f32 0.0, %v521
  %v523 = vpop.f32.mrb[0].mxu0
  %v524 = vpop.f32.mrb[0].mxu0
  %v525 = vadd.f32 0.0, %v524
  %v526 = vpop.f32.mrb[0].mxu0
  %527 = vmatprep.mubr.bf16.mxu0 0
  %528 = vmatmul.mubr.bf16.gmra.mrb[0].mxu0 %v228
  %v529 = vpop.f32.mrb[0].mxu0
  %v530 = vadd.f32 0.0, %v529
  %v531 = vpop.f32.mrb[0].mxu0
  %v532 = vpop.f32.mrb[0].mxu0
  %v533 = vadd.f32 0.0, %v532
  %v534 = vpop.f32.mrb[0].mxu0
  %535 = vmatprep.mubr.bf16.mxu0 0
  %536 = vmatmul.mubr.bf16.gmra.mrb[0].mxu0 %v229
  %v537 = vpop.f32.mrb[0].mxu0
  %v538 = vadd.f32 0.0, %v537
  %v539 = vpop.f32.mrb[0].mxu0
  %v540 = vpop.f32.mrb[0].mxu0
  %v541 = vadd.f32 0.0, %v540
  %v542 = vpop.f32.mrb[0].mxu0
  %543 = vmatprep.mubr.bf16.mxu0 0
  %544 = vmatmul.mubr.bf16.gmra.mrb[0].mxu0 %v230
  %v545 = vpop.f32.mrb[0].mxu0
  %v546 = vadd.f32 0.0, %v545
  %v547 = vpop.f32.mrb[0].mxu0
  %v548 = vpop.f32.mrb[0].mxu0
  %v549 = vadd.f32 0.0, %v548
  %v550 = vpop.f32.mrb[0].mxu0
  %551 = vmatprep.mubr.bf16.mxu0 0
  %552 = vmatmul.mubr.bf16.gmra.mrb[0].mxu0 %v231
  %v553 = vpop.f32.mrb[0].mxu0
  %v554 = vadd.f32 0.0, %v553
  %v555 = vpop.f32.mrb[0].mxu0
  %v556 = vpop.f32.mrb[0].mxu0
  %v557 = vadd.f32 0.0, %v556
  %v558 = vpop.f32.mrb[0].mxu0
  %559 = vmatprep.mubr.bf16.mxu0 0
  %560 = vmatmul.mubr.bf16.gmra.mrb[0].mxu0 %v232
  %v561 = vpop.f32.mrb[0].mxu0
  %v562 = vadd.f32 0.0, %v561
  %v563 = vpop.f32.mrb[0].mxu0
  %v564 = vpop.f32.mrb[0].mxu0
  %v565 = vadd.f32 0.0, %v564
  %v566 = vpop.f32.mrb[0].mxu0
  %567 = vmatprep.mubr.bf16.mxu0 0
  %568 = vmatmul.mubr.bf16.gmra.mrb[0].mxu0 %v233
  %v569 = vpop.f32.mrb[0].mxu0
  %v570 = vadd.f32 0.0, %v569
  %v571 = vpop.f32.mrb[0].mxu0
  %v572 = vpop.f32.mrb[0].mxu0
  %v573 = vpop.f32.mrb[0].mxu0
  %574 = vdwg.mxu0
  %v575 = vadd.f32 %v346, %v349
  %v576 = vadd.f32 %v575, %v354
  %v577 = vadd.f32 %v576, %v357
  %v578 = vadd.f32 %v577, %v362
  %v579 = vadd.f32 %v578, %v365
  %v580 = vadd.f32 %v579, %v370
  %v581 = vadd.f32 %v580, %v373
  %v582 = vadd.f32 %v581, %v378
  %v583 = vadd.f32 %v582, %v381
  %v584 = vadd.f32 %v583, %v386
  %v585 = vadd.f32 %v584, %v389
  %v586 = vadd.f32 %v585, %v394
  %v587 = vadd.f32 %v586, %v397
  %v588 = vadd.f32 %v587, %v402
  %v589 = vadd.f32 %v588, %v405
  %v590 = vadd.f32 %v589, %v410
  %v591 = vadd.f32 %v590, %v413
  %v592 = vadd.f32 %v591, %v418
  %v593 = vadd.f32 %v592, %v421
  %v594 = vadd.f32 %v593, %v426
  %v595 = vadd.f32 %v594, %v429
  %v596 = vadd.f32 %v595, %v434
  %v597 = vadd.f32 %v596, %v437
  %v598 = vadd.f32 %v597, %v442
  %v599 = vadd.f32 %v598, %v445
  %v600 = vadd.f32 %v599, %v450
  %v601 = vadd.f32 %v600, %v453
  %v602 = vadd.f32 %v601, %v458
  %v603 = vadd.f32 %v602, %v461
  %v604 = vadd.f32 %v603, %v466
  %v605 = vadd.f32 %v604, %v469
  %v606 = vadd.f32 %v605, %v474
  %v607 = vadd.f32 %v606, %v477
  %v608 = vadd.f32 %v607, %v482
  %v609 = vadd.f32 %v608, %v485
  %v610 = vadd.f32 %v609, %v490
  %v611 = vadd.f32 %v610, %v493
  %v612 = vadd.f32 %v611, %v498
  %v613 = vadd.f32 %v612, %v501
  %v614 = vadd.f32 %v613, %v506
  %v615 = vadd.f32 %v614, %v509
  %v616 = vadd.f32 %v615, %v514
  %v617 = vadd.f32 %v616, %v517
  %v618 = vadd.f32 %v617, %v522
  %v619 = vadd.f32 %v618, %v525
  %v620 = vadd.f32 %v619, %v530
  %v621 = vadd.f32 %v620, %v533
  %v622 = vadd.f32 %v621, %v538
  %v623 = vadd.f32 %v622, %v541
  %v624 = vadd.f32 %v623, %v546
  %v625 = vadd.f32 %v624, %v549
  %v626 = vadd.f32 %v625, %v554
  %v627 = vadd.f32 %v626, %v557
  %v628 = vadd.f32 %v627, %v562
  %v629 = vadd.f32 %v628, %v565
  %v630 = vadd.f32 %v629, %v570
  %v631 = vrot.slane %v630, 4
  %v632 = vadd.f32 %v630, %v631
  %v633 = vrot.slane %v632, 2
  %v634 = vadd.f32 %v632, %v633
  %v635 = vrot.slane %v634, 1
  %v636 = vadd.f32 %v634, %v635
  %v637 = vmul.f32 %v346, %v346
  %v638 = vmul.f32 %v349, %v349
  %v639 = vmul.f32 %v354, %v354
  %v640 = vmul.f32 %v357, %v357
  %v641 = vmul.f32 %v362, %v362
  %v642 = vmul.f32 %v365, %v365
  %v643 = vmul.f32 %v370, %v370
  %v644 = vmul.f32 %v373, %v373
  %v645 = vmul.f32 %v378, %v378
  %v646 = vmul.f32 %v381, %v381
  %v647 = vmul.f32 %v386, %v386
  %v648 = vmul.f32 %v389, %v389
  %v649 = vmul.f32 %v394, %v394
  %v650 = vmul.f32 %v397, %v397
  %v651 = vmul.f32 %v402, %v402
  %v652 = vmul.f32 %v405, %v405
  %v653 = vmul.f32 %v410, %v410
  %v654 = vmul.f32 %v413, %v413
  %v655 = vmul.f32 %v418, %v418
  %v656 = vmul.f32 %v421, %v421
  %v657 = vmul.f32 %v426, %v426
  %v658 = vmul.f32 %v429, %v429
  %v659 = vmul.f32 %v434, %v434
  %v660 = vmul.f32 %v437, %v437
  %v661 = vmul.f32 %v442, %v442
  %v662 = vmul.f32 %v445, %v445
  %v663 = vmul.f32 %v450, %v450
  %v664 = vmul.f32 %v453, %v453
  %v665 = vmul.f32 %v458, %v458
  %v666 = vmul.f32 %v461, %v461
  %v667 = vmul.f32 %v466, %v466
  %v668 = vmul.f32 %v469, %v469
  %v669 = vmul.f32 %v474, %v474
  %v670 = vmul.f32 %v477, %v477
  %v671 = vmul.f32 %v482, %v482
  %v672 = vmul.f32 %v485, %v485
  %v673 = vmul.f32 %v490, %v490
  %v674 = vmul.f32 %v493, %v493
  %v675 = vmul.f32 %v498, %v498
  %v676 = vmul.f32 %v501, %v501
  %v677 = vmul.f32 %v506, %v506
  %v678 = vmul.f32 %v509, %v509
  %v679 = vmul.f32 %v514, %v514
  %v680 = vmul.f32 %v517, %v517
  %v681 = vmul.f32 %v522, %v522
  %v682 = vmul.f32 %v525, %v525
  %v683 = vmul.f32 %v530, %v530
  %v684 = vmul.f32 %v533, %v533
  %v685 = vmul.f32 %v538, %v538
  %v686 = vmul.f32 %v541, %v541
  %v687 = vmul.f32 %v546, %v546
  %v688 = vmul.f32 %v549, %v549
  %v689 = vmul.f32 %v554, %v554
  %v690 = vmul.f32 %v557, %v557
  %v691 = vmul.f32 %v562, %v562
  %v692 = vmul.f32 %v565, %v565
  %v693 = vmul.f32 %v570, %v570
  %v694 = vadd.f32 %v637, %v638
  %v695 = vadd.f32 %v694, %v639
  %v696 = vadd.f32 %v695, %v640
  %v697 = vadd.f32 %v696, %v641
  %v698 = vadd.f32 %v697, %v642
  %v699 = vadd.f32 %v698, %v643
  %v700 = vadd.f32 %v699, %v644
  %v701 = vadd.f32 %v700, %v645
  %v702 = vadd.f32 %v701, %v646
  %v703 = vadd.f32 %v702, %v647
  %v704 = vadd.f32 %v703, %v648
  %v705 = vadd.f32 %v704, %v649
  %v706 = vadd.f32 %v705, %v650
  %v707 = vadd.f32 %v706, %v651
  %v708 = vadd.f32 %v707, %v652
  %v709 = vadd.f32 %v708, %v653
  %v710 = vadd.f32 %v709, %v654
  %v711 = vadd.f32 %v710, %v655
  %v712 = vadd.f32 %v711, %v656
  %v713 = vadd.f32 %v712, %v657
  %v714 = vadd.f32 %v713, %v658
  %v715 = vadd.f32 %v714, %v659
  %v716 = vadd.f32 %v715, %v660
  %v717 = vadd.f32 %v716, %v661
  %v718 = vadd.f32 %v717, %v662
  %v719 = vadd.f32 %v718, %v663
  %v720 = vadd.f32 %v719, %v664
  %v721 = vadd.f32 %v720, %v665
  %v722 = vadd.f32 %v721, %v666
  %v723 = vadd.f32 %v722, %v667
  %v724 = vadd.f32 %v723, %v668
  %v725 = vadd.f32 %v724, %v669
  %v726 = vadd.f32 %v725, %v670
  %v727 = vadd.f32 %v726, %v671
  %v728 = vadd.f32 %v727, %v672
  %v729 = vadd.f32 %v728, %v673
  %v730 = vadd.f32 %v729, %v674
  %v731 = vadd.f32 %v730, %v675
  %v732 = vadd.f32 %v731, %v676
  %v733 = vadd.f32 %v732, %v677
  %v734 = vadd.f32 %v733, %v678
  %v735 = vadd.f32 %v734, %v679
  %v736 = vadd.f32 %v735, %v680
  %v737 = vadd.f32 %v736, %v681
  %v738 = vadd.f32 %v737, %v682
  %v739 = vadd.f32 %v738, %v683
  %v740 = vadd.f32 %v739, %v684
  %v741 = vadd.f32 %v740, %v685
  %v742 = vadd.f32 %v741, %v686
  %v743 = vadd.f32 %v742, %v687
  %v744 = vadd.f32 %v743, %v688
  %v745 = vadd.f32 %v744, %v689
  %v746 = vadd.f32 %v745, %v690
  %v747 = vadd.f32 %v746, %v691
  %v748 = vadd.f32 %v747, %v692
  %v749 = vadd.f32 %v748, %v693
  %v750 = vrot.slane %v749, 4
  %v751 = vadd.f32 %v749, %v750
  %v752 = vrot.slane %v751, 2
  %v753 = vadd.f32 %v751, %v752
  %v754 = vrot.slane %v753, 1
  %v755 = vadd.f32 %v753, %v754
  %v756 = vmul.f32 %v636, 0.0022222223
  %v757 = vmul.f32 %v755, 0.0022222223
  %v758 = vmul.f32 %v756, %v756
  %v759 = vsub.f32 %v757, %v758
  %v760 = vld [vmem:[%s2] sm:$0x1]
  %v761 = vadd.f32 %v759, 1e-05
  %v762 = vrsqrt.pop %v761
  %v763 = vmul.f32 %v760, %v762
  %v764 = vld [vmem:[%s3] sm:$0x1]
  %v765 = vmul.f32 %v756, %v763
  %v766 = vsub.f32 %v764, %v765
  %v768 = vlaneseq
  %v769 = vshrl.u32 %v768, 7
  %v770 = vsub.s32 0, %v769
  %v771 = vrot.slane %v763, %v770
  %v773 = vmul.f32 %v346, %v771
  %v774 = vmul.f32 %v349, %v771
  %v775 = vmul.f32 %v354, %v771
  %v776 = vmul.f32 %v357, %v771
  %v777 = vmul.f32 %v362, %v771
  %v778 = vmul.f32 %v365, %v771
  %v779 = vmul.f32 %v370, %v771
  %v780 = vmul.f32 %v373, %v771
  %v781 = vmul.f32 %v378, %v771
  %v782 = vmul.f32 %v381, %v771
  %v783 = vmul.f32 %v386, %v771
  %v784 = vmul.f32 %v389, %v771
  %v785 = vmul.f32 %v394, %v771
  %v786 = vmul.f32 %v397, %v771
  %v787 = vmul.f32 %v402, %v771
  %v788 = vmul.f32 %v405, %v771
  %v789 = vmul.f32 %v410, %v771
  %v790 = vmul.f32 %v413, %v771
  %v791 = vmul.f32 %v418, %v771
  %v792 = vmul.f32 %v421, %v771
  %v793 = vmul.f32 %v426, %v771
  %v794 = vmul.f32 %v429, %v771
  %v795 = vmul.f32 %v434, %v771
  %v796 = vmul.f32 %v437, %v771
  %v797 = vmul.f32 %v442, %v771
  %v798 = vmul.f32 %v445, %v771
  %v799 = vmul.f32 %v450, %v771
  %v800 = vmul.f32 %v453, %v771
  %v801 = vmul.f32 %v458, %v771
  %v802 = vmul.f32 %v461, %v771
  %v803 = vmul.f32 %v466, %v771
  %v804 = vmul.f32 %v469, %v771
  %v805 = vmul.f32 %v474, %v771
  %v806 = vmul.f32 %v477, %v771
  %v807 = vmul.f32 %v482, %v771
  %v808 = vmul.f32 %v485, %v771
  %v809 = vmul.f32 %v490, %v771
  %v810 = vmul.f32 %v493, %v771
  %v811 = vmul.f32 %v498, %v771
  %v812 = vmul.f32 %v501, %v771
  %v813 = vmul.f32 %v506, %v771
  %v814 = vmul.f32 %v509, %v771
  %v815 = vmul.f32 %v514, %v771
  %v816 = vmul.f32 %v517, %v771
  %v817 = vmul.f32 %v522, %v771
  %v818 = vmul.f32 %v525, %v771
  %v819 = vmul.f32 %v530, %v771
  %v820 = vmul.f32 %v533, %v771
  %v821 = vmul.f32 %v538, %v771
  %v822 = vmul.f32 %v541, %v771
  %v823 = vmul.f32 %v546, %v771
  %v824 = vmul.f32 %v549, %v771
  %v825 = vmul.f32 %v554, %v771
  %v826 = vmul.f32 %v557, %v771
  %v827 = vmul.f32 %v562, %v771
  %v828 = vmul.f32 %v565, %v771
  %v829 = vmul.f32 %v570, %v771
  %v831 = vlaneseq
  %v832 = vshrl.u32 %v831, 7
  %v833 = vsub.s32 0, %v832
  %v834 = vrot.slane %v766, %v833
  %v836 = vadd.f32 %v773, %v834
  %v837 = vadd.f32 %v774, %v834
  %v838 = vadd.f32 %v775, %v834
  %v839 = vadd.f32 %v776, %v834
  %v840 = vadd.f32 %v777, %v834
  %v841 = vadd.f32 %v778, %v834
  %v842 = vadd.f32 %v779, %v834
  %v843 = vadd.f32 %v780, %v834
  %v844 = vadd.f32 %v781, %v834
  %v845 = vadd.f32 %v782, %v834
  %v846 = vadd.f32 %v783, %v834
  %v847 = vadd.f32 %v784, %v834
  %v848 = vadd.f32 %v785, %v834
  %v849 = vadd.f32 %v786, %v834
  %v850 = vadd.f32 %v787, %v834
  %v851 = vadd.f32 %v788, %v834
  %v852 = vadd.f32 %v789, %v834
  %v853 = vadd.f32 %v790, %v834
  %v854 = vadd.f32 %v791, %v834
  %v855 = vadd.f32 %v792, %v834
  %v856 = vadd.f32 %v793, %v834
  %v857 = vadd.f32 %v794, %v834
  %v858 = vadd.f32 %v795, %v834
  %v859 = vadd.f32 %v796, %v834
  %v860 = vadd.f32 %v797, %v834
  %v861 = vadd.f32 %v798, %v834
  %v862 = vadd.f32 %v799, %v834
  %v863 = vadd.f32 %v800, %v834
  %v864 = vadd.f32 %v801, %v834
  %v865 = vadd.f32 %v802, %v834
  %v866 = vadd.f32 %v803, %v834
  %v867 = vadd.f32 %v804, %v834
  %v868 = vadd.f32 %v805, %v834
  %v869 = vadd.f32 %v806, %v834
  %v870 = vadd.f32 %v807, %v834
  %v871 = vadd.f32 %v808, %v834
  %v872 = vadd.f32 %v809, %v834
  %v873 = vadd.f32 %v810, %v834
  %v874 = vadd.f32 %v811, %v834
  %v875 = vadd.f32 %v812, %v834
  %v876 = vadd.f32 %v813, %v834
  %v877 = vadd.f32 %v814, %v834
  %v878 = vadd.f32 %v815, %v834
  %v879 = vadd.f32 %v816, %v834
  %v880 = vadd.f32 %v817, %v834
  %v881 = vadd.f32 %v818, %v834
  %v882 = vadd.f32 %v819, %v834
  %v883 = vadd.f32 %v820, %v834
  %v884 = vadd.f32 %v821, %v834
  %v885 = vadd.f32 %v822, %v834
  %v886 = vadd.f32 %v823, %v834
  %v887 = vadd.f32 %v824, %v834
  %v888 = vadd.f32 %v825, %v834
  %v889 = vadd.f32 %v826, %v834
  %v890 = vadd.f32 %v827, %v834
  %v891 = vadd.f32 %v828, %v834
  %v892 = vadd.f32 %v829, %v834
  %vm893 = vcmp.gt.f32.partialorder %v836, 0.0
  %vm894 = vcmp.gt.f32.partialorder %v837, 0.0
  %vm895 = vcmp.gt.f32.partialorder %v838, 0.0
  %vm896 = vcmp.gt.f32.partialorder %v839, 0.0
  %vm897 = vcmp.gt.f32.partialorder %v840, 0.0
  %vm898 = vcmp.gt.f32.partialorder %v841, 0.0
  %vm899 = vcmp.gt.f32.partialorder %v842, 0.0
  %vm900 = vcmp.gt.f32.partialorder %v843, 0.0
  %vm901 = vcmp.gt.f32.partialorder %v844, 0.0
  %vm902 = vcmp.gt.f32.partialorder %v845, 0.0
  %vm903 = vcmp.gt.f32.partialorder %v846, 0.0
  %vm904 = vcmp.gt.f32.partialorder %v847, 0.0
  %vm905 = vcmp.gt.f32.partialorder %v848, 0.0
  %vm906 = vcmp.gt.f32.partialorder %v849, 0.0
  %vm907 = vcmp.gt.f32.partialorder %v850, 0.0
  %vm908 = vcmp.gt.f32.partialorder %v851, 0.0
  %vm909 = vcmp.gt.f32.partialorder %v852, 0.0
  %vm910 = vcmp.gt.f32.partialorder %v853, 0.0
  %vm911 = vcmp.gt.f32.partialorder %v854, 0.0
  %vm912 = vcmp.gt.f32.partialorder %v855, 0.0
  %vm913 = vcmp.gt.f32.partialorder %v856, 0.0
  %vm914 = vcmp.gt.f32.partialorder %v857, 0.0
  %vm915 = vcmp.gt.f32.partialorder %v858, 0.0
  %vm916 = vcmp.gt.f32.partialorder %v859, 0.0
  %vm917 = vcmp.gt.f32.partialorder %v860, 0.0
  %vm918 = vcmp.gt.f32.partialorder %v861, 0.0
  %vm919 = vcmp.gt.f32.partialorder %v862, 0.0
  %vm920 = vcmp.gt.f32.partialorder %v863, 0.0
  %vm921 = vcmp.gt.f32.partialorder %v864, 0.0
  %vm922 = vcmp.gt.f32.partialorder %v865, 0.0
  %vm923 = vcmp.gt.f32.partialorder %v866, 0.0
  %vm924 = vcmp.gt.f32.partialorder %v867, 0.0
  %vm925 = vcmp.gt.f32.partialorder %v868, 0.0
  %vm926 = vcmp.gt.f32.partialorder %v869, 0.0
  %vm927 = vcmp.gt.f32.partialorder %v870, 0.0
  %vm928 = vcmp.gt.f32.partialorder %v871, 0.0
  %vm929 = vcmp.gt.f32.partialorder %v872, 0.0
  %vm930 = vcmp.gt.f32.partialorder %v873, 0.0
  %vm931 = vcmp.gt.f32.partialorder %v874, 0.0
  %vm932 = vcmp.gt.f32.partialorder %v875, 0.0
  %vm933 = vcmp.gt.f32.partialorder %v876, 0.0
  %vm934 = vcmp.gt.f32.partialorder %v877, 0.0
  %vm935 = vcmp.gt.f32.partialorder %v878, 0.0
  %vm936 = vcmp.gt.f32.partialorder %v879, 0.0
  %vm937 = vcmp.gt.f32.partialorder %v880, 0.0
  %vm938 = vcmp.gt.f32.partialorder %v881, 0.0
  %vm939 = vcmp.gt.f32.partialorder %v882, 0.0
  %vm940 = vcmp.gt.f32.partialorder %v883, 0.0
  %vm941 = vcmp.gt.f32.partialorder %v884, 0.0
  %vm942 = vcmp.gt.f32.partialorder %v885, 0.0
  %vm943 = vcmp.gt.f32.partialorder %v886, 0.0
  %vm944 = vcmp.gt.f32.partialorder %v887, 0.0
  %vm945 = vcmp.gt.f32.partialorder %v888, 0.0
  %vm946 = vcmp.gt.f32.partialorder %v889, 0.0
  %vm947 = vcmp.gt.f32.partialorder %v890, 0.0
  %vm948 = vcmp.gt.f32.partialorder %v891, 0.0
  %vm949 = vcmp.gt.f32.partialorder %v892, 0.0
  %v950 = vmul.f32 %v836, 0.2
  %v951 = vmul.f32 %v837, 0.2
  %v952 = vmul.f32 %v838, 0.2
  %v953 = vmul.f32 %v839, 0.2
  %v954 = vmul.f32 %v840, 0.2
  %v955 = vmul.f32 %v841, 0.2
  %v956 = vmul.f32 %v842, 0.2
  %v957 = vmul.f32 %v843, 0.2
  %v958 = vmul.f32 %v844, 0.2
  %v959 = vmul.f32 %v845, 0.2
  %v960 = vmul.f32 %v846, 0.2
  %v961 = vmul.f32 %v847, 0.2
  %v962 = vmul.f32 %v848, 0.2
  %v963 = vmul.f32 %v849, 0.2
  %v964 = vmul.f32 %v850, 0.2
  %v965 = vmul.f32 %v851, 0.2
  %v966 = vmul.f32 %v852, 0.2
  %v967 = vmul.f32 %v853, 0.2
  %v968 = vmul.f32 %v854, 0.2
  %v969 = vmul.f32 %v855, 0.2
  %v970 = vmul.f32 %v856, 0.2
  %v971 = vmul.f32 %v857, 0.2
  %v972 = vmul.f32 %v858, 0.2
  %v973 = vmul.f32 %v859, 0.2
  %v974 = vmul.f32 %v860, 0.2
  %v975 = vmul.f32 %v861, 0.2
  %v976 = vmul.f32 %v862, 0.2
  %v977 = vmul.f32 %v863, 0.2
  %v978 = vmul.f32 %v864, 0.2
  %v979 = vmul.f32 %v865, 0.2
  %v980 = vmul.f32 %v866, 0.2
  %v981 = vmul.f32 %v867, 0.2
  %v982 = vmul.f32 %v868, 0.2
  %v983 = vmul.f32 %v869, 0.2
  %v984 = vmul.f32 %v870, 0.2
  %v985 = vmul.f32 %v871, 0.2
  %v986 = vmul.f32 %v872, 0.2
  %v987 = vmul.f32 %v873, 0.2
  %v988 = vmul.f32 %v874, 0.2
  %v989 = vmul.f32 %v875, 0.2
  %v990 = vmul.f32 %v876, 0.2
  %v991 = vmul.f32 %v877, 0.2
  %v992 = vmul.f32 %v878, 0.2
  %v993 = vmul.f32 %v879, 0.2
  %v994 = vmul.f32 %v880, 0.2
  %v995 = vmul.f32 %v881, 0.2
  %v996 = vmul.f32 %v882, 0.2
  %v997 = vmul.f32 %v883, 0.2
  %v998 = vmul.f32 %v884, 0.2
  %v999 = vmul.f32 %v885, 0.2
  %v1000 = vmul.f32 %v886, 0.2
  %v1001 = vmul.f32 %v887, 0.2
  %v1002 = vmul.f32 %v888, 0.2
  %v1003 = vmul.f32 %v889, 0.2
  %v1004 = vmul.f32 %v890, 0.2
  %v1005 = vmul.f32 %v891, 0.2
  %v1006 = vmul.f32 %v892, 0.2
  %v1007 = vsel %vm893, %v836, %v950
  %v1008 = vsel %vm894, %v837, %v951
  %v1009 = vsel %vm895, %v838, %v952
  %v1010 = vsel %vm896, %v839, %v953
  %v1011 = vsel %vm897, %v840, %v954
  %v1012 = vsel %vm898, %v841, %v955
  %v1013 = vsel %vm899, %v842, %v956
  %v1014 = vsel %vm900, %v843, %v957
  %v1015 = vsel %vm901, %v844, %v958
  %v1016 = vsel %vm902, %v845, %v959
  %v1017 = vsel %vm903, %v846, %v960
  %v1018 = vsel %vm904, %v847, %v961
  %v1019 = vsel %vm905, %v848, %v962
  %v1020 = vsel %vm906, %v849, %v963
  %v1021 = vsel %vm907, %v850, %v964
  %v1022 = vsel %vm908, %v851, %v965
  %v1023 = vsel %vm909, %v852, %v966
  %v1024 = vsel %vm910, %v853, %v967
  %v1025 = vsel %vm911, %v854, %v968
  %v1026 = vsel %vm912, %v855, %v969
  %v1027 = vsel %vm913, %v856, %v970
  %v1028 = vsel %vm914, %v857, %v971
  %v1029 = vsel %vm915, %v858, %v972
  %v1030 = vsel %vm916, %v859, %v973
  %v1031 = vsel %vm917, %v860, %v974
  %v1032 = vsel %vm918, %v861, %v975
  %v1033 = vsel %vm919, %v862, %v976
  %v1034 = vsel %vm920, %v863, %v977
  %v1035 = vsel %vm921, %v864, %v978
  %v1036 = vsel %vm922, %v865, %v979
  %v1037 = vsel %vm923, %v866, %v980
  %v1038 = vsel %vm924, %v867, %v981
  %v1039 = vsel %vm925, %v868, %v982
  %v1040 = vsel %vm926, %v869, %v983
  %v1041 = vsel %vm927, %v870, %v984
  %v1042 = vsel %vm928, %v871, %v985
  %v1043 = vsel %vm929, %v872, %v986
  %v1044 = vsel %vm930, %v873, %v987
  %v1045 = vsel %vm931, %v874, %v988
  %v1046 = vsel %vm932, %v875, %v989
  %v1047 = vsel %vm933, %v876, %v990
  %v1048 = vsel %vm934, %v877, %v991
  %v1049 = vsel %vm935, %v878, %v992
  %v1050 = vsel %vm936, %v879, %v993
  %v1051 = vsel %vm937, %v880, %v994
  %v1052 = vsel %vm938, %v881, %v995
  %v1053 = vsel %vm939, %v882, %v996
  %v1054 = vsel %vm940, %v883, %v997
  %v1055 = vsel %vm941, %v884, %v998
  %v1056 = vsel %vm942, %v885, %v999
  %v1057 = vsel %vm943, %v886, %v1000
  %v1058 = vsel %vm944, %v887, %v1001
  %v1059 = vsel %vm945, %v888, %v1002
  %v1060 = vsel %vm946, %v889, %v1003
  %v1061 = vsel %vm947, %v890, %v1004
  %v1062 = vsel %vm948, %v891, %v1005
  %v1063 = vsel %vm949, %v892, %v1006
  %v1064 = vpack.c.bf16 %v1008, %v1007
  %v1065 = vpack.c.bf16 %v1010, %v1009
  %v1066 = vpack.c.bf16 %v1012, %v1011
  %v1067 = vpack.c.bf16 %v1014, %v1013
  %v1068 = vpack.c.bf16 %v1016, %v1015
  %v1069 = vpack.c.bf16 %v1018, %v1017
  %v1070 = vpack.c.bf16 %v1020, %v1019
  %v1071 = vpack.c.bf16 %v1022, %v1021
  %v1072 = vpack.c.bf16 %v1024, %v1023
  %v1073 = vpack.c.bf16 %v1026, %v1025
  %v1074 = vpack.c.bf16 %v1028, %v1027
  %v1075 = vpack.c.bf16 %v1030, %v1029
  %v1076 = vpack.c.bf16 %v1032, %v1031
  %v1077 = vpack.c.bf16 %v1034, %v1033
  %v1078 = vpack.c.bf16 %v1036, %v1035
  %v1079 = vpack.c.bf16 %v1038, %v1037
  %v1080 = vpack.c.bf16 %v1040, %v1039
  %v1081 = vpack.c.bf16 %v1042, %v1041
  %v1082 = vpack.c.bf16 %v1044, %v1043
  %v1083 = vpack.c.bf16 %v1046, %v1045
  %v1084 = vpack.c.bf16 %v1048, %v1047
  %v1085 = vpack.c.bf16 %v1050, %v1049
  %v1086 = vpack.c.bf16 %v1052, %v1051
  %v1087 = vpack.c.bf16 %v1054, %v1053
  %v1088 = vpack.c.bf16 %v1056, %v1055
  %v1089 = vpack.c.bf16 %v1058, %v1057
  %v1090 = vpack.c.bf16 %v1060, %v1059
  %v1091 = vpack.c.bf16 %v1062, %v1061
  %v1092 = vpack.c.bf16 %v1063, %v1063
  %v1122 = vunpack.c.l.b16 %v1064
  %v1123 = vunpack.c.h.b16 %v1064
  %v1124 = vunpack.c.l.b16 %v1065
  %v1125 = vunpack.c.h.b16 %v1065
  %v1126 = vunpack.c.l.b16 %v1066
  %v1127 = vunpack.c.h.b16 %v1066
  %v1128 = vunpack.c.l.b16 %v1067
  %v1129 = vunpack.c.h.b16 %v1067
  %v1130 = vunpack.c.l.b16 %v1068
  %v1131 = vunpack.c.h.b16 %v1068
  %v1132 = vunpack.c.l.b16 %v1069
  %v1133 = vunpack.c.h.b16 %v1069
  %v1134 = vunpack.c.l.b16 %v1070
  %v1135 = vunpack.c.h.b16 %v1070
  %v1136 = vunpack.c.l.b16 %v1071
  %v1137 = vunpack.c.h.b16 %v1071
  %v1138 = vunpack.c.l.b16 %v1072
  %v1139 = vunpack.c.h.b16 %v1072
  %v1140 = vunpack.c.l.b16 %v1073
  %v1141 = vunpack.c.h.b16 %v1073
  %v1142 = vunpack.c.l.b16 %v1074
  %v1143 = vunpack.c.h.b16 %v1074
  %v1144 = vunpack.c.l.b16 %v1075
  %v1145 = vunpack.c.h.b16 %v1075
  %v1146 = vunpack.c.l.b16 %v1076
  %v1147 = vunpack.c.h.b16 %v1076
  %v1148 = vunpack.c.l.b16 %v1077
  %v1149 = vunpack.c.h.b16 %v1077
  %v1150 = vunpack.c.l.b16 %v1078
  %v1151 = vunpack.c.h.b16 %v1078
  %v1152 = vunpack.c.l.b16 %v1079
  %v1153 = vunpack.c.h.b16 %v1079
  %v1154 = vunpack.c.l.b16 %v1080
  %v1155 = vunpack.c.h.b16 %v1080
  %v1156 = vunpack.c.l.b16 %v1081
  %v1157 = vunpack.c.h.b16 %v1081
  %v1158 = vunpack.c.l.b16 %v1082
  %v1159 = vunpack.c.h.b16 %v1082
  %v1160 = vunpack.c.l.b16 %v1083
  %v1161 = vunpack.c.h.b16 %v1083
  %v1162 = vunpack.c.l.b16 %v1084
  %v1163 = vunpack.c.h.b16 %v1084
  %v1164 = vunpack.c.l.b16 %v1085
  %v1165 = vunpack.c.h.b16 %v1085
  %v1166 = vunpack.c.l.b16 %v1086
  %v1167 = vunpack.c.h.b16 %v1086
  %v1168 = vunpack.c.l.b16 %v1087
  %v1169 = vunpack.c.h.b16 %v1087
  %v1170 = vunpack.c.l.b16 %v1088
  %v1171 = vunpack.c.h.b16 %v1088
  %v1172 = vunpack.c.l.b16 %v1089
  %v1173 = vunpack.c.h.b16 %v1089
  %v1174 = vunpack.c.l.b16 %v1090
  %v1175 = vunpack.c.h.b16 %v1090
  %v1176 = vunpack.c.l.b16 %v1091
  %v1177 = vunpack.c.h.b16 %v1091
  %v1178 = vunpack.c.l.b16 %v1092
  %v1179 = vpack.c.b16 %v1122, %v1122
  %v1180 = vpack.c.b16 %v1123, %v1123
  %v1181 = vpack.c.b16 %v1124, %v1124
  %v1182 = vpack.c.b16 %v1125, %v1125
  %v1183 = vpack.c.b16 %v1126, %v1126
  %v1184 = vpack.c.b16 %v1127, %v1127
  %v1185 = vpack.c.b16 %v1128, %v1128
  %v1186 = vpack.c.b16 %v1129, %v1129
  %v1187 = vpack.c.b16 %v1130, %v1130
  %v1188 = vpack.c.b16 %v1131, %v1131
  %v1189 = vpack.c.b16 %v1132, %v1132
  %v1190 = vpack.c.b16 %v1133, %v1133
  %v1191 = vpack.c.b16 %v1134, %v1134
  %v1192 = vpack.c.b16 %v1135, %v1135
  %v1193 = vpack.c.b16 %v1136, %v1136
  %v1194 = vpack.c.b16 %v1137, %v1137
  %v1195 = vpack.c.b16 %v1138, %v1138
  %v1196 = vpack.c.b16 %v1139, %v1139
  %v1197 = vpack.c.b16 %v1140, %v1140
  %v1198 = vpack.c.b16 %v1141, %v1141
  %v1199 = vpack.c.b16 %v1142, %v1142
  %v1200 = vpack.c.b16 %v1143, %v1143
  %v1201 = vpack.c.b16 %v1144, %v1144
  %v1202 = vpack.c.b16 %v1145, %v1145
  %v1203 = vpack.c.b16 %v1146, %v1146
  %v1204 = vpack.c.b16 %v1147, %v1147
  %v1205 = vpack.c.b16 %v1148, %v1148
  %v1206 = vpack.c.b16 %v1149, %v1149
  %v1207 = vpack.c.b16 %v1150, %v1150
  %v1208 = vpack.c.b16 %v1151, %v1151
  %v1209 = vpack.c.b16 %v1152, %v1152
  %v1210 = vpack.c.b16 %v1153, %v1153
  %v1211 = vpack.c.b16 %v1154, %v1154
  %v1212 = vpack.c.b16 %v1155, %v1155
  %v1213 = vpack.c.b16 %v1156, %v1156
  %v1214 = vpack.c.b16 %v1157, %v1157
  %v1215 = vpack.c.b16 %v1158, %v1158
  %v1216 = vpack.c.b16 %v1159, %v1159
  %v1217 = vpack.c.b16 %v1160, %v1160
  %v1218 = vpack.c.b16 %v1161, %v1161
  %v1219 = vpack.c.b16 %v1162, %v1162
  %v1220 = vpack.c.b16 %v1163, %v1163
  %v1221 = vpack.c.b16 %v1164, %v1164
  %v1222 = vpack.c.b16 %v1165, %v1165
  %v1223 = vpack.c.b16 %v1166, %v1166
  %v1224 = vpack.c.b16 %v1167, %v1167
  %v1225 = vpack.c.b16 %v1168, %v1168
  %v1226 = vpack.c.b16 %v1169, %v1169
  %v1227 = vpack.c.b16 %v1170, %v1170
  %v1228 = vpack.c.b16 %v1171, %v1171
  %v1229 = vpack.c.b16 %v1172, %v1172
  %v1230 = vpack.c.b16 %v1173, %v1173
  %v1231 = vpack.c.b16 %v1174, %v1174
  %v1232 = vpack.c.b16 %v1175, %v1175
  %v1233 = vpack.c.b16 %v1176, %v1176
  %v1234 = vpack.c.b16 %v1177, %v1177
  %v1235 = vpack.c.b16 %v1178, %v1178
  %1293 = vst [vmem:[%s4] sm:$0xf] %v1179
  %1294 = vst [vmem:[%s4 + $0x4] sm:$0xf] %v1180
  %1295 = vst [vmem:[%s4 + $0x8] sm:$0xf] %v1181
  %1296 = vst [vmem:[%s4 + $0xc] sm:$0xf] %v1182
  %1297 = vst [vmem:[%s4 + $0x10] sm:$0xf] %v1183
  %1298 = vst [vmem:[%s4 + $0x14] sm:$0xf] %v1184
  %1299 = vst [vmem:[%s4 + $0x18] sm:$0xf] %v1185
  %1300 = vst [vmem:[%s4 + $0x1c] sm:$0xf] %v1186
  %1301 = vst [vmem:[%s4 + $0x20] sm:$0xf] %v1187
  %1302 = vst [vmem:[%s4 + $0x24] sm:$0xf] %v1188
  %1303 = vst [vmem:[%s4 + $0x28] sm:$0xf] %v1189
  %1304 = vst [vmem:[%s4 + $0x2c] sm:$0xf] %v1190
  %1305 = vst [vmem:[%s4 + $0x30] sm:$0xf] %v1191
  %1306 = vst [vmem:[%s4 + $0x34] sm:$0xf] %v1192
  %1307 = vst [vmem:[%s4 + $0x38] sm:$0xf] %v1193
  %1308 = vst [vmem:[%s4 + $0x3c] sm:$0xf] %v1194
  %1309 = vst [vmem:[%s4 + $0x40] sm:$0xf] %v1195
  %1310 = vst [vmem:[%s4 + $0x44] sm:$0xf] %v1196
  %1311 = vst [vmem:[%s4 + $0x48] sm:$0xf] %v1197
  %1312 = vst [vmem:[%s4 + $0x4c] sm:$0xf] %v1198
  %1313 = vst [vmem:[%s4 + $0x50] sm:$0xf] %v1199
  %1314 = vst [vmem:[%s4 + $0x54] sm:$0xf] %v1200
  %1315 = vst [vmem:[%s4 + $0x58] sm:$0xf] %v1201
  %1316 = vst [vmem:[%s4 + $0x5c] sm:$0xf] %v1202
  %1317 = vst [vmem:[%s4 + $0x60] sm:$0xf] %v1203
  %1318 = vst [vmem:[%s4 + $0x64] sm:$0xf] %v1204
  %1319 = vst [vmem:[%s4 + $0x68] sm:$0xf] %v1205
  %1320 = vst [vmem:[%s4 + $0x6c] sm:$0xf] %v1206
  %1321 = vst [vmem:[%s4 + $0x70] sm:$0xf] %v1207
  %1322 = vst [vmem:[%s4 + $0x74] sm:$0xf] %v1208
  %1323 = vst [vmem:[%s4 + $0x78] sm:$0xf] %v1209
  %1324 = vst [vmem:[%s4 + $0x7c] sm:$0xf] %v1210
  %1325 = vst [vmem:[%s4 + $0x80] sm:$0xf] %v1211
  %1326 = vst [vmem:[%s4 + $0x84] sm:$0xf] %v1212
  %1327 = vst [vmem:[%s4 + $0x88] sm:$0xf] %v1213
  %1328 = vst [vmem:[%s4 + $0x8c] sm:$0xf] %v1214
  %1329 = vst [vmem:[%s4 + $0x90] sm:$0xf] %v1215
  %1330 = vst [vmem:[%s4 + $0x94] sm:$0xf] %v1216
  %1331 = vst [vmem:[%s4 + $0x98] sm:$0xf] %v1217
  %1332 = vst [vmem:[%s4 + $0x9c] sm:$0xf] %v1218
  %1333 = vst [vmem:[%s4 + $0xa0] sm:$0xf] %v1219
  %1334 = vst [vmem:[%s4 + $0xa4] sm:$0xf] %v1220
  %1335 = vst [vmem:[%s4 + $0xa8] sm:$0xf] %v1221
  %1336 = vst [vmem:[%s4 + $0xac] sm:$0xf] %v1222
  %1337 = vst [vmem:[%s4 + $0xb0] sm:$0xf] %v1223
  %1338 = vst [vmem:[%s4 + $0xb4] sm:$0xf] %v1224
  %1339 = vst [vmem:[%s4 + $0xb8] sm:$0xf] %v1225
  %1340 = vst [vmem:[%s4 + $0xbc] sm:$0xf] %v1226
  %1341 = vst [vmem:[%s4 + $0xc0] sm:$0xf] %v1227
  %1342 = vst [vmem:[%s4 + $0xc4] sm:$0xf] %v1228
  %1343 = vst [vmem:[%s4 + $0xc8] sm:$0xf] %v1229
  %1344 = vst [vmem:[%s4 + $0xcc] sm:$0xf] %v1230
  %1345 = vst [vmem:[%s4 + $0xd0] sm:$0xf] %v1231
  %1346 = vst [vmem:[%s4 + $0xd4] sm:$0xf] %v1232
  %1347 = vst [vmem:[%s4 + $0xd8] sm:$0xf] %v1233
  %1348 = vst [vmem:[%s4 + $0xdc] sm:$0xf] %v1234
  %1349 = vst [vmem:[%s4 + $0xe0] sm:$0xf] %v1235
  // Predicated region
  $region18: #{encoder_forward.4} parent=0 // pred_check
    _
  $region19: #{encoder_forward.4} parent=0 // pred_check_branch
    %1351 = sbr.rel (0) target = $region21
  $region20: #{encoder_forward.4} parent=0 // pred_region
    _
  $region21: #{encoder_forward.4} parent=0 // pred_fallthru
    _
  // Predicated region
  $region22: #{encoder_forward.4} parent=0 // pred_check
    _
  $region23: #{encoder_forward.4} parent=0 // pred_check_branch
    %1353 = sbr.rel (0) target = $region25
  $region24: #{encoder_forward.4} parent=0 // pred_region
    _
  $region25: #{encoder_forward.4} parent=0 // pred_fallthru
    _

// kernel: encoder_forward.5
$region0: #{encoder_forward.5}
  #allocation0 [shape = 'u32[]', space=smem, size = 0x4, offset = 0x4, fixed_abs, tag = 'smem constant byte address 0x4 - core index']
  #allocation1 [shape = 'u32[144,128]{1,0:T(1,128)}', space=vmem, size = 0x12000, scoped, tag = 'internal scratch']
  %s0 = inlined_call_operand.vmem [shape: bf16[104,1024], index: 0, kind: input, shape index: {}]
  %s1 = inlined_call_operand.vmem [shape: bf16[1024,128], index: 1, kind: input, shape index: {}]
  %s2 = inlined_call_operand.vmem [shape: f32[1,128], index: 2, kind: input, shape index: {}]
  %s3 = inlined_call_operand.vmem [shape: f32[1,128], index: 3, kind: input, shape index: {}]
  %s4 = inlined_call_operand.vmem [shape: bf16[104,128], index: 4, kind: output, shape index: {}]
  %s5 = sld [smem:[#allocation0]]
  $region26: #{encoder_forward.5} parent=0
    _
  %s7 = ssub.s32 1, %s5
  %s8 = scalar_select 0, %s7, %s5
  // Predicated region
  $region2: #{encoder_forward.5} parent=0 // pred_check
    _
  $region3: #{encoder_forward.5} parent=0 // pred_check_branch
    %10 = sbr.rel (0) target = $region5
  $region4: #{encoder_forward.5} parent=0 // pred_region
    _
  $region5: #{encoder_forward.5} parent=0 // pred_fallthru
    _
  // Predicated region
  $region6: #{encoder_forward.5} parent=0 // pred_check
    _
  $region7: #{encoder_forward.5} parent=0 // pred_check_branch
    %12 = sbr.rel (0) target = $region9
  $region8: #{encoder_forward.5} parent=0 // pred_region
    _
  $region9: #{encoder_forward.5} parent=0 // pred_fallthru
    _
  // Predicated region
  $region10: #{encoder_forward.5} parent=0 // pred_check
    _
  $region11: #{encoder_forward.5} parent=0 // pred_check_branch
    %14 = sbr.rel (0) target = $region13
  $region12: #{encoder_forward.5} parent=0 // pred_region
    _
  $region13: #{encoder_forward.5} parent=0 // pred_fallthru
    _
  // Predicated region
  $region14: #{encoder_forward.5} parent=0 // pred_check
    _
  $region15: #{encoder_forward.5} parent=0 // pred_check_branch
    %16 = sbr.rel (0) target = $region17
  $region16: #{encoder_forward.5} parent=0 // pred_region
    _
  $region17: #{encoder_forward.5} parent=0 // pred_fallthru
    _
  %v18 = vld [vmem:[%s0] sm:$0xff]
  %v19 = vld [vmem:[%s0 + $0x8] sm:$0xff]
  %v20 = vld [vmem:[%s0 + $0x10] sm:$0xff]
  %v21 = vld [vmem:[%s0 + $0x18] sm:$0xff]
  %v22 = vld [vmem:[%s0 + $0x20] sm:$0xff]
  %v23 = vld [vmem:[%s0 + $0x28] sm:$0xff]
  %v24 = vld [vmem:[%s0 + $0x30] sm:$0xff]
  %v25 = vld [vmem:[%s0 + $0x38] sm:$0xff]
  %v26 = vld [vmem:[%s0 + $0x40] sm:$0xff]
  %v27 = vld [vmem:[%s0 + $0x48] sm:$0xff]
  %v28 = vld [vmem:[%s0 + $0x50] sm:$0xff]
  %v29 = vld [vmem:[%s0 + $0x58] sm:$0xff]
  %v30 = vld [vmem:[%s0 + $0x60] sm:$0xff]
  %v31 = vld [vmem:[%s0 + $0x68] sm:$0xff]
  %v32 = vld [vmem:[%s0 + $0x70] sm:$0xff]
  %v33 = vld [vmem:[%s0 + $0x78] sm:$0xff]
  %v34 = vld [vmem:[%s0 + $0x80] sm:$0xff]
  %v35 = vld [vmem:[%s0 + $0x88] sm:$0xff]
  %v36 = vld [vmem:[%s0 + $0x90] sm:$0xff]
  %v37 = vld [vmem:[%s0 + $0x98] sm:$0xff]
  %v38 = vld [vmem:[%s0 + $0xa0] sm:$0xff]
  %v39 = vld [vmem:[%s0 + $0xa8] sm:$0xff]
  %v40 = vld [vmem:[%s0 + $0xb0] sm:$0xff]
  %v41 = vld [vmem:[%s0 + $0xb8] sm:$0xff]
  %v42 = vld [vmem:[%s0 + $0xc0] sm:$0xff]
  %v43 = vld [vmem:[%s0 + $0xc8] sm:$0xff]
  %v44 = vld [vmem:[%s0 + $0xd0] sm:$0xff]
  %v45 = vld [vmem:[%s0 + $0xd8] sm:$0xff]
  %v46 = vld [vmem:[%s0 + $0xe0] sm:$0xff]
  %v47 = vld [vmem:[%s0 + $0xe8] sm:$0xff]
  %v48 = vld [vmem:[%s0 + $0xf0] sm:$0xff]
  %v49 = vld [vmem:[%s0 + $0xf8] sm:$0xff]
  %v50 = vld [vmem:[%s0 + $0x100] sm:$0xff]
  %v51 = vld [vmem:[%s0 + $0x108] sm:$0xff]
  %v52 = vld [vmem:[%s0 + $0x110] sm:$0xff]
  %v53 = vld [vmem:[%s0 + $0x118] sm:$0xff]
  %v54 = vld [vmem:[%s0 + $0x120] sm:$0xff]
  %v55 = vld [vmem:[%s0 + $0x128] sm:$0xff]
  %v56 = vld [vmem:[%s0 + $0x130] sm:$0xff]
  %v57 = vld [vmem:[%s0 + $0x138] sm:$0xff]
  %v58 = vld [vmem:[%s0 + $0x140] sm:$0xff]
  %v59 = vld [vmem:[%s0 + $0x148] sm:$0xff]
  %v60 = vld [vmem:[%s0 + $0x150] sm:$0xff]
  %v61 = vld [vmem:[%s0 + $0x158] sm:$0xff]
  %v62 = vld [vmem:[%s0 + $0x160] sm:$0xff]
  %v63 = vld [vmem:[%s0 + $0x168] sm:$0xff]
  %v64 = vld [vmem:[%s0 + $0x170] sm:$0xff]
  %v65 = vld [vmem:[%s0 + $0x178] sm:$0xff]
  %v66 = vld [vmem:[%s0 + $0x180] sm:$0xff]
  %v67 = vld [vmem:[%s0 + $0x188] sm:$0xff]
  %v68 = vld [vmem:[%s0 + $0x190] sm:$0xff]
  %v69 = vld [vmem:[%s0 + $0x198] sm:$0xff]
  %v70 = vld [vmem:[%s1] sm:$0xf]
  %v71 = vld [vmem:[%s1 + $0x4] sm:$0xf]
  %v72 = vld [vmem:[%s1 + $0x8] sm:$0xf]
  %v73 = vld [vmem:[%s1 + $0xc] sm:$0xf]
  %v74 = vld [vmem:[%s1 + $0x10] sm:$0xf]
  %v75 = vld [vmem:[%s1 + $0x14] sm:$0xf]
  %v76 = vld [vmem:[%s1 + $0x18] sm:$0xf]
  %v77 = vld [vmem:[%s1 + $0x1c] sm:$0xf]
  %v78 = vld [vmem:[%s1 + $0x20] sm:$0xf]
  %v79 = vld [vmem:[%s1 + $0x24] sm:$0xf]
  %v80 = vld [vmem:[%s1 + $0x28] sm:$0xf]
  %v81 = vld [vmem:[%s1 + $0x2c] sm:$0xf]
  %v82 = vld [vmem:[%s1 + $0x30] sm:$0xf]
  %v83 = vld [vmem:[%s1 + $0x34] sm:$0xf]
  %v84 = vld [vmem:[%s1 + $0x38] sm:$0xf]
  %v85 = vld [vmem:[%s1 + $0x3c] sm:$0xf]
  %v86 = vld [vmem:[%s1 + $0x40] sm:$0xf]
  %v87 = vld [vmem:[%s1 + $0x44] sm:$0xf]
  %v88 = vld [vmem:[%s1 + $0x48] sm:$0xf]
  %v89 = vld [vmem:[%s1 + $0x4c] sm:$0xf]
  %v90 = vld [vmem:[%s1 + $0x50] sm:$0xf]
  %v91 = vld [vmem:[%s1 + $0x54] sm:$0xf]
  %v92 = vld [vmem:[%s1 + $0x58] sm:$0xf]
  %v93 = vld [vmem:[%s1 + $0x5c] sm:$0xf]
  %v94 = vld [vmem:[%s1 + $0x60] sm:$0xf]
  %v95 = vld [vmem:[%s1 + $0x64] sm:$0xf]
  %v96 = vld [vmem:[%s1 + $0x68] sm:$0xf]
  %v97 = vld [vmem:[%s1 + $0x6c] sm:$0xf]
  %v98 = vld [vmem:[%s1 + $0x70] sm:$0xf]
  %v99 = vld [vmem:[%s1 + $0x74] sm:$0xf]
  %v100 = vld [vmem:[%s1 + $0x78] sm:$0xf]
  %v101 = vld [vmem:[%s1 + $0x7c] sm:$0xf]
  %v102 = vld [vmem:[%s1 + $0x80] sm:$0xf]
  %v103 = vld [vmem:[%s1 + $0x84] sm:$0xf]
  %v104 = vld [vmem:[%s1 + $0x88] sm:$0xf]
  %v105 = vld [vmem:[%s1 + $0x8c] sm:$0xf]
  %v106 = vld [vmem:[%s1 + $0x90] sm:$0xf]
  %v107 = vld [vmem:[%s1 + $0x94] sm:$0xf]
  %v108 = vld [vmem:[%s1 + $0x98] sm:$0xf]
  %v109 = vld [vmem:[%s1 + $0x9c] sm:$0xf]
  %v110 = vld [vmem:[%s1 + $0xa0] sm:$0xf]
  %v111 = vld [vmem:[%s1 + $0xa4] sm:$0xf]
  %v112 = vld [vmem:[%s1 + $0xa8] sm:$0xf]
  %v113 = vld [vmem:[%s1 + $0xac] sm:$0xf]
  %v114 = vld [vmem:[%s1 + $0xb0] sm:$0xf]
  %v115 = vld [vmem:[%s1 + $0xb4] sm:$0xf]
  %v116 = vld [vmem:[%s1 + $0xb8] sm:$0xf]
  %v117 = vld [vmem:[%s1 + $0xbc] sm:$0xf]
  %v118 = vld [vmem:[%s1 + $0xc0] sm:$0xf]
  %v119 = vld [vmem:[%s1 + $0xc4] sm:$0xf]
  %v120 = vld [vmem:[%s1 + $0xc8] sm:$0xf]
  %v121 = vld [vmem:[%s1 + $0xcc] sm:$0xf]
  %v122 = vld [vmem:[%s1 + $0xd0] sm:$0xf]
  %v123 = vld [vmem:[%s1 + $0xd4] sm:$0xf]
  %v124 = vld [vmem:[%s1 + $0xd8] sm:$0xf]
  %v125 = vld [vmem:[%s1 + $0xdc] sm:$0xf]
  %v126 = vld [vmem:[%s1 + $0xe0] sm:$0xf]
  %v127 = vld [vmem:[%s1 + $0xe4] sm:$0xf]
  %v128 = vld [vmem:[%s1 + $0xe8] sm:$0xf]
  %v129 = vld [vmem:[%s1 + $0xec] sm:$0xf]
  %v130 = vld [vmem:[%s1 + $0xf0] sm:$0xf]
  %v131 = vld [vmem:[%s1 + $0xf4] sm:$0xf]
  %v132 = vld [vmem:[%s1 + $0xf8] sm:$0xf]
  %v133 = vld [vmem:[%s1 + $0xfc] sm:$0xf]
  %v134 = vld [vmem:[%s1 + $0x100] sm:$0xf]
  %v135 = vld [vmem:[%s1 + $0x104] sm:$0xf]
  %v136 = vld [vmem:[%s1 + $0x108] sm:$0xf]
  %v137 = vld [vmem:[%s1 + $0x10c] sm:$0xf]
  %v138 = vld [vmem:[%s1 + $0x110] sm:$0xf]
  %v139 = vld [vmem:[%s1 + $0x114] sm:$0xf]
  %v140 = vld [vmem:[%s1 + $0x118] sm:$0xf]
  %v141 = vld [vmem:[%s1 + $0x11c] sm:$0xf]
  %v142 = vld [vmem:[%s1 + $0x120] sm:$0xf]
  %v143 = vld [vmem:[%s1 + $0x124] sm:$0xf]
  %v144 = vld [vmem:[%s1 + $0x128] sm:$0xf]
  %v145 = vld [vmem:[%s1 + $0x12c] sm:$0xf]
  %v146 = vld [vmem:[%s1 + $0x130] sm:$0xf]
  %v147 = vld [vmem:[%s1 + $0x134] sm:$0xf]
  %v148 = vld [vmem:[%s1 + $0x138] sm:$0xf]
  %v149 = vld [vmem:[%s1 + $0x13c] sm:$0xf]
  %v150 = vld [vmem:[%s1 + $0x140] sm:$0xf]
  %v151 = vld [vmem:[%s1 + $0x144] sm:$0xf]
  %v152 = vld [vmem:[%s1 + $0x148] sm:$0xf]
  %v153 = vld [vmem:[%s1 + $0x14c] sm:$0xf]
  %v154 = vld [vmem:[%s1 + $0x150] sm:$0xf]
  %v155 = vld [vmem:[%s1 + $0x154] sm:$0xf]
  %v156 = vld [vmem:[%s1 + $0x158] sm:$0xf]
  %v157 = vld [vmem:[%s1 + $0x15c] sm:$0xf]
  %v158 = vld [vmem:[%s1 + $0x160] sm:$0xf]
  %v159 = vld [vmem:[%s1 + $0x164] sm:$0xf]
  %v160 = vld [vmem:[%s1 + $0x168] sm:$0xf]
  %v161 = vld [vmem:[%s1 + $0x16c] sm:$0xf]
  %v162 = vld [vmem:[%s1 + $0x170] sm:$0xf]
  %v163 = vld [vmem:[%s1 + $0x174] sm:$0xf]
  %v164 = vld [vmem:[%s1 + $0x178] sm:$0xf]
  %v165 = vld [vmem:[%s1 + $0x17c] sm:$0xf]
  %v166 = vld [vmem:[%s1 + $0x180] sm:$0xf]
  %v167 = vld [vmem:[%s1 + $0x184] sm:$0xf]
  %v168 = vld [vmem:[%s1 + $0x188] sm:$0xf]
  %v169 = vld [vmem:[%s1 + $0x18c] sm:$0xf]
  %v170 = vld [vmem:[%s1 + $0x190] sm:$0xf]
  %v171 = vld [vmem:[%s1 + $0x194] sm:$0xf]
  %v172 = vld [vmem:[%s1 + $0x198] sm:$0xf]
  %v173 = vld [vmem:[%s1 + $0x19c] sm:$0xf]
  %v174 = vld [vmem:[%s1 + $0x1a0] sm:$0xf]
  %v175 = vld [vmem:[%s1 + $0x1a4] sm:$0xf]
  %v176 = vld [vmem:[%s1 + $0x1a8] sm:$0xf]
  %v177 = vld [vmem:[%s1 + $0x1ac] sm:$0xf]
  %v178 = vld [vmem:[%s1 + $0x1b0] sm:$0xf]
  %v179 = vld [vmem:[%s1 + $0x1b4] sm:$0xf]
  %v180 = vld [vmem:[%s1 + $0x1b8] sm:$0xf]
  %v181 = vld [vmem:[%s1 + $0x1bc] sm:$0xf]
  %v182 = vld [vmem:[%s1 + $0x1c0] sm:$0xf]
  %v183 = vld [vmem:[%s1 + $0x1c4] sm:$0xf]
  %v184 = vld [vmem:[%s1 + $0x1c8] sm:$0xf]
  %v185 = vld [vmem:[%s1 + $0x1cc] sm:$0xf]
  %v186 = vld [vmem:[%s1 + $0x1d0] sm:$0xf]
  %v187 = vld [vmem:[%s1 + $0x1d4] sm:$0xf]
  %v188 = vld [vmem:[%s1 + $0x1d8] sm:$0xf]
  %v189 = vld [vmem:[%s1 + $0x1dc] sm:$0xf]
  %v190 = vld [vmem:[%s1 + $0x1e0] sm:$0xf]
  %v191 = vld [vmem:[%s1 + $0x1e4] sm:$0xf]
  %v192 = vld [vmem:[%s1 + $0x1e8] sm:$0xf]
  %v193 = vld [vmem:[%s1 + $0x1ec] sm:$0xf]
  %v194 = vld [vmem:[%s1 + $0x1f0] sm:$0xf]
  %v195 = vld [vmem:[%s1 + $0x1f4] sm:$0xf]
  %v196 = vld [vmem:[%s1 + $0x1f8] sm:$0xf]
  %v197 = vld [vmem:[%s1 + $0x1fc] sm:$0xf]
  %v250 = vunpack.c.l.b16 %v18
  %v251 = vunpack.c.h.b16 %v18
  %v252 = vunpack.c.l.b16 %v19
  %v253 = vunpack.c.h.b16 %v19
  %v254 = vunpack.c.l.b16 %v20
  %v255 = vunpack.c.h.b16 %v20
  %v256 = vunpack.c.l.b16 %v21
  %v257 = vunpack.c.h.b16 %v21
  %v258 = vunpack.c.l.b16 %v22
  %v259 = vunpack.c.h.b16 %v22
  %v260 = vunpack.c.l.b16 %v23
  %v261 = vunpack.c.h.b16 %v23
  %v262 = vunpack.c.l.b16 %v24
  %v263 = vunpack.c.h.b16 %v24
  %v264 = vunpack.c.l.b16 %v25
  %v265 = vunpack.c.h.b16 %v25
  %v266 = vunpack.c.l.b16 %v26
  %v267 = vunpack.c.h.b16 %v26
  %v268 = vunpack.c.l.b16 %v27
  %v269 = vunpack.c.h.b16 %v27
  %v270 = vunpack.c.l.b16 %v28
  %v271 = vunpack.c.h.b16 %v28
  %v272 = vunpack.c.l.b16 %v29
  %v273 = vunpack.c.h.b16 %v29
  %v274 = vunpack.c.l.b16 %v30
  %v275 = vunpack.c.h.b16 %v30
  %v276 = vunpack.c.l.b16 %v31
  %v277 = vunpack.c.h.b16 %v31
  %v278 = vunpack.c.l.b16 %v32
  %v279 = vunpack.c.h.b16 %v32
  %v280 = vunpack.c.l.b16 %v33
  %v281 = vunpack.c.h.b16 %v33
  %v282 = vunpack.c.l.b16 %v34
  %v283 = vunpack.c.h.b16 %v34
  %v284 = vunpack.c.l.b16 %v35
  %v285 = vunpack.c.h.b16 %v35
  %v286 = vunpack.c.l.b16 %v36
  %v287 = vunpack.c.h.b16 %v36
  %v288 = vunpack.c.l.b16 %v37
  %v289 = vunpack.c.h.b16 %v37
  %v290 = vunpack.c.l.b16 %v38
  %v291 = vunpack.c.h.b16 %v38
  %v292 = vunpack.c.l.b16 %v39
  %v293 = vunpack.c.h.b16 %v39
  %v294 = vunpack.c.l.b16 %v40
  %v295 = vunpack.c.h.b16 %v40
  %v296 = vunpack.c.l.b16 %v41
  %v297 = vunpack.c.h.b16 %v41
  %v298 = vunpack.c.l.b16 %v42
  %v299 = vunpack.c.h.b16 %v42
  %v300 = vunpack.c.l.b16 %v43
  %v301 = vunpack.c.h.b16 %v43
  %v302 = vunpack.c.l.b16 %v44
  %v303 = vunpack.c.h.b16 %v44
  %v304 = vunpack.c.l.b16 %v45
  %v305 = vunpack.c.h.b16 %v45
  %v306 = vunpack.c.l.b16 %v46
  %v307 = vunpack.c.h.b16 %v46
  %v308 = vunpack.c.l.b16 %v47
  %v309 = vunpack.c.h.b16 %v47
  %v310 = vunpack.c.l.b16 %v48
  %v311 = vunpack.c.h.b16 %v48
  %v312 = vunpack.c.l.b16 %v49
  %v313 = vunpack.c.h.b16 %v49
  %v314 = vunpack.c.l.b16 %v50
  %v315 = vunpack.c.h.b16 %v50
  %v316 = vunpack.c.l.b16 %v51
  %v317 = vunpack.c.h.b16 %v51
  %v318 = vunpack.c.l.b16 %v52
  %v319 = vunpack.c.h.b16 %v52
  %v320 = vunpack.c.l.b16 %v53
  %v321 = vunpack.c.h.b16 %v53
  %v322 = vunpack.c.l.b16 %v54
  %v323 = vunpack.c.h.b16 %v54
  %v324 = vunpack.c.l.b16 %v55
  %v325 = vunpack.c.h.b16 %v55
  %v326 = vunpack.c.l.b16 %v56
  %v327 = vunpack.c.h.b16 %v56
  %v328 = vunpack.c.l.b16 %v57
  %v329 = vunpack.c.h.b16 %v57
  %v330 = vunpack.c.l.b16 %v58
  %v331 = vunpack.c.h.b16 %v58
  %v332 = vunpack.c.l.b16 %v59
  %v333 = vunpack.c.h.b16 %v59
  %v334 = vunpack.c.l.b16 %v60
  %v335 = vunpack.c.h.b16 %v60
  %v336 = vunpack.c.l.b16 %v61
  %v337 = vunpack.c.h.b16 %v61
  %v338 = vunpack.c.l.b16 %v62
  %v339 = vunpack.c.h.b16 %v62
  %v340 = vunpack.c.l.b16 %v63
  %v341 = vunpack.c.h.b16 %v63
  %v342 = vunpack.c.l.b16 %v64
  %v343 = vunpack.c.h.b16 %v64
  %v344 = vunpack.c.l.b16 %v65
  %v345 = vunpack.c.h.b16 %v65
  %v346 = vunpack.c.l.b16 %v66
  %v347 = vunpack.c.h.b16 %v66
  %v348 = vunpack.c.l.b16 %v67
  %v349 = vunpack.c.h.b16 %v67
  %v350 = vunpack.c.l.b16 %v68
  %v351 = vunpack.c.h.b16 %v68
  %v352 = vunpack.c.l.b16 %v69
  %v353 = vunpack.c.h.b16 %v69
  %v354 = vpack.c.b16 %v258, %v250
  %v355 = vpack.c.b16 %v259, %v251
  %v356 = vpack.c.b16 %v260, %v252
  %v357 = vpack.c.b16 %v261, %v253
  %v358 = vpack.c.b16 %v262, %v254
  %v359 = vpack.c.b16 %v263, %v255
  %v360 = vpack.c.b16 %v264, %v256
  %v361 = vpack.c.b16 %v265, %v257
  %v362 = vpack.c.b16 %v274, %v266
  %v363 = vpack.c.b16 %v275, %v267
  %v364 = vpack.c.b16 %v276, %v268
  %v365 = vpack.c.b16 %v277, %v269
  %v366 = vpack.c.b16 %v278, %v270
  %v367 = vpack.c.b16 %v279, %v271
  %v368 = vpack.c.b16 %v280, %v272
  %v369 = vpack.c.b16 %v281, %v273
  %v370 = vpack.c.b16 %v290, %v282
  %v371 = vpack.c.b16 %v291, %v283
  %v372 = vpack.c.b16 %v292, %v284
  %v373 = vpack.c.b16 %v293, %v285
  %v374 = vpack.c.b16 %v294, %v286
  %v375 = vpack.c.b16 %v295, %v287
  %v376 = vpack.c.b16 %v296, %v288
  %v377 = vpack.c.b16 %v297, %v289
  %v378 = vpack.c.b16 %v306, %v298
  %v379 = vpack.c.b16 %v307, %v299
  %v380 = vpack.c.b16 %v308, %v300
  %v381 = vpack.c.b16 %v309, %v301
  %v382 = vpack.c.b16 %v310, %v302
  %v383 = vpack.c.b16 %v311, %v303
  %v384 = vpack.c.b16 %v312, %v304
  %v385 = vpack.c.b16 %v313, %v305
  %v386 = vpack.c.b16 %v322, %v314
  %v387 = vpack.c.b16 %v323, %v315
  %v388 = vpack.c.b16 %v324, %v316
  %v389 = vpack.c.b16 %v325, %v317
  %v390 = vpack.c.b16 %v326, %v318
  %v391 = vpack.c.b16 %v327, %v319
  %v392 = vpack.c.b16 %v328, %v320
  %v393 = vpack.c.b16 %v329, %v321
  %v394 = vpack.c.b16 %v338, %v330
  %v395 = vpack.c.b16 %v339, %v331
  %v396 = vpack.c.b16 %v340, %v332
  %v397 = vpack.c.b16 %v341, %v333
  %v398 = vpack.c.b16 %v342, %v334
  %v399 = vpack.c.b16 %v343, %v335
  %v400 = vpack.c.b16 %v344, %v336
  %v401 = vpack.c.b16 %v345, %v337
  %v402 = vpack.c.b16 %v346, %v346
  %v403 = vpack.c.b16 %v347, %v347
  %v404 = vpack.c.b16 %v348, %v348
  %v405 = vpack.c.b16 %v349, %v349
  %v406 = vpack.c.b16 %v350, %v350
  %v407 = vpack.c.b16 %v351, %v351
  %v408 = vpack.c.b16 %v352, %v352
  %v409 = vpack.c.b16 %v353, %v353
  %v594 = vunpack.c.l.b16 %v70
  %v595 = vunpack.c.l.b16 %v71
  %v596 = vunpack.c.l.b16 %v72
  %v597 = vunpack.c.l.b16 %v73
  %v598 = vunpack.c.l.b16 %v74
  %v599 = vunpack.c.l.b16 %v75
  %v600 = vunpack.c.l.b16 %v76
  %v601 = vunpack.c.l.b16 %v77
  %v602 = vunpack.c.l.b16 %v78
  %v603 = vunpack.c.l.b16 %v79
  %v604 = vunpack.c.l.b16 %v80
  %v605 = vunpack.c.l.b16 %v81
  %v606 = vunpack.c.l.b16 %v82
  %v607 = vunpack.c.l.b16 %v83
  %v608 = vunpack.c.l.b16 %v84
  %v609 = vunpack.c.l.b16 %v85
  %v610 = vunpack.c.l.b16 %v86
  %v611 = vunpack.c.l.b16 %v87
  %v612 = vunpack.c.l.b16 %v88
  %v613 = vunpack.c.l.b16 %v89
  %v614 = vunpack.c.l.b16 %v90
  %v615 = vunpack.c.l.b16 %v91
  %v616 = vunpack.c.l.b16 %v92
  %v617 = vunpack.c.l.b16 %v93
  %v618 = vunpack.c.l.b16 %v94
  %v619 = vunpack.c.l.b16 %v95
  %v620 = vunpack.c.l.b16 %v96
  %v621 = vunpack.c.l.b16 %v97
  %v622 = vunpack.c.l.b16 %v98
  %v623 = vunpack.c.l.b16 %v99
  %v624 = vunpack.c.l.b16 %v100
  %v625 = vunpack.c.l.b16 %v101
  %v626 = vunpack.c.l.b16 %v102
  %v627 = vunpack.c.l.b16 %v103
  %v628 = vunpack.c.l.b16 %v104
  %v629 = vunpack.c.l.b16 %v105
  %v630 = vunpack.c.l.b16 %v106
  %v631 = vunpack.c.l.b16 %v107
  %v632 = vunpack.c.l.b16 %v108
  %v633 = vunpack.c.l.b16 %v109
  %v634 = vunpack.c.l.b16 %v110
  %v635 = vunpack.c.l.b16 %v111
  %v636 = vunpack.c.l.b16 %v112
  %v637 = vunpack.c.l.b16 %v113
  %v638 = vunpack.c.l.b16 %v114
  %v639 = vunpack.c.l.b16 %v115
  %v640 = vunpack.c.l.b16 %v116
  %v641 = vunpack.c.l.b16 %v117
  %v642 = vunpack.c.l.b16 %v118
  %v643 = vunpack.c.l.b16 %v119
  %v644 = vunpack.c.l.b16 %v120
  %v645 = vunpack.c.l.b16 %v121
  %v646 = vunpack.c.l.b16 %v122
  %v647 = vunpack.c.l.b16 %v123
  %v648 = vunpack.c.l.b16 %v124
  %v649 = vunpack.c.l.b16 %v125
  %v650 = vunpack.c.l.b16 %v126
  %v651 = vunpack.c.l.b16 %v127
  %v652 = vunpack.c.l.b16 %v128
  %v653 = vunpack.c.l.b16 %v129
  %v654 = vunpack.c.l.b16 %v130
  %v655 = vunpack.c.l.b16 %v131
  %v656 = vunpack.c.l.b16 %v132
  %v657 = vunpack.c.l.b16 %v133
  %v658 = vunpack.c.l.b16 %v134
  %v659 = vunpack.c.l.b16 %v135
  %v660 = vunpack.c.l.b16 %v136
  %v661 = vunpack.c.l.b16 %v137
  %v662 = vunpack.c.l.b16 %v138
  %v663 = vunpack.c.l.b16 %v139
  %v664 = vunpack.c.l.b16 %v140
  %v665 = vunpack.c.l.b16 %v141
  %v666 = vunpack.c.l.b16 %v142
  %v667 = vunpack.c.l.b16 %v143
  %v668 = vunpack.c.l.b16 %v144
  %v669 = vunpack.c.l.b16 %v145
  %v670 = vunpack.c.l.b16 %v146
  %v671 = vunpack.c.l.b16 %v147
  %v672 = vunpack.c.l.b16 %v148
  %v673 = vunpack.c.l.b16 %v149
  %v674 = vunpack.c.l.b16 %v150
  %v675 = vunpack.c.l.b16 %v151
  %v676 = vunpack.c.l.b16 %v152
  %v677 = vunpack.c.l.b16 %v153
  %v678 = vunpack.c.l.b16 %v154
  %v679 = vunpack.c.l.b16 %v155
  %v680 = vunpack.c.l.b16 %v156
  %v681 = vunpack.c.l.b16 %v157
  %v682 = vunpack.c.l.b16 %v158
  %v683 = vunpack.c.l.b16 %v159
  %v684 = vunpack.c.l.b16 %v160
  %v685 = vunpack.c.l.b16 %v161
  %v686 = vunpack.c.l.b16 %v162
  %v687 = vunpack.c.l.b16 %v163
  %v688 = vunpack.c.l.b16 %v164
  %v689 = vunpack.c.l.b16 %v165
  %v690 = vunpack.c.l.b16 %v166
  %v691 = vunpack.c.l.b16 %v167
  %v692 = vunpack.c.l.b16 %v168
  %v693 = vunpack.c.l.b16 %v169
  %v694 = vunpack.c.l.b16 %v170
  %v695 = vunpack.c.l.b16 %v171
  %v696 = vunpack.c.l.b16 %v172
  %v697 = vunpack.c.l.b16 %v173
  %v698 = vunpack.c.l.b16 %v174
  %v699 = vunpack.c.l.b16 %v175
  %v700 = vunpack.c.l.b16 %v176
  %v701 = vunpack.c.l.b16 %v177
  %v702 = vunpack.c.l.b16 %v178
  %v703 = vunpack.c.l.b16 %v179
  %v704 = vunpack.c.l.b16 %v180
  %v705 = vunpack.c.l.b16 %v181
  %v706 = vunpack.c.l.b16 %v182
  %v707 = vunpack.c.l.b16 %v183
  %v708 = vunpack.c.l.b16 %v184
  %v709 = vunpack.c.l.b16 %v185
  %v710 = vunpack.c.l.b16 %v186
  %v711 = vunpack.c.l.b16 %v187
  %v712 = vunpack.c.l.b16 %v188
  %v713 = vunpack.c.l.b16 %v189
  %v714 = vunpack.c.l.b16 %v190
  %v715 = vunpack.c.l.b16 %v191
  %v716 = vunpack.c.l.b16 %v192
  %v717 = vunpack.c.l.b16 %v193
  %v718 = vunpack.c.l.b16 %v194
  %v719 = vunpack.c.l.b16 %v195
  %v720 = vunpack.c.l.b16 %v196
  %v721 = vunpack.c.l.b16 %v197
  %v722 = vpack.c.b16 %v595, %v594
  %v723 = vpack.c.b16 %v597, %v596
  %v724 = vpack.c.b16 %v599, %v598
  %v725 = vpack.c.b16 %v601, %v600
  %v726 = vpack.c.b16 %v603, %v602
  %v727 = vpack.c.b16 %v605, %v604
  %v728 = vpack.c.b16 %v607, %v606
  %v729 = vpack.c.b16 %v609, %v608
  %v730 = vpack.c.b16 %v611, %v610
  %v731 = vpack.c.b16 %v613, %v612
  %v732 = vpack.c.b16 %v615, %v614
  %v733 = vpack.c.b16 %v617, %v616
  %v734 = vpack.c.b16 %v619, %v618
  %v735 = vpack.c.b16 %v621, %v620
  %v736 = vpack.c.b16 %v623, %v622
  %v737 = vpack.c.b16 %v625, %v624
  %v738 = vpack.c.b16 %v627, %v626
  %v739 = vpack.c.b16 %v629, %v628
  %v740 = vpack.c.b16 %v631, %v630
  %v741 = vpack.c.b16 %v633, %v632
  %v742 = vpack.c.b16 %v635, %v634
  %v743 = vpack.c.b16 %v637, %v636
  %v744 = vpack.c.b16 %v639, %v638
  %v745 = vpack.c.b16 %v641, %v640
  %v746 = vpack.c.b16 %v643, %v642
  %v747 = vpack.c.b16 %v645, %v644
  %v748 = vpack.c.b16 %v647, %v646
  %v749 = vpack.c.b16 %v649, %v648
  %v750 = vpack.c.b16 %v651, %v650
  %v751 = vpack.c.b16 %v653, %v652
  %v752 = vpack.c.b16 %v655, %v654
  %v753 = vpack.c.b16 %v657, %v656
  %v754 = vpack.c.b16 %v659, %v658
  %v755 = vpack.c.b16 %v661, %v660
  %v756 = vpack.c.b16 %v663, %v662
  %v757 = vpack.c.b16 %v665, %v664
  %v758 = vpack.c.b16 %v667, %v666
  %v759 = vpack.c.b16 %v669, %v668
  %v760 = vpack.c.b16 %v671, %v670
  %v761 = vpack.c.b16 %v673, %v672
  %v762 = vpack.c.b16 %v675, %v674
  %v763 = vpack.c.b16 %v677, %v676
  %v764 = vpack.c.b16 %v679, %v678
  %v765 = vpack.c.b16 %v681, %v680
  %v766 = vpack.c.b16 %v683, %v682
  %v767 = vpack.c.b16 %v685, %v684
  %v768 = vpack.c.b16 %v687, %v686
  %v769 = vpack.c.b16 %v689, %v688
  %v770 = vpack.c.b16 %v691, %v690
  %v771 = vpack.c.b16 %v693, %v692
  %v772 = vpack.c.b16 %v695, %v694
  %v773 = vpack.c.b16 %v697, %v696
  %v774 = vpack.c.b16 %v699, %v698
  %v775 = vpack.c.b16 %v701, %v700
  %v776 = vpack.c.b16 %v703, %v702
  %v777 = vpack.c.b16 %v705, %v704
  %v778 = vpack.c.b16 %v707, %v706
  %v779 = vpack.c.b16 %v709, %v708
  %v780 = vpack.c.b16 %v711, %v710
  %v781 = vpack.c.b16 %v713, %v712
  %v782 = vpack.c.b16 %v715, %v714
  %v783 = vpack.c.b16 %v717, %v716
  %v784 = vpack.c.b16 %v719, %v718
  %v785 = vpack.c.b16 %v721, %v720
  %850 = vmatprep.subr.bf16.mxu0 0
  %851 = vmatpush1.bf16.msra.mxu0 %v722
  %852 = vmatprep.subr.bf16.mxu0 0
  %853 = vmatpush1.bf16.msra.mxu0 %v723
  %854 = vmatprep.subr.bf16.mxu0 0
  %855 = vmatpush1.bf16.msra.mxu0 %v724
  %856 = vmatprep.subr.bf16.mxu0 0
  %857 = vmatpush1.bf16.msra.mxu0 %v725
  %858 = vmatprep.subr.bf16.mxu0 0
  %859 = vmatpush1.bf16.msra.mxu0 %v726
  %860 = vmatprep.subr.bf16.mxu0 0
  %861 = vmatpush1.bf16.msra.mxu0 %v727
  %862 = vmatprep.subr.bf16.mxu0 0
  %863 = vmatpush1.bf16.msra.mxu0 %v728
  %864 = vmatprep.subr.bf16.mxu0 0
  %865 = vmatpush1.bf16.msra.mxu0 %v729
  %866 = vmatprep.subr.bf16.mxu0 0
  %867 = vmatpush1.bf16.msra.mxu0 %v730
  %868 = vmatprep.subr.bf16.mxu0 0
  %869 = vmatpush1.bf16.msra.mxu0 %v731
  %870 = vmatprep.subr.bf16.mxu0 0
  %871 = vmatpush1.bf16.msra.mxu0 %v732
  %872 = vmatprep.subr.bf16.mxu0 0
  %873 = vmatpush1.bf16.msra.mxu0 %v733
  %874 = vmatprep.subr.bf16.mxu0 0
  %875 = vmatpush1.bf16.msra.mxu0 %v734
  %876 = vmatprep.subr.bf16.mxu0 0
  %877 = vmatpush1.bf16.msra.mxu0 %v735
  %878 = vmatprep.subr.bf16.mxu0 0
  %879 = vmatpush1.bf16.msra.mxu0 %v736
  %880 = vmatprep.subr.bf16.mxu0 0
  %881 = vmatpush1.bf16.msra.mxu0 %v737
  %882 = vmatprep.mubr.bf16.mxu0 %v355
  %883 = vmatmul.mubr.bf16.gmra.mrb[0].mxu0 %v354
  %v884 = vpop.f32.mrb[0].mxu0
  %v885 = vadd.f32 0.0, %v884
  %v886 = vpop.f32.mrb[0].mxu0
  %v887 = vpop.f32.mrb[0].mxu0
  %v888 = vadd.f32 0.0, %v887
  %v889 = vpop.f32.mrb[0].mxu0
  %890 = vmatprep.mubr.bf16.mxu0 %v363
  %891 = vmatmul.mubr.bf16.gmra.mrb[0].mxu0 %v362
  %v892 = vpop.f32.mrb[0].mxu0
  %v893 = vadd.f32 0.0, %v892
  %v894 = vpop.f32.mrb[0].mxu0
  %v895 = vpop.f32.mrb[0].mxu0
  %v896 = vadd.f32 0.0, %v895
  %v897 = vpop.f32.mrb[0].mxu0
  %898 = vmatprep.mubr.bf16.mxu0 %v371
  %899 = vmatmul.mubr.bf16.gmra.mrb[0].mxu0 %v370
  %v900 = vpop.f32.mrb[0].mxu0
  %v901 = vadd.f32 0.0, %v900
  %v902 = vpop.f32.mrb[0].mxu0
  %v903 = vpop.f32.mrb[0].mxu0
  %v904 = vadd.f32 0.0, %v903
  %v905 = vpop.f32.mrb[0].mxu0
  %906 = vmatprep.mubr.bf16.mxu0 %v379
  %907 = vmatmul.mubr.bf16.gmra.mrb[0].mxu0 %v378
  %v908 = vpop.f32.mrb[0].mxu0
  %v909 = vadd.f32 0.0, %v908
  %v910 = vpop.f32.mrb[0].mxu0
  %v911 = vpop.f32.mrb[0].mxu0
  %v912 = vadd.f32 0.0, %v911
  %v913 = vpop.f32.mrb[0].mxu0
  %914 = vmatprep.mubr.bf16.mxu0 %v387
  %915 = vmatmul.mubr.bf16.gmra.mrb[0].mxu0 %v386
  %v916 = vpop.f32.mrb[0].mxu0
  %v917 = vadd.f32 0.0, %v916
  %v918 = vpop.f32.mrb[0].mxu0
  %v919 = vpop.f32.mrb[0].mxu0
  %v920 = vadd.f32 0.0, %v919
  %v921 = vpop.f32.mrb[0].mxu0
  %922 = vmatprep.mubr.bf16.mxu0 %v395
  %923 = vmatmul.mubr.bf16.gmra.mrb[0].mxu0 %v394
  %v924 = vpop.f32.mrb[0].mxu0
  %v925 = vadd.f32 0.0, %v924
  %v926 = vpop.f32.mrb[0].mxu0
  %v927 = vpop.f32.mrb[0].mxu0
  %v928 = vadd.f32 0.0, %v927
  %v929 = vpop.f32.mrb[0].mxu0
  %930 = vmatprep.mubr.bf16.mxu0 %v403
  %931 = vmatmul.mubr.bf16.gmra.mrb[0].mxu0 %v402
  %v932 = vpop.f32.mrb[0].mxu0
  %v933 = vadd.f32 0.0, %v932
  %v934 = vpop.f32.mrb[0].mxu0
  %v935 = vpop.f32.mrb[0].mxu0
  %v936 = vpop.f32.mrb[0].mxu0
  %937 = vdwg.mxu0
  %938 = vmatprep.subr.bf16.mxu0 0
  %939 = vmatpush1.bf16.msra.mxu0 %v738
  %940 = vmatprep.subr.bf16.mxu0 0
  %941 = vmatpush1.bf16.msra.mxu0 %v739
  %942 = vmatprep.subr.bf16.mxu0 0
  %943 = vmatpush1.bf16.msra.mxu0 %v740
  %944 = vmatprep.subr.bf16.mxu0 0
  %945 = vmatpush1.bf16.msra.mxu0 %v741
  %946 = vmatprep.subr.bf16.mxu0 0
  %947 = vmatpush1.bf16.msra.mxu0 %v742
  %948 = vmatprep.subr.bf16.mxu0 0
  %949 = vmatpush1.bf16.msra.mxu0 %v743
  %950 = vmatprep.subr.bf16.mxu0 0
  %951 = vmatpush1.bf16.msra.mxu0 %v744
  %952 = vmatprep.subr.bf16.mxu0 0
  %953 = vmatpush1.bf16.msra.mxu0 %v745
  %954 = vmatprep.subr.bf16.mxu0 0
  %955 = vmatpush1.bf16.msra.mxu0 %v746
  %956 = vmatprep.subr.bf16.mxu0 0
  %957 = vmatpush1.bf16.msra.mxu0 %v747
  %958 = vmatprep.subr.bf16.mxu0 0
  %959 = vmatpush1.bf16.msra.mxu0 %v748
  %960 = vmatprep.subr.bf16.mxu0 0
  %961 = vmatpush1.bf16.msra.mxu0 %v749
  %962 = vmatprep.subr.bf16.mxu0 0
  %963 = vmatpush1.bf16.msra.mxu0 %v750
  %964 = vmatprep.subr.bf16.mxu0 0
  %965 = vmatpush1.bf16.msra.mxu0 %v751
  %966 = vmatprep.subr.bf16.mxu0 0
  %967 = vmatpush1.bf16.msra.mxu0 %v752
  %968 = vmatprep.subr.bf16.mxu0 0
  %969 = vmatpush1.bf16.msra.mxu0 %v753
  %970 = vmatprep.mubr.bf16.mxu0 %v357
  %971 = vmatmul.mubr.bf16.gmra.mrb[0].mxu0 %v356
  %v972 = vpop.f32.mrb[0].mxu0
  %v973 = vadd.f32 %v885, %v972
  %v974 = vpop.f32.mrb[0].mxu0
  %v975 = vpop.f32.mrb[0].mxu0
  %v976 = vadd.f32 %v888, %v975
  %v977 = vpop.f32.mrb[0].mxu0
  %978 = vmatprep.mubr.bf16.mxu0 %v365
  %979 = vmatmul.mubr.bf16.gmra.mrb[0].mxu0 %v364
  %v980 = vpop.f32.mrb[0].mxu0
  %v981 = vadd.f32 %v893, %v980
  %v982 = vpop.f32.mrb[0].mxu0
  %v983 = vpop.f32.mrb[0].mxu0
  %v984 = vadd.f32 %v896, %v983
  %v985 = vpop.f32.mrb[0].mxu0
  %986 = vmatprep.mubr.bf16.mxu0 %v373
  %987 = vmatmul.mubr.bf16.gmra.mrb[0].mxu0 %v372
  %v988 = vpop.f32.mrb[0].mxu0
  %v989 = vadd.f32 %v901, %v988
  %v990 = vpop.f32.mrb[0].mxu0
  %v991 = vpop.f32.mrb[0].mxu0
  %v992 = vadd.f32 %v904, %v991
  %v993 = vpop.f32.mrb[0].mxu0
  %994 = vmatprep.mubr.bf16.mxu0 %v381
  %995 = vmatmul.mubr.bf16.gmra.mrb[0].mxu0 %v380
  %v996 = vpop.f32.mrb[0].mxu0
  %v997 = vadd.f32 %v909, %v996
  %v998 = vpop.f32.mrb[0].mxu0
  %v999 = vpop.f32.mrb[0].mxu0
  %v1000 = vadd.f32 %v912, %v999
  %v1001 = vpop.f32.mrb[0].mxu0
  %1002 = vmatprep.mubr.bf16.mxu0 %v389
  %1003 = vmatmul.mubr.bf16.gmra.mrb[0].mxu0 %v388
  %v1004 = vpop.f32.mrb[0].mxu0
  %v1005 = vadd.f32 %v917, %v1004
  %v1006 = vpop.f32.mrb[0].mxu0
  %v1007 = vpop.f32.mrb[0].mxu0
  %v1008 = vadd.f32 %v920, %v1007
  %v1009 = vpop.f32.mrb[0].mxu0
  %1010 = vmatprep.mubr.bf16.mxu0 %v397
  %1011 = vmatmul.mubr.bf16.gmra.mrb[0].mxu0 %v396
  %v1012 = vpop.f32.mrb[0].mxu0
  %v1013 = vadd.f32 %v925, %v1012
  %v1014 = vpop.f32.mrb[0].mxu0
  %v1015 = vpop.f32.mrb[0].mxu0
  %v1016 = vadd.f32 %v928, %v1015
  %v1017 = vpop.f32.mrb[0].mxu0
  %1018 = vmatprep.mubr.bf16.mxu0 %v405
  %1019 = vmatmul.mubr.bf16.gmra.mrb[0].mxu0 %v404
  %v1020 = vpop.f32.mrb[0].mxu0
  %v1021 = vadd.f32 %v933, %v1020
  %v1022 = vpop.f32.mrb[0].mxu0
  %v1023 = vpop.f32.mrb[0].mxu0
  %v1024 = vpop.f32.mrb[0].mxu0
  %1025 = vdwg.mxu0
  %1026 = vmatprep.subr.bf16.mxu0 0
  %1027 = vmatpush1.bf16.msra.mxu0 %v754
  %1028 = vmatprep.subr.bf16.mxu0 0
  %1029 = vmatpush1.bf16.msra.mxu0 %v755
  %1030 = vmatprep.subr.bf16.mxu0 0
  %1031 = vmatpush1.bf16.msra.mxu0 %v756
  %1032 = vmatprep.subr.bf16.mxu0 0
  %1033 = vmatpush1.bf16.msra.mxu0 %v757
  %1034 = vmatprep.subr.bf16.mxu0 0
  %1035 = vmatpush1.bf16.msra.mxu0 %v758
  %1036 = vmatprep.subr.bf16.mxu0 0
  %1037 = vmatpush1.bf16.msra.mxu0 %v759
  %1038 = vmatprep.subr.bf16.mxu0 0
  %1039 = vmatpush1.bf16.msra.mxu0 %v760
  %1040 = vmatprep.subr.bf16.mxu0 0
  %1041 = vmatpush1.bf16.msra.mxu0 %v761
  %1042 = vmatprep.subr.bf16.mxu0 0
  %1043 = vmatpush1.bf16.msra.mxu0 %v762
  %1044 = vmatprep.subr.bf16.mxu0 0
  %1045 = vmatpush1.bf16.msra.mxu0 %v763
  %1046 = vmatprep.subr.bf16.mxu0 0
  %1047 = vmatpush1.bf16.msra.mxu0 %v764
  %1048 = vmatprep.subr.bf16.mxu0 0
  %1049 = vmatpush1.bf16.msra.mxu0 %v765
  %1050 = vmatprep.subr.bf16.mxu0 0
  %1051 = vmatpush1.bf16.msra.mxu0 %v766
  %1052 = vmatprep.subr.bf16.mxu0 0
  %1053 = vmatpush1.bf16.msra.mxu0 %v767
  %1054 = vmatprep.subr.bf16.mxu0 0
  %1055 = vmatpush1.bf16.msra.mxu0 %v768
  %1056 = vmatprep.subr.bf16.mxu0 0
  %1057 = vmatpush1.bf16.msra.mxu0 %v769
  %1058 = vmatprep.mubr.bf16.mxu0 %v359
  %1059 = vmatmul.mubr.bf16.gmra.mrb[0].mxu0 %v358
  %v1060 = vpop.f32.mrb[0].mxu0
  %v1061 = vadd.f32 %v973, %v1060
  %v1062 = vpop.f32.mrb[0].mxu0
  %v1063 = vpop.f32.mrb[0].mxu0
  %v1064 = vadd.f32 %v976, %v1063
  %v1065 = vpop.f32.mrb[0].mxu0
  %1066 = vmatprep.mubr.bf16.mxu0 %v367
  %1067 = vmatmul.mubr.bf16.gmra.mrb[0].mxu0 %v366
  %v1068 = vpop.f32.mrb[0].mxu0
  %v1069 = vadd.f32 %v981, %v1068
  %v1070 = vpop.f32.mrb[0].mxu0
  %v1071 = vpop.f32.mrb[0].mxu0
  %v1072 = vadd.f32 %v984, %v1071
  %v1073 = vpop.f32.mrb[0].mxu0
  %1074 = vmatprep.mubr.bf16.mxu0 %v375
  %1075 = vmatmul.mubr.bf16.gmra.mrb[0].mxu0 %v374
  %v1076 = vpop.f32.mrb[0].mxu0
  %v1077 = vadd.f32 %v989, %v1076
  %v1078 = vpop.f32.mrb[0].mxu0
  %v1079 = vpop.f32.mrb[0].mxu0
  %v1080 = vadd.f32 %v992, %v1079
  %v1081 = vpop.f32.mrb[0].mxu0
  %1082 = vmatprep.mubr.bf16.mxu0 %v383
  %1083 = vmatmul.mubr.bf16.gmra.mrb[0].mxu0 %v382
  %v1084 = vpop.f32.mrb[0].mxu0
  %v1085 = vadd.f32 %v997, %v1084
  %v1086 = vpop.f32.mrb[0].mxu0
  %v1087 = vpop.f32.mrb[0].mxu0
  %v1088 = vadd.f32 %v1000, %v1087
  %v1089 = vpop.f32.mrb[0].mxu0
  %1090 = vmatprep.mubr.bf16.mxu0 %v391
  %1091 = vmatmul.mubr.bf16.gmra.mrb[0].mxu0 %v390
  %v1092 = vpop.f32.mrb[0].mxu0
  %v1093 = vadd.f32 %v1005, %v1092
  %v1094 = vpop.f32.mrb[0].mxu0
  %v1095 = vpop.f32.mrb[0].mxu0
  %v1096 = vadd.f32 %v1008, %v1095
  %v1097 = vpop.f32.mrb[0].mxu0
  %1098 = vmatprep.mubr.bf16.mxu0 %v399
  %1099 = vmatmul.mubr.bf16.gmra.mrb[0].mxu0 %v398
  %v1100 = vpop.f32.mrb[0].mxu0
  %v1101 = vadd.f32 %v1013, %v1100
  %v1102 = vpop.f32.mrb[0].mxu0
  %v1103 = vpop.f32.mrb[0].mxu0
  %v1104 = vadd.f32 %v1016, %v1103
  %v1105 = vpop.f32.mrb[0].mxu0
  %1106 = vmatprep.mubr.bf16.mxu0 %v407
  %1107 = vmatmul.mubr.bf16.gmra.mrb[0].mxu0 %v406
  %v1108 = vpop.f32.mrb[0].mxu0
  %v1109 = vadd.f32 %v1021, %v1108
  %v1110 = vpop.f32.mrb[0].mxu0
  %v1111 = vpop.f32.mrb[0].mxu0
  %v1112 = vpop.f32.mrb[0].mxu0
  %1113 = vdwg.mxu0
  %1114 = vmatprep.subr.bf16.mxu0 0
  %1115 = vmatpush1.bf16.msra.mxu0 %v770
  %1116 = vmatprep.subr.bf16.mxu0 0
  %1117 = vmatpush1.bf16.msra.mxu0 %v771
  %1118 = vmatprep.subr.bf16.mxu0 0
  %1119 = vmatpush1.bf16.msra.mxu0 %v772
  %1120 = vmatprep.subr.bf16.mxu0 0
  %1121 = vmatpush1.bf16.msra.mxu0 %v773
  %1122 = vmatprep.subr.bf16.mxu0 0
  %1123 = vmatpush1.bf16.msra.mxu0 %v774
  %1124 = vmatprep.subr.bf16.mxu0 0
  %1125 = vmatpush1.bf16.msra.mxu0 %v775
  %1126 = vmatprep.subr.bf16.mxu0 0
  %1127 = vmatpush1.bf16.msra.mxu0 %v776
  %1128 = vmatprep.subr.bf16.mxu0 0
  %1129 = vmatpush1.bf16.msra.mxu0 %v777
  %1130 = vmatprep.subr.bf16.mxu0 0
  %1131 = vmatpush1.bf16.msra.mxu0 %v778
  %1132 = vmatprep.subr.bf16.mxu0 0
  %1133 = vmatpush1.bf16.msra.mxu0 %v779
  %1134 = vmatprep.subr.bf16.mxu0 0
  %1135 = vmatpush1.bf16.msra.mxu0 %v780
  %1136 = vmatprep.subr.bf16.mxu0 0
  %1137 = vmatpush1.bf16.msra.mxu0 %v781
  %1138 = vmatprep.subr.bf16.mxu0 0
  %1139 = vmatpush1.bf16.msra.mxu0 %v782
  %1140 = vmatprep.subr.bf16.mxu0 0
  %1141 = vmatpush1.bf16.msra.mxu0 %v783
  %1142 = vmatprep.subr.bf16.mxu0 0
  %1143 = vmatpush1.bf16.msra.mxu0 %v784
  %1144 = vmatprep.subr.bf16.mxu0 0
  %1145 = vmatpush1.bf16.msra.mxu0 %v785
  %1146 = vmatprep.mubr.bf16.mxu0 %v361
  %1147 = vmatmul.mubr.bf16.gmra.mrb[0].mxu0 %v360
  %v1148 = vpop.f32.mrb[0].mxu0
  %v1149 = vadd.f32 %v1061, %v1148
  %v1150 = vpop.f32.mrb[0].mxu0
  %v1151 = vpop.f32.mrb[0].mxu0
  %v1152 = vadd.f32 %v1064, %v1151
  %v1153 = vpop.f32.mrb[0].mxu0
  %1154 = vmatprep.mubr.bf16.mxu0 %v369
  %1155 = vmatmul.mubr.bf16.gmra.mrb[0].mxu0 %v368
  %v1156 = vpop.f32.mrb[0].mxu0
  %v1157 = vadd.f32 %v1069, %v1156
  %v1158 = vpop.f32.mrb[0].mxu0
  %v1159 = vpop.f32.mrb[0].mxu0
  %v1160 = vadd.f32 %v1072, %v1159
  %v1161 = vpop.f32.mrb[0].mxu0
  %1162 = vmatprep.mubr.bf16.mxu0 %v377
  %1163 = vmatmul.mubr.bf16.gmra.mrb[0].mxu0 %v376
  %v1164 = vpop.f32.mrb[0].mxu0
  %v1165 = vadd.f32 %v1077, %v1164
  %v1166 = vpop.f32.mrb[0].mxu0
  %v1167 = vpop.f32.mrb[0].mxu0
  %v1168 = vadd.f32 %v1080, %v1167
  %v1169 = vpop.f32.mrb[0].mxu0
  %1170 = vmatprep.mubr.bf16.mxu0 %v385
  %1171 = vmatmul.mubr.bf16.gmra.mrb[0].mxu0 %v384
  %v1172 = vpop.f32.mrb[0].mxu0
  %v1173 = vadd.f32 %v1085, %v1172
  %v1174 = vpop.f32.mrb[0].mxu0
  %v1175 = vpop.f32.mrb[0].mxu0
  %v1176 = vadd.f32 %v1088, %v1175
  %v1177 = vpop.f32.mrb[0].mxu0
  %1178 = vmatprep.mubr.bf16.mxu0 %v393
  %1179 = vmatmul.mubr.bf16.gmra.mrb[0].mxu0 %v392
  %v1180 = vpop.f32.mrb[0].mxu0
  %v1181 = vadd.f32 %v1093, %v1180
  %v1182 = vpop.f32.mrb[0].mxu0
  %v1183 = vpop.f32.mrb[0].mxu0
  %v1184 = vadd.f32 %v1096, %v1183
  %v1185 = vpop.f32.mrb[0].mxu0
  %1186 = vmatprep.mubr.bf16.mxu0 %v401
  %1187 = vmatmul.mubr.bf16.gmra.mrb[0].mxu0 %v400
  %v1188 = vpop.f32.mrb[0].mxu0
  %v1189 = vadd.f32 %v1101, %v1188
  %v1190 = vpop.f32.mrb[0].mxu0
  %v1191 = vpop.f32.mrb[0].mxu0
  %v1192 = vadd.f32 %v1104, %v1191
  %v1193 = vpop.f32.mrb[0].mxu0
  %1194 = vmatprep.mubr.bf16.mxu0 %v409
  %1195 = vmatmul.mubr.bf16.gmra.mrb[0].mxu0 %v408
  %v1196 = vpop.f32.mrb[0].mxu0
  %v1197 = vadd.f32 %v1109, %v1196
  %v1198 = vpop.f32.mrb[0].mxu0
  %v1199 = vpop.f32.mrb[0].mxu0
  %v1200 = vpop.f32.mrb[0].mxu0
  %1201 = vdwg.mxu0
  %v1202 = vadd.f32 %v1149, %v1152
  %v1203 = vadd.f32 %v1202, %v1157
  %v1204 = vadd.f32 %v1203, %v1160
  %v1205 = vadd.f32 %v1204, %v1165
  %v1206 = vadd.f32 %v1205, %v1168
  %v1207 = vadd.f32 %v1206, %v1173
  %v1208 = vadd.f32 %v1207, %v1176
  %v1209 = vadd.f32 %v1208, %v1181
  %v1210 = vadd.f32 %v1209, %v1184
  %v1211 = vadd.f32 %v1210, %v1189
  %v1212 = vadd.f32 %v1211, %v1192
  %v1213 = vadd.f32 %v1212, %v1197
  %v1214 = vrot.slane %v1213, 4
  %v1215 = vadd.f32 %v1213, %v1214
  %v1216 = vrot.slane %v1215, 2
  %v1217 = vadd.f32 %v1215, %v1216
  %v1218 = vrot.slane %v1217, 1
  %v1219 = vadd.f32 %v1217, %v1218
  %v1220 = vmul.f32 %v1149, %v1149
  %v1221 = vmul.f32 %v1152, %v1152
  %v1222 = vmul.f32 %v1157, %v1157
  %v1223 = vmul.f32 %v1160, %v1160
  %v1224 = vmul.f32 %v1165, %v1165
  %v1225 = vmul.f32 %v1168, %v1168
  %v1226 = vmul.f32 %v1173, %v1173
  %v1227 = vmul.f32 %v1176, %v1176
  %v1228 = vmul.f32 %v1181, %v1181
  %v1229 = vmul.f32 %v1184, %v1184
  %v1230 = vmul.f32 %v1189, %v1189
  %v1231 = vmul.f32 %v1192, %v1192
  %v1232 = vmul.f32 %v1197, %v1197
  %v1233 = vadd.f32 %v1220, %v1221
  %v1234 = vadd.f32 %v1233, %v1222
  %v1235 = vadd.f32 %v1234, %v1223
  %v1236 = vadd.f32 %v1235, %v1224
  %v1237 = vadd.f32 %v1236, %v1225
  %v1238 = vadd.f32 %v1237, %v1226
  %v1239 = vadd.f32 %v1238, %v1227
  %v1240 = vadd.f32 %v1239, %v1228
  %v1241 = vadd.f32 %v1240, %v1229
  %v1242 = vadd.f32 %v1241, %v1230
  %v1243 = vadd.f32 %v1242, %v1231
  %v1244 = vadd.f32 %v1243, %v1232
  %v1245 = vrot.slane %v1244, 4
  %v1246 = vadd.f32 %v1244, %v1245
  %v1247 = vrot.slane %v1246, 2
  %v1248 = vadd.f32 %v1246, %v1247
  %v1249 = vrot.slane %v1248, 1
  %v1250 = vadd.f32 %v1248, %v1249
  %v1251 = vmul.f32 %v1219, 0.010204081
  %v1252 = vmul.f32 %v1250, 0.010204081
  %v1253 = vmul.f32 %v1251, %v1251
  %v1254 = vsub.f32 %v1252, %v1253
  %v1255 = vld [vmem:[%s2] sm:$0x1]
  %v1256 = vadd.f32 %v1254, 1e-05
  %v1257 = vrsqrt.pop %v1256
  %v1258 = vmul.f32 %v1255, %v1257
  %v1259 = vld [vmem:[%s3] sm:$0x1]
  %v1260 = vmul.f32 %v1251, %v1258
  %v1261 = vsub.f32 %v1259, %v1260
  %v1263 = vlaneseq
  %v1264 = vshrl.u32 %v1263, 7
  %v1265 = vsub.s32 0, %v1264
  %v1266 = vrot.slane %v1258, %v1265
  %v1268 = vmul.f32 %v1149, %v1266
  %v1269 = vmul.f32 %v1152, %v1266
  %v1270 = vmul.f32 %v1157, %v1266
  %v1271 = vmul.f32 %v1160, %v1266
  %v1272 = vmul.f32 %v1165, %v1266
  %v1273 = vmul.f32 %v1168, %v1266
  %v1274 = vmul.f32 %v1173, %v1266
  %v1275 = vmul.f32 %v1176, %v1266
  %v1276 = vmul.f32 %v1181, %v1266
  %v1277 = vmul.f32 %v1184, %v1266
  %v1278 = vmul.f32 %v1189, %v1266
  %v1279 = vmul.f32 %v1192, %v1266
  %v1280 = vmul.f32 %v1197, %v1266
  %v1282 = vlaneseq
  %v1283 = vshrl.u32 %v1282, 7
  %v1284 = vsub.s32 0, %v1283
  %v1285 = vrot.slane %v1261, %v1284
  %v1287 = vadd.f32 %v1268, %v1285
  %v1288 = vadd.f32 %v1269, %v1285
  %v1289 = vadd.f32 %v1270, %v1285
  %v1290 = vadd.f32 %v1271, %v1285
  %v1291 = vadd.f32 %v1272, %v1285
  %v1292 = vadd.f32 %v1273, %v1285
  %v1293 = vadd.f32 %v1274, %v1285
  %v1294 = vadd.f32 %v1275, %v1285
  %v1295 = vadd.f32 %v1276, %v1285
  %v1296 = vadd.f32 %v1277, %v1285
  %v1297 = vadd.f32 %v1278, %v1285
  %v1298 = vadd.f32 %v1279, %v1285
  %v1299 = vadd.f32 %v1280, %v1285
  %vm1300 = vcmp.gt.f32.partialorder %v1287, 0.0
  %vm1301 = vcmp.gt.f32.partialorder %v1288, 0.0
  %vm1302 = vcmp.gt.f32.partialorder %v1289, 0.0
  %vm1303 = vcmp.gt.f32.partialorder %v1290, 0.0
  %vm1304 = vcmp.gt.f32.partialorder %v1291, 0.0
  %vm1305 = vcmp.gt.f32.partialorder %v1292, 0.0
  %vm1306 = vcmp.gt.f32.partialorder %v1293, 0.0
  %vm1307 = vcmp.gt.f32.partialorder %v1294, 0.0
  %vm1308 = vcmp.gt.f32.partialorder %v1295, 0.0
  %vm1309 = vcmp.gt.f32.partialorder %v1296, 0.0
  %vm1310 = vcmp.gt.f32.partialorder %v1297, 0.0
  %vm1311 = vcmp.gt.f32.partialorder %v1298, 0.0
  %vm1312 = vcmp.gt.f32.partialorder %v1299, 0.0
  %v1313 = vmul.f32 %v1287, 0.2
  %v1314 = vmul.f32 %v1288, 0.2
  %v1315 = vmul.f32 %v1289, 0.2
  %v1316 = vmul.f32 %v1290, 0.2
  %v1317 = vmul.f32 %v1291, 0.2
  %v1318 = vmul.f32 %v1292, 0.2
  %v1319 = vmul.f32 %v1293, 0.2
  %v1320 = vmul.f32 %v1294, 0.2
  %v1321 = vmul.f32 %v1295, 0.2
  %v1322 = vmul.f32 %v1296, 0.2
  %v1323 = vmul.f32 %v1297, 0.2
  %v1324 = vmul.f32 %v1298, 0.2
  %v1325 = vmul.f32 %v1299, 0.2
  %v1326 = vsel %vm1300, %v1287, %v1313
  %v1327 = vsel %vm1301, %v1288, %v1314
  %v1328 = vsel %vm1302, %v1289, %v1315
  %v1329 = vsel %vm1303, %v1290, %v1316
  %v1330 = vsel %vm1304, %v1291, %v1317
  %v1331 = vsel %vm1305, %v1292, %v1318
  %v1332 = vsel %vm1306, %v1293, %v1319
  %v1333 = vsel %vm1307, %v1294, %v1320
  %v1334 = vsel %vm1308, %v1295, %v1321
  %v1335 = vsel %vm1309, %v1296, %v1322
  %v1336 = vsel %vm1310, %v1297, %v1323
  %v1337 = vsel %vm1311, %v1298, %v1324
  %v1338 = vsel %vm1312, %v1299, %v1325
  %v1339 = vpack.c.bf16 %v1327, %v1326
  %v1340 = vpack.c.bf16 %v1329, %v1328
  %v1341 = vpack.c.bf16 %v1331, %v1330
  %v1342 = vpack.c.bf16 %v1333, %v1332
  %v1343 = vpack.c.bf16 %v1335, %v1334
  %v1344 = vpack.c.bf16 %v1337, %v1336
  %v1345 = vpack.c.bf16 %v1338, %v1338
  %v1353 = vunpack.c.l.b16 %v1339
  %v1354 = vunpack.c.h.b16 %v1339
  %v1355 = vunpack.c.l.b16 %v1340
  %v1356 = vunpack.c.h.b16 %v1340
  %v1357 = vunpack.c.l.b16 %v1341
  %v1358 = vunpack.c.h.b16 %v1341
  %v1359 = vunpack.c.l.b16 %v1342
  %v1360 = vunpack.c.h.b16 %v1342
  %v1361 = vunpack.c.l.b16 %v1343
  %v1362 = vunpack.c.h.b16 %v1343
  %v1363 = vunpack.c.l.b16 %v1344
  %v1364 = vunpack.c.h.b16 %v1344
  %v1365 = vunpack.c.l.b16 %v1345
  %v1366 = vpack.c.b16 %v1353, %v1353
  %v1367 = vpack.c.b16 %v1354, %v1354
  %v1368 = vpack.c.b16 %v1355, %v1355
  %v1369 = vpack.c.b16 %v1356, %v1356
  %v1370 = vpack.c.b16 %v1357, %v1357
  %v1371 = vpack.c.b16 %v1358, %v1358
  %v1372 = vpack.c.b16 %v1359, %v1359
  %v1373 = vpack.c.b16 %v1360, %v1360
  %v1374 = vpack.c.b16 %v1361, %v1361
  %v1375 = vpack.c.b16 %v1362, %v1362
  %v1376 = vpack.c.b16 %v1363, %v1363
  %v1377 = vpack.c.b16 %v1364, %v1364
  %v1378 = vpack.c.b16 %v1365, %v1365
  %1392 = vst [vmem:[%s4] sm:$0xf] %v1366
  %1393 = vst [vmem:[%s4 + $0x4] sm:$0xf] %v1367
  %1394 = vst [vmem:[%s4 + $0x8] sm:$0xf] %v1368
  %1395 = vst [vmem:[%s4 + $0xc] sm:$0xf] %v1369
  %1396 = vst [vmem:[%s4 + $0x10] sm:$0xf] %v1370
  %1397 = vst [vmem:[%s4 + $0x14] sm:$0xf] %v1371
  %1398 = vst [vmem:[%s4 + $0x18] sm:$0xf] %v1372
  %1399 = vst [vmem:[%s4 + $0x1c] sm:$0xf] %v1373
  %1400 = vst [vmem:[%s4 + $0x20] sm:$0xf] %v1374
  %1401 = vst [vmem:[%s4 + $0x24] sm:$0xf] %v1375
  %1402 = vst [vmem:[%s4 + $0x28] sm:$0xf] %v1376
  %1403 = vst [vmem:[%s4 + $0x2c] sm:$0xf] %v1377
  %1404 = vst [vmem:[%s4 + $0x30] sm:$0xf] %v1378
  // Predicated region
  $region18: #{encoder_forward.5} parent=0 // pred_check
    _
  $region19: #{encoder_forward.5} parent=0 // pred_check_branch
    %1406 = sbr.rel (0) target = $region21
  $region20: #{encoder_forward.5} parent=0 // pred_region
    _
  $region21: #{encoder_forward.5} parent=0 // pred_fallthru
    _
  // Predicated region
  $region22: #{encoder_forward.5} parent=0 // pred_check
    _
  $region23: #{encoder_forward.5} parent=0 // pred_check_branch
    %1408 = sbr.rel (0) target = $region25
  $region24: #{encoder_forward.5} parent=0 // pred_region
    _
  $region25: #{encoder_forward.5} parent=0 // pred_fallthru
    _

// kernel: encoder_forward.6
$region0: #{encoder_forward.6}
  #allocation0 [shape = 'u32[]', space=smem, size = 0x4, offset = 0x4, fixed_abs, tag = 'smem constant byte address 0x4 - core index']
  #allocation1 [shape = 'u32[144,128]{1,0:T(1,128)}', space=vmem, size = 0x12000, scoped, tag = 'internal scratch']
  %s0 = inlined_call_operand.vmem [shape: bf16[24,2048], index: 0, kind: input, shape index: {}]
  %s1 = inlined_call_operand.vmem [shape: bf16[2048,256], index: 1, kind: input, shape index: {}]
  %s2 = inlined_call_operand.vmem [shape: f32[1,256], index: 2, kind: input, shape index: {}]
  %s3 = inlined_call_operand.vmem [shape: f32[1,256], index: 3, kind: input, shape index: {}]
  %s4 = inlined_call_operand.vmem [shape: bf16[24,256], index: 4, kind: output, shape index: {}]
  %s5 = sld [smem:[#allocation0]]
  $region127: #{encoder_forward.6} parent=0
    _
  %s7 = ssub.s32 1, %s5
  %s8 = scalar_select 0, %s7, %s5
  $region1: #{encoder_forward.6} parent=0
    #allocation2 [shape = 'u8[1048576]{0}', space=vmem, size = 0x100000, scoped, tag = 'input window, operand 1']
    #allocation3 [shape = 'u8[12288]{0}', space=vmem, size = 0x3000, scoped, tag = 'output window, operand 0']
    loop: start=0, step=1, limit=4
    $region2: #{encoder_forward.6} parent=1 // loop_pre_header
      _
    $region3: #{encoder_forward.6} parent=1 // loop_header
      %s10 = sphi 0, %s14
      %p11 = scmp.ge.s32.totalorder %s10, 4
      %s18 = sphi 0, %s18
      %s20 = sphi 0, %s18
      %s21 = sphi 0, %s20
      %s35 = sphi 0, %s21
      %s41 = sphi 0, %s43
      %s44 = sphi 0, %s41
      %s45 = sphi 0, %s44
      %s61 = sphi 0, %s45
      %s67 = sphi 0, %s69
      %s70 = sphi 0, %s67
      %s71 = sphi 0, %s70
      %s87 = sphi 0, %s71
      %s93 = sphi 0, %s95
      %s96 = sphi 0, %s93
      %s97 = sphi 0, %s96
      %s113 = sphi 0, %s97
      %s119 = sphi 0, %s121
      %s122 = sphi 0, %s119
      %s123 = sphi 0, %s122
      %s139 = sphi 0, %s123
    $region4: #{encoder_forward.6} parent=1 // loop_header_branch
      %13 = sbr.rel (%p11) target = $region8
    $region5: #{encoder_forward.6} parent=1 // loop_body
      %s15 = ssub.s32 %s10, 1
      %s16 = ssub.s32 %s10, 2
      %s17 = sadd.s32 %s10, 1
      %s19 = sadd.s32 %s18, 1
      %p22 = scmp.eq.s32.totalorder %s10, 1
      %p23 = scmp.ne.s32.totalorder %s18, %s20
      %p24 = scmp.eq.s32.totalorder %s10, 0
      %p25 = por %p23, %p24
      %p26 = scmp.ne.s32.totalorder %s18, %s20
      %p27 = scmp.eq.s32.totalorder %s15, 1
      %p28 = por %p26, %p27
      %p29 = scmp.ne.s32.totalorder %s20, %s21
      %p30 = scmp.eq.s32.totalorder %s15, 0
      %p31 = por %p29, %p30
      %p32 = scmp.ne.s32.totalorder %s20, %s21
      %p33 = scmp.eq.s32.totalorder %s16, 1
      %p34 = por %p32, %p33
      %p36 = scmp.ne.s32.totalorder %s21, %s35
      %p37 = scmp.eq.s32.totalorder %s16, 0
      %p38 = por %p36, %p37
      %s39 = ssub.s32 %s10, %s17
      %p40 = scmp.eq.s32.totalorder %s39, 0
      %s42 = sadd.s32 %s41, 1
      %s43 = scalar_select %p40, %s41, %s42
      %p46 = pneg %p40
      %p47 = scmp.eq.s32.totalorder %s10, 1
      %p48 = por %p46, %p47
      %p49 = scmp.ne.s32.totalorder %s41, %s44
      %p50 = scmp.eq.s32.totalorder %s10, 0
      %p51 = por %p49, %p50
      %p52 = scmp.ne.s32.totalorder %s41, %s44
      %p53 = scmp.eq.s32.totalorder %s15, 1
      %p54 = por %p52, %p53
      %p55 = scmp.ne.s32.totalorder %s44, %s45
      %p56 = scmp.eq.s32.totalorder %s15, 0
      %p57 = por %p55, %p56
      %p58 = scmp.ne.s32.totalorder %s44, %s45
      %p59 = scmp.eq.s32.totalorder %s16, 1
      %p60 = por %p58, %p59
      %p62 = scmp.ne.s32.totalorder %s45, %s61
      %p63 = scmp.eq.s32.totalorder %s16, 0
      %p64 = por %p62, %p63
      %s65 = ssub.s32 %s10, %s17
      %p66 = scmp.eq.s32.totalorder %s65, 0
      %s68 = sadd.s32 %s67, 1
      %s69 = scalar_select %p66, %s67, %s68
      %p72 = pneg %p66
      %p73 = scmp.eq.s32.totalorder %s10, 1
      %p74 = por %p72, %p73
      %p75 = scmp.ne.s32.totalorder %s67, %s70
      %p76 = scmp.eq.s32.totalorder %s10, 0
      %p77 = por %p75, %p76
      %p78 = scmp.ne.s32.totalorder %s67, %s70
      %p79 = scmp.eq.s32.totalorder %s15, 1
      %p80 = por %p78, %p79
      %p81 = scmp.ne.s32.totalorder %s70, %s71
      %p82 = scmp.eq.s32.totalorder %s15, 0
      %p83 = por %p81, %p82
      %p84 = scmp.ne.s32.totalorder %s70, %s71
      %p85 = scmp.eq.s32.totalorder %s16, 1
      %p86 = por %p84, %p85
      %p88 = scmp.ne.s32.totalorder %s71, %s87
      %p89 = scmp.eq.s32.totalorder %s16, 0
      %p90 = por %p88, %p89
      %s91 = ssub.s32 %s10, %s17
      %p92 = scmp.eq.s32.totalorder %s91, 0
      %s94 = sadd.s32 %s93, 1
      %s95 = scalar_select %p92, %s93, %s94
      %p98 = pneg %p92
      %p99 = scmp.eq.s32.totalorder %s10, 1
      %p100 = por %p98, %p99
      %p101 = scmp.ne.s32.totalorder %s93, %s96
      %p102 = scmp.eq.s32.totalorder %s10, 0
      %p103 = por %p101, %p102
      %p104 = scmp.ne.s32.totalorder %s93, %s96
      %p105 = scmp.eq.s32.totalorder %s15, 1
      %p106 = por %p104, %p105
      %p107 = scmp.ne.s32.totalorder %s96, %s97
      %p108 = scmp.eq.s32.totalorder %s15, 0
      %p109 = por %p107, %p108
      %p110 = scmp.ne.s32.totalorder %s96, %s97
      %p111 = scmp.eq.s32.totalorder %s16, 1
      %p112 = por %p110, %p111
      %p114 = scmp.ne.s32.totalorder %s97, %s113
      %p115 = scmp.eq.s32.totalorder %s16, 0
      %p116 = por %p114, %p115
      %s117 = ssub.s32 %s10, %s17
      %p118 = scmp.eq.s32.totalorder %s117, 0
      %s120 = sadd.s32 %s119, 1
      %s121 = scalar_select %p118, %s119, %s120
      %p124 = pneg %p118
      %p125 = scmp.eq.s32.totalorder %s10, 1
      %p126 = por %p124, %p125
      %p127 = scmp.ne.s32.totalorder %s119, %s122
      %p128 = scmp.eq.s32.totalorder %s10, 0
      %p129 = por %p127, %p128
      %p130 = scmp.ne.s32.totalorder %s119, %s122
      %p131 = scmp.eq.s32.totalorder %s15, 1
      %p132 = por %p130, %p131
      %p133 = scmp.ne.s32.totalorder %s122, %s123
      %p134 = scmp.eq.s32.totalorder %s15, 0
      %p135 = por %p133, %p134
      %p136 = scmp.ne.s32.totalorder %s122, %s123
      %p137 = scmp.eq.s32.totalorder %s16, 1
      %p138 = por %p136, %p137
      %p140 = scmp.ne.s32.totalorder %s123, %s139
      %p141 = scmp.eq.s32.totalorder %s16, 0
      %p142 = por %p140, %p141
      %p143 = scmp.le.s32.totalorder 1, %s10
      %p144 = scmp.lt.s32.totalorder %s10, 3
      %p145 = pnand %p143, %p144
      %p146 = pneg %p145
      // Predicated region
      $region9: #{encoder_forward.6} parent=5 // pred_check
        _
      $region10: #{encoder_forward.6} parent=5 // pred_check_branch
        %148 = sbr.rel (%p145) target = $region12
      $region11: #{encoder_forward.6} parent=5 // pred_region
        %s149 = ssub.s32 %s10, 1
        // Predicated region
        $region13: #{encoder_forward.6} parent=11 // pred_check
          %p150 = pneg %p31
        $region14: #{encoder_forward.6} parent=11 // pred_check_branch
          %152 = sbr.rel (%p150) target = $region16
        $region15: #{encoder_forward.6} parent=11 // pred_region
          _
        $region16: #{encoder_forward.6} parent=11 // pred_fallthru
          _
      $region12: #{encoder_forward.6} parent=5 // pred_fallthru
        _
      %p153 = scmp.lt.s32.totalorder %s10, 2
      // Predicated region
      $region17: #{encoder_forward.6} parent=5 // pred_check
        %p154 = pneg %p153
      $region18: #{encoder_forward.6} parent=5 // pred_check_branch
        %156 = sbr.rel (%p154) target = $region20
      $region19: #{encoder_forward.6} parent=5 // pred_region
        // Predicated region
        $region21: #{encoder_forward.6} parent=19 // pred_check
          %p157 = pneg %p51
        $region22: #{encoder_forward.6} parent=19 // pred_check_branch
          %159 = sbr.rel (%p157) target = $region24
        $region23: #{encoder_forward.6} parent=19 // pred_region
          %s160 = sand.u32 %s41, 1
          %s161 = sand.u32 %s41, 1
          %s162 = smul.addr %s161, 1024
          %s163 = scalar_lea.vmem [#allocation2], %s162
          %s164 = smul.addr %s10, 4
          %s165 = scalar_lea.vmem %s1, %s164
          // Predicated region
          $region25: #{encoder_forward.6} parent=23 // pred_check
            _
          $region26: #{encoder_forward.6} parent=23 // pred_check_branch
            %167 = sbr.rel (0) target = $region28
          $region27: #{encoder_forward.6} parent=23 // pred_region
            // Predicated region
            $region29: #{encoder_forward.6} parent=27 // pred_check
              _
            $region30: #{encoder_forward.6} parent=27 // pred_check_branch
              %169 = sbr.rel target = $region32
            $region31: #{encoder_forward.6} parent=27 // pred_region
              // Predicated region
              $region44: #{encoder_forward.6} parent=31 // pred_check
                _
              $region45: #{encoder_forward.6} parent=31 // pred_check_branch
                %694 = sbr.rel (0) target = $region47
              $region46: #{encoder_forward.6} parent=31 // pred_region
                loop: start=0, step=1, limit=1
                $region48: #{encoder_forward.6} parent=46 // loop_pre_header
                  _
                $region49: #{encoder_forward.6} parent=46 // loop_header
                  %s696 = sphi 0, %s700
                  %p697 = scmp.ge.s32.totalorder %s696, 1
                  %s701 = sphi %s165, %s165
                  %s702 = sphi %s163, %s163
                $region50: #{encoder_forward.6} parent=46 // loop_header_branch
                  %699 = sbr.rel (%p697) target = $region54
                $region51: #{encoder_forward.6} parent=46 // loop_body
                  _
                $region52: #{encoder_forward.6} parent=46 // loop_footer
                  %s700 = sadd.s32 1, %s696
                $region53: #{encoder_forward.6} parent=46 // loop_footer_branch
                  %695 = sbr.rel target = $region49
                $region54: #{encoder_forward.6} parent=46 // loop_exit
                  _
                loop: start=0, step=1, limit=1
                $region55: #{encoder_forward.6} parent=46 // loop_pre_header
                  _
                $region56: #{encoder_forward.6} parent=46 // loop_header
                  %s705 = sphi 0, %s709
                  %p706 = scmp.ge.s32.totalorder %s705, 1
                  %s710 = sphi %s165, %s165
                  %s711 = sphi %s163, %s163
                $region57: #{encoder_forward.6} parent=46 // loop_header_branch
                  %708 = sbr.rel (%p706) target = $region61
                $region58: #{encoder_forward.6} parent=46 // loop_body
                  %v712 = vld [vmem:[%s710] sm:$0xf]
                  %713 = vst [vmem:[%s711] sm:$0xf] %v712
                  %v714 = vld [vmem:[%s710 + $0x8] sm:$0xf]
                  %715 = vst [vmem:[%s711 + $0x4] sm:$0xf] %v714
                  %v716 = vld [vmem:[%s710 + $0x10] sm:$0xf]
                  %717 = vst [vmem:[%s711 + $0x8] sm:$0xf] %v716
                  %v718 = vld [vmem:[%s710 + $0x18] sm:$0xf]
                  %719 = vst [vmem:[%s711 + $0xc] sm:$0xf] %v718
                  %v720 = vld [vmem:[%s710 + $0x20] sm:$0xf]
                  %721 = vst [vmem:[%s711 + $0x10] sm:$0xf] %v720
                  %v722 = vld [vmem:[%s710 + $0x28] sm:$0xf]
                  %723 = vst [vmem:[%s711 + $0x14] sm:$0xf] %v722
                  %v724 = vld [vmem:[%s710 + $0x30] sm:$0xf]
                  %725 = vst [vmem:[%s711 + $0x18] sm:$0xf] %v724
                  %v726 = vld [vmem:[%s710 + $0x38] sm:$0xf]
                  %727 = vst [vmem:[%s711 + $0x1c] sm:$0xf] %v726
                  %v728 = vld [vmem:[%s710 + $0x40] sm:$0xf]
                  %729 = vst [vmem:[%s711 + $0x20] sm:$0xf] %v728
                  %v730 = vld [vmem:[%s710 + $0x48] sm:$0xf]
                  %731 = vst [vmem:[%s711 + $0x24] sm:$0xf] %v730
                  %v732 = vld [vmem:[%s710 + $0x50] sm:$0xf]
                  %733 = vst [vmem:[%s711 + $0x28] sm:$0xf] %v732
                  %v734 = vld [vmem:[%s710 + $0x58] sm:$0xf]
                  %735 = vst [vmem:[%s711 + $0x2c] sm:$0xf] %v734
                  %v736 = vld [vmem:[%s710 + $0x60] sm:$0xf]
                  %737 = vst [vmem:[%s711 + $0x30] sm:$0xf] %v736
                  %v738 = vld [vmem:[%s710 + $0x68] sm:$0xf]
                  %739 = vst [vmem:[%s711 + $0x34] sm:$0xf] %v738
                  %v740 = vld [vmem:[%s710 + $0x70] sm:$0xf]
                  %741 = vst [vmem:[%s711 + $0x38] sm:$0xf] %v740
                  %v742 = vld [vmem:[%s710 + $0x78] sm:$0xf]
                  %743 = vst [vmem:[%s711 + $0x3c] sm:$0xf] %v742
                  %v744 = vld [vmem:[%s710 + $0x80] sm:$0xf]
                  %745 = vst [vmem:[%s711 + $0x40] sm:$0xf] %v744
                  %v746 = vld [vmem:[%s710 + $0x88] sm:$0xf]
                  %747 = vst [vmem:[%s711 + $0x44] sm:$0xf] %v746
                  %v748 = vld [vmem:[%s710 + $0x90] sm:$0xf]
                  %749 = vst [vmem:[%s711 + $0x48] sm:$0xf] %v748
                  %v750 = vld [vmem:[%s710 + $0x98] sm:$0xf]
                  %751 = vst [vmem:[%s711 + $0x4c] sm:$0xf] %v750
                  %v752 = vld [vmem:[%s710 + $0xa0] sm:$0xf]
                  %753 = vst [vmem:[%s711 + $0x50] sm:$0xf] %v752
                  %v754 = vld [vmem:[%s710 + $0xa8] sm:$0xf]
                  %755 = vst [vmem:[%s711 + $0x54] sm:$0xf] %v754
                  %v756 = vld [vmem:[%s710 + $0xb0] sm:$0xf]
                  %757 = vst [vmem:[%s711 + $0x58] sm:$0xf] %v756
                  %v758 = vld [vmem:[%s710 + $0xb8] sm:$0xf]
                  %759 = vst [vmem:[%s711 + $0x5c] sm:$0xf] %v758
                  %v760 = vld [vmem:[%s710 + $0xc0] sm:$0xf]
                  %761 = vst [vmem:[%s711 + $0x60] sm:$0xf] %v760
                  %v762 = vld [vmem:[%s710 + $0xc8] sm:$0xf]
                  %763 = vst [vmem:[%s711 + $0x64] sm:$0xf] %v762
                  %v764 = vld [vmem:[%s710 + $0xd0] sm:$0xf]
                  %765 = vst [vmem:[%s711 + $0x68] sm:$0xf] %v764
                  %v766 = vld [vmem:[%s710 + $0xd8] sm:$0xf]
                  %767 = vst [vmem:[%s711 + $0x6c] sm:$0xf] %v766
                  %v768 = vld [vmem:[%s710 + $0xe0] sm:$0xf]
                  %769 = vst [vmem:[%s711 + $0x70] sm:$0xf] %v768
                  %v770 = vld [vmem:[%s710 + $0xe8] sm:$0xf]
                  %771 = vst [vmem:[%s711 + $0x74] sm:$0xf] %v770
                  %v772 = vld [vmem:[%s710 + $0xf0] sm:$0xf]
                  %773 = vst [vmem:[%s711 + $0x78] sm:$0xf] %v772
                  %v774 = vld [vmem:[%s710 + $0xf8] sm:$0xf]
                  %775 = vst [vmem:[%s711 + $0x7c] sm:$0xf] %v774
                  %v776 = vld [vmem:[%s710 + $0x100] sm:$0xf]
                  %777 = vst [vmem:[%s711 + $0x80] sm:$0xf] %v776
                  %v778 = vld [vmem:[%s710 + $0x108] sm:$0xf]
                  %779 = vst [vmem:[%s711 + $0x84] sm:$0xf] %v778
                  %v780 = vld [vmem:[%s710 + $0x110] sm:$0xf]
                  %781 = vst [vmem:[%s711 + $0x88] sm:$0xf] %v780
                  %v782 = vld [vmem:[%s710 + $0x118] sm:$0xf]
                  %783 = vst [vmem:[%s711 + $0x8c] sm:$0xf] %v782
                  %v784 = vld [vmem:[%s710 + $0x120] sm:$0xf]
                  %785 = vst [vmem:[%s711 + $0x90] sm:$0xf] %v784
                  %v786 = vld [vmem:[%s710 + $0x128] sm:$0xf]
                  %787 = vst [vmem:[%s711 + $0x94] sm:$0xf] %v786
                  %v788 = vld [vmem:[%s710 + $0x130] sm:$0xf]
                  %789 = vst [vmem:[%s711 + $0x98] sm:$0xf] %v788
                  %v790 = vld [vmem:[%s710 + $0x138] sm:$0xf]
                  %791 = vst [vmem:[%s711 + $0x9c] sm:$0xf] %v790
                  %v792 = vld [vmem:[%s710 + $0x140] sm:$0xf]
                  %793 = vst [vmem:[%s711 + $0xa0] sm:$0xf] %v792
                  %v794 = vld [vmem:[%s710 + $0x148] sm:$0xf]
                  %795 = vst [vmem:[%s711 + $0xa4] sm:$0xf] %v794
                  %v796 = vld [vmem:[%s710 + $0x150] sm:$0xf]
                  %797 = vst [vmem:[%s711 + $0xa8] sm:$0xf] %v796
                  %v798 = vld [vmem:[%s710 + $0x158] sm:$0xf]
                  %799 = vst [vmem:[%s711 + $0xac] sm:$0xf] %v798
                  %v800 = vld [vmem:[%s710 + $0x160] sm:$0xf]
                  %801 = vst [vmem:[%s711 + $0xb0] sm:$0xf] %v800
                  %v802 = vld [vmem:[%s710 + $0x168] sm:$0xf]
                  %803 = vst [vmem:[%s711 + $0xb4] sm:$0xf] %v802
                  %v804 = vld [vmem:[%s710 + $0x170] sm:$0xf]
                  %805 = vst [vmem:[%s711 + $0xb8] sm:$0xf] %v804
                  %v806 = vld [vmem:[%s710 + $0x178] sm:$0xf]
                  %807 = vst [vmem:[%s711 + $0xbc] sm:$0xf] %v806
                  %v808 = vld [vmem:[%s710 + $0x180] sm:$0xf]
                  %809 = vst [vmem:[%s711 + $0xc0] sm:$0xf] %v808
                  %v810 = vld [vmem:[%s710 + $0x188] sm:$0xf]
                  %811 = vst [vmem:[%s711 + $0xc4] sm:$0xf] %v810
                  %v812 = vld [vmem:[%s710 + $0x190] sm:$0xf]
                  %813 = vst [vmem:[%s711 + $0xc8] sm:$0xf] %v812
                  %v814 = vld [vmem:[%s710 + $0x198] sm:$0xf]
                  %815 = vst [vmem:[%s711 + $0xcc] sm:$0xf] %v814
                  %v816 = vld [vmem:[%s710 + $0x1a0] sm:$0xf]
                  %817 = vst [vmem:[%s711 + $0xd0] sm:$0xf] %v816
                  %v818 = vld [vmem:[%s710 + $0x1a8] sm:$0xf]
                  %819 = vst [vmem:[%s711 + $0xd4] sm:$0xf] %v818
                  %v820 = vld [vmem:[%s710 + $0x1b0] sm:$0xf]
                  %821 = vst [vmem:[%s711 + $0xd8] sm:$0xf] %v820
                  %v822 = vld [vmem:[%s710 + $0x1b8] sm:$0xf]
                  %823 = vst [vmem:[%s711 + $0xdc] sm:$0xf] %v822
                  %v824 = vld [vmem:[%s710 + $0x1c0] sm:$0xf]
                  %825 = vst [vmem:[%s711 + $0xe0] sm:$0xf] %v824
                  %v826 = vld [vmem:[%s710 + $0x1c8] sm:$0xf]
                  %827 = vst [vmem:[%s711 + $0xe4] sm:$0xf] %v826
                  %v828 = vld [vmem:[%s710 + $0x1d0] sm:$0xf]
                  %829 = vst [vmem:[%s711 + $0xe8] sm:$0xf] %v828
                  %v830 = vld [vmem:[%s710 + $0x1d8] sm:$0xf]
                  %831 = vst [vmem:[%s711 + $0xec] sm:$0xf] %v830
                  %v832 = vld [vmem:[%s710 + $0x1e0] sm:$0xf]
                  %833 = vst [vmem:[%s711 + $0xf0] sm:$0xf] %v832
                  %v834 = vld [vmem:[%s710 + $0x1e8] sm:$0xf]
                  %835 = vst [vmem:[%s711 + $0xf4] sm:$0xf] %v834
                  %v836 = vld [vmem:[%s710 + $0x1f0] sm:$0xf]
                  %837 = vst [vmem:[%s711 + $0xf8] sm:$0xf] %v836
                  %v838 = vld [vmem:[%s710 + $0x1f8] sm:$0xf]
                  %839 = vst [vmem:[%s711 + $0xfc] sm:$0xf] %v838
                  %v840 = vld [vmem:[%s710 + $0x200] sm:$0xf]
                  %841 = vst [vmem:[%s711 + $0x100] sm:$0xf] %v840
                  %v842 = vld [vmem:[%s710 + $0x208] sm:$0xf]
                  %843 = vst [vmem:[%s711 + $0x104] sm:$0xf] %v842
                  %v844 = vld [vmem:[%s710 + $0x210] sm:$0xf]
                  %845 = vst [vmem:[%s711 + $0x108] sm:$0xf] %v844
                  %v846 = vld [vmem:[%s710 + $0x218] sm:$0xf]
                  %847 = vst [vmem:[%s711 + $0x10c] sm:$0xf] %v846
                  %v848 = vld [vmem:[%s710 + $0x220] sm:$0xf]
                  %849 = vst [vmem:[%s711 + $0x110] sm:$0xf] %v848
                  %v850 = vld [vmem:[%s710 + $0x228] sm:$0xf]
                  %851 = vst [vmem:[%s711 + $0x114] sm:$0xf] %v850
                  %v852 = vld [vmem:[%s710 + $0x230] sm:$0xf]
                  %853 = vst [vmem:[%s711 + $0x118] sm:$0xf] %v852
                  %v854 = vld [vmem:[%s710 + $0x238] sm:$0xf]
                  %855 = vst [vmem:[%s711 + $0x11c] sm:$0xf] %v854
                  %v856 = vld [vmem:[%s710 + $0x240] sm:$0xf]
                  %857 = vst [vmem:[%s711 + $0x120] sm:$0xf] %v856
                  %v858 = vld [vmem:[%s710 + $0x248] sm:$0xf]
                  %859 = vst [vmem:[%s711 + $0x124] sm:$0xf] %v858
                  %v860 = vld [vmem:[%s710 + $0x250] sm:$0xf]
                  %861 = vst [vmem:[%s711 + $0x128] sm:$0xf] %v860
                  %v862 = vld [vmem:[%s710 + $0x258] sm:$0xf]
                  %863 = vst [vmem:[%s711 + $0x12c] sm:$0xf] %v862
                  %v864 = vld [vmem:[%s710 + $0x260] sm:$0xf]
                  %865 = vst [vmem:[%s711 + $0x130] sm:$0xf] %v864
                  %v866 = vld [vmem:[%s710 + $0x268] sm:$0xf]
                  %867 = vst [vmem:[%s711 + $0x134] sm:$0xf] %v866
                  %v868 = vld [vmem:[%s710 + $0x270] sm:$0xf]
                  %869 = vst [vmem:[%s711 + $0x138] sm:$0xf] %v868
                  %v870 = vld [vmem:[%s710 + $0x278] sm:$0xf]
                  %871 = vst [vmem:[%s711 + $0x13c] sm:$0xf] %v870
                  %v872 = vld [vmem:[%s710 + $0x280] sm:$0xf]
                  %873 = vst [vmem:[%s711 + $0x140] sm:$0xf] %v872
                  %v874 = vld [vmem:[%s710 + $0x288] sm:$0xf]
                  %875 = vst [vmem:[%s711 + $0x144] sm:$0xf] %v874
                  %v876 = vld [vmem:[%s710 + $0x290] sm:$0xf]
                  %877 = vst [vmem:[%s711 + $0x148] sm:$0xf] %v876
                  %v878 = vld [vmem:[%s710 + $0x298] sm:$0xf]
                  %879 = vst [vmem:[%s711 + $0x14c] sm:$0xf] %v878
                  %v880 = vld [vmem:[%s710 + $0x2a0] sm:$0xf]
                  %881 = vst [vmem:[%s711 + $0x150] sm:$0xf] %v880
                  %v882 = vld [vmem:[%s710 + $0x2a8] sm:$0xf]
                  %883 = vst [vmem:[%s711 + $0x154] sm:$0xf] %v882
                  %v884 = vld [vmem:[%s710 + $0x2b0] sm:$0xf]
                  %885 = vst [vmem:[%s711 + $0x158] sm:$0xf] %v884
                  %v886 = vld [vmem:[%s710 + $0x2b8] sm:$0xf]
                  %887 = vst [vmem:[%s711 + $0x15c] sm:$0xf] %v886
                  %v888 = vld [vmem:[%s710 + $0x2c0] sm:$0xf]
                  %889 = vst [vmem:[%s711 + $0x160] sm:$0xf] %v888
                  %v890 = vld [vmem:[%s710 + $0x2c8] sm:$0xf]
                  %891 = vst [vmem:[%s711 + $0x164] sm:$0xf] %v890
                  %v892 = vld [vmem:[%s710 + $0x2d0] sm:$0xf]
                  %893 = vst [vmem:[%s711 + $0x168] sm:$0xf] %v892
                  %v894 = vld [vmem:[%s710 + $0x2d8] sm:$0xf]
                  %895 = vst [vmem:[%s711 + $0x16c] sm:$0xf] %v894
                  %v896 = vld [vmem:[%s710 + $0x2e0] sm:$0xf]
                  %897 = vst [vmem:[%s711 + $0x170] sm:$0xf] %v896
                  %v898 = vld [vmem:[%s710 + $0x2e8] sm:$0xf]
                  %899 = vst [vmem:[%s711 + $0x174] sm:$0xf] %v898
                  %v900 = vld [vmem:[%s710 + $0x2f0] sm:$0xf]
                  %901 = vst [vmem:[%s711 + $0x178] sm:$0xf] %v900
                  %v902 = vld [vmem:[%s710 + $0x2f8] sm:$0xf]
                  %903 = vst [vmem:[%s711 + $0x17c] sm:$0xf] %v902
                  %v904 = vld [vmem:[%s710 + $0x300] sm:$0xf]
                  %905 = vst [vmem:[%s711 + $0x180] sm:$0xf] %v904
                  %v906 = vld [vmem:[%s710 + $0x308] sm:$0xf]
                  %907 = vst [vmem:[%s711 + $0x184] sm:$0xf] %v906
                  %v908 = vld [vmem:[%s710 + $0x310] sm:$0xf]
                  %909 = vst [vmem:[%s711 + $0x188] sm:$0xf] %v908
                  %v910 = vld [vmem:[%s710 + $0x318] sm:$0xf]
                  %911 = vst [vmem:[%s711 + $0x18c] sm:$0xf] %v910
                  %v912 = vld [vmem:[%s710 + $0x320] sm:$0xf]
                  %913 = vst [vmem:[%s711 + $0x190] sm:$0xf] %v912
                  %v914 = vld [vmem:[%s710 + $0x328] sm:$0xf]
                  %915 = vst [vmem:[%s711 + $0x194] sm:$0xf] %v914
                  %v916 = vld [vmem:[%s710 + $0x330] sm:$0xf]
                  %917 = vst [vmem:[%s711 + $0x198] sm:$0xf] %v916
                  %v918 = vld [vmem:[%s710 + $0x338] sm:$0xf]
                  %919 = vst [vmem:[%s711 + $0x19c] sm:$0xf] %v918
                  %v920 = vld [vmem:[%s710 + $0x340] sm:$0xf]
                  %921 = vst [vmem:[%s711 + $0x1a0] sm:$0xf] %v920
                  %v922 = vld [vmem:[%s710 + $0x348] sm:$0xf]
                  %923 = vst [vmem:[%s711 + $0x1a4] sm:$0xf] %v922
                  %v924 = vld [vmem:[%s710 + $0x350] sm:$0xf]
                  %925 = vst [vmem:[%s711 + $0x1a8] sm:$0xf] %v924
                  %v926 = vld [vmem:[%s710 + $0x358] sm:$0xf]
                  %927 = vst [vmem:[%s711 + $0x1ac] sm:$0xf] %v926
                  %v928 = vld [vmem:[%s710 + $0x360] sm:$0xf]
                  %929 = vst [vmem:[%s711 + $0x1b0] sm:$0xf] %v928
                  %v930 = vld [vmem:[%s710 + $0x368] sm:$0xf]
                  %931 = vst [vmem:[%s711 + $0x1b4] sm:$0xf] %v930
                  %v932 = vld [vmem:[%s710 + $0x370] sm:$0xf]
                  %933 = vst [vmem:[%s711 + $0x1b8] sm:$0xf] %v932
                  %v934 = vld [vmem:[%s710 + $0x378] sm:$0xf]
                  %935 = vst [vmem:[%s711 + $0x1bc] sm:$0xf] %v934
                  %v936 = vld [vmem:[%s710 + $0x380] sm:$0xf]
                  %937 = vst [vmem:[%s711 + $0x1c0] sm:$0xf] %v936
                  %v938 = vld [vmem:[%s710 + $0x388] sm:$0xf]
                  %939 = vst [vmem:[%s711 + $0x1c4] sm:$0xf] %v938
                  %v940 = vld [vmem:[%s710 + $0x390] sm:$0xf]
                  %941 = vst [vmem:[%s711 + $0x1c8] sm:$0xf] %v940
                  %v942 = vld [vmem:[%s710 + $0x398] sm:$0xf]
                  %943 = vst [vmem:[%s711 + $0x1cc] sm:$0xf] %v942
                  %v944 = vld [vmem:[%s710 + $0x3a0] sm:$0xf]
                  %945 = vst [vmem:[%s711 + $0x1d0] sm:$0xf] %v944
                  %v946 = vld [vmem:[%s710 + $0x3a8] sm:$0xf]
                  %947 = vst [vmem:[%s711 + $0x1d4] sm:$0xf] %v946
                  %v948 = vld [vmem:[%s710 + $0x3b0] sm:$0xf]
                  %949 = vst [vmem:[%s711 + $0x1d8] sm:$0xf] %v948
                  %v950 = vld [vmem:[%s710 + $0x3b8] sm:$0xf]
                  %951 = vst [vmem:[%s711 + $0x1dc] sm:$0xf] %v950
                  %v952 = vld [vmem:[%s710 + $0x3c0] sm:$0xf]
                  %953 = vst [vmem:[%s711 + $0x1e0] sm:$0xf] %v952
                  %v954 = vld [vmem:[%s710 + $0x3c8] sm:$0xf]
                  %955 = vst [vmem:[%s711 + $0x1e4] sm:$0xf] %v954
                  %v956 = vld [vmem:[%s710 + $0x3d0] sm:$0xf]
                  %957 = vst [vmem:[%s711 + $0x1e8] sm:$0xf] %v956
                  %v958 = vld [vmem:[%s710 + $0x3d8] sm:$0xf]
                  %959 = vst [vmem:[%s711 + $0x1ec] sm:$0xf] %v958
                  %v960 = vld [vmem:[%s710 + $0x3e0] sm:$0xf]
                  %961 = vst [vmem:[%s711 + $0x1f0] sm:$0xf] %v960
                  %v962 = vld [vmem:[%s710 + $0x3e8] sm:$0xf]
                  %963 = vst [vmem:[%s711 + $0x1f4] sm:$0xf] %v962
                  %v964 = vld [vmem:[%s710 + $0x3f0] sm:$0xf]
                  %965 = vst [vmem:[%s711 + $0x1f8] sm:$0xf] %v964
                  %v966 = vld [vmem:[%s710 + $0x3f8] sm:$0xf]
                  %967 = vst [vmem:[%s711 + $0x1fc] sm:$0xf] %v966
                  %v968 = vld [vmem:[%s710 + $0x400] sm:$0xf]
                  %969 = vst [vmem:[%s711 + $0x200] sm:$0xf] %v968
                  %v970 = vld [vmem:[%s710 + $0x408] sm:$0xf]
                  %971 = vst [vmem:[%s711 + $0x204] sm:$0xf] %v970
                  %v972 = vld [vmem:[%s710 + $0x410] sm:$0xf]
                  %973 = vst [vmem:[%s711 + $0x208] sm:$0xf] %v972
                  %v974 = vld [vmem:[%s710 + $0x418] sm:$0xf]
                  %975 = vst [vmem:[%s711 + $0x20c] sm:$0xf] %v974
                  %v976 = vld [vmem:[%s710 + $0x420] sm:$0xf]
                  %977 = vst [vmem:[%s711 + $0x210] sm:$0xf] %v976
                  %v978 = vld [vmem:[%s710 + $0x428] sm:$0xf]
                  %979 = vst [vmem:[%s711 + $0x214] sm:$0xf] %v978
                  %v980 = vld [vmem:[%s710 + $0x430] sm:$0xf]
                  %981 = vst [vmem:[%s711 + $0x218] sm:$0xf] %v980
                  %v982 = vld [vmem:[%s710 + $0x438] sm:$0xf]
                  %983 = vst [vmem:[%s711 + $0x21c] sm:$0xf] %v982
                  %v984 = vld [vmem:[%s710 + $0x440] sm:$0xf]
                  %985 = vst [vmem:[%s711 + $0x220] sm:$0xf] %v984
                  %v986 = vld [vmem:[%s710 + $0x448] sm:$0xf]
                  %987 = vst [vmem:[%s711 + $0x224] sm:$0xf] %v986
                  %v988 = vld [vmem:[%s710 + $0x450] sm:$0xf]
                  %989 = vst [vmem:[%s711 + $0x228] sm:$0xf] %v988
                  %v990 = vld [vmem:[%s710 + $0x458] sm:$0xf]
                  %991 = vst [vmem:[%s711 + $0x22c] sm:$0xf] %v990
                  %v992 = vld [vmem:[%s710 + $0x460] sm:$0xf]
                  %993 = vst [vmem:[%s711 + $0x230] sm:$0xf] %v992
                  %v994 = vld [vmem:[%s710 + $0x468] sm:$0xf]
                  %995 = vst [vmem:[%s711 + $0x234] sm:$0xf] %v994
                  %v996 = vld [vmem:[%s710 + $0x470] sm:$0xf]
                  %997 = vst [vmem:[%s711 + $0x238] sm:$0xf] %v996
                  %v998 = vld [vmem:[%s710 + $0x478] sm:$0xf]
                  %999 = vst [vmem:[%s711 + $0x23c] sm:$0xf] %v998
                  %v1000 = vld [vmem:[%s710 + $0x480] sm:$0xf]
                  %1001 = vst [vmem:[%s711 + $0x240] sm:$0xf] %v1000
                  %v1002 = vld [vmem:[%s710 + $0x488] sm:$0xf]
                  %1003 = vst [vmem:[%s711 + $0x244] sm:$0xf] %v1002
                  %v1004 = vld [vmem:[%s710 + $0x490] sm:$0xf]
                  %1005 = vst [vmem:[%s711 + $0x248] sm:$0xf] %v1004
                  %v1006 = vld [vmem:[%s710 + $0x498] sm:$0xf]
                  %1007 = vst [vmem:[%s711 + $0x24c] sm:$0xf] %v1006
                  %v1008 = vld [vmem:[%s710 + $0x4a0] sm:$0xf]
                  %1009 = vst [vmem:[%s711 + $0x250] sm:$0xf] %v1008
                  %v1010 = vld [vmem:[%s710 + $0x4a8] sm:$0xf]
                  %1011 = vst [vmem:[%s711 + $0x254] sm:$0xf] %v1010
                  %v1012 = vld [vmem:[%s710 + $0x4b0] sm:$0xf]
                  %1013 = vst [vmem:[%s711 + $0x258] sm:$0xf] %v1012
                  %v1014 = vld [vmem:[%s710 + $0x4b8] sm:$0xf]
                  %1015 = vst [vmem:[%s711 + $0x25c] sm:$0xf] %v1014
                  %v1016 = vld [vmem:[%s710 + $0x4c0] sm:$0xf]
                  %1017 = vst [vmem:[%s711 + $0x260] sm:$0xf] %v1016
                  %v1018 = vld [vmem:[%s710 + $0x4c8] sm:$0xf]
                  %1019 = vst [vmem:[%s711 + $0x264] sm:$0xf] %v1018
                  %v1020 = vld [vmem:[%s710 + $0x4d0] sm:$0xf]
                  %1021 = vst [vmem:[%s711 + $0x268] sm:$0xf] %v1020
                  %v1022 = vld [vmem:[%s710 + $0x4d8] sm:$0xf]
                  %1023 = vst [vmem:[%s711 + $0x26c] sm:$0xf] %v1022
                  %v1024 = vld [vmem:[%s710 + $0x4e0] sm:$0xf]
                  %1025 = vst [vmem:[%s711 + $0x270] sm:$0xf] %v1024
                  %v1026 = vld [vmem:[%s710 + $0x4e8] sm:$0xf]
                  %1027 = vst [vmem:[%s711 + $0x274] sm:$0xf] %v1026
                  %v1028 = vld [vmem:[%s710 + $0x4f0] sm:$0xf]
                  %1029 = vst [vmem:[%s711 + $0x278] sm:$0xf] %v1028
                  %v1030 = vld [vmem:[%s710 + $0x4f8] sm:$0xf]
                  %1031 = vst [vmem:[%s711 + $0x27c] sm:$0xf] %v1030
                  %v1032 = vld [vmem:[%s710 + $0x500] sm:$0xf]
                  %1033 = vst [vmem:[%s711 + $0x280] sm:$0xf] %v1032
                  %v1034 = vld [vmem:[%s710 + $0x508] sm:$0xf]
                  %1035 = vst [vmem:[%s711 + $0x284] sm:$0xf] %v1034
                  %v1036 = vld [vmem:[%s710 + $0x510] sm:$0xf]
                  %1037 = vst [vmem:[%s711 + $0x288] sm:$0xf] %v1036
                  %v1038 = vld [vmem:[%s710 + $0x518] sm:$0xf]
                  %1039 = vst [vmem:[%s711 + $0x28c] sm:$0xf] %v1038
                  %v1040 = vld [vmem:[%s710 + $0x520] sm:$0xf]
                  %1041 = vst [vmem:[%s711 + $0x290] sm:$0xf] %v1040
                  %v1042 = vld [vmem:[%s710 + $0x528] sm:$0xf]
                  %1043 = vst [vmem:[%s711 + $0x294] sm:$0xf] %v1042
                  %v1044 = vld [vmem:[%s710 + $0x530] sm:$0xf]
                  %1045 = vst [vmem:[%s711 + $0x298] sm:$0xf] %v1044
                  %v1046 = vld [vmem:[%s710 + $0x538] sm:$0xf]
                  %1047 = vst [vmem:[%s711 + $0x29c] sm:$0xf] %v1046
                  %v1048 = vld [vmem:[%s710 + $0x540] sm:$0xf]
                  %1049 = vst [vmem:[%s711 + $0x2a0] sm:$0xf] %v1048
                  %v1050 = vld [vmem:[%s710 + $0x548] sm:$0xf]
                  %1051 = vst [vmem:[%s711 + $0x2a4] sm:$0xf] %v1050
                  %v1052 = vld [vmem:[%s710 + $0x550] sm:$0xf]
                  %1053 = vst [vmem:[%s711 + $0x2a8] sm:$0xf] %v1052
                  %v1054 = vld [vmem:[%s710 + $0x558] sm:$0xf]
                  %1055 = vst [vmem:[%s711 + $0x2ac] sm:$0xf] %v1054
                  %v1056 = vld [vmem:[%s710 + $0x560] sm:$0xf]
                  %1057 = vst [vmem:[%s711 + $0x2b0] sm:$0xf] %v1056
                  %v1058 = vld [vmem:[%s710 + $0x568] sm:$0xf]
                  %1059 = vst [vmem:[%s711 + $0x2b4] sm:$0xf] %v1058
                  %v1060 = vld [vmem:[%s710 + $0x570] sm:$0xf]
                  %1061 = vst [vmem:[%s711 + $0x2b8] sm:$0xf] %v1060
                  %v1062 = vld [vmem:[%s710 + $0x578] sm:$0xf]
                  %1063 = vst [vmem:[%s711 + $0x2bc] sm:$0xf] %v1062
                  %v1064 = vld [vmem:[%s710 + $0x580] sm:$0xf]
                  %1065 = vst [vmem:[%s711 + $0x2c0] sm:$0xf] %v1064
                  %v1066 = vld [vmem:[%s710 + $0x588] sm:$0xf]
                  %1067 = vst [vmem:[%s711 + $0x2c4] sm:$0xf] %v1066
                  %v1068 = vld [vmem:[%s710 + $0x590] sm:$0xf]
                  %1069 = vst [vmem:[%s711 + $0x2c8] sm:$0xf] %v1068
                  %v1070 = vld [vmem:[%s710 + $0x598] sm:$0xf]
                  %1071 = vst [vmem:[%s711 + $0x2cc] sm:$0xf] %v1070
                  %v1072 = vld [vmem:[%s710 + $0x5a0] sm:$0xf]
                  %1073 = vst [vmem:[%s711 + $0x2d0] sm:$0xf] %v1072
                  %v1074 = vld [vmem:[%s710 + $0x5a8] sm:$0xf]
                  %1075 = vst [vmem:[%s711 + $0x2d4] sm:$0xf] %v1074
                  %v1076 = vld [vmem:[%s710 + $0x5b0] sm:$0xf]
                  %1077 = vst [vmem:[%s711 + $0x2d8] sm:$0xf] %v1076
                  %v1078 = vld [vmem:[%s710 + $0x5b8] sm:$0xf]
                  %1079 = vst [vmem:[%s711 + $0x2dc] sm:$0xf] %v1078
                  %v1080 = vld [vmem:[%s710 + $0x5c0] sm:$0xf]
                  %1081 = vst [vmem:[%s711 + $0x2e0] sm:$0xf] %v1080
                  %v1082 = vld [vmem:[%s710 + $0x5c8] sm:$0xf]
                  %1083 = vst [vmem:[%s711 + $0x2e4] sm:$0xf] %v1082
                  %v1084 = vld [vmem:[%s710 + $0x5d0] sm:$0xf]
                  %1085 = vst [vmem:[%s711 + $0x2e8] sm:$0xf] %v1084
                  %v1086 = vld [vmem:[%s710 + $0x5d8] sm:$0xf]
                  %1087 = vst [vmem:[%s711 + $0x2ec] sm:$0xf] %v1086
                  %v1088 = vld [vmem:[%s710 + $0x5e0] sm:$0xf]
                  %1089 = vst [vmem:[%s711 + $0x2f0] sm:$0xf] %v1088
                  %v1090 = vld [vmem:[%s710 + $0x5e8] sm:$0xf]
                  %1091 = vst [vmem:[%s711 + $0x2f4] sm:$0xf] %v1090
                  %v1092 = vld [vmem:[%s710 + $0x5f0] sm:$0xf]
                  %1093 = vst [vmem:[%s711 + $0x2f8] sm:$0xf] %v1092
                  %v1094 = vld [vmem:[%s710 + $0x5f8] sm:$0xf]
                  %1095 = vst [vmem:[%s711 + $0x2fc] sm:$0xf] %v1094
                  %v1096 = vld [vmem:[%s710 + $0x600] sm:$0xf]
                  %1097 = vst [vmem:[%s711 + $0x300] sm:$0xf] %v1096
                  %v1098 = vld [vmem:[%s710 + $0x608] sm:$0xf]
                  %1099 = vst [vmem:[%s711 + $0x304] sm:$0xf] %v1098
                  %v1100 = vld [vmem:[%s710 + $0x610] sm:$0xf]
                  %1101 = vst [vmem:[%s711 + $0x308] sm:$0xf] %v1100
                  %v1102 = vld [vmem:[%s710 + $0x618] sm:$0xf]
                  %1103 = vst [vmem:[%s711 + $0x30c] sm:$0xf] %v1102
                  %v1104 = vld [vmem:[%s710 + $0x620] sm:$0xf]
                  %1105 = vst [vmem:[%s711 + $0x310] sm:$0xf] %v1104
                  %v1106 = vld [vmem:[%s710 + $0x628] sm:$0xf]
                  %1107 = vst [vmem:[%s711 + $0x314] sm:$0xf] %v1106
                  %v1108 = vld [vmem:[%s710 + $0x630] sm:$0xf]
                  %1109 = vst [vmem:[%s711 + $0x318] sm:$0xf] %v1108
                  %v1110 = vld [vmem:[%s710 + $0x638] sm:$0xf]
                  %1111 = vst [vmem:[%s711 + $0x31c] sm:$0xf] %v1110
                  %v1112 = vld [vmem:[%s710 + $0x640] sm:$0xf]
                  %1113 = vst [vmem:[%s711 + $0x320] sm:$0xf] %v1112
                  %v1114 = vld [vmem:[%s710 + $0x648] sm:$0xf]
                  %1115 = vst [vmem:[%s711 + $0x324] sm:$0xf] %v1114
                  %v1116 = vld [vmem:[%s710 + $0x650] sm:$0xf]
                  %1117 = vst [vmem:[%s711 + $0x328] sm:$0xf] %v1116
                  %v1118 = vld [vmem:[%s710 + $0x658] sm:$0xf]
                  %1119 = vst [vmem:[%s711 + $0x32c] sm:$0xf] %v1118
                  %v1120 = vld [vmem:[%s710 + $0x660] sm:$0xf]
                  %1121 = vst [vmem:[%s711 + $0x330] sm:$0xf] %v1120
                  %v1122 = vld [vmem:[%s710 + $0x668] sm:$0xf]
                  %1123 = vst [vmem:[%s711 + $0x334] sm:$0xf] %v1122
                  %v1124 = vld [vmem:[%s710 + $0x670] sm:$0xf]
                  %1125 = vst [vmem:[%s711 + $0x338] sm:$0xf] %v1124
                  %v1126 = vld [vmem:[%s710 + $0x678] sm:$0xf]
                  %1127 = vst [vmem:[%s711 + $0x33c] sm:$0xf] %v1126
                  %v1128 = vld [vmem:[%s710 + $0x680] sm:$0xf]
                  %1129 = vst [vmem:[%s711 + $0x340] sm:$0xf] %v1128
                  %v1130 = vld [vmem:[%s710 + $0x688] sm:$0xf]
                  %1131 = vst [vmem:[%s711 + $0x344] sm:$0xf] %v1130
                  %v1132 = vld [vmem:[%s710 + $0x690] sm:$0xf]
                  %1133 = vst [vmem:[%s711 + $0x348] sm:$0xf] %v1132
                  %v1134 = vld [vmem:[%s710 + $0x698] sm:$0xf]
                  %1135 = vst [vmem:[%s711 + $0x34c] sm:$0xf] %v1134
                  %v1136 = vld [vmem:[%s710 + $0x6a0] sm:$0xf]
                  %1137 = vst [vmem:[%s711 + $0x350] sm:$0xf] %v1136
                  %v1138 = vld [vmem:[%s710 + $0x6a8] sm:$0xf]
                  %1139 = vst [vmem:[%s711 + $0x354] sm:$0xf] %v1138
                  %v1140 = vld [vmem:[%s710 + $0x6b0] sm:$0xf]
                  %1141 = vst [vmem:[%s711 + $0x358] sm:$0xf] %v1140
                  %v1142 = vld [vmem:[%s710 + $0x6b8] sm:$0xf]
                  %1143 = vst [vmem:[%s711 + $0x35c] sm:$0xf] %v1142
                  %v1144 = vld [vmem:[%s710 + $0x6c0] sm:$0xf]
                  %1145 = vst [vmem:[%s711 + $0x360] sm:$0xf] %v1144
                  %v1146 = vld [vmem:[%s710 + $0x6c8] sm:$0xf]
                  %1147 = vst [vmem:[%s711 + $0x364] sm:$0xf] %v1146
                  %v1148 = vld [vmem:[%s710 + $0x6d0] sm:$0xf]
                  %1149 = vst [vmem:[%s711 + $0x368] sm:$0xf] %v1148
                  %v1150 = vld [vmem:[%s710 + $0x6d8] sm:$0xf]
                  %1151 = vst [vmem:[%s711 + $0x36c] sm:$0xf] %v1150
                  %v1152 = vld [vmem:[%s710 + $0x6e0] sm:$0xf]
                  %1153 = vst [vmem:[%s711 + $0x370] sm:$0xf] %v1152
                  %v1154 = vld [vmem:[%s710 + $0x6e8] sm:$0xf]
                  %1155 = vst [vmem:[%s711 + $0x374] sm:$0xf] %v1154
                  %v1156 = vld [vmem:[%s710 + $0x6f0] sm:$0xf]
                  %1157 = vst [vmem:[%s711 + $0x378] sm:$0xf] %v1156
                  %v1158 = vld [vmem:[%s710 + $0x6f8] sm:$0xf]
                  %1159 = vst [vmem:[%s711 + $0x37c] sm:$0xf] %v1158
                  %v1160 = vld [vmem:[%s710 + $0x700] sm:$0xf]
                  %1161 = vst [vmem:[%s711 + $0x380] sm:$0xf] %v1160
                  %v1162 = vld [vmem:[%s710 + $0x708] sm:$0xf]
                  %1163 = vst [vmem:[%s711 + $0x384] sm:$0xf] %v1162
                  %v1164 = vld [vmem:[%s710 + $0x710] sm:$0xf]
                  %1165 = vst [vmem:[%s711 + $0x388] sm:$0xf] %v1164
                  %v1166 = vld [vmem:[%s710 + $0x718] sm:$0xf]
                  %1167 = vst [vmem:[%s711 + $0x38c] sm:$0xf] %v1166
                  %v1168 = vld [vmem:[%s710 + $0x720] sm:$0xf]
                  %1169 = vst [vmem:[%s711 + $0x390] sm:$0xf] %v1168
                  %v1170 = vld [vmem:[%s710 + $0x728] sm:$0xf]
                  %1171 = vst [vmem:[%s711 + $0x394] sm:$0xf] %v1170
                  %v1172 = vld [vmem:[%s710 + $0x730] sm:$0xf]
                  %1173 = vst [vmem:[%s711 + $0x398] sm:$0xf] %v1172
                  %v1174 = vld [vmem:[%s710 + $0x738] sm:$0xf]
                  %1175 = vst [vmem:[%s711 + $0x39c] sm:$0xf] %v1174
                  %v1176 = vld [vmem:[%s710 + $0x740] sm:$0xf]
                  %1177 = vst [vmem:[%s711 + $0x3a0] sm:$0xf] %v1176
                  %v1178 = vld [vmem:[%s710 + $0x748] sm:$0xf]
                  %1179 = vst [vmem:[%s711 + $0x3a4] sm:$0xf] %v1178
                  %v1180 = vld [vmem:[%s710 + $0x750] sm:$0xf]
                  %1181 = vst [vmem:[%s711 + $0x3a8] sm:$0xf] %v1180
                  %v1182 = vld [vmem:[%s710 + $0x758] sm:$0xf]
                  %1183 = vst [vmem:[%s711 + $0x3ac] sm:$0xf] %v1182
                  %v1184 = vld [vmem:[%s710 + $0x760] sm:$0xf]
                  %1185 = vst [vmem:[%s711 + $0x3b0] sm:$0xf] %v1184
                  %v1186 = vld [vmem:[%s710 + $0x768] sm:$0xf]
                  %1187 = vst [vmem:[%s711 + $0x3b4] sm:$0xf] %v1186
                  %v1188 = vld [vmem:[%s710 + $0x770] sm:$0xf]
                  %1189 = vst [vmem:[%s711 + $0x3b8] sm:$0xf] %v1188
                  %v1190 = vld [vmem:[%s710 + $0x778] sm:$0xf]
                  %1191 = vst [vmem:[%s711 + $0x3bc] sm:$0xf] %v1190
                  %v1192 = vld [vmem:[%s710 + $0x780] sm:$0xf]
                  %1193 = vst [vmem:[%s711 + $0x3c0] sm:$0xf] %v1192
                  %v1194 = vld [vmem:[%s710 + $0x788] sm:$0xf]
                  %1195 = vst [vmem:[%s711 + $0x3c4] sm:$0xf] %v1194
                  %v1196 = vld [vmem:[%s710 + $0x790] sm:$0xf]
                  %1197 = vst [vmem:[%s711 + $0x3c8] sm:$0xf] %v1196
                  %v1198 = vld [vmem:[%s710 + $0x798] sm:$0xf]
                  %1199 = vst [vmem:[%s711 + $0x3cc] sm:$0xf] %v1198
                  %v1200 = vld [vmem:[%s710 + $0x7a0] sm:$0xf]
                  %1201 = vst [vmem:[%s711 + $0x3d0] sm:$0xf] %v1200
                  %v1202 = vld [vmem:[%s710 + $0x7a8] sm:$0xf]
                  %1203 = vst [vmem:[%s711 + $0x3d4] sm:$0xf] %v1202
                  %v1204 = vld [vmem:[%s710 + $0x7b0] sm:$0xf]
                  %1205 = vst [vmem:[%s711 + $0x3d8] sm:$0xf] %v1204
                  %v1206 = vld [vmem:[%s710 + $0x7b8] sm:$0xf]
                  %1207 = vst [vmem:[%s711 + $0x3dc] sm:$0xf] %v1206
                  %v1208 = vld [vmem:[%s710 + $0x7c0] sm:$0xf]
                  %1209 = vst [vmem:[%s711 + $0x3e0] sm:$0xf] %v1208
                  %v1210 = vld [vmem:[%s710 + $0x7c8] sm:$0xf]
                  %1211 = vst [vmem:[%s711 + $0x3e4] sm:$0xf] %v1210
                  %v1212 = vld [vmem:[%s710 + $0x7d0] sm:$0xf]
                  %1213 = vst [vmem:[%s711 + $0x3e8] sm:$0xf] %v1212
                  %v1214 = vld [vmem:[%s710 + $0x7d8] sm:$0xf]
                  %1215 = vst [vmem:[%s711 + $0x3ec] sm:$0xf] %v1214
                  %v1216 = vld [vmem:[%s710 + $0x7e0] sm:$0xf]
                  %1217 = vst [vmem:[%s711 + $0x3f0] sm:$0xf] %v1216
                  %v1218 = vld [vmem:[%s710 + $0x7e8] sm:$0xf]
                  %1219 = vst [vmem:[%s711 + $0x3f4] sm:$0xf] %v1218
                  %v1220 = vld [vmem:[%s710 + $0x7f0] sm:$0xf]
                  %1221 = vst [vmem:[%s711 + $0x3f8] sm:$0xf] %v1220
                  %v1222 = vld [vmem:[%s710 + $0x7f8] sm:$0xf]
                  %1223 = vst [vmem:[%s711 + $0x3fc] sm:$0xf] %v1222
                $region59: #{encoder_forward.6} parent=46 // loop_footer
                  %s709 = sadd.s32 1, %s705
                $region60: #{encoder_forward.6} parent=46 // loop_footer_branch
                  %704 = sbr.rel target = $region56
                $region61: #{encoder_forward.6} parent=46 // loop_exit
                  _
              $region47: #{encoder_forward.6} parent=31 // pred_fallthru
                _
            $region32: #{encoder_forward.6} parent=27 // pred_fallthru
              _
            // Predicated region
            $region33: #{encoder_forward.6} parent=27 // pred_check
              _
            $region34: #{encoder_forward.6} parent=27 // pred_check_branch
              %171 = sbr.rel (0) target = $region36
            $region35: #{encoder_forward.6} parent=27 // pred_region
              loop: start=0, step=1, limit=1
              $region37: #{encoder_forward.6} parent=35 // loop_pre_header
                _
              $region38: #{encoder_forward.6} parent=35 // loop_header
                %s174 = sphi 0, %s178
                %p175 = scmp.ge.s32.totalorder %s174, 1
                %s179 = sphi %s165, %s165
                %s180 = sphi %s163, %s163
              $region39: #{encoder_forward.6} parent=35 // loop_header_branch
                %177 = sbr.rel (%p175) target = $region43
              $region40: #{encoder_forward.6} parent=35 // loop_body
                %v181 = vld [vmem:[%s179] sm:$0xf]
                %182 = vst [vmem:[%s180] sm:$0xf] %v181
                %v183 = vld [vmem:[%s179 + $0x8] sm:$0xf]
                %184 = vst [vmem:[%s180 + $0x4] sm:$0xf] %v183
                %v185 = vld [vmem:[%s179 + $0x10] sm:$0xf]
                %186 = vst [vmem:[%s180 + $0x8] sm:$0xf] %v185
                %v187 = vld [vmem:[%s179 + $0x18] sm:$0xf]
                %188 = vst [vmem:[%s180 + $0xc] sm:$0xf] %v187
                %v189 = vld [vmem:[%s179 + $0x20] sm:$0xf]
                %190 = vst [vmem:[%s180 + $0x10] sm:$0xf] %v189
                %v191 = vld [vmem:[%s179 + $0x28] sm:$0xf]
                %192 = vst [vmem:[%s180 + $0x14] sm:$0xf] %v191
                %v193 = vld [vmem:[%s179 + $0x30] sm:$0xf]
                %194 = vst [vmem:[%s180 + $0x18] sm:$0xf] %v193
                %v195 = vld [vmem:[%s179 + $0x38] sm:$0xf]
                %196 = vst [vmem:[%s180 + $0x1c] sm:$0xf] %v195
                %v197 = vld [vmem:[%s179 + $0x40] sm:$0xf]
                %198 = vst [vmem:[%s180 + $0x20] sm:$0xf] %v197
                %v199 = vld [vmem:[%s179 + $0x48] sm:$0xf]
                %200 = vst [vmem:[%s180 + $0x24] sm:$0xf] %v199
                %v201 = vld [vmem:[%s179 + $0x50] sm:$0xf]
                %202 = vst [vmem:[%s180 + $0x28] sm:$0xf] %v201
                %v203 = vld [vmem:[%s179 + $0x58] sm:$0xf]
                %204 = vst [vmem:[%s180 + $0x2c] sm:$0xf] %v203
                %v205 = vld [vmem:[%s179 + $0x60] sm:$0xf]
                %206 = vst [vmem:[%s180 + $0x30] sm:$0xf] %v205
                %v207 = vld [vmem:[%s179 + $0x68] sm:$0xf]
                %208 = vst [vmem:[%s180 + $0x34] sm:$0xf] %v207
                %v209 = vld [vmem:[%s179 + $0x70] sm:$0xf]
                %210 = vst [vmem:[%s180 + $0x38] sm:$0xf] %v209
                %v211 = vld [vmem:[%s179 + $0x78] sm:$0xf]
                %212 = vst [vmem:[%s180 + $0x3c] sm:$0xf] %v211
                %v213 = vld [vmem:[%s179 + $0x80] sm:$0xf]
                %214 = vst [vmem:[%s180 + $0x40] sm:$0xf] %v213
                %v215 = vld [vmem:[%s179 + $0x88] sm:$0xf]
                %216 = vst [vmem:[%s180 + $0x44] sm:$0xf] %v215
                %v217 = vld [vmem:[%s179 + $0x90] sm:$0xf]
                %218 = vst [vmem:[%s180 + $0x48] sm:$0xf] %v217
                %v219 = vld [vmem:[%s179 + $0x98] sm:$0xf]
                %220 = vst [vmem:[%s180 + $0x4c] sm:$0xf] %v219
                %v221 = vld [vmem:[%s179 + $0xa0] sm:$0xf]
                %222 = vst [vmem:[%s180 + $0x50] sm:$0xf] %v221
                %v223 = vld [vmem:[%s179 + $0xa8] sm:$0xf]
                %224 = vst [vmem:[%s180 + $0x54] sm:$0xf] %v223
                %v225 = vld [vmem:[%s179 + $0xb0] sm:$0xf]
                %226 = vst [vmem:[%s180 + $0x58] sm:$0xf] %v225
                %v227 = vld [vmem:[%s179 + $0xb8] sm:$0xf]
                %228 = vst [vmem:[%s180 + $0x5c] sm:$0xf] %v227
                %v229 = vld [vmem:[%s179 + $0xc0] sm:$0xf]
                %230 = vst [vmem:[%s180 + $0x60] sm:$0xf] %v229
                %v231 = vld [vmem:[%s179 + $0xc8] sm:$0xf]
                %232 = vst [vmem:[%s180 + $0x64] sm:$0xf] %v231
                %v233 = vld [vmem:[%s179 + $0xd0] sm:$0xf]
                %234 = vst [vmem:[%s180 + $0x68] sm:$0xf] %v233
                %v235 = vld [vmem:[%s179 + $0xd8] sm:$0xf]
                %236 = vst [vmem:[%s180 + $0x6c] sm:$0xf] %v235
                %v237 = vld [vmem:[%s179 + $0xe0] sm:$0xf]
                %238 = vst [vmem:[%s180 + $0x70] sm:$0xf] %v237
                %v239 = vld [vmem:[%s179 + $0xe8] sm:$0xf]
                %240 = vst [vmem:[%s180 + $0x74] sm:$0xf] %v239
                %v241 = vld [vmem:[%s179 + $0xf0] sm:$0xf]
                %242 = vst [vmem:[%s180 + $0x78] sm:$0xf] %v241
                %v243 = vld [vmem:[%s179 + $0xf8] sm:$0xf]
                %244 = vst [vmem:[%s180 + $0x7c] sm:$0xf] %v243
                %v245 = vld [vmem:[%s179 + $0x100] sm:$0xf]
                %246 = vst [vmem:[%s180 + $0x80] sm:$0xf] %v245
                %v247 = vld [vmem:[%s179 + $0x108] sm:$0xf]
                %248 = vst [vmem:[%s180 + $0x84] sm:$0xf] %v247
                %v249 = vld [vmem:[%s179 + $0x110] sm:$0xf]
                %250 = vst [vmem:[%s180 + $0x88] sm:$0xf] %v249
                %v251 = vld [vmem:[%s179 + $0x118] sm:$0xf]
                %252 = vst [vmem:[%s180 + $0x8c] sm:$0xf] %v251
                %v253 = vld [vmem:[%s179 + $0x120] sm:$0xf]
                %254 = vst [vmem:[%s180 + $0x90] sm:$0xf] %v253
                %v255 = vld [vmem:[%s179 + $0x128] sm:$0xf]
                %256 = vst [vmem:[%s180 + $0x94] sm:$0xf] %v255
                %v257 = vld [vmem:[%s179 + $0x130] sm:$0xf]
                %258 = vst [vmem:[%s180 + $0x98] sm:$0xf] %v257
                %v259 = vld [vmem:[%s179 + $0x138] sm:$0xf]
                %260 = vst [vmem:[%s180 + $0x9c] sm:$0xf] %v259
                %v261 = vld [vmem:[%s179 + $0x140] sm:$0xf]
                %262 = vst [vmem:[%s180 + $0xa0] sm:$0xf] %v261
                %v263 = vld [vmem:[%s179 + $0x148] sm:$0xf]
                %264 = vst [vmem:[%s180 + $0xa4] sm:$0xf] %v263
                %v265 = vld [vmem:[%s179 + $0x150] sm:$0xf]
                %266 = vst [vmem:[%s180 + $0xa8] sm:$0xf] %v265
                %v267 = vld [vmem:[%s179 + $0x158] sm:$0xf]
                %268 = vst [vmem:[%s180 + $0xac] sm:$0xf] %v267
                %v269 = vld [vmem:[%s179 + $0x160] sm:$0xf]
                %270 = vst [vmem:[%s180 + $0xb0] sm:$0xf] %v269
                %v271 = vld [vmem:[%s179 + $0x168] sm:$0xf]
                %272 = vst [vmem:[%s180 + $0xb4] sm:$0xf] %v271
                %v273 = vld [vmem:[%s179 + $0x170] sm:$0xf]
                %274 = vst [vmem:[%s180 + $0xb8] sm:$0xf] %v273
                %v275 = vld [vmem:[%s179 + $0x178] sm:$0xf]
                %276 = vst [vmem:[%s180 + $0xbc] sm:$0xf] %v275
                %v277 = vld [vmem:[%s179 + $0x180] sm:$0xf]
                %278 = vst [vmem:[%s180 + $0xc0] sm:$0xf] %v277
                %v279 = vld [vmem:[%s179 + $0x188] sm:$0xf]
                %280 = vst [vmem:[%s180 + $0xc4] sm:$0xf] %v279
                %v281 = vld [vmem:[%s179 + $0x190] sm:$0xf]
                %282 = vst [vmem:[%s180 + $0xc8] sm:$0xf] %v281
                %v283 = vld [vmem:[%s179 + $0x198] sm:$0xf]
                %284 = vst [vmem:[%s180 + $0xcc] sm:$0xf] %v283
                %v285 = vld [vmem:[%s179 + $0x1a0] sm:$0xf]
                %286 = vst [vmem:[%s180 + $0xd0] sm:$0xf] %v285
                %v287 = vld [vmem:[%s179 + $0x1a8] sm:$0xf]
                %288 = vst [vmem:[%s180 + $0xd4] sm:$0xf] %v287
                %v289 = vld [vmem:[%s179 + $0x1b0] sm:$0xf]
                %290 = vst [vmem:[%s180 + $0xd8] sm:$0xf] %v289
                %v291 = vld [vmem:[%s179 + $0x1b8] sm:$0xf]
                %292 = vst [vmem:[%s180 + $0xdc] sm:$0xf] %v291
                %v293 = vld [vmem:[%s179 + $0x1c0] sm:$0xf]
                %294 = vst [vmem:[%s180 + $0xe0] sm:$0xf] %v293
                %v295 = vld [vmem:[%s179 + $0x1c8] sm:$0xf]
                %296 = vst [vmem:[%s180 + $0xe4] sm:$0xf] %v295
                %v297 = vld [vmem:[%s179 + $0x1d0] sm:$0xf]
                %298 = vst [vmem:[%s180 + $0xe8] sm:$0xf] %v297
                %v299 = vld [vmem:[%s179 + $0x1d8] sm:$0xf]
                %300 = vst [vmem:[%s180 + $0xec] sm:$0xf] %v299
                %v301 = vld [vmem:[%s179 + $0x1e0] sm:$0xf]
                %302 = vst [vmem:[%s180 + $0xf0] sm:$0xf] %v301
                %v303 = vld [vmem:[%s179 + $0x1e8] sm:$0xf]
                %304 = vst [vmem:[%s180 + $0xf4] sm:$0xf] %v303
                %v305 = vld [vmem:[%s179 + $0x1f0] sm:$0xf]
                %306 = vst [vmem:[%s180 + $0xf8] sm:$0xf] %v305
                %v307 = vld [vmem:[%s179 + $0x1f8] sm:$0xf]
                %308 = vst [vmem:[%s180 + $0xfc] sm:$0xf] %v307
                %v309 = vld [vmem:[%s179 + $0x200] sm:$0xf]
                %310 = vst [vmem:[%s180 + $0x100] sm:$0xf] %v309
                %v311 = vld [vmem:[%s179 + $0x208] sm:$0xf]
                %312 = vst [vmem:[%s180 + $0x104] sm:$0xf] %v311
                %v313 = vld [vmem:[%s179 + $0x210] sm:$0xf]
                %314 = vst [vmem:[%s180 + $0x108] sm:$0xf] %v313
                %v315 = vld [vmem:[%s179 + $0x218] sm:$0xf]
                %316 = vst [vmem:[%s180 + $0x10c] sm:$0xf] %v315
                %v317 = vld [vmem:[%s179 + $0x220] sm:$0xf]
                %318 = vst [vmem:[%s180 + $0x110] sm:$0xf] %v317
                %v319 = vld [vmem:[%s179 + $0x228] sm:$0xf]
                %320 = vst [vmem:[%s180 + $0x114] sm:$0xf] %v319
                %v321 = vld [vmem:[%s179 + $0x230] sm:$0xf]
                %322 = vst [vmem:[%s180 + $0x118] sm:$0xf] %v321
                %v323 = vld [vmem:[%s179 + $0x238] sm:$0xf]
                %324 = vst [vmem:[%s180 + $0x11c] sm:$0xf] %v323
                %v325 = vld [vmem:[%s179 + $0x240] sm:$0xf]
                %326 = vst [vmem:[%s180 + $0x120] sm:$0xf] %v325
                %v327 = vld [vmem:[%s179 + $0x248] sm:$0xf]
                %328 = vst [vmem:[%s180 + $0x124] sm:$0xf] %v327
                %v329 = vld [vmem:[%s179 + $0x250] sm:$0xf]
                %330 = vst [vmem:[%s180 + $0x128] sm:$0xf] %v329
                %v331 = vld [vmem:[%s179 + $0x258] sm:$0xf]
                %332 = vst [vmem:[%s180 + $0x12c] sm:$0xf] %v331
                %v333 = vld [vmem:[%s179 + $0x260] sm:$0xf]
                %334 = vst [vmem:[%s180 + $0x130] sm:$0xf] %v333
                %v335 = vld [vmem:[%s179 + $0x268] sm:$0xf]
                %336 = vst [vmem:[%s180 + $0x134] sm:$0xf] %v335
                %v337 = vld [vmem:[%s179 + $0x270] sm:$0xf]
                %338 = vst [vmem:[%s180 + $0x138] sm:$0xf] %v337
                %v339 = vld [vmem:[%s179 + $0x278] sm:$0xf]
                %340 = vst [vmem:[%s180 + $0x13c] sm:$0xf] %v339
                %v341 = vld [vmem:[%s179 + $0x280] sm:$0xf]
                %342 = vst [vmem:[%s180 + $0x140] sm:$0xf] %v341
                %v343 = vld [vmem:[%s179 + $0x288] sm:$0xf]
                %344 = vst [vmem:[%s180 + $0x144] sm:$0xf] %v343
                %v345 = vld [vmem:[%s179 + $0x290] sm:$0xf]
                %346 = vst [vmem:[%s180 + $0x148] sm:$0xf] %v345
                %v347 = vld [vmem:[%s179 + $0x298] sm:$0xf]
                %348 = vst [vmem:[%s180 + $0x14c] sm:$0xf] %v347
                %v349 = vld [vmem:[%s179 + $0x2a0] sm:$0xf]
                %350 = vst [vmem:[%s180 + $0x150] sm:$0xf] %v349
                %v351 = vld [vmem:[%s179 + $0x2a8] sm:$0xf]
                %352 = vst [vmem:[%s180 + $0x154] sm:$0xf] %v351
                %v353 = vld [vmem:[%s179 + $0x2b0] sm:$0xf]
                %354 = vst [vmem:[%s180 + $0x158] sm:$0xf] %v353
                %v355 = vld [vmem:[%s179 + $0x2b8] sm:$0xf]
                %356 = vst [vmem:[%s180 + $0x15c] sm:$0xf] %v355
                %v357 = vld [vmem:[%s179 + $0x2c0] sm:$0xf]
                %358 = vst [vmem:[%s180 + $0x160] sm:$0xf] %v357
                %v359 = vld [vmem:[%s179 + $0x2c8] sm:$0xf]
                %360 = vst [vmem:[%s180 + $0x164] sm:$0xf] %v359
                %v361 = vld [vmem:[%s179 + $0x2d0] sm:$0xf]
                %362 = vst [vmem:[%s180 + $0x168] sm:$0xf] %v361
                %v363 = vld [vmem:[%s179 + $0x2d8] sm:$0xf]
                %364 = vst [vmem:[%s180 + $0x16c] sm:$0xf] %v363
                %v365 = vld [vmem:[%s179 + $0x2e0] sm:$0xf]
                %366 = vst [vmem:[%s180 + $0x170] sm:$0xf] %v365
                %v367 = vld [vmem:[%s179 + $0x2e8] sm:$0xf]
                %368 = vst [vmem:[%s180 + $0x174] sm:$0xf] %v367
                %v369 = vld [vmem:[%s179 + $0x2f0] sm:$0xf]
                %370 = vst [vmem:[%s180 + $0x178] sm:$0xf] %v369
                %v371 = vld [vmem:[%s179 + $0x2f8] sm:$0xf]
                %372 = vst [vmem:[%s180 + $0x17c] sm:$0xf] %v371
                %v373 = vld [vmem:[%s179 + $0x300] sm:$0xf]
                %374 = vst [vmem:[%s180 + $0x180] sm:$0xf] %v373
                %v375 = vld [vmem:[%s179 + $0x308] sm:$0xf]
                %376 = vst [vmem:[%s180 + $0x184] sm:$0xf] %v375
                %v377 = vld [vmem:[%s179 + $0x310] sm:$0xf]
                %378 = vst [vmem:[%s180 + $0x188] sm:$0xf] %v377
                %v379 = vld [vmem:[%s179 + $0x318] sm:$0xf]
                %380 = vst [vmem:[%s180 + $0x18c] sm:$0xf] %v379
                %v381 = vld [vmem:[%s179 + $0x320] sm:$0xf]
                %382 = vst [vmem:[%s180 + $0x190] sm:$0xf] %v381
                %v383 = vld [vmem:[%s179 + $0x328] sm:$0xf]
                %384 = vst [vmem:[%s180 + $0x194] sm:$0xf] %v383
                %v385 = vld [vmem:[%s179 + $0x330] sm:$0xf]
                %386 = vst [vmem:[%s180 + $0x198] sm:$0xf] %v385
                %v387 = vld [vmem:[%s179 + $0x338] sm:$0xf]
                %388 = vst [vmem:[%s180 + $0x19c] sm:$0xf] %v387
                %v389 = vld [vmem:[%s179 + $0x340] sm:$0xf]
                %390 = vst [vmem:[%s180 + $0x1a0] sm:$0xf] %v389
                %v391 = vld [vmem:[%s179 + $0x348] sm:$0xf]
                %392 = vst [vmem:[%s180 + $0x1a4] sm:$0xf] %v391
                %v393 = vld [vmem:[%s179 + $0x350] sm:$0xf]
                %394 = vst [vmem:[%s180 + $0x1a8] sm:$0xf] %v393
                %v395 = vld [vmem:[%s179 + $0x358] sm:$0xf]
                %396 = vst [vmem:[%s180 + $0x1ac] sm:$0xf] %v395
                %v397 = vld [vmem:[%s179 + $0x360] sm:$0xf]
                %398 = vst [vmem:[%s180 + $0x1b0] sm:$0xf] %v397
                %v399 = vld [vmem:[%s179 + $0x368] sm:$0xf]
                %400 = vst [vmem:[%s180 + $0x1b4] sm:$0xf] %v399
                %v401 = vld [vmem:[%s179 + $0x370] sm:$0xf]
                %402 = vst [vmem:[%s180 + $0x1b8] sm:$0xf] %v401
                %v403 = vld [vmem:[%s179 + $0x378] sm:$0xf]
                %404 = vst [vmem:[%s180 + $0x1bc] sm:$0xf] %v403
                %v405 = vld [vmem:[%s179 + $0x380] sm:$0xf]
                %406 = vst [vmem:[%s180 + $0x1c0] sm:$0xf] %v405
                %v407 = vld [vmem:[%s179 + $0x388] sm:$0xf]
                %408 = vst [vmem:[%s180 + $0x1c4] sm:$0xf] %v407
                %v409 = vld [vmem:[%s179 + $0x390] sm:$0xf]
                %410 = vst [vmem:[%s180 + $0x1c8] sm:$0xf] %v409
                %v411 = vld [vmem:[%s179 + $0x398] sm:$0xf]
                %412 = vst [vmem:[%s180 + $0x1cc] sm:$0xf] %v411
                %v413 = vld [vmem:[%s179 + $0x3a0] sm:$0xf]
                %414 = vst [vmem:[%s180 + $0x1d0] sm:$0xf] %v413
                %v415 = vld [vmem:[%s179 + $0x3a8] sm:$0xf]
                %416 = vst [vmem:[%s180 + $0x1d4] sm:$0xf] %v415
                %v417 = vld [vmem:[%s179 + $0x3b0] sm:$0xf]
                %418 = vst [vmem:[%s180 + $0x1d8] sm:$0xf] %v417
                %v419 = vld [vmem:[%s179 + $0x3b8] sm:$0xf]
                %420 = vst [vmem:[%s180 + $0x1dc] sm:$0xf] %v419
                %v421 = vld [vmem:[%s179 + $0x3c0] sm:$0xf]
                %422 = vst [vmem:[%s180 + $0x1e0] sm:$0xf] %v421
                %v423 = vld [vmem:[%s179 + $0x3c8] sm:$0xf]
                %424 = vst [vmem:[%s180 + $0x1e4] sm:$0xf] %v423
                %v425 = vld [vmem:[%s179 + $0x3d0] sm:$0xf]
                %426 = vst [vmem:[%s180 + $0x1e8] sm:$0xf] %v425
                %v427 = vld [vmem:[%s179 + $0x3d8] sm:$0xf]
                %428 = vst [vmem:[%s180 + $0x1ec] sm:$0xf] %v427
                %v429 = vld [vmem:[%s179 + $0x3e0] sm:$0xf]
                %430 = vst [vmem:[%s180 + $0x1f0] sm:$0xf] %v429
                %v431 = vld [vmem:[%s179 + $0x3e8] sm:$0xf]
                %432 = vst [vmem:[%s180 + $0x1f4] sm:$0xf] %v431
                %v433 = vld [vmem:[%s179 + $0x3f0] sm:$0xf]
                %434 = vst [vmem:[%s180 + $0x1f8] sm:$0xf] %v433
                %v435 = vld [vmem:[%s179 + $0x3f8] sm:$0xf]
                %436 = vst [vmem:[%s180 + $0x1fc] sm:$0xf] %v435
                %v437 = vld [vmem:[%s179 + $0x400] sm:$0xf]
                %438 = vst [vmem:[%s180 + $0x200] sm:$0xf] %v437
                %v439 = vld [vmem:[%s179 + $0x408] sm:$0xf]
                %440 = vst [vmem:[%s180 + $0x204] sm:$0xf] %v439
                %v441 = vld [vmem:[%s179 + $0x410] sm:$0xf]
                %442 = vst [vmem:[%s180 + $0x208] sm:$0xf] %v441
                %v443 = vld [vmem:[%s179 + $0x418] sm:$0xf]
                %444 = vst [vmem:[%s180 + $0x20c] sm:$0xf] %v443
                %v445 = vld [vmem:[%s179 + $0x420] sm:$0xf]
                %446 = vst [vmem:[%s180 + $0x210] sm:$0xf] %v445
                %v447 = vld [vmem:[%s179 + $0x428] sm:$0xf]
                %448 = vst [vmem:[%s180 + $0x214] sm:$0xf] %v447
                %v449 = vld [vmem:[%s179 + $0x430] sm:$0xf]
                %450 = vst [vmem:[%s180 + $0x218] sm:$0xf] %v449
                %v451 = vld [vmem:[%s179 + $0x438] sm:$0xf]
                %452 = vst [vmem:[%s180 + $0x21c] sm:$0xf] %v451
                %v453 = vld [vmem:[%s179 + $0x440] sm:$0xf]
                %454 = vst [vmem:[%s180 + $0x220] sm:$0xf] %v453
                %v455 = vld [vmem:[%s179 + $0x448] sm:$0xf]
                %456 = vst [vmem:[%s180 + $0x224] sm:$0xf] %v455
                %v457 = vld [vmem:[%s179 + $0x450] sm:$0xf]
                %458 = vst [vmem:[%s180 + $0x228] sm:$0xf] %v457
                %v459 = vld [vmem:[%s179 + $0x458] sm:$0xf]
                %460 = vst [vmem:[%s180 + $0x22c] sm:$0xf] %v459
                %v461 = vld [vmem:[%s179 + $0x460] sm:$0xf]
                %462 = vst [vmem:[%s180 + $0x230] sm:$0xf] %v461
                %v463 = vld [vmem:[%s179 + $0x468] sm:$0xf]
                %464 = vst [vmem:[%s180 + $0x234] sm:$0xf] %v463
                %v465 = vld [vmem:[%s179 + $0x470] sm:$0xf]
                %466 = vst [vmem:[%s180 + $0x238] sm:$0xf] %v465
                %v467 = vld [vmem:[%s179 + $0x478] sm:$0xf]
                %468 = vst [vmem:[%s180 + $0x23c] sm:$0xf] %v467
                %v469 = vld [vmem:[%s179 + $0x480] sm:$0xf]
                %470 = vst [vmem:[%s180 + $0x240] sm:$0xf] %v469
                %v471 = vld [vmem:[%s179 + $0x488] sm:$0xf]
                %472 = vst [vmem:[%s180 + $0x244] sm:$0xf] %v471
                %v473 = vld [vmem:[%s179 + $0x490] sm:$0xf]
                %474 = vst [vmem:[%s180 + $0x248] sm:$0xf] %v473
                %v475 = vld [vmem:[%s179 + $0x498] sm:$0xf]
                %476 = vst [vmem:[%s180 + $0x24c] sm:$0xf] %v475
                %v477 = vld [vmem:[%s179 + $0x4a0] sm:$0xf]
                %478 = vst [vmem:[%s180 + $0x250] sm:$0xf] %v477
                %v479 = vld [vmem:[%s179 + $0x4a8] sm:$0xf]
                %480 = vst [vmem:[%s180 + $0x254] sm:$0xf] %v479
                %v481 = vld [vmem:[%s179 + $0x4b0] sm:$0xf]
                %482 = vst [vmem:[%s180 + $0x258] sm:$0xf] %v481
                %v483 = vld [vmem:[%s179 + $0x4b8] sm:$0xf]
                %484 = vst [vmem:[%s180 + $0x25c] sm:$0xf] %v483
                %v485 = vld [vmem:[%s179 + $0x4c0] sm:$0xf]
                %486 = vst [vmem:[%s180 + $0x260] sm:$0xf] %v485
                %v487 = vld [vmem:[%s179 + $0x4c8] sm:$0xf]
                %488 = vst [vmem:[%s180 + $0x264] sm:$0xf] %v487
                %v489 = vld [vmem:[%s179 + $0x4d0] sm:$0xf]
                %490 = vst [vmem:[%s180 + $0x268] sm:$0xf] %v489
                %v491 = vld [vmem:[%s179 + $0x4d8] sm:$0xf]
                %492 = vst [vmem:[%s180 + $0x26c] sm:$0xf] %v491
                %v493 = vld [vmem:[%s179 + $0x4e0] sm:$0xf]
                %494 = vst [vmem:[%s180 + $0x270] sm:$0xf] %v493
                %v495 = vld [vmem:[%s179 + $0x4e8] sm:$0xf]
                %496 = vst [vmem:[%s180 + $0x274] sm:$0xf] %v495
                %v497 = vld [vmem:[%s179 + $0x4f0] sm:$0xf]
                %498 = vst [vmem:[%s180 + $0x278] sm:$0xf] %v497
                %v499 = vld [vmem:[%s179 + $0x4f8] sm:$0xf]
                %500 = vst [vmem:[%s180 + $0x27c] sm:$0xf] %v499
                %v501 = vld [vmem:[%s179 + $0x500] sm:$0xf]
                %502 = vst [vmem:[%s180 + $0x280] sm:$0xf] %v501
                %v503 = vld [vmem:[%s179 + $0x508] sm:$0xf]
                %504 = vst [vmem:[%s180 + $0x284] sm:$0xf] %v503
                %v505 = vld [vmem:[%s179 + $0x510] sm:$0xf]
                %506 = vst [vmem:[%s180 + $0x288] sm:$0xf] %v505
                %v507 = vld [vmem:[%s179 + $0x518] sm:$0xf]
                %508 = vst [vmem:[%s180 + $0x28c] sm:$0xf] %v507
                %v509 = vld [vmem:[%s179 + $0x520] sm:$0xf]
                %510 = vst [vmem:[%s180 + $0x290] sm:$0xf] %v509
                %v511 = vld [vmem:[%s179 + $0x528] sm:$0xf]
                %512 = vst [vmem:[%s180 + $0x294] sm:$0xf] %v511
                %v513 = vld [vmem:[%s179 + $0x530] sm:$0xf]
                %514 = vst [vmem:[%s180 + $0x298] sm:$0xf] %v513
                %v515 = vld [vmem:[%s179 + $0x538] sm:$0xf]
                %516 = vst [vmem:[%s180 + $0x29c] sm:$0xf] %v515
                %v517 = vld [vmem:[%s179 + $0x540] sm:$0xf]
                %518 = vst [vmem:[%s180 + $0x2a0] sm:$0xf] %v517
                %v519 = vld [vmem:[%s179 + $0x548] sm:$0xf]
                %520 = vst [vmem:[%s180 + $0x2a4] sm:$0xf] %v519
                %v521 = vld [vmem:[%s179 + $0x550] sm:$0xf]
                %522 = vst [vmem:[%s180 + $0x2a8] sm:$0xf] %v521
                %v523 = vld [vmem:[%s179 + $0x558] sm:$0xf]
                %524 = vst [vmem:[%s180 + $0x2ac] sm:$0xf] %v523
                %v525 = vld [vmem:[%s179 + $0x560] sm:$0xf]
                %526 = vst [vmem:[%s180 + $0x2b0] sm:$0xf] %v525
                %v527 = vld [vmem:[%s179 + $0x568] sm:$0xf]
                %528 = vst [vmem:[%s180 + $0x2b4] sm:$0xf] %v527
                %v529 = vld [vmem:[%s179 + $0x570] sm:$0xf]
                %530 = vst [vmem:[%s180 + $0x2b8] sm:$0xf] %v529
                %v531 = vld [vmem:[%s179 + $0x578] sm:$0xf]
                %532 = vst [vmem:[%s180 + $0x2bc] sm:$0xf] %v531
                %v533 = vld [vmem:[%s179 + $0x580] sm:$0xf]
                %534 = vst [vmem:[%s180 + $0x2c0] sm:$0xf] %v533
                %v535 = vld [vmem:[%s179 + $0x588] sm:$0xf]
                %536 = vst [vmem:[%s180 + $0x2c4] sm:$0xf] %v535
                %v537 = vld [vmem:[%s179 + $0x590] sm:$0xf]
                %538 = vst [vmem:[%s180 + $0x2c8] sm:$0xf] %v537
                %v539 = vld [vmem:[%s179 + $0x598] sm:$0xf]
                %540 = vst [vmem:[%s180 + $0x2cc] sm:$0xf] %v539
                %v541 = vld [vmem:[%s179 + $0x5a0] sm:$0xf]
                %542 = vst [vmem:[%s180 + $0x2d0] sm:$0xf] %v541
                %v543 = vld [vmem:[%s179 + $0x5a8] sm:$0xf]
                %544 = vst [vmem:[%s180 + $0x2d4] sm:$0xf] %v543
                %v545 = vld [vmem:[%s179 + $0x5b0] sm:$0xf]
                %546 = vst [vmem:[%s180 + $0x2d8] sm:$0xf] %v545
                %v547 = vld [vmem:[%s179 + $0x5b8] sm:$0xf]
                %548 = vst [vmem:[%s180 + $0x2dc] sm:$0xf] %v547
                %v549 = vld [vmem:[%s179 + $0x5c0] sm:$0xf]
                %550 = vst [vmem:[%s180 + $0x2e0] sm:$0xf] %v549
                %v551 = vld [vmem:[%s179 + $0x5c8] sm:$0xf]
                %552 = vst [vmem:[%s180 + $0x2e4] sm:$0xf] %v551
                %v553 = vld [vmem:[%s179 + $0x5d0] sm:$0xf]
                %554 = vst [vmem:[%s180 + $0x2e8] sm:$0xf] %v553
                %v555 = vld [vmem:[%s179 + $0x5d8] sm:$0xf]
                %556 = vst [vmem:[%s180 + $0x2ec] sm:$0xf] %v555
                %v557 = vld [vmem:[%s179 + $0x5e0] sm:$0xf]
                %558 = vst [vmem:[%s180 + $0x2f0] sm:$0xf] %v557
                %v559 = vld [vmem:[%s179 + $0x5e8] sm:$0xf]
                %560 = vst [vmem:[%s180 + $0x2f4] sm:$0xf] %v559
                %v561 = vld [vmem:[%s179 + $0x5f0] sm:$0xf]
                %562 = vst [vmem:[%s180 + $0x2f8] sm:$0xf] %v561
                %v563 = vld [vmem:[%s179 + $0x5f8] sm:$0xf]
                %564 = vst [vmem:[%s180 + $0x2fc] sm:$0xf] %v563
                %v565 = vld [vmem:[%s179 + $0x600] sm:$0xf]
                %566 = vst [vmem:[%s180 + $0x300] sm:$0xf] %v565
                %v567 = vld [vmem:[%s179 + $0x608] sm:$0xf]
                %568 = vst [vmem:[%s180 + $0x304] sm:$0xf] %v567
                %v569 = vld [vmem:[%s179 + $0x610] sm:$0xf]
                %570 = vst [vmem:[%s180 + $0x308] sm:$0xf] %v569
                %v571 = vld [vmem:[%s179 + $0x618] sm:$0xf]
                %572 = vst [vmem:[%s180 + $0x30c] sm:$0xf] %v571
                %v573 = vld [vmem:[%s179 + $0x620] sm:$0xf]
                %574 = vst [vmem:[%s180 + $0x310] sm:$0xf] %v573
                %v575 = vld [vmem:[%s179 + $0x628] sm:$0xf]
                %576 = vst [vmem:[%s180 + $0x314] sm:$0xf] %v575
                %v577 = vld [vmem:[%s179 + $0x630] sm:$0xf]
                %578 = vst [vmem:[%s180 + $0x318] sm:$0xf] %v577
                %v579 = vld [vmem:[%s179 + $0x638] sm:$0xf]
                %580 = vst [vmem:[%s180 + $0x31c] sm:$0xf] %v579
                %v581 = vld [vmem:[%s179 + $0x640] sm:$0xf]
                %582 = vst [vmem:[%s180 + $0x320] sm:$0xf] %v581
                %v583 = vld [vmem:[%s179 + $0x648] sm:$0xf]
                %584 = vst [vmem:[%s180 + $0x324] sm:$0xf] %v583
                %v585 = vld [vmem:[%s179 + $0x650] sm:$0xf]
                %586 = vst [vmem:[%s180 + $0x328] sm:$0xf] %v585
                %v587 = vld [vmem:[%s179 + $0x658] sm:$0xf]
                %588 = vst [vmem:[%s180 + $0x32c] sm:$0xf] %v587
                %v589 = vld [vmem:[%s179 + $0x660] sm:$0xf]
                %590 = vst [vmem:[%s180 + $0x330] sm:$0xf] %v589
                %v591 = vld [vmem:[%s179 + $0x668] sm:$0xf]
                %592 = vst [vmem:[%s180 + $0x334] sm:$0xf] %v591
                %v593 = vld [vmem:[%s179 + $0x670] sm:$0xf]
                %594 = vst [vmem:[%s180 + $0x338] sm:$0xf] %v593
                %v595 = vld [vmem:[%s179 + $0x678] sm:$0xf]
                %596 = vst [vmem:[%s180 + $0x33c] sm:$0xf] %v595
                %v597 = vld [vmem:[%s179 + $0x680] sm:$0xf]
                %598 = vst [vmem:[%s180 + $0x340] sm:$0xf] %v597
                %v599 = vld [vmem:[%s179 + $0x688] sm:$0xf]
                %600 = vst [vmem:[%s180 + $0x344] sm:$0xf] %v599
                %v601 = vld [vmem:[%s179 + $0x690] sm:$0xf]
                %602 = vst [vmem:[%s180 + $0x348] sm:$0xf] %v601
                %v603 = vld [vmem:[%s179 + $0x698] sm:$0xf]
                %604 = vst [vmem:[%s180 + $0x34c] sm:$0xf] %v603
                %v605 = vld [vmem:[%s179 + $0x6a0] sm:$0xf]
                %606 = vst [vmem:[%s180 + $0x350] sm:$0xf] %v605
                %v607 = vld [vmem:[%s179 + $0x6a8] sm:$0xf]
                %608 = vst [vmem:[%s180 + $0x354] sm:$0xf] %v607
                %v609 = vld [vmem:[%s179 + $0x6b0] sm:$0xf]
                %610 = vst [vmem:[%s180 + $0x358] sm:$0xf] %v609
                %v611 = vld [vmem:[%s179 + $0x6b8] sm:$0xf]
                %612 = vst [vmem:[%s180 + $0x35c] sm:$0xf] %v611
                %v613 = vld [vmem:[%s179 + $0x6c0] sm:$0xf]
                %614 = vst [vmem:[%s180 + $0x360] sm:$0xf] %v613
                %v615 = vld [vmem:[%s179 + $0x6c8] sm:$0xf]
                %616 = vst [vmem:[%s180 + $0x364] sm:$0xf] %v615
                %v617 = vld [vmem:[%s179 + $0x6d0] sm:$0xf]
                %618 = vst [vmem:[%s180 + $0x368] sm:$0xf] %v617
                %v619 = vld [vmem:[%s179 + $0x6d8] sm:$0xf]
                %620 = vst [vmem:[%s180 + $0x36c] sm:$0xf] %v619
                %v621 = vld [vmem:[%s179 + $0x6e0] sm:$0xf]
                %622 = vst [vmem:[%s180 + $0x370] sm:$0xf] %v621
                %v623 = vld [vmem:[%s179 + $0x6e8] sm:$0xf]
                %624 = vst [vmem:[%s180 + $0x374] sm:$0xf] %v623
                %v625 = vld [vmem:[%s179 + $0x6f0] sm:$0xf]
                %626 = vst [vmem:[%s180 + $0x378] sm:$0xf] %v625
                %v627 = vld [vmem:[%s179 + $0x6f8] sm:$0xf]
                %628 = vst [vmem:[%s180 + $0x37c] sm:$0xf] %v627
                %v629 = vld [vmem:[%s179 + $0x700] sm:$0xf]
                %630 = vst [vmem:[%s180 + $0x380] sm:$0xf] %v629
                %v631 = vld [vmem:[%s179 + $0x708] sm:$0xf]
                %632 = vst [vmem:[%s180 + $0x384] sm:$0xf] %v631
                %v633 = vld [vmem:[%s179 + $0x710] sm:$0xf]
                %634 = vst [vmem:[%s180 + $0x388] sm:$0xf] %v633
                %v635 = vld [vmem:[%s179 + $0x718] sm:$0xf]
                %636 = vst [vmem:[%s180 + $0x38c] sm:$0xf] %v635
                %v637 = vld [vmem:[%s179 + $0x720] sm:$0xf]
                %638 = vst [vmem:[%s180 + $0x390] sm:$0xf] %v637
                %v639 = vld [vmem:[%s179 + $0x728] sm:$0xf]
                %640 = vst [vmem:[%s180 + $0x394] sm:$0xf] %v639
                %v641 = vld [vmem:[%s179 + $0x730] sm:$0xf]
                %642 = vst [vmem:[%s180 + $0x398] sm:$0xf] %v641
                %v643 = vld [vmem:[%s179 + $0x738] sm:$0xf]
                %644 = vst [vmem:[%s180 + $0x39c] sm:$0xf] %v643
                %v645 = vld [vmem:[%s179 + $0x740] sm:$0xf]
                %646 = vst [vmem:[%s180 + $0x3a0] sm:$0xf] %v645
                %v647 = vld [vmem:[%s179 + $0x748] sm:$0xf]
                %648 = vst [vmem:[%s180 + $0x3a4] sm:$0xf] %v647
                %v649 = vld [vmem:[%s179 + $0x750] sm:$0xf]
                %650 = vst [vmem:[%s180 + $0x3a8] sm:$0xf] %v649
                %v651 = vld [vmem:[%s179 + $0x758] sm:$0xf]
                %652 = vst [vmem:[%s180 + $0x3ac] sm:$0xf] %v651
                %v653 = vld [vmem:[%s179 + $0x760] sm:$0xf]
                %654 = vst [vmem:[%s180 + $0x3b0] sm:$0xf] %v653
                %v655 = vld [vmem:[%s179 + $0x768] sm:$0xf]
                %656 = vst [vmem:[%s180 + $0x3b4] sm:$0xf] %v655
                %v657 = vld [vmem:[%s179 + $0x770] sm:$0xf]
                %658 = vst [vmem:[%s180 + $0x3b8] sm:$0xf] %v657
                %v659 = vld [vmem:[%s179 + $0x778] sm:$0xf]
                %660 = vst [vmem:[%s180 + $0x3bc] sm:$0xf] %v659
                %v661 = vld [vmem:[%s179 + $0x780] sm:$0xf]
                %662 = vst [vmem:[%s180 + $0x3c0] sm:$0xf] %v661
                %v663 = vld [vmem:[%s179 + $0x788] sm:$0xf]
                %664 = vst [vmem:[%s180 + $0x3c4] sm:$0xf] %v663
                %v665 = vld [vmem:[%s179 + $0x790] sm:$0xf]
                %666 = vst [vmem:[%s180 + $0x3c8] sm:$0xf] %v665
                %v667 = vld [vmem:[%s179 + $0x798] sm:$0xf]
                %668 = vst [vmem:[%s180 + $0x3cc] sm:$0xf] %v667
                %v669 = vld [vmem:[%s179 + $0x7a0] sm:$0xf]
                %670 = vst [vmem:[%s180 + $0x3d0] sm:$0xf] %v669
                %v671 = vld [vmem:[%s179 + $0x7a8] sm:$0xf]
                %672 = vst [vmem:[%s180 + $0x3d4] sm:$0xf] %v671
                %v673 = vld [vmem:[%s179 + $0x7b0] sm:$0xf]
                %674 = vst [vmem:[%s180 + $0x3d8] sm:$0xf] %v673
                %v675 = vld [vmem:[%s179 + $0x7b8] sm:$0xf]
                %676 = vst [vmem:[%s180 + $0x3dc] sm:$0xf] %v675
                %v677 = vld [vmem:[%s179 + $0x7c0] sm:$0xf]
                %678 = vst [vmem:[%s180 + $0x3e0] sm:$0xf] %v677
                %v679 = vld [vmem:[%s179 + $0x7c8] sm:$0xf]
                %680 = vst [vmem:[%s180 + $0x3e4] sm:$0xf] %v679
                %v681 = vld [vmem:[%s179 + $0x7d0] sm:$0xf]
                %682 = vst [vmem:[%s180 + $0x3e8] sm:$0xf] %v681
                %v683 = vld [vmem:[%s179 + $0x7d8] sm:$0xf]
                %684 = vst [vmem:[%s180 + $0x3ec] sm:$0xf] %v683
                %v685 = vld [vmem:[%s179 + $0x7e0] sm:$0xf]
                %686 = vst [vmem:[%s180 + $0x3f0] sm:$0xf] %v685
                %v687 = vld [vmem:[%s179 + $0x7e8] sm:$0xf]
                %688 = vst [vmem:[%s180 + $0x3f4] sm:$0xf] %v687
                %v689 = vld [vmem:[%s179 + $0x7f0] sm:$0xf]
                %690 = vst [vmem:[%s180 + $0x3f8] sm:$0xf] %v689
                %v691 = vld [vmem:[%s179 + $0x7f8] sm:$0xf]
                %692 = vst [vmem:[%s180 + $0x3fc] sm:$0xf] %v691
              $region41: #{encoder_forward.6} parent=35 // loop_footer
                %s178 = sadd.s32 1, %s174
              $region42: #{encoder_forward.6} parent=35 // loop_footer_branch
                %173 = sbr.rel target = $region38
              $region43: #{encoder_forward.6} parent=35 // loop_exit
                _
            $region36: #{encoder_forward.6} parent=27 // pred_fallthru
              _
          $region28: #{encoder_forward.6} parent=23 // pred_fallthru
            _
          %1224 = vnop
        $region24: #{encoder_forward.6} parent=19 // pred_fallthru
          _
        // Predicated region
        $region62: #{encoder_forward.6} parent=19 // pred_check
          %p1225 = pneg %p77
        $region63: #{encoder_forward.6} parent=19 // pred_check_branch
          %1227 = sbr.rel (%p1225) target = $region65
        $region64: #{encoder_forward.6} parent=19 // pred_region
          %p1228 = scmp.lt.s32.totalorder %s10, 1
          %s1229 = scalar_select %p1228, %s10, 1
          %s1230 = scalar_lea.vmem %s2, %s1229
        $region65: #{encoder_forward.6} parent=19 // pred_fallthru
          _
        // Predicated region
        $region66: #{encoder_forward.6} parent=19 // pred_check
          %p1231 = pneg %p103
        $region67: #{encoder_forward.6} parent=19 // pred_check_branch
          %1233 = sbr.rel (%p1231) target = $region69
        $region68: #{encoder_forward.6} parent=19 // pred_region
          %p1234 = scmp.lt.s32.totalorder %s10, 1
          %s1235 = scalar_select %p1234, %s10, 1
          %s1236 = scalar_lea.vmem %s3, %s1235
        $region69: #{encoder_forward.6} parent=19 // pred_fallthru
          _
      $region20: #{encoder_forward.6} parent=5 // pred_fallthru
        _
      %p1237 = scmp.le.s32.totalorder 1, %s10
      %p1238 = scmp.lt.s32.totalorder %s10, 3
      %p1239 = pnand %p1237, %p1238
      %p1240 = pneg %p1239
      // Predicated region
      $region70: #{encoder_forward.6} parent=5 // pred_check
        _
      $region71: #{encoder_forward.6} parent=5 // pred_check_branch
        %1242 = sbr.rel (%p1239) target = $region73
      $region72: #{encoder_forward.6} parent=5 // pred_region
        %s1243 = ssub.s32 %s10, 1
        %s1244 = sand.u32 %s44, 1
        %s1245 = sand.u32 %s44, 1
        %s1246 = smul.addr %s1245, 1024
        %s1247 = scalar_lea.vmem [#allocation2], %s1246
        // Predicated region
        $region74: #{encoder_forward.6} parent=72 // pred_check
          %p1248 = pneg %p57
        $region75: #{encoder_forward.6} parent=72 // pred_check_branch
          %1250 = sbr.rel (%p1248) target = $region77
        $region76: #{encoder_forward.6} parent=72 // pred_region
          _
        $region77: #{encoder_forward.6} parent=72 // pred_fallthru
          _
        %p1251 = pneg %p31
        %p1252 = pneg %p28
        %s1253 = sand.u32 %s44, 1
        %s1254 = sand.u32 %s44, 1
        %s1255 = smul.addr %s1254, 1024
        %s1256 = scalar_lea.vmem [#allocation2], %s1255
        %p1257 = pneg %p57
        %p1258 = pneg %p54
        %p1259 = scmp.lt.s32.totalorder %s15, 1
        %s1260 = scalar_select %p1259, %s15, 1
        %s1261 = scalar_lea.vmem %s2, %s1260
        %p1262 = pneg %p83
        %p1263 = pneg %p80
        %p1264 = scmp.lt.s32.totalorder %s15, 1
        %s1265 = scalar_select %p1264, %s15, 1
        %s1266 = scalar_lea.vmem %s3, %s1265
        %p1267 = pneg %p109
        %p1268 = pneg %p106
        %p1269 = pneg %p135
        %p1270 = pneg %p132
        %s1271 = sand.u32 %s122, 1
        %s1272 = sand.u32 %s122, 1
        %s1273 = smul.addr %s1272, 12
        %s1274 = scalar_lea.vmem [#allocation3], %s1273
        %p1275 = scmp.lt.s32.totalorder %s15, 1
        %s1276 = scalar_select %p1275, %s15, 1
        %s1277 = scalar_lea.vmem %s2, %s1276
        %p1278 = scmp.lt.s32.totalorder %s15, 1
        %s1279 = scalar_select %p1278, %s15, 1
        %s1280 = scalar_lea.vmem %s3, %s1279
        %v1282 = vld [vmem:[%s0] sm:$0xff]
        %v1283 = vld [vmem:[%s0 + $0x8] sm:$0xff]
        %v1284 = vld [vmem:[%s0 + $0x10] sm:$0xff]
        %v1285 = vld [vmem:[%s0 + $0x18] sm:$0xff]
        %v1286 = vld [vmem:[%s0 + $0x20] sm:$0xff]
        %v1287 = vld [vmem:[%s0 + $0x28] sm:$0xff]
        %v1288 = vld [vmem:[%s0 + $0x30] sm:$0xff]
        %v1289 = vld [vmem:[%s0 + $0x38] sm:$0xff]
        %v1290 = vld [vmem:[%s0 + $0x40] sm:$0xff]
        %v1291 = vld [vmem:[%s0 + $0x48] sm:$0xff]
        %v1292 = vld [vmem:[%s0 + $0x50] sm:$0xff]
        %v1293 = vld [vmem:[%s0 + $0x58] sm:$0xff]
        %v1294 = vld [vmem:[%s0 + $0x60] sm:$0xff]
        %v1295 = vld [vmem:[%s0 + $0x68] sm:$0xff]
        %v1296 = vld [vmem:[%s0 + $0x70] sm:$0xff]
        %v1297 = vld [vmem:[%s0 + $0x78] sm:$0xff]
        %v1298 = vld [vmem:[%s0 + $0x80] sm:$0xff]
        %v1299 = vld [vmem:[%s0 + $0x88] sm:$0xff]
        %v1300 = vld [vmem:[%s0 + $0x90] sm:$0xff]
        %v1301 = vld [vmem:[%s0 + $0x98] sm:$0xff]
        %v1302 = vld [vmem:[%s0 + $0xa0] sm:$0xff]
        %v1303 = vld [vmem:[%s0 + $0xa8] sm:$0xff]
        %v1304 = vld [vmem:[%s0 + $0xb0] sm:$0xff]
        %v1305 = vld [vmem:[%s0 + $0xb8] sm:$0xff]
        %v1306 = vld [vmem:[%s1247] sm:$0xf]
        %v1307 = vld [vmem:[%s1247 + $0x4] sm:$0xf]
        %v1308 = vld [vmem:[%s1247 + $0x8] sm:$0xf]
        %v1309 = vld [vmem:[%s1247 + $0xc] sm:$0xf]
        %v1310 = vld [vmem:[%s1247 + $0x10] sm:$0xf]
        %v1311 = vld [vmem:[%s1247 + $0x14] sm:$0xf]
        %v1312 = vld [vmem:[%s1247 + $0x18] sm:$0xf]
        %v1313 = vld [vmem:[%s1247 + $0x1c] sm:$0xf]
        %v1314 = vld [vmem:[%s1247 + $0x20] sm:$0xf]
        %v1315 = vld [vmem:[%s1247 + $0x24] sm:$0xf]
        %v1316 = vld [vmem:[%s1247 + $0x28] sm:$0xf]
        %v1317 = vld [vmem:[%s1247 + $0x2c] sm:$0xf]
        %v1318 = vld [vmem:[%s1247 + $0x30] sm:$0xf]
        %v1319 = vld [vmem:[%s1247 + $0x34] sm:$0xf]
        %v1320 = vld [vmem:[%s1247 + $0x38] sm:$0xf]
        %v1321 = vld [vmem:[%s1247 + $0x3c] sm:$0xf]
        %v1322 = vld [vmem:[%s1247 + $0x40] sm:$0xf]
        %v1323 = vld [vmem:[%s1247 + $0x44] sm:$0xf]
        %v1324 = vld [vmem:[%s1247 + $0x48] sm:$0xf]
        %v1325 = vld [vmem:[%s1247 + $0x4c] sm:$0xf]
        %v1326 = vld [vmem:[%s1247 + $0x50] sm:$0xf]
        %v1327 = vld [vmem:[%s1247 + $0x54] sm:$0xf]
        %v1328 = vld [vmem:[%s1247 + $0x58] sm:$0xf]
        %v1329 = vld [vmem:[%s1247 + $0x5c] sm:$0xf]
        %v1330 = vld [vmem:[%s1247 + $0x60] sm:$0xf]
        %v1331 = vld [vmem:[%s1247 + $0x64] sm:$0xf]
        %v1332 = vld [vmem:[%s1247 + $0x68] sm:$0xf]
        %v1333 = vld [vmem:[%s1247 + $0x6c] sm:$0xf]
        %v1334 = vld [vmem:[%s1247 + $0x70] sm:$0xf]
        %v1335 = vld [vmem:[%s1247 + $0x74] sm:$0xf]
        %v1336 = vld [vmem:[%s1247 + $0x78] sm:$0xf]
        %v1337 = vld [vmem:[%s1247 + $0x7c] sm:$0xf]
        %v1338 = vld [vmem:[%s1247 + $0x80] sm:$0xf]
        %v1339 = vld [vmem:[%s1247 + $0x84] sm:$0xf]
        %v1340 = vld [vmem:[%s1247 + $0x88] sm:$0xf]
        %v1341 = vld [vmem:[%s1247 + $0x8c] sm:$0xf]
        %v1342 = vld [vmem:[%s1247 + $0x90] sm:$0xf]
        %v1343 = vld [vmem:[%s1247 + $0x94] sm:$0xf]
        %v1344 = vld [vmem:[%s1247 + $0x98] sm:$0xf]
        %v1345 = vld [vmem:[%s1247 + $0x9c] sm:$0xf]
        %v1346 = vld [vmem:[%s1247 + $0xa0] sm:$0xf]
        %v1347 = vld [vmem:[%s1247 + $0xa4] sm:$0xf]
        %v1348 = vld [vmem:[%s1247 + $0xa8] sm:$0xf]
        %v1349 = vld [vmem:[%s1247 + $0xac] sm:$0xf]
        %v1350 = vld [vmem:[%s1247 + $0xb0] sm:$0xf]
        %v1351 = vld [vmem:[%s1247 + $0xb4] sm:$0xf]
        %v1352 = vld [vmem:[%s1247 + $0xb8] sm:$0xf]
        %v1353 = vld [vmem:[%s1247 + $0xbc] sm:$0xf]
        %v1354 = vld [vmem:[%s1247 + $0xc0] sm:$0xf]
        %v1355 = vld [vmem:[%s1247 + $0xc4] sm:$0xf]
        %v1356 = vld [vmem:[%s1247 + $0xc8] sm:$0xf]
        %v1357 = vld [vmem:[%s1247 + $0xcc] sm:$0xf]
        %v1358 = vld [vmem:[%s1247 + $0xd0] sm:$0xf]
        %v1359 = vld [vmem:[%s1247 + $0xd4] sm:$0xf]
        %v1360 = vld [vmem:[%s1247 + $0xd8] sm:$0xf]
        %v1361 = vld [vmem:[%s1247 + $0xdc] sm:$0xf]
        %v1362 = vld [vmem:[%s1247 + $0xe0] sm:$0xf]
        %v1363 = vld [vmem:[%s1247 + $0xe4] sm:$0xf]
        %v1364 = vld [vmem:[%s1247 + $0xe8] sm:$0xf]
        %v1365 = vld [vmem:[%s1247 + $0xec] sm:$0xf]
        %v1366 = vld [vmem:[%s1247 + $0xf0] sm:$0xf]
        %v1367 = vld [vmem:[%s1247 + $0xf4] sm:$0xf]
        %v1368 = vld [vmem:[%s1247 + $0xf8] sm:$0xf]
        %v1369 = vld [vmem:[%s1247 + $0xfc] sm:$0xf]
        %v1370 = vld [vmem:[%s1247 + $0x100] sm:$0xf]
        %v1371 = vld [vmem:[%s1247 + $0x104] sm:$0xf]
        %v1372 = vld [vmem:[%s1247 + $0x108] sm:$0xf]
        %v1373 = vld [vmem:[%s1247 + $0x10c] sm:$0xf]
        %v1374 = vld [vmem:[%s1247 + $0x110] sm:$0xf]
        %v1375 = vld [vmem:[%s1247 + $0x114] sm:$0xf]
        %v1376 = vld [vmem:[%s1247 + $0x118] sm:$0xf]
        %v1377 = vld [vmem:[%s1247 + $0x11c] sm:$0xf]
        %v1378 = vld [vmem:[%s1247 + $0x120] sm:$0xf]
        %v1379 = vld [vmem:[%s1247 + $0x124] sm:$0xf]
        %v1380 = vld [vmem:[%s1247 + $0x128] sm:$0xf]
        %v1381 = vld [vmem:[%s1247 + $0x12c] sm:$0xf]
        %v1382 = vld [vmem:[%s1247 + $0x130] sm:$0xf]
        %v1383 = vld [vmem:[%s1247 + $0x134] sm:$0xf]
        %v1384 = vld [vmem:[%s1247 + $0x138] sm:$0xf]
        %v1385 = vld [vmem:[%s1247 + $0x13c] sm:$0xf]
        %v1386 = vld [vmem:[%s1247 + $0x140] sm:$0xf]
        %v1387 = vld [vmem:[%s1247 + $0x144] sm:$0xf]
        %v1388 = vld [vmem:[%s1247 + $0x148] sm:$0xf]
        %v1389 = vld [vmem:[%s1247 + $0x14c] sm:$0xf]
        %v1390 = vld [vmem:[%s1247 + $0x150] sm:$0xf]
        %v1391 = vld [vmem:[%s1247 + $0x154] sm:$0xf]
        %v1392 = vld [vmem:[%s1247 + $0x158] sm:$0xf]
        %v1393 = vld [vmem:[%s1247 + $0x15c] sm:$0xf]
        %v1394 = vld [vmem:[%s1247 + $0x160] sm:$0xf]
        %v1395 = vld [vmem:[%s1247 + $0x164] sm:$0xf]
        %v1396 = vld [vmem:[%s1247 + $0x168] sm:$0xf]
        %v1397 = vld [vmem:[%s1247 + $0x16c] sm:$0xf]
        %v1398 = vld [vmem:[%s1247 + $0x170] sm:$0xf]
        %v1399 = vld [vmem:[%s1247 + $0x174] sm:$0xf]
        %v1400 = vld [vmem:[%s1247 + $0x178] sm:$0xf]
        %v1401 = vld [vmem:[%s1247 + $0x17c] sm:$0xf]
        %v1402 = vld [vmem:[%s1247 + $0x180] sm:$0xf]
        %v1403 = vld [vmem:[%s1247 + $0x184] sm:$0xf]
        %v1404 = vld [vmem:[%s1247 + $0x188] sm:$0xf]
        %v1405 = vld [vmem:[%s1247 + $0x18c] sm:$0xf]
        %v1406 = vld [vmem:[%s1247 + $0x190] sm:$0xf]
        %v1407 = vld [vmem:[%s1247 + $0x194] sm:$0xf]
        %v1408 = vld [vmem:[%s1247 + $0x198] sm:$0xf]
        %v1409 = vld [vmem:[%s1247 + $0x19c] sm:$0xf]
        %v1410 = vld [vmem:[%s1247 + $0x1a0] sm:$0xf]
        %v1411 = vld [vmem:[%s1247 + $0x1a4] sm:$0xf]
        %v1412 = vld [vmem:[%s1247 + $0x1a8] sm:$0xf]
        %v1413 = vld [vmem:[%s1247 + $0x1ac] sm:$0xf]
        %v1414 = vld [vmem:[%s1247 + $0x1b0] sm:$0xf]
        %v1415 = vld [vmem:[%s1247 + $0x1b4] sm:$0xf]
        %v1416 = vld [vmem:[%s1247 + $0x1b8] sm:$0xf]
        %v1417 = vld [vmem:[%s1247 + $0x1bc] sm:$0xf]
        %v1418 = vld [vmem:[%s1247 + $0x1c0] sm:$0xf]
        %v1419 = vld [vmem:[%s1247 + $0x1c4] sm:$0xf]
        %v1420 = vld [vmem:[%s1247 + $0x1c8] sm:$0xf]
        %v1421 = vld [vmem:[%s1247 + $0x1cc] sm:$0xf]
        %v1422 = vld [vmem:[%s1247 + $0x1d0] sm:$0xf]
        %v1423 = vld [vmem:[%s1247 + $0x1d4] sm:$0xf]
        %v1424 = vld [vmem:[%s1247 + $0x1d8] sm:$0xf]
        %v1425 = vld [vmem:[%s1247 + $0x1dc] sm:$0xf]
        %v1426 = vld [vmem:[%s1247 + $0x1e0] sm:$0xf]
        %v1427 = vld [vmem:[%s1247 + $0x1e4] sm:$0xf]
        %v1428 = vld [vmem:[%s1247 + $0x1e8] sm:$0xf]
        %v1429 = vld [vmem:[%s1247 + $0x1ec] sm:$0xf]
        %v1430 = vld [vmem:[%s1247 + $0x1f0] sm:$0xf]
        %v1431 = vld [vmem:[%s1247 + $0x1f4] sm:$0xf]
        %v1432 = vld [vmem:[%s1247 + $0x1f8] sm:$0xf]
        %v1433 = vld [vmem:[%s1247 + $0x1fc] sm:$0xf]
        %v1434 = vld [vmem:[%s1247 + $0x200] sm:$0xf]
        %v1435 = vld [vmem:[%s1247 + $0x204] sm:$0xf]
        %v1436 = vld [vmem:[%s1247 + $0x208] sm:$0xf]
        %v1437 = vld [vmem:[%s1247 + $0x20c] sm:$0xf]
        %v1438 = vld [vmem:[%s1247 + $0x210] sm:$0xf]
        %v1439 = vld [vmem:[%s1247 + $0x214] sm:$0xf]
        %v1440 = vld [vmem:[%s1247 + $0x218] sm:$0xf]
        %v1441 = vld [vmem:[%s1247 + $0x21c] sm:$0xf]
        %v1442 = vld [vmem:[%s1247 + $0x220] sm:$0xf]
        %v1443 = vld [vmem:[%s1247 + $0x224] sm:$0xf]
        %v1444 = vld [vmem:[%s1247 + $0x228] sm:$0xf]
        %v1445 = vld [vmem:[%s1247 + $0x22c] sm:$0xf]
        %v1446 = vld [vmem:[%s1247 + $0x230] sm:$0xf]
        %v1447 = vld [vmem:[%s1247 + $0x234] sm:$0xf]
        %v1448 = vld [vmem:[%s1247 + $0x238] sm:$0xf]
        %v1449 = vld [vmem:[%s1247 + $0x23c] sm:$0xf]
        %v1450 = vld [vmem:[%s1247 + $0x240] sm:$0xf]
        %v1451 = vld [vmem:[%s1247 + $0x244] sm:$0xf]
        %v1452 = vld [vmem:[%s1247 + $0x248] sm:$0xf]
        %v1453 = vld [vmem:[%s1247 + $0x24c] sm:$0xf]
        %v1454 = vld [vmem:[%s1247 + $0x250] sm:$0xf]
        %v1455 = vld [vmem:[%s1247 + $0x254] sm:$0xf]
        %v1456 = vld [vmem:[%s1247 + $0x258] sm:$0xf]
        %v1457 = vld [vmem:[%s1247 + $0x25c] sm:$0xf]
        %v1458 = vld [vmem:[%s1247 + $0x260] sm:$0xf]
        %v1459 = vld [vmem:[%s1247 + $0x264] sm:$0xf]
        %v1460 = vld [vmem:[%s1247 + $0x268] sm:$0xf]
        %v1461 = vld [vmem:[%s1247 + $0x26c] sm:$0xf]
        %v1462 = vld [vmem:[%s1247 + $0x270] sm:$0xf]
        %v1463 = vld [vmem:[%s1247 + $0x274] sm:$0xf]
        %v1464 = vld [vmem:[%s1247 + $0x278] sm:$0xf]
        %v1465 = vld [vmem:[%s1247 + $0x27c] sm:$0xf]
        %v1466 = vld [vmem:[%s1247 + $0x280] sm:$0xf]
        %v1467 = vld [vmem:[%s1247 + $0x284] sm:$0xf]
        %v1468 = vld [vmem:[%s1247 + $0x288] sm:$0xf]
        %v1469 = vld [vmem:[%s1247 + $0x28c] sm:$0xf]
        %v1470 = vld [vmem:[%s1247 + $0x290] sm:$0xf]
        %v1471 = vld [vmem:[%s1247 + $0x294] sm:$0xf]
        %v1472 = vld [vmem:[%s1247 + $0x298] sm:$0xf]
        %v1473 = vld [vmem:[%s1247 + $0x29c] sm:$0xf]
        %v1474 = vld [vmem:[%s1247 + $0x2a0] sm:$0xf]
        %v1475 = vld [vmem:[%s1247 + $0x2a4] sm:$0xf]
        %v1476 = vld [vmem:[%s1247 + $0x2a8] sm:$0xf]
        %v1477 = vld [vmem:[%s1247 + $0x2ac] sm:$0xf]
        %v1478 = vld [vmem:[%s1247 + $0x2b0] sm:$0xf]
        %v1479 = vld [vmem:[%s1247 + $0x2b4] sm:$0xf]
        %v1480 = vld [vmem:[%s1247 + $0x2b8] sm:$0xf]
        %v1481 = vld [vmem:[%s1247 + $0x2bc] sm:$0xf]
        %v1482 = vld [vmem:[%s1247 + $0x2c0] sm:$0xf]
        %v1483 = vld [vmem:[%s1247 + $0x2c4] sm:$0xf]
        %v1484 = vld [vmem:[%s1247 + $0x2c8] sm:$0xf]
        %v1485 = vld [vmem:[%s1247 + $0x2cc] sm:$0xf]
        %v1486 = vld [vmem:[%s1247 + $0x2d0] sm:$0xf]
        %v1487 = vld [vmem:[%s1247 + $0x2d4] sm:$0xf]
        %v1488 = vld [vmem:[%s1247 + $0x2d8] sm:$0xf]
        %v1489 = vld [vmem:[%s1247 + $0x2dc] sm:$0xf]
        %v1490 = vld [vmem:[%s1247 + $0x2e0] sm:$0xf]
        %v1491 = vld [vmem:[%s1247 + $0x2e4] sm:$0xf]
        %v1492 = vld [vmem:[%s1247 + $0x2e8] sm:$0xf]
        %v1493 = vld [vmem:[%s1247 + $0x2ec] sm:$0xf]
        %v1494 = vld [vmem:[%s1247 + $0x2f0] sm:$0xf]
        %v1495 = vld [vmem:[%s1247 + $0x2f4] sm:$0xf]
        %v1496 = vld [vmem:[%s1247 + $0x2f8] sm:$0xf]
        %v1497 = vld [vmem:[%s1247 + $0x2fc] sm:$0xf]
        %v1498 = vld [vmem:[%s1247 + $0x300] sm:$0xf]
        %v1499 = vld [vmem:[%s1247 + $0x304] sm:$0xf]
        %v1500 = vld [vmem:[%s1247 + $0x308] sm:$0xf]
        %v1501 = vld [vmem:[%s1247 + $0x30c] sm:$0xf]
        %v1502 = vld [vmem:[%s1247 + $0x310] sm:$0xf]
        %v1503 = vld [vmem:[%s1247 + $0x314] sm:$0xf]
        %v1504 = vld [vmem:[%s1247 + $0x318] sm:$0xf]
        %v1505 = vld [vmem:[%s1247 + $0x31c] sm:$0xf]
        %v1506 = vld [vmem:[%s1247 + $0x320] sm:$0xf]
        %v1507 = vld [vmem:[%s1247 + $0x324] sm:$0xf]
        %v1508 = vld [vmem:[%s1247 + $0x328] sm:$0xf]
        %v1509 = vld [vmem:[%s1247 + $0x32c] sm:$0xf]
        %v1510 = vld [vmem:[%s1247 + $0x330] sm:$0xf]
        %v1511 = vld [vmem:[%s1247 + $0x334] sm:$0xf]
        %v1512 = vld [vmem:[%s1247 + $0x338] sm:$0xf]
        %v1513 = vld [vmem:[%s1247 + $0x33c] sm:$0xf]
        %v1514 = vld [vmem:[%s1247 + $0x340] sm:$0xf]
        %v1515 = vld [vmem:[%s1247 + $0x344] sm:$0xf]
        %v1516 = vld [vmem:[%s1247 + $0x348] sm:$0xf]
        %v1517 = vld [vmem:[%s1247 + $0x34c] sm:$0xf]
        %v1518 = vld [vmem:[%s1247 + $0x350] sm:$0xf]
        %v1519 = vld [vmem:[%s1247 + $0x354] sm:$0xf]
        %v1520 = vld [vmem:[%s1247 + $0x358] sm:$0xf]
        %v1521 = vld [vmem:[%s1247 + $0x35c] sm:$0xf]
        %v1522 = vld [vmem:[%s1247 + $0x360] sm:$0xf]
        %v1523 = vld [vmem:[%s1247 + $0x364] sm:$0xf]
        %v1524 = vld [vmem:[%s1247 + $0x368] sm:$0xf]
        %v1525 = vld [vmem:[%s1247 + $0x36c] sm:$0xf]
        %v1526 = vld [vmem:[%s1247 + $0x370] sm:$0xf]
        %v1527 = vld [vmem:[%s1247 + $0x374] sm:$0xf]
        %v1528 = vld [vmem:[%s1247 + $0x378] sm:$0xf]
        %v1529 = vld [vmem:[%s1247 + $0x37c] sm:$0xf]
        %v1530 = vld [vmem:[%s1247 + $0x380] sm:$0xf]
        %v1531 = vld [vmem:[%s1247 + $0x384] sm:$0xf]
        %v1532 = vld [vmem:[%s1247 + $0x388] sm:$0xf]
        %v1533 = vld [vmem:[%s1247 + $0x38c] sm:$0xf]
        %v1534 = vld [vmem:[%s1247 + $0x390] sm:$0xf]
        %v1535 = vld [vmem:[%s1247 + $0x394] sm:$0xf]
        %v1536 = vld [vmem:[%s1247 + $0x398] sm:$0xf]
        %v1537 = vld [vmem:[%s1247 + $0x39c] sm:$0xf]
        %v1538 = vld [vmem:[%s1247 + $0x3a0] sm:$0xf]
        %v1539 = vld [vmem:[%s1247 + $0x3a4] sm:$0xf]
        %v1540 = vld [vmem:[%s1247 + $0x3a8] sm:$0xf]
        %v1541 = vld [vmem:[%s1247 + $0x3ac] sm:$0xf]
        %v1542 = vld [vmem:[%s1247 + $0x3b0] sm:$0xf]
        %v1543 = vld [vmem:[%s1247 + $0x3b4] sm:$0xf]
        %v1544 = vld [vmem:[%s1247 + $0x3b8] sm:$0xf]
        %v1545 = vld [vmem:[%s1247 + $0x3bc] sm:$0xf]
        %v1546 = vld [vmem:[%s1247 + $0x3c0] sm:$0xf]
        %v1547 = vld [vmem:[%s1247 + $0x3c4] sm:$0xf]
        %v1548 = vld [vmem:[%s1247 + $0x3c8] sm:$0xf]
        %v1549 = vld [vmem:[%s1247 + $0x3cc] sm:$0xf]
        %v1550 = vld [vmem:[%s1247 + $0x3d0] sm:$0xf]
        %v1551 = vld [vmem:[%s1247 + $0x3d4] sm:$0xf]
        %v1552 = vld [vmem:[%s1247 + $0x3d8] sm:$0xf]
        %v1553 = vld [vmem:[%s1247 + $0x3dc] sm:$0xf]
        %v1554 = vld [vmem:[%s1247 + $0x3e0] sm:$0xf]
        %v1555 = vld [vmem:[%s1247 + $0x3e4] sm:$0xf]
        %v1556 = vld [vmem:[%s1247 + $0x3e8] sm:$0xf]
        %v1557 = vld [vmem:[%s1247 + $0x3ec] sm:$0xf]
        %v1558 = vld [vmem:[%s1247 + $0x3f0] sm:$0xf]
        %v1559 = vld [vmem:[%s1247 + $0x3f4] sm:$0xf]
        %v1560 = vld [vmem:[%s1247 + $0x3f8] sm:$0xf]
        %v1561 = vld [vmem:[%s1247 + $0x3fc] sm:$0xf]
        %v1586 = vunpack.c.l.b16 %v1282
        %v1587 = vunpack.c.h.b16 %v1282
        %v1588 = vunpack.c.l.b16 %v1283
        %v1589 = vunpack.c.h.b16 %v1283
        %v1590 = vunpack.c.l.b16 %v1284
        %v1591 = vunpack.c.h.b16 %v1284
        %v1592 = vunpack.c.l.b16 %v1285
        %v1593 = vunpack.c.h.b16 %v1285
        %v1594 = vunpack.c.l.b16 %v1286
        %v1595 = vunpack.c.h.b16 %v1286
        %v1596 = vunpack.c.l.b16 %v1287
        %v1597 = vunpack.c.h.b16 %v1287
        %v1598 = vunpack.c.l.b16 %v1288
        %v1599 = vunpack.c.h.b16 %v1288
        %v1600 = vunpack.c.l.b16 %v1289
        %v1601 = vunpack.c.h.b16 %v1289
        %v1602 = vunpack.c.l.b16 %v1290
        %v1603 = vunpack.c.h.b16 %v1290
        %v1604 = vunpack.c.l.b16 %v1291
        %v1605 = vunpack.c.h.b16 %v1291
        %v1606 = vunpack.c.l.b16 %v1292
        %v1607 = vunpack.c.h.b16 %v1292
        %v1608 = vunpack.c.l.b16 %v1293
        %v1609 = vunpack.c.h.b16 %v1293
        %v1610 = vunpack.c.l.b16 %v1294
        %v1611 = vunpack.c.h.b16 %v1294
        %v1612 = vunpack.c.l.b16 %v1295
        %v1613 = vunpack.c.h.b16 %v1295
        %v1614 = vunpack.c.l.b16 %v1296
        %v1615 = vunpack.c.h.b16 %v1296
        %v1616 = vunpack.c.l.b16 %v1297
        %v1617 = vunpack.c.h.b16 %v1297
        %v1618 = vunpack.c.l.b16 %v1298
        %v1619 = vunpack.c.h.b16 %v1298
        %v1620 = vunpack.c.l.b16 %v1299
        %v1621 = vunpack.c.h.b16 %v1299
        %v1622 = vunpack.c.l.b16 %v1300
        %v1623 = vunpack.c.h.b16 %v1300
        %v1624 = vunpack.c.l.b16 %v1301
        %v1625 = vunpack.c.h.b16 %v1301
        %v1626 = vunpack.c.l.b16 %v1302
        %v1627 = vunpack.c.h.b16 %v1302
        %v1628 = vunpack.c.l.b16 %v1303
        %v1629 = vunpack.c.h.b16 %v1303
        %v1630 = vunpack.c.l.b16 %v1304
        %v1631 = vunpack.c.h.b16 %v1304
        %v1632 = vunpack.c.l.b16 %v1305
        %v1633 = vunpack.c.h.b16 %v1305
        %v1634 = vpack.c.b16 %v1602, %v1586
        %v1635 = vpack.c.b16 %v1603, %v1587
        %v1636 = vpack.c.b16 %v1604, %v1588
        %v1637 = vpack.c.b16 %v1605, %v1589
        %v1638 = vpack.c.b16 %v1606, %v1590
        %v1639 = vpack.c.b16 %v1607, %v1591
        %v1640 = vpack.c.b16 %v1608, %v1592
        %v1641 = vpack.c.b16 %v1609, %v1593
        %v1642 = vpack.c.b16 %v1610, %v1594
        %v1643 = vpack.c.b16 %v1611, %v1595
        %v1644 = vpack.c.b16 %v1612, %v1596
        %v1645 = vpack.c.b16 %v1613, %v1597
        %v1646 = vpack.c.b16 %v1614, %v1598
        %v1647 = vpack.c.b16 %v1615, %v1599
        %v1648 = vpack.c.b16 %v1616, %v1600
        %v1649 = vpack.c.b16 %v1617, %v1601
        %v1650 = vpack.c.b16 %v1618, %v1618
        %v1651 = vpack.c.b16 %v1619, %v1619
        %v1652 = vpack.c.b16 %v1620, %v1620
        %v1653 = vpack.c.b16 %v1621, %v1621
        %v1654 = vpack.c.b16 %v1622, %v1622
        %v1655 = vpack.c.b16 %v1623, %v1623
        %v1656 = vpack.c.b16 %v1624, %v1624
        %v1657 = vpack.c.b16 %v1625, %v1625
        %v1658 = vpack.c.b16 %v1626, %v1626
        %v1659 = vpack.c.b16 %v1627, %v1627
        %v1660 = vpack.c.b16 %v1628, %v1628
        %v1661 = vpack.c.b16 %v1629, %v1629
        %v1662 = vpack.c.b16 %v1630, %v1630
        %v1663 = vpack.c.b16 %v1631, %v1631
        %v1664 = vpack.c.b16 %v1632, %v1632
        %v1665 = vpack.c.b16 %v1633, %v1633
        %v1954 = vunpack.c.l.b16 %v1306
        %v1955 = vunpack.c.l.b16 %v1307
        %v1956 = vunpack.c.l.b16 %v1308
        %v1957 = vunpack.c.l.b16 %v1309
        %v1958 = vunpack.c.l.b16 %v1310
        %v1959 = vunpack.c.l.b16 %v1311
        %v1960 = vunpack.c.l.b16 %v1312
        %v1961 = vunpack.c.l.b16 %v1313
        %v1962 = vunpack.c.l.b16 %v1314
        %v1963 = vunpack.c.l.b16 %v1315
        %v1964 = vunpack.c.l.b16 %v1316
        %v1965 = vunpack.c.l.b16 %v1317
        %v1966 = vunpack.c.l.b16 %v1318
        %v1967 = vunpack.c.l.b16 %v1319
        %v1968 = vunpack.c.l.b16 %v1320
        %v1969 = vunpack.c.l.b16 %v1321
        %v1970 = vunpack.c.l.b16 %v1322
        %v1971 = vunpack.c.l.b16 %v1323
        %v1972 = vunpack.c.l.b16 %v1324
        %v1973 = vunpack.c.l.b16 %v1325
        %v1974 = vunpack.c.l.b16 %v1326
        %v1975 = vunpack.c.l.b16 %v1327
        %v1976 = vunpack.c.l.b16 %v1328
        %v1977 = vunpack.c.l.b16 %v1329
        %v1978 = vunpack.c.l.b16 %v1330
        %v1979 = vunpack.c.l.b16 %v1331
        %v1980 = vunpack.c.l.b16 %v1332
        %v1981 = vunpack.c.l.b16 %v1333
        %v1982 = vunpack.c.l.b16 %v1334
        %v1983 = vunpack.c.l.b16 %v1335
        %v1984 = vunpack.c.l.b16 %v1336
        %v1985 = vunpack.c.l.b16 %v1337
        %v1986 = vunpack.c.l.b16 %v1338
        %v1987 = vunpack.c.l.b16 %v1339
        %v1988 = vunpack.c.l.b16 %v1340
        %v1989 = vunpack.c.l.b16 %v1341
        %v1990 = vunpack.c.l.b16 %v1342
        %v1991 = vunpack.c.l.b16 %v1343
        %v1992 = vunpack.c.l.b16 %v1344
        %v1993 = vunpack.c.l.b16 %v1345
        %v1994 = vunpack.c.l.b16 %v1346
        %v1995 = vunpack.c.l.b16 %v1347
        %v1996 = vunpack.c.l.b16 %v1348
        %v1997 = vunpack.c.l.b16 %v1349
        %v1998 = vunpack.c.l.b16 %v1350
        %v1999 = vunpack.c.l.b16 %v1351
        %v2000 = vunpack.c.l.b16 %v1352
        %v2001 = vunpack.c.l.b16 %v1353
        %v2002 = vunpack.c.l.b16 %v1354
        %v2003 = vunpack.c.l.b16 %v1355
        %v2004 = vunpack.c.l.b16 %v1356
        %v2005 = vunpack.c.l.b16 %v1357
        %v2006 = vunpack.c.l.b16 %v1358
        %v2007 = vunpack.c.l.b16 %v1359
        %v2008 = vunpack.c.l.b16 %v1360
        %v2009 = vunpack.c.l.b16 %v1361
        %v2010 = vunpack.c.l.b16 %v1362
        %v2011 = vunpack.c.l.b16 %v1363
        %v2012 = vunpack.c.l.b16 %v1364
        %v2013 = vunpack.c.l.b16 %v1365
        %v2014 = vunpack.c.l.b16 %v1366
        %v2015 = vunpack.c.l.b16 %v1367
        %v2016 = vunpack.c.l.b16 %v1368
        %v2017 = vunpack.c.l.b16 %v1369
        %v2018 = vunpack.c.l.b16 %v1370
        %v2019 = vunpack.c.l.b16 %v1371
        %v2020 = vunpack.c.l.b16 %v1372
        %v2021 = vunpack.c.l.b16 %v1373
        %v2022 = vunpack.c.l.b16 %v1374
        %v2023 = vunpack.c.l.b16 %v1375
        %v2024 = vunpack.c.l.b16 %v1376
        %v2025 = vunpack.c.l.b16 %v1377
        %v2026 = vunpack.c.l.b16 %v1378
        %v2027 = vunpack.c.l.b16 %v1379
        %v2028 = vunpack.c.l.b16 %v1380
        %v2029 = vunpack.c.l.b16 %v1381
        %v2030 = vunpack.c.l.b16 %v1382
        %v2031 = vunpack.c.l.b16 %v1383
        %v2032 = vunpack.c.l.b16 %v1384
        %v2033 = vunpack.c.l.b16 %v1385
        %v2034 = vunpack.c.l.b16 %v1386
        %v2035 = vunpack.c.l.b16 %v1387
        %v2036 = vunpack.c.l.b16 %v1388
        %v2037 = vunpack.c.l.b16 %v1389
        %v2038 = vunpack.c.l.b16 %v1390
        %v2039 = vunpack.c.l.b16 %v1391
        %v2040 = vunpack.c.l.b16 %v1392
        %v2041 = vunpack.c.l.b16 %v1393
        %v2042 = vunpack.c.l.b16 %v1394
        %v2043 = vunpack.c.l.b16 %v1395
        %v2044 = vunpack.c.l.b16 %v1396
        %v2045 = vunpack.c.l.b16 %v1397
        %v2046 = vunpack.c.l.b16 %v1398
        %v2047 = vunpack.c.l.b16 %v1399
        %v2048 = vunpack.c.l.b16 %v1400
        %v2049 = vunpack.c.l.b16 %v1401
        %v2050 = vunpack.c.l.b16 %v1402
        %v2051 = vunpack.c.l.b16 %v1403
        %v2052 = vunpack.c.l.b16 %v1404
        %v2053 = vunpack.c.l.b16 %v1405
        %v2054 = vunpack.c.l.b16 %v1406
        %v2055 = vunpack.c.l.b16 %v1407
        %v2056 = vunpack.c.l.b16 %v1408
        %v2057 = vunpack.c.l.b16 %v1409
        %v2058 = vunpack.c.l.b16 %v1410
        %v2059 = vunpack.c.l.b16 %v1411
        %v2060 = vunpack.c.l.b16 %v1412
        %v2061 = vunpack.c.l.b16 %v1413
        %v2062 = vunpack.c.l.b16 %v1414
        %v2063 = vunpack.c.l.b16 %v1415
        %v2064 = vunpack.c.l.b16 %v1416
        %v2065 = vunpack.c.l.b16 %v1417
        %v2066 = vunpack.c.l.b16 %v1418
        %v2067 = vunpack.c.l.b16 %v1419
        %v2068 = vunpack.c.l.b16 %v1420
        %v2069 = vunpack.c.l.b16 %v1421
        %v2070 = vunpack.c.l.b16 %v1422
        %v2071 = vunpack.c.l.b16 %v1423
        %v2072 = vunpack.c.l.b16 %v1424
        %v2073 = vunpack.c.l.b16 %v1425
        %v2074 = vunpack.c.l.b16 %v1426
        %v2075 = vunpack.c.l.b16 %v1427
        %v2076 = vunpack.c.l.b16 %v1428
        %v2077 = vunpack.c.l.b16 %v1429
        %v2078 = vunpack.c.l.b16 %v1430
        %v2079 = vunpack.c.l.b16 %v1431
        %v2080 = vunpack.c.l.b16 %v1432
        %v2081 = vunpack.c.l.b16 %v1433
        %v2082 = vunpack.c.l.b16 %v1434
        %v2083 = vunpack.c.l.b16 %v1435
        %v2084 = vunpack.c.l.b16 %v1436
        %v2085 = vunpack.c.l.b16 %v1437
        %v2086 = vunpack.c.l.b16 %v1438
        %v2087 = vunpack.c.l.b16 %v1439
        %v2088 = vunpack.c.l.b16 %v1440
        %v2089 = vunpack.c.l.b16 %v1441
        %v2090 = vunpack.c.l.b16 %v1442
        %v2091 = vunpack.c.l.b16 %v1443
        %v2092 = vunpack.c.l.b16 %v1444
        %v2093 = vunpack.c.l.b16 %v1445
        %v2094 = vunpack.c.l.b16 %v1446
        %v2095 = vunpack.c.l.b16 %v1447
        %v2096 = vunpack.c.l.b16 %v1448
        %v2097 = vunpack.c.l.b16 %v1449
        %v2098 = vunpack.c.l.b16 %v1450
        %v2099 = vunpack.c.l.b16 %v1451
        %v2100 = vunpack.c.l.b16 %v1452
        %v2101 = vunpack.c.l.b16 %v1453
        %v2102 = vunpack.c.l.b16 %v1454
        %v2103 = vunpack.c.l.b16 %v1455
        %v2104 = vunpack.c.l.b16 %v1456
        %v2105 = vunpack.c.l.b16 %v1457
        %v2106 = vunpack.c.l.b16 %v1458
        %v2107 = vunpack.c.l.b16 %v1459
        %v2108 = vunpack.c.l.b16 %v1460
        %v2109 = vunpack.c.l.b16 %v1461
        %v2110 = vunpack.c.l.b16 %v1462
        %v2111 = vunpack.c.l.b16 %v1463
        %v2112 = vunpack.c.l.b16 %v1464
        %v2113 = vunpack.c.l.b16 %v1465
        %v2114 = vunpack.c.l.b16 %v1466
        %v2115 = vunpack.c.l.b16 %v1467
        %v2116 = vunpack.c.l.b16 %v1468
        %v2117 = vunpack.c.l.b16 %v1469
        %v2118 = vunpack.c.l.b16 %v1470
        %v2119 = vunpack.c.l.b16 %v1471
        %v2120 = vunpack.c.l.b16 %v1472
        %v2121 = vunpack.c.l.b16 %v1473
        %v2122 = vunpack.c.l.b16 %v1474
        %v2123 = vunpack.c.l.b16 %v1475
        %v2124 = vunpack.c.l.b16 %v1476
        %v2125 = vunpack.c.l.b16 %v1477
        %v2126 = vunpack.c.l.b16 %v1478
        %v2127 = vunpack.c.l.b16 %v1479
        %v2128 = vunpack.c.l.b16 %v1480
        %v2129 = vunpack.c.l.b16 %v1481
        %v2130 = vunpack.c.l.b16 %v1482
        %v2131 = vunpack.c.l.b16 %v1483
        %v2132 = vunpack.c.l.b16 %v1484
        %v2133 = vunpack.c.l.b16 %v1485
        %v2134 = vunpack.c.l.b16 %v1486
        %v2135 = vunpack.c.l.b16 %v1487
        %v2136 = vunpack.c.l.b16 %v1488
        %v2137 = vunpack.c.l.b16 %v1489
        %v2138 = vunpack.c.l.b16 %v1490
        %v2139 = vunpack.c.l.b16 %v1491
        %v2140 = vunpack.c.l.b16 %v1492
        %v2141 = vunpack.c.l.b16 %v1493
        %v2142 = vunpack.c.l.b16 %v1494
        %v2143 = vunpack.c.l.b16 %v1495
        %v2144 = vunpack.c.l.b16 %v1496
        %v2145 = vunpack.c.l.b16 %v1497
        %v2146 = vunpack.c.l.b16 %v1498
        %v2147 = vunpack.c.l.b16 %v1499
        %v2148 = vunpack.c.l.b16 %v1500
        %v2149 = vunpack.c.l.b16 %v1501
        %v2150 = vunpack.c.l.b16 %v1502
        %v2151 = vunpack.c.l.b16 %v1503
        %v2152 = vunpack.c.l.b16 %v1504
        %v2153 = vunpack.c.l.b16 %v1505
        %v2154 = vunpack.c.l.b16 %v1506
        %v2155 = vunpack.c.l.b16 %v1507
        %v2156 = vunpack.c.l.b16 %v1508
        %v2157 = vunpack.c.l.b16 %v1509
        %v2158 = vunpack.c.l.b16 %v1510
        %v2159 = vunpack.c.l.b16 %v1511
        %v2160 = vunpack.c.l.b16 %v1512
        %v2161 = vunpack.c.l.b16 %v1513
        %v2162 = vunpack.c.l.b16 %v1514
        %v2163 = vunpack.c.l.b16 %v1515
        %v2164 = vunpack.c.l.b16 %v1516
        %v2165 = vunpack.c.l.b16 %v1517
        %v2166 = vunpack.c.l.b16 %v1518
        %v2167 = vunpack.c.l.b16 %v1519
        %v2168 = vunpack.c.l.b16 %v1520
        %v2169 = vunpack.c.l.b16 %v1521
        %v2170 = vunpack.c.l.b16 %v1522
        %v2171 = vunpack.c.l.b16 %v1523
        %v2172 = vunpack.c.l.b16 %v1524
        %v2173 = vunpack.c.l.b16 %v1525
        %v2174 = vunpack.c.l.b16 %v1526
        %v2175 = vunpack.c.l.b16 %v1527
        %v2176 = vunpack.c.l.b16 %v1528
        %v2177 = vunpack.c.l.b16 %v1529
        %v2178 = vunpack.c.l.b16 %v1530
        %v2179 = vunpack.c.l.b16 %v1531
        %v2180 = vunpack.c.l.b16 %v1532
        %v2181 = vunpack.c.l.b16 %v1533
        %v2182 = vunpack.c.l.b16 %v1534
        %v2183 = vunpack.c.l.b16 %v1535
        %v2184 = vunpack.c.l.b16 %v1536
        %v2185 = vunpack.c.l.b16 %v1537
        %v2186 = vunpack.c.l.b16 %v1538
        %v2187 = vunpack.c.l.b16 %v1539
        %v2188 = vunpack.c.l.b16 %v1540
        %v2189 = vunpack.c.l.b16 %v1541
        %v2190 = vunpack.c.l.b16 %v1542
        %v2191 = vunpack.c.l.b16 %v1543
        %v2192 = vunpack.c.l.b16 %v1544
        %v2193 = vunpack.c.l.b16 %v1545
        %v2194 = vunpack.c.l.b16 %v1546
        %v2195 = vunpack.c.l.b16 %v1547
        %v2196 = vunpack.c.l.b16 %v1548
        %v2197 = vunpack.c.l.b16 %v1549
        %v2198 = vunpack.c.l.b16 %v1550
        %v2199 = vunpack.c.l.b16 %v1551
        %v2200 = vunpack.c.l.b16 %v1552
        %v2201 = vunpack.c.l.b16 %v1553
        %v2202 = vunpack.c.l.b16 %v1554
        %v2203 = vunpack.c.l.b16 %v1555
        %v2204 = vunpack.c.l.b16 %v1556
        %v2205 = vunpack.c.l.b16 %v1557
        %v2206 = vunpack.c.l.b16 %v1558
        %v2207 = vunpack.c.l.b16 %v1559
        %v2208 = vunpack.c.l.b16 %v1560
        %v2209 = vunpack.c.l.b16 %v1561
        %v2210 = vpack.c.b16 %v1955, %v1954
        %v2211 = vpack.c.b16 %v1957, %v1956
        %v2212 = vpack.c.b16 %v1959, %v1958
        %v2213 = vpack.c.b16 %v1961, %v1960
        %v2214 = vpack.c.b16 %v1963, %v1962
        %v2215 = vpack.c.b16 %v1965, %v1964
        %v2216 = vpack.c.b16 %v1967, %v1966
        %v2217 = vpack.c.b16 %v1969, %v1968
        %v2218 = vpack.c.b16 %v1971, %v1970
        %v2219 = vpack.c.b16 %v1973, %v1972
        %v2220 = vpack.c.b16 %v1975, %v1974
        %v2221 = vpack.c.b16 %v1977, %v1976
        %v2222 = vpack.c.b16 %v1979, %v1978
        %v2223 = vpack.c.b16 %v1981, %v1980
        %v2224 = vpack.c.b16 %v1983, %v1982
        %v2225 = vpack.c.b16 %v1985, %v1984
        %v2226 = vpack.c.b16 %v1987, %v1986
        %v2227 = vpack.c.b16 %v1989, %v1988
        %v2228 = vpack.c.b16 %v1991, %v1990
        %v2229 = vpack.c.b16 %v1993, %v1992
        %v2230 = vpack.c.b16 %v1995, %v1994
        %v2231 = vpack.c.b16 %v1997, %v1996
        %v2232 = vpack.c.b16 %v1999, %v1998
        %v2233 = vpack.c.b16 %v2001, %v2000
        %v2234 = vpack.c.b16 %v2003, %v2002
        %v2235 = vpack.c.b16 %v2005, %v2004
        %v2236 = vpack.c.b16 %v2007, %v2006
        %v2237 = vpack.c.b16 %v2009, %v2008
        %v2238 = vpack.c.b16 %v2011, %v2010
        %v2239 = vpack.c.b16 %v2013, %v2012
        %v2240 = vpack.c.b16 %v2015, %v2014
        %v2241 = vpack.c.b16 %v2017, %v2016
        %v2242 = vpack.c.b16 %v2019, %v2018
        %v2243 = vpack.c.b16 %v2021, %v2020
        %v2244 = vpack.c.b16 %v2023, %v2022
        %v2245 = vpack.c.b16 %v2025, %v2024
        %v2246 = vpack.c.b16 %v2027, %v2026
        %v2247 = vpack.c.b16 %v2029, %v2028
        %v2248 = vpack.c.b16 %v2031, %v2030
        %v2249 = vpack.c.b16 %v2033, %v2032
        %v2250 = vpack.c.b16 %v2035, %v2034
        %v2251 = vpack.c.b16 %v2037, %v2036
        %v2252 = vpack.c.b16 %v2039, %v2038
        %v2253 = vpack.c.b16 %v2041, %v2040
        %v2254 = vpack.c.b16 %v2043, %v2042
        %v2255 = vpack.c.b16 %v2045, %v2044
        %v2256 = vpack.c.b16 %v2047, %v2046
        %v2257 = vpack.c.b16 %v2049, %v2048
        %v2258 = vpack.c.b16 %v2051, %v2050
        %v2259 = vpack.c.b16 %v2053, %v2052
        %v2260 = vpack.c.b16 %v2055, %v2054
        %v2261 = vpack.c.b16 %v2057, %v2056
        %v2262 = vpack.c.b16 %v2059, %v2058
        %v2263 = vpack.c.b16 %v2061, %v2060
        %v2264 = vpack.c.b16 %v2063, %v2062
        %v2265 = vpack.c.b16 %v2065, %v2064
        %v2266 = vpack.c.b16 %v2067, %v2066
        %v2267 = vpack.c.b16 %v2069, %v2068
        %v2268 = vpack.c.b16 %v2071, %v2070
        %v2269 = vpack.c.b16 %v2073, %v2072
        %v2270 = vpack.c.b16 %v2075, %v2074
        %v2271 = vpack.c.b16 %v2077, %v2076
        %v2272 = vpack.c.b16 %v2079, %v2078
        %v2273 = vpack.c.b16 %v2081, %v2080
        %v2274 = vpack.c.b16 %v2083, %v2082
        %v2275 = vpack.c.b16 %v2085, %v2084
        %v2276 = vpack.c.b16 %v2087, %v2086
        %v2277 = vpack.c.b16 %v2089, %v2088
        %v2278 = vpack.c.b16 %v2091, %v2090
        %v2279 = vpack.c.b16 %v2093, %v2092
        %v2280 = vpack.c.b16 %v2095, %v2094
        %v2281 = vpack.c.b16 %v2097, %v2096
        %v2282 = vpack.c.b16 %v2099, %v2098
        %v2283 = vpack.c.b16 %v2101, %v2100
        %v2284 = vpack.c.b16 %v2103, %v2102
        %v2285 = vpack.c.b16 %v2105, %v2104
        %v2286 = vpack.c.b16 %v2107, %v2106
        %v2287 = vpack.c.b16 %v2109, %v2108
        %v2288 = vpack.c.b16 %v2111, %v2110
        %v2289 = vpack.c.b16 %v2113, %v2112
        %v2290 = vpack.c.b16 %v2115, %v2114
        %v2291 = vpack.c.b16 %v2117, %v2116
        %v2292 = vpack.c.b16 %v2119, %v2118
        %v2293 = vpack.c.b16 %v2121, %v2120
        %v2294 = vpack.c.b16 %v2123, %v2122
        %v2295 = vpack.c.b16 %v2125, %v2124
        %v2296 = vpack.c.b16 %v2127, %v2126
        %v2297 = vpack.c.b16 %v2129, %v2128
        %v2298 = vpack.c.b16 %v2131, %v2130
        %v2299 = vpack.c.b16 %v2133, %v2132
        %v2300 = vpack.c.b16 %v2135, %v2134
        %v2301 = vpack.c.b16 %v2137, %v2136
        %v2302 = vpack.c.b16 %v2139, %v2138
        %v2303 = vpack.c.b16 %v2141, %v2140
        %v2304 = vpack.c.b16 %v2143, %v2142
        %v2305 = vpack.c.b16 %v2145, %v2144
        %v2306 = vpack.c.b16 %v2147, %v2146
        %v2307 = vpack.c.b16 %v2149, %v2148
        %v2308 = vpack.c.b16 %v2151, %v2150
        %v2309 = vpack.c.b16 %v2153, %v2152
        %v2310 = vpack.c.b16 %v2155, %v2154
        %v2311 = vpack.c.b16 %v2157, %v2156
        %v2312 = vpack.c.b16 %v2159, %v2158
        %v2313 = vpack.c.b16 %v2161, %v2160
        %v2314 = vpack.c.b16 %v2163, %v2162
        %v2315 = vpack.c.b16 %v2165, %v2164
        %v2316 = vpack.c.b16 %v2167, %v2166
        %v2317 = vpack.c.b16 %v2169, %v2168
        %v2318 = vpack.c.b16 %v2171, %v2170
        %v2319 = vpack.c.b16 %v2173, %v2172
        %v2320 = vpack.c.b16 %v2175, %v2174
        %v2321 = vpack.c.b16 %v2177, %v2176
        %v2322 = vpack.c.b16 %v2179, %v2178
        %v2323 = vpack.c.b16 %v2181, %v2180
        %v2324 = vpack.c.b16 %v2183, %v2182
        %v2325 = vpack.c.b16 %v2185, %v2184
        %v2326 = vpack.c.b16 %v2187, %v2186
        %v2327 = vpack.c.b16 %v2189, %v2188
        %v2328 = vpack.c.b16 %v2191, %v2190
        %v2329 = vpack.c.b16 %v2193, %v2192
        %v2330 = vpack.c.b16 %v2195, %v2194
        %v2331 = vpack.c.b16 %v2197, %v2196
        %v2332 = vpack.c.b16 %v2199, %v2198
        %v2333 = vpack.c.b16 %v2201, %v2200
        %v2334 = vpack.c.b16 %v2203, %v2202
        %v2335 = vpack.c.b16 %v2205, %v2204
        %v2336 = vpack.c.b16 %v2207, %v2206
        %v2337 = vpack.c.b16 %v2209, %v2208
        %2466 = vmatprep.subr.bf16.mxu0 0
        %2467 = vmatpush1.bf16.msra.mxu0 %v2210
        %2468 = vmatprep.subr.bf16.mxu0 0
        %2469 = vmatpush1.bf16.msra.mxu0 %v2211
        %2470 = vmatprep.subr.bf16.mxu0 0
        %2471 = vmatpush1.bf16.msra.mxu0 %v2212
        %2472 = vmatprep.subr.bf16.mxu0 0
        %2473 = vmatpush1.bf16.msra.mxu0 %v2213
        %2474 = vmatprep.subr.bf16.mxu0 0
        %2475 = vmatpush1.bf16.msra.mxu0 %v2214
        %2476 = vmatprep.subr.bf16.mxu0 0
        %2477 = vmatpush1.bf16.msra.mxu0 %v2215
        %2478 = vmatprep.subr.bf16.mxu0 0
        %2479 = vmatpush1.bf16.msra.mxu0 %v2216
        %2480 = vmatprep.subr.bf16.mxu0 0
        %2481 = vmatpush1.bf16.msra.mxu0 %v2217
        %2482 = vmatprep.subr.bf16.mxu0 0
        %2483 = vmatpush1.bf16.msra.mxu0 %v2218
        %2484 = vmatprep.subr.bf16.mxu0 0
        %2485 = vmatpush1.bf16.msra.mxu0 %v2219
        %2486 = vmatprep.subr.bf16.mxu0 0
        %2487 = vmatpush1.bf16.msra.mxu0 %v2220
        %2488 = vmatprep.subr.bf16.mxu0 0
        %2489 = vmatpush1.bf16.msra.mxu0 %v2221
        %2490 = vmatprep.subr.bf16.mxu0 0
        %2491 = vmatpush1.bf16.msra.mxu0 %v2222
        %2492 = vmatprep.subr.bf16.mxu0 0
        %2493 = vmatpush1.bf16.msra.mxu0 %v2223
        %2494 = vmatprep.subr.bf16.mxu0 0
        %2495 = vmatpush1.bf16.msra.mxu0 %v2224
        %2496 = vmatprep.subr.bf16.mxu0 0
        %2497 = vmatpush1.bf16.msra.mxu0 %v2225
        %2498 = vmatprep.mubr.bf16.mxu0 %v1635
        %2499 = vmatmul.mubr.bf16.gmra.mrb[0].mxu0 %v1634
        %v2500 = vpop.f32.mrb[0].mxu0
        %v2501 = vadd.f32 0.0, %v2500
        %v2502 = vpop.f32.mrb[0].mxu0
        %v2503 = vpop.f32.mrb[0].mxu0
        %v2504 = vadd.f32 0.0, %v2503
        %v2505 = vpop.f32.mrb[0].mxu0
        %2506 = vmatprep.mubr.bf16.mxu0 %v1651
        %2507 = vmatmul.mubr.bf16.gmra.mrb[0].mxu0 %v1650
        %v2508 = vpop.f32.mrb[0].mxu0
        %v2509 = vadd.f32 0.0, %v2508
        %v2510 = vpop.f32.mrb[0].mxu0
        %v2511 = vpop.f32.mrb[0].mxu0
        %v2512 = vpop.f32.mrb[0].mxu0
        %2513 = vdwg.mxu0
        %2514 = vmatprep.subr.bf16.mxu0 0
        %2515 = vmatpush1.bf16.msra.mxu0 %v2226
        %2516 = vmatprep.subr.bf16.mxu0 0
        %2517 = vmatpush1.bf16.msra.mxu0 %v2227
        %2518 = vmatprep.subr.bf16.mxu0 0
        %2519 = vmatpush1.bf16.msra.mxu0 %v2228
        %2520 = vmatprep.subr.bf16.mxu0 0
        %2521 = vmatpush1.bf16.msra.mxu0 %v2229
        %2522 = vmatprep.subr.bf16.mxu0 0
        %2523 = vmatpush1.bf16.msra.mxu0 %v2230
        %2524 = vmatprep.subr.bf16.mxu0 0
        %2525 = vmatpush1.bf16.msra.mxu0 %v2231
        %2526 = vmatprep.subr.bf16.mxu0 0
        %2527 = vmatpush1.bf16.msra.mxu0 %v2232
        %2528 = vmatprep.subr.bf16.mxu0 0
        %2529 = vmatpush1.bf16.msra.mxu0 %v2233
        %2530 = vmatprep.subr.bf16.mxu0 0
        %2531 = vmatpush1.bf16.msra.mxu0 %v2234
        %2532 = vmatprep.subr.bf16.mxu0 0
        %2533 = vmatpush1.bf16.msra.mxu0 %v2235
        %2534 = vmatprep.subr.bf16.mxu0 0
        %2535 = vmatpush1.bf16.msra.mxu0 %v2236
        %2536 = vmatprep.subr.bf16.mxu0 0
        %2537 = vmatpush1.bf16.msra.mxu0 %v2237
        %2538 = vmatprep.subr.bf16.mxu0 0
        %2539 = vmatpush1.bf16.msra.mxu0 %v2238
        %2540 = vmatprep.subr.bf16.mxu0 0
        %2541 = vmatpush1.bf16.msra.mxu0 %v2239
        %2542 = vmatprep.subr.bf16.mxu0 0
        %2543 = vmatpush1.bf16.msra.mxu0 %v2240
        %2544 = vmatprep.subr.bf16.mxu0 0
        %2545 = vmatpush1.bf16.msra.mxu0 %v2241
        %2546 = vmatprep.mubr.bf16.mxu0 %v1637
        %2547 = vmatmul.mubr.bf16.gmra.mrb[0].mxu0 %v1636
        %v2548 = vpop.f32.mrb[0].mxu0
        %v2549 = vadd.f32 %v2501, %v2548
        %v2550 = vpop.f32.mrb[0].mxu0
        %v2551 = vpop.f32.mrb[0].mxu0
        %v2552 = vadd.f32 %v2504, %v2551
        %v2553 = vpop.f32.mrb[0].mxu0
        %2554 = vmatprep.mubr.bf16.mxu0 %v1653
        %2555 = vmatmul.mubr.bf16.gmra.mrb[0].mxu0 %v1652
        %v2556 = vpop.f32.mrb[0].mxu0
        %v2557 = vadd.f32 %v2509, %v2556
        %v2558 = vpop.f32.mrb[0].mxu0
        %v2559 = vpop.f32.mrb[0].mxu0
        %v2560 = vpop.f32.mrb[0].mxu0
        %2561 = vdwg.mxu0
        %2562 = vmatprep.subr.bf16.mxu0 0
        %2563 = vmatpush1.bf16.msra.mxu0 %v2242
        %2564 = vmatprep.subr.bf16.mxu0 0
        %2565 = vmatpush1.bf16.msra.mxu0 %v2243
        %2566 = vmatprep.subr.bf16.mxu0 0
        %2567 = vmatpush1.bf16.msra.mxu0 %v2244
        %2568 = vmatprep.subr.bf16.mxu0 0
        %2569 = vmatpush1.bf16.msra.mxu0 %v2245
        %2570 = vmatprep.subr.bf16.mxu0 0
        %2571 = vmatpush1.bf16.msra.mxu0 %v2246
        %2572 = vmatprep.subr.bf16.mxu0 0
        %2573 = vmatpush1.bf16.msra.mxu0 %v2247
        %2574 = vmatprep.subr.bf16.mxu0 0
        %2575 = vmatpush1.bf16.msra.mxu0 %v2248
        %2576 = vmatprep.subr.bf16.mxu0 0
        %2577 = vmatpush1.bf16.msra.mxu0 %v2249
        %2578 = vmatprep.subr.bf16.mxu0 0
        %2579 = vmatpush1.bf16.msra.mxu0 %v2250
        %2580 = vmatprep.subr.bf16.mxu0 0
        %2581 = vmatpush1.bf16.msra.mxu0 %v2251
        %2582 = vmatprep.subr.bf16.mxu0 0
        %2583 = vmatpush1.bf16.msra.mxu0 %v2252
        %2584 = vmatprep.subr.bf16.mxu0 0
        %2585 = vmatpush1.bf16.msra.mxu0 %v2253
        %2586 = vmatprep.subr.bf16.mxu0 0
        %2587 = vmatpush1.bf16.msra.mxu0 %v2254
        %2588 = vmatprep.subr.bf16.mxu0 0
        %2589 = vmatpush1.bf16.msra.mxu0 %v2255
        %2590 = vmatprep.subr.bf16.mxu0 0
        %2591 = vmatpush1.bf16.msra.mxu0 %v2256
        %2592 = vmatprep.subr.bf16.mxu0 0
        %2593 = vmatpush1.bf16.msra.mxu0 %v2257
        %2594 = vmatprep.mubr.bf16.mxu0 %v1639
        %2595 = vmatmul.mubr.bf16.gmra.mrb[0].mxu0 %v1638
        %v2596 = vpop.f32.mrb[0].mxu0
        %v2597 = vadd.f32 %v2549, %v2596
        %v2598 = vpop.f32.mrb[0].mxu0
        %v2599 = vpop.f32.mrb[0].mxu0
        %v2600 = vadd.f32 %v2552, %v2599
        %v2601 = vpop.f32.mrb[0].mxu0
        %2602 = vmatprep.mubr.bf16.mxu0 %v1655
        %2603 = vmatmul.mubr.bf16.gmra.mrb[0].mxu0 %v1654
        %v2604 = vpop.f32.mrb[0].mxu0
        %v2605 = vadd.f32 %v2557, %v2604
        %v2606 = vpop.f32.mrb[0].mxu0
        %v2607 = vpop.f32.mrb[0].mxu0
        %v2608 = vpop.f32.mrb[0].mxu0
        %2609 = vdwg.mxu0
        %2610 = vmatprep.subr.bf16.mxu0 0
        %2611 = vmatpush1.bf16.msra.mxu0 %v2258
        %2612 = vmatprep.subr.bf16.mxu0 0
        %2613 = vmatpush1.bf16.msra.mxu0 %v2259
        %2614 = vmatprep.subr.bf16.mxu0 0
        %2615 = vmatpush1.bf16.msra.mxu0 %v2260
        %2616 = vmatprep.subr.bf16.mxu0 0
        %2617 = vmatpush1.bf16.msra.mxu0 %v2261
        %2618 = vmatprep.subr.bf16.mxu0 0
        %2619 = vmatpush1.bf16.msra.mxu0 %v2262
        %2620 = vmatprep.subr.bf16.mxu0 0
        %2621 = vmatpush1.bf16.msra.mxu0 %v2263
        %2622 = vmatprep.subr.bf16.mxu0 0
        %2623 = vmatpush1.bf16.msra.mxu0 %v2264
        %2624 = vmatprep.subr.bf16.mxu0 0
        %2625 = vmatpush1.bf16.msra.mxu0 %v2265
        %2626 = vmatprep.subr.bf16.mxu0 0
        %2627 = vmatpush1.bf16.msra.mxu0 %v2266
        %2628 = vmatprep.subr.bf16.mxu0 0
        %2629 = vmatpush1.bf16.msra.mxu0 %v2267
        %2630 = vmatprep.subr.bf16.mxu0 0
        %2631 = vmatpush1.bf16.msra.mxu0 %v2268
        %2632 = vmatprep.subr.bf16.mxu0 0
        %2633 = vmatpush1.bf16.msra.mxu0 %v2269
        %2634 = vmatprep.subr.bf16.mxu0 0
        %2635 = vmatpush1.bf16.msra.mxu0 %v2270
        %2636 = vmatprep.subr.bf16.mxu0 0
        %2637 = vmatpush1.bf16.msra.mxu0 %v2271
        %2638 = vmatprep.subr.bf16.mxu0 0
        %2639 = vmatpush1.bf16.msra.mxu0 %v2272
        %2640 = vmatprep.subr.bf16.mxu0 0
        %2641 = vmatpush1.bf16.msra.mxu0 %v2273
        %2642 = vmatprep.mubr.bf16.mxu0 %v1641
        %2643 = vmatmul.mubr.bf16.gmra.mrb[0].mxu0 %v1640
        %v2644 = vpop.f32.mrb[0].mxu0
        %v2645 = vadd.f32 %v2597, %v2644
        %v2646 = vpop.f32.mrb[0].mxu0
        %v2647 = vpop.f32.mrb[0].mxu0
        %v2648 = vadd.f32 %v2600, %v2647
        %v2649 = vpop.f32.mrb[0].mxu0
        %2650 = vmatprep.mubr.bf16.mxu0 %v1657
        %2651 = vmatmul.mubr.bf16.gmra.mrb[0].mxu0 %v1656
        %v2652 = vpop.f32.mrb[0].mxu0
        %v2653 = vadd.f32 %v2605, %v2652
        %v2654 = vpop.f32.mrb[0].mxu0
        %v2655 = vpop.f32.mrb[0].mxu0
        %v2656 = vpop.f32.mrb[0].mxu0
        %2657 = vdwg.mxu0
        %2658 = vmatprep.subr.bf16.mxu0 0
        %2659 = vmatpush1.bf16.msra.mxu0 %v2274
        %2660 = vmatprep.subr.bf16.mxu0 0
        %2661 = vmatpush1.bf16.msra.mxu0 %v2275
        %2662 = vmatprep.subr.bf16.mxu0 0
        %2663 = vmatpush1.bf16.msra.mxu0 %v2276
        %2664 = vmatprep.subr.bf16.mxu0 0
        %2665 = vmatpush1.bf16.msra.mxu0 %v2277
        %2666 = vmatprep.subr.bf16.mxu0 0
        %2667 = vmatpush1.bf16.msra.mxu0 %v2278
        %2668 = vmatprep.subr.bf16.mxu0 0
        %2669 = vmatpush1.bf16.msra.mxu0 %v2279
        %2670 = vmatprep.subr.bf16.mxu0 0
        %2671 = vmatpush1.bf16.msra.mxu0 %v2280
        %2672 = vmatprep.subr.bf16.mxu0 0
        %2673 = vmatpush1.bf16.msra.mxu0 %v2281
        %2674 = vmatprep.subr.bf16.mxu0 0
        %2675 = vmatpush1.bf16.msra.mxu0 %v2282
        %2676 = vmatprep.subr.bf16.mxu0 0
        %2677 = vmatpush1.bf16.msra.mxu0 %v2283
        %2678 = vmatprep.subr.bf16.mxu0 0
        %2679 = vmatpush1.bf16.msra.mxu0 %v2284
        %2680 = vmatprep.subr.bf16.mxu0 0
        %2681 = vmatpush1.bf16.msra.mxu0 %v2285
        %2682 = vmatprep.subr.bf16.mxu0 0
        %2683 = vmatpush1.bf16.msra.mxu0 %v2286
        %2684 = vmatprep.subr.bf16.mxu0 0
        %2685 = vmatpush1.bf16.msra.mxu0 %v2287
        %2686 = vmatprep.subr.bf16.mxu0 0
        %2687 = vmatpush1.bf16.msra.mxu0 %v2288
        %2688 = vmatprep.subr.bf16.mxu0 0
        %2689 = vmatpush1.bf16.msra.mxu0 %v2289
        %2690 = vmatprep.mubr.bf16.mxu0 %v1643
        %2691 = vmatmul.mubr.bf16.gmra.mrb[0].mxu0 %v1642
        %v2692 = vpop.f32.mrb[0].mxu0
        %v2693 = vadd.f32 %v2645, %v2692
        %v2694 = vpop.f32.mrb[0].mxu0
        %v2695 = vpop.f32.mrb[0].mxu0
        %v2696 = vadd.f32 %v2648, %v2695
        %v2697 = vpop.f32.mrb[0].mxu0
        %2698 = vmatprep.mubr.bf16.mxu0 %v1659
        %2699 = vmatmul.mubr.bf16.gmra.mrb[0].mxu0 %v1658
        %v2700 = vpop.f32.mrb[0].mxu0
        %v2701 = vadd.f32 %v2653, %v2700
        %v2702 = vpop.f32.mrb[0].mxu0
        %v2703 = vpop.f32.mrb[0].mxu0
        %v2704 = vpop.f32.mrb[0].mxu0
        %2705 = vdwg.mxu0
        %2706 = vmatprep.subr.bf16.mxu0 0
        %2707 = vmatpush1.bf16.msra.mxu0 %v2290
        %2708 = vmatprep.subr.bf16.mxu0 0
        %2709 = vmatpush1.bf16.msra.mxu0 %v2291
        %2710 = vmatprep.subr.bf16.mxu0 0
        %2711 = vmatpush1.bf16.msra.mxu0 %v2292
        %2712 = vmatprep.subr.bf16.mxu0 0
        %2713 = vmatpush1.bf16.msra.mxu0 %v2293
        %2714 = vmatprep.subr.bf16.mxu0 0
        %2715 = vmatpush1.bf16.msra.mxu0 %v2294
        %2716 = vmatprep.subr.bf16.mxu0 0
        %2717 = vmatpush1.bf16.msra.mxu0 %v2295
        %2718 = vmatprep.subr.bf16.mxu0 0
        %2719 = vmatpush1.bf16.msra.mxu0 %v2296
        %2720 = vmatprep.subr.bf16.mxu0 0
        %2721 = vmatpush1.bf16.msra.mxu0 %v2297
        %2722 = vmatprep.subr.bf16.mxu0 0
        %2723 = vmatpush1.bf16.msra.mxu0 %v2298
        %2724 = vmatprep.subr.bf16.mxu0 0
        %2725 = vmatpush1.bf16.msra.mxu0 %v2299
        %2726 = vmatprep.subr.bf16.mxu0 0
        %2727 = vmatpush1.bf16.msra.mxu0 %v2300
        %2728 = vmatprep.subr.bf16.mxu0 0
        %2729 = vmatpush1.bf16.msra.mxu0 %v2301
        %2730 = vmatprep.subr.bf16.mxu0 0
        %2731 = vmatpush1.bf16.msra.mxu0 %v2302
        %2732 = vmatprep.subr.bf16.mxu0 0
        %2733 = vmatpush1.bf16.msra.mxu0 %v2303
        %2734 = vmatprep.subr.bf16.mxu0 0
        %2735 = vmatpush1.bf16.msra.mxu0 %v2304
        %2736 = vmatprep.subr.bf16.mxu0 0
        %2737 = vmatpush1.bf16.msra.mxu0 %v2305
        %2738 = vmatprep.mubr.bf16.mxu0 %v1645
        %2739 = vmatmul.mubr.bf16.gmra.mrb[0].mxu0 %v1644
        %v2740 = vpop.f32.mrb[0].mxu0
        %v2741 = vadd.f32 %v2693, %v2740
        %v2742 = vpop.f32.mrb[0].mxu0
        %v2743 = vpop.f32.mrb[0].mxu0
        %v2744 = vadd.f32 %v2696, %v2743
        %v2745 = vpop.f32.mrb[0].mxu0
        %2746 = vmatprep.mubr.bf16.mxu0 %v1661
        %2747 = vmatmul.mubr.bf16.gmra.mrb[0].mxu0 %v1660
        %v2748 = vpop.f32.mrb[0].mxu0
        %v2749 = vadd.f32 %v2701, %v2748
        %v2750 = vpop.f32.mrb[0].mxu0
        %v2751 = vpop.f32.mrb[0].mxu0
        %v2752 = vpop.f32.mrb[0].mxu0
        %2753 = vdwg.mxu0
        %2754 = vmatprep.subr.bf16.mxu0 0
        %2755 = vmatpush1.bf16.msra.mxu0 %v2306
        %2756 = vmatprep.subr.bf16.mxu0 0
        %2757 = vmatpush1.bf16.msra.mxu0 %v2307
        %2758 = vmatprep.subr.bf16.mxu0 0
        %2759 = vmatpush1.bf16.msra.mxu0 %v2308
        %2760 = vmatprep.subr.bf16.mxu0 0
        %2761 = vmatpush1.bf16.msra.mxu0 %v2309
        %2762 = vmatprep.subr.bf16.mxu0 0
        %2763 = vmatpush1.bf16.msra.mxu0 %v2310
        %2764 = vmatprep.subr.bf16.mxu0 0
        %2765 = vmatpush1.bf16.msra.mxu0 %v2311
        %2766 = vmatprep.subr.bf16.mxu0 0
        %2767 = vmatpush1.bf16.msra.mxu0 %v2312
        %2768 = vmatprep.subr.bf16.mxu0 0
        %2769 = vmatpush1.bf16.msra.mxu0 %v2313
        %2770 = vmatprep.subr.bf16.mxu0 0
        %2771 = vmatpush1.bf16.msra.mxu0 %v2314
        %2772 = vmatprep.subr.bf16.mxu0 0
        %2773 = vmatpush1.bf16.msra.mxu0 %v2315
        %2774 = vmatprep.subr.bf16.mxu0 0
        %2775 = vmatpush1.bf16.msra.mxu0 %v2316
        %2776 = vmatprep.subr.bf16.mxu0 0
        %2777 = vmatpush1.bf16.msra.mxu0 %v2317
        %2778 = vmatprep.subr.bf16.mxu0 0
        %2779 = vmatpush1.bf16.msra.mxu0 %v2318
        %2780 = vmatprep.subr.bf16.mxu0 0
        %2781 = vmatpush1.bf16.msra.mxu0 %v2319
        %2782 = vmatprep.subr.bf16.mxu0 0
        %2783 = vmatpush1.bf16.msra.mxu0 %v2320
        %2784 = vmatprep.subr.bf16.mxu0 0
        %2785 = vmatpush1.bf16.msra.mxu0 %v2321
        %2786 = vmatprep.mubr.bf16.mxu0 %v1647
        %2787 = vmatmul.mubr.bf16.gmra.mrb[0].mxu0 %v1646
        %v2788 = vpop.f32.mrb[0].mxu0
        %v2789 = vadd.f32 %v2741, %v2788
        %v2790 = vpop.f32.mrb[0].mxu0
        %v2791 = vpop.f32.mrb[0].mxu0
        %v2792 = vadd.f32 %v2744, %v2791
        %v2793 = vpop.f32.mrb[0].mxu0
        %2794 = vmatprep.mubr.bf16.mxu0 %v1663
        %2795 = vmatmul.mubr.bf16.gmra.mrb[0].mxu0 %v1662
        %v2796 = vpop.f32.mrb[0].mxu0
        %v2797 = vadd.f32 %v2749, %v2796
        %v2798 = vpop.f32.mrb[0].mxu0
        %v2799 = vpop.f32.mrb[0].mxu0
        %v2800 = vpop.f32.mrb[0].mxu0
        %2801 = vdwg.mxu0
        %2802 = vmatprep.subr.bf16.mxu0 0
        %2803 = vmatpush1.bf16.msra.mxu0 %v2322
        %2804 = vmatprep.subr.bf16.mxu0 0
        %2805 = vmatpush1.bf16.msra.mxu0 %v2323
        %2806 = vmatprep.subr.bf16.mxu0 0
        %2807 = vmatpush1.bf16.msra.mxu0 %v2324
        %2808 = vmatprep.subr.bf16.mxu0 0
        %2809 = vmatpush1.bf16.msra.mxu0 %v2325
        %2810 = vmatprep.subr.bf16.mxu0 0
        %2811 = vmatpush1.bf16.msra.mxu0 %v2326
        %2812 = vmatprep.subr.bf16.mxu0 0
        %2813 = vmatpush1.bf16.msra.mxu0 %v2327
        %2814 = vmatprep.subr.bf16.mxu0 0
        %2815 = vmatpush1.bf16.msra.mxu0 %v2328
        %2816 = vmatprep.subr.bf16.mxu0 0
        %2817 = vmatpush1.bf16.msra.mxu0 %v2329
        %2818 = vmatprep.subr.bf16.mxu0 0
        %2819 = vmatpush1.bf16.msra.mxu0 %v2330
        %2820 = vmatprep.subr.bf16.mxu0 0
        %2821 = vmatpush1.bf16.msra.mxu0 %v2331
        %2822 = vmatprep.subr.bf16.mxu0 0
        %2823 = vmatpush1.bf16.msra.mxu0 %v2332
        %2824 = vmatprep.subr.bf16.mxu0 0
        %2825 = vmatpush1.bf16.msra.mxu0 %v2333
        %2826 = vmatprep.subr.bf16.mxu0 0
        %2827 = vmatpush1.bf16.msra.mxu0 %v2334
        %2828 = vmatprep.subr.bf16.mxu0 0
        %2829 = vmatpush1.bf16.msra.mxu0 %v2335
        %2830 = vmatprep.subr.bf16.mxu0 0
        %2831 = vmatpush1.bf16.msra.mxu0 %v2336
        %2832 = vmatprep.subr.bf16.mxu0 0
        %2833 = vmatpush1.bf16.msra.mxu0 %v2337
        %2834 = vmatprep.mubr.bf16.mxu0 %v1649
        %2835 = vmatmul.mubr.bf16.gmra.mrb[0].mxu0 %v1648
        %v2836 = vpop.f32.mrb[0].mxu0
        %v2837 = vadd.f32 %v2789, %v2836
        %v2838 = vpop.f32.mrb[0].mxu0
        %v2839 = vpop.f32.mrb[0].mxu0
        %v2840 = vadd.f32 %v2792, %v2839
        %v2841 = vpop.f32.mrb[0].mxu0
        %2842 = vmatprep.mubr.bf16.mxu0 %v1665
        %2843 = vmatmul.mubr.bf16.gmra.mrb[0].mxu0 %v1664
        %v2844 = vpop.f32.mrb[0].mxu0
        %v2845 = vadd.f32 %v2797, %v2844
        %v2846 = vpop.f32.mrb[0].mxu0
        %v2847 = vpop.f32.mrb[0].mxu0
        %v2848 = vpop.f32.mrb[0].mxu0
        %2849 = vdwg.mxu0
        %v2850 = vadd.f32 %v2837, %v2840
        %v2851 = vadd.f32 %v2850, %v2845
        %v2852 = vrot.slane %v2851, 4
        %v2853 = vadd.f32 %v2851, %v2852
        %v2854 = vrot.slane %v2853, 2
        %v2855 = vadd.f32 %v2853, %v2854
        %v2856 = vrot.slane %v2855, 1
        %v2857 = vadd.f32 %v2855, %v2856
        %v2858 = vmul.f32 %v2837, %v2837
        %v2859 = vmul.f32 %v2840, %v2840
        %v2860 = vmul.f32 %v2845, %v2845
        %v2861 = vadd.f32 %v2858, %v2859
        %v2862 = vadd.f32 %v2861, %v2860
        %v2863 = vrot.slane %v2862, 4
        %v2864 = vadd.f32 %v2862, %v2863
        %v2865 = vrot.slane %v2864, 2
        %v2866 = vadd.f32 %v2864, %v2865
        %v2867 = vrot.slane %v2866, 1
        %v2868 = vadd.f32 %v2866, %v2867
        %v2869 = vmul.f32 %v2857, 0.055555556
        %v2870 = vmul.f32 %v2868, 0.055555556
        %v2871 = vmul.f32 %v2869, %v2869
        %v2872 = vsub.f32 %v2870, %v2871
        %v2873 = vld [vmem:[%s1277] sm:$0x1]
        %v2874 = vadd.f32 %v2872, 1e-05
        %v2875 = vrsqrt.pop %v2874
        %v2876 = vmul.f32 %v2873, %v2875
        %v2877 = vld [vmem:[%s1280] sm:$0x1]
        %v2878 = vmul.f32 %v2869, %v2876
        %v2879 = vsub.f32 %v2877, %v2878
        %v2881 = vlaneseq
        %v2882 = vshrl.u32 %v2881, 7
        %v2883 = vsub.s32 0, %v2882
        %v2884 = vrot.slane %v2876, %v2883
        %v2886 = vmul.f32 %v2837, %v2884
        %v2887 = vmul.f32 %v2840, %v2884
        %v2888 = vmul.f32 %v2845, %v2884
        %v2890 = vlaneseq
        %v2891 = vshrl.u32 %v2890, 7
        %v2892 = vsub.s32 0, %v2891
        %v2893 = vrot.slane %v2879, %v2892
        %v2895 = vadd.f32 %v2886, %v2893
        %v2896 = vadd.f32 %v2887, %v2893
        %v2897 = vadd.f32 %v2888, %v2893
        %vm2898 = vcmp.gt.f32.partialorder %v2895, 0.0
        %vm2899 = vcmp.gt.f32.partialorder %v2896, 0.0
        %vm2900 = vcmp.gt.f32.partialorder %v2897, 0.0
        %v2901 = vmul.f32 %v2895, 0.2
        %v2902 = vmul.f32 %v2896, 0.2
        %v2903 = vmul.f32 %v2897, 0.2
        %v2904 = vsel %vm2898, %v2895, %v2901
        %v2905 = vsel %vm2899, %v2896, %v2902
        %v2906 = vsel %vm2900, %v2897, %v2903
        %v2907 = vpack.c.bf16 %v2905, %v2904
        %v2908 = vpack.c.bf16 %v2906, %v2906
        %v2911 = vunpack.c.l.b16 %v2907
        %v2912 = vunpack.c.h.b16 %v2907
        %v2913 = vunpack.c.l.b16 %v2908
        %v2914 = vpack.c.b16 %v2911, %v2911
        %v2915 = vpack.c.b16 %v2912, %v2912
        %v2916 = vpack.c.b16 %v2913, %v2913
        %2920 = vst [vmem:[%s1274] sm:$0xf] %v2914
        %2921 = vst [vmem:[%s1274 + $0x4] sm:$0xf] %v2915
        %2922 = vst [vmem:[%s1274 + $0x8] sm:$0xf] %v2916
        %s2923 = sand.u32 %s122, 1
        %s2924 = sand.u32 %s122, 1
        %s2925 = smul.addr %s2924, 12
        %s2926 = scalar_lea.vmem [#allocation3], %s2925
        // Predicated region
        $region78: #{encoder_forward.6} parent=72 // pred_check
          %p2927 = pneg %p132
        $region79: #{encoder_forward.6} parent=72 // pred_check_branch
          %2929 = sbr.rel (%p2927) target = $region81
        $region80: #{encoder_forward.6} parent=72 // pred_region
          %s2930 = smul.addr %s15, 4
          %s2931 = scalar_lea.vmem %s4, %s2930
          // Predicated region
          $region82: #{encoder_forward.6} parent=80 // pred_check
            _
          $region83: #{encoder_forward.6} parent=80 // pred_check_branch
            %2933 = sbr.rel (0) target = $region85
          $region84: #{encoder_forward.6} parent=80 // pred_region
            // Predicated region
            $region86: #{encoder_forward.6} parent=84 // pred_check
              _
            $region87: #{encoder_forward.6} parent=84 // pred_check_branch
              %2935 = sbr.rel target = $region89
            $region88: #{encoder_forward.6} parent=84 // pred_region
              // Predicated region
              $region101: #{encoder_forward.6} parent=88 // pred_check
                _
              $region102: #{encoder_forward.6} parent=88 // pred_check_branch
                %2954 = sbr.rel (0) target = $region104
              $region103: #{encoder_forward.6} parent=88 // pred_region
                loop: start=0, step=1, limit=1
                $region105: #{encoder_forward.6} parent=103 // loop_pre_header
                  _
                $region106: #{encoder_forward.6} parent=103 // loop_header
                  %s2956 = sphi 0, %s2960
                  %p2957 = scmp.ge.s32.totalorder %s2956, 1
                  %s2961 = sphi %s2926, %s2926
                  %s2962 = sphi %s2931, %s2931
                $region107: #{encoder_forward.6} parent=103 // loop_header_branch
                  %2959 = sbr.rel (%p2957) target = $region111
                $region108: #{encoder_forward.6} parent=103 // loop_body
                  _
                $region109: #{encoder_forward.6} parent=103 // loop_footer
                  %s2960 = sadd.s32 1, %s2956
                $region110: #{encoder_forward.6} parent=103 // loop_footer_branch
                  %2955 = sbr.rel target = $region106
                $region111: #{encoder_forward.6} parent=103 // loop_exit
                  _
                loop: start=0, step=1, limit=1
                $region112: #{encoder_forward.6} parent=103 // loop_pre_header
                  _
                $region113: #{encoder_forward.6} parent=103 // loop_header
                  %s2965 = sphi 0, %s2969
                  %p2966 = scmp.ge.s32.totalorder %s2965, 1
                  %s2970 = sphi %s2926, %s2926
                  %s2971 = sphi %s2931, %s2931
                $region114: #{encoder_forward.6} parent=103 // loop_header_branch
                  %2968 = sbr.rel (%p2966) target = $region118
                $region115: #{encoder_forward.6} parent=103 // loop_body
                  %v2972 = vld [vmem:[%s2970] sm:$0xf]
                  %2973 = vst [vmem:[%s2971] sm:$0xf] %v2972
                  %v2974 = vld [vmem:[%s2970 + $0x4] sm:$0xf]
                  %2975 = vst [vmem:[%s2971 + $0x8] sm:$0xf] %v2974
                  %v2976 = vld [vmem:[%s2970 + $0x8] sm:$0xf]
                  %2977 = vst [vmem:[%s2971 + $0x10] sm:$0xf] %v2976
                $region116: #{encoder_forward.6} parent=103 // loop_footer
                  %s2969 = sadd.s32 1, %s2965
                $region117: #{encoder_forward.6} parent=103 // loop_footer_branch
                  %2964 = sbr.rel target = $region113
                $region118: #{encoder_forward.6} parent=103 // loop_exit
                  _
              $region104: #{encoder_forward.6} parent=88 // pred_fallthru
                _
            $region89: #{encoder_forward.6} parent=84 // pred_fallthru
              _
            // Predicated region
            $region90: #{encoder_forward.6} parent=84 // pred_check
              _
            $region91: #{encoder_forward.6} parent=84 // pred_check_branch
              %2937 = sbr.rel (0) target = $region93
            $region92: #{encoder_forward.6} parent=84 // pred_region
              loop: start=0, step=1, limit=1
              $region94: #{encoder_forward.6} parent=92 // loop_pre_header
                _
              $region95: #{encoder_forward.6} parent=92 // loop_header
                %s2940 = sphi 0, %s2944
                %p2941 = scmp.ge.s32.totalorder %s2940, 1
                %s2945 = sphi %s2926, %s2926
                %s2946 = sphi %s2931, %s2931
              $region96: #{encoder_forward.6} parent=92 // loop_header_branch
                %2943 = sbr.rel (%p2941) target = $region100
              $region97: #{encoder_forward.6} parent=92 // loop_body
                %v2947 = vld [vmem:[%s2945] sm:$0xf]
                %2948 = vst [vmem:[%s2946] sm:$0xf] %v2947
                %v2949 = vld [vmem:[%s2945 + $0x4] sm:$0xf]
                %2950 = vst [vmem:[%s2946 + $0x8] sm:$0xf] %v2949
                %v2951 = vld [vmem:[%s2945 + $0x8] sm:$0xf]
                %2952 = vst [vmem:[%s2946 + $0x10] sm:$0xf] %v2951
              $region98: #{encoder_forward.6} parent=92 // loop_footer
                %s2944 = sadd.s32 1, %s2940
              $region99: #{encoder_forward.6} parent=92 // loop_footer_branch
                %2939 = sbr.rel target = $region95
              $region100: #{encoder_forward.6} parent=92 // loop_exit
                _
            $region93: #{encoder_forward.6} parent=84 // pred_fallthru
              _
          $region85: #{encoder_forward.6} parent=80 // pred_fallthru
            _
          %2978 = vnop
        $region81: #{encoder_forward.6} parent=72 // pred_fallthru
          _
      $region73: #{encoder_forward.6} parent=5 // pred_fallthru
        _
      %p2979 = scmp.le.s32.totalorder 2, %s10
      // Predicated region
      $region119: #{encoder_forward.6} parent=5 // pred_check
        %p2980 = pneg %p2979
      $region120: #{encoder_forward.6} parent=5 // pred_check_branch
        %2982 = sbr.rel (%p2980) target = $region122
      $region121: #{encoder_forward.6} parent=5 // pred_region
        %s2983 = ssub.s32 %s10, 2
        // Predicated region
        $region123: #{encoder_forward.6} parent=121 // pred_check
          %p2984 = pneg %p138
        $region124: #{encoder_forward.6} parent=121 // pred_check_branch
          %2986 = sbr.rel (%p2984) target = $region126
        $region125: #{encoder_forward.6} parent=121 // pred_region
          %s2987 = sand.u32 %s123, 1
          %s2988 = sand.u32 %s123, 1
          %s2989 = smul.addr %s2988, 12
          %s2990 = scalar_lea.vmem [#allocation3], %s2989
        $region126: #{encoder_forward.6} parent=121 // pred_fallthru
          _
      $region122: #{encoder_forward.6} parent=5 // pred_fallthru
        _
    $region6: #{encoder_forward.6} parent=1 // loop_footer
      %s14 = sadd.s32 1, %s10
    $region7: #{encoder_forward.6} parent=1 // loop_footer_branch
      %9 = sbr.rel target = $region3
    $region8: #{encoder_forward.6} parent=1 // loop_exit
      _

// kernel: encoder_forward.7
$region0: #{encoder_forward.7}
  #allocation0 [shape = 'u32[]', space=smem, size = 0x4, offset = 0x4, fixed_abs, tag = 'smem constant byte address 0x4 - core index']
  #allocation1 [shape = 'u32[144,128]{1,0:T(1,128)}', space=vmem, size = 0x12000, scoped, tag = 'internal scratch']
  %s0 = inlined_call_operand.vmem [shape: bf16[8,2304], index: 0, kind: input, shape index: {}]
  %s1 = inlined_call_operand.vmem [shape: bf16[2304,128], index: 1, kind: input, shape index: {}]
  %s2 = inlined_call_operand.vmem [shape: f32[1,128], index: 2, kind: input, shape index: {}]
  %s3 = inlined_call_operand.vmem [shape: f32[8,128], index: 3, kind: output, shape index: {}]
  %s4 = sld [smem:[#allocation0]]
  $region22: #{encoder_forward.7} parent=0
    _
  %s6 = ssub.s32 1, %s4
  %s7 = scalar_select 0, %s6, %s4
  // Predicated region
  $region2: #{encoder_forward.7} parent=0 // pred_check
    _
  $region3: #{encoder_forward.7} parent=0 // pred_check_branch
    %9 = sbr.rel (0) target = $region5
  $region4: #{encoder_forward.7} parent=0 // pred_region
    _
  $region5: #{encoder_forward.7} parent=0 // pred_fallthru
    _
  // Predicated region
  $region6: #{encoder_forward.7} parent=0 // pred_check
    _
  $region7: #{encoder_forward.7} parent=0 // pred_check_branch
    %11 = sbr.rel (0) target = $region9
  $region8: #{encoder_forward.7} parent=0 // pred_region
    _
  $region9: #{encoder_forward.7} parent=0 // pred_fallthru
    _
  // Predicated region
  $region10: #{encoder_forward.7} parent=0 // pred_check
    _
  $region11: #{encoder_forward.7} parent=0 // pred_check_branch
    %13 = sbr.rel (0) target = $region13
  $region12: #{encoder_forward.7} parent=0 // pred_region
    _
  $region13: #{encoder_forward.7} parent=0 // pred_fallthru
    _
  %v15 = vld [vmem:[%s0] sm:$0xff]
  %v16 = vld [vmem:[%s0 + $0x8] sm:$0xff]
  %v17 = vld [vmem:[%s0 + $0x10] sm:$0xff]
  %v18 = vld [vmem:[%s0 + $0x18] sm:$0xff]
  %v19 = vld [vmem:[%s0 + $0x20] sm:$0xff]
  %v20 = vld [vmem:[%s0 + $0x28] sm:$0xff]
  %v21 = vld [vmem:[%s0 + $0x30] sm:$0xff]
  %v22 = vld [vmem:[%s0 + $0x38] sm:$0xff]
  %v23 = vld [vmem:[%s0 + $0x40] sm:$0xff]
  %v24 = vld [vmem:[%s1] sm:$0xf]
  %v25 = vld [vmem:[%s1 + $0x4] sm:$0xf]
  %v26 = vld [vmem:[%s1 + $0x8] sm:$0xf]
  %v27 = vld [vmem:[%s1 + $0xc] sm:$0xf]
  %v28 = vld [vmem:[%s1 + $0x10] sm:$0xf]
  %v29 = vld [vmem:[%s1 + $0x14] sm:$0xf]
  %v30 = vld [vmem:[%s1 + $0x18] sm:$0xf]
  %v31 = vld [vmem:[%s1 + $0x1c] sm:$0xf]
  %v32 = vld [vmem:[%s1 + $0x20] sm:$0xf]
  %v33 = vld [vmem:[%s1 + $0x24] sm:$0xf]
  %v34 = vld [vmem:[%s1 + $0x28] sm:$0xf]
  %v35 = vld [vmem:[%s1 + $0x2c] sm:$0xf]
  %v36 = vld [vmem:[%s1 + $0x30] sm:$0xf]
  %v37 = vld [vmem:[%s1 + $0x34] sm:$0xf]
  %v38 = vld [vmem:[%s1 + $0x38] sm:$0xf]
  %v39 = vld [vmem:[%s1 + $0x3c] sm:$0xf]
  %v40 = vld [vmem:[%s1 + $0x40] sm:$0xf]
  %v41 = vld [vmem:[%s1 + $0x44] sm:$0xf]
  %v42 = vld [vmem:[%s1 + $0x48] sm:$0xf]
  %v43 = vld [vmem:[%s1 + $0x4c] sm:$0xf]
  %v44 = vld [vmem:[%s1 + $0x50] sm:$0xf]
  %v45 = vld [vmem:[%s1 + $0x54] sm:$0xf]
  %v46 = vld [vmem:[%s1 + $0x58] sm:$0xf]
  %v47 = vld [vmem:[%s1 + $0x5c] sm:$0xf]
  %v48 = vld [vmem:[%s1 + $0x60] sm:$0xf]
  %v49 = vld [vmem:[%s1 + $0x64] sm:$0xf]
  %v50 = vld [vmem:[%s1 + $0x68] sm:$0xf]
  %v51 = vld [vmem:[%s1 + $0x6c] sm:$0xf]
  %v52 = vld [vmem:[%s1 + $0x70] sm:$0xf]
  %v53 = vld [vmem:[%s1 + $0x74] sm:$0xf]
  %v54 = vld [vmem:[%s1 + $0x78] sm:$0xf]
  %v55 = vld [vmem:[%s1 + $0x7c] sm:$0xf]
  %v56 = vld [vmem:[%s1 + $0x80] sm:$0xf]
  %v57 = vld [vmem:[%s1 + $0x84] sm:$0xf]
  %v58 = vld [vmem:[%s1 + $0x88] sm:$0xf]
  %v59 = vld [vmem:[%s1 + $0x8c] sm:$0xf]
  %v60 = vld [vmem:[%s1 + $0x90] sm:$0xf]
  %v61 = vld [vmem:[%s1 + $0x94] sm:$0xf]
  %v62 = vld [vmem:[%s1 + $0x98] sm:$0xf]
  %v63 = vld [vmem:[%s1 + $0x9c] sm:$0xf]
  %v64 = vld [vmem:[%s1 + $0xa0] sm:$0xf]
  %v65 = vld [vmem:[%s1 + $0xa4] sm:$0xf]
  %v66 = vld [vmem:[%s1 + $0xa8] sm:$0xf]
  %v67 = vld [vmem:[%s1 + $0xac] sm:$0xf]
  %v68 = vld [vmem:[%s1 + $0xb0] sm:$0xf]
  %v69 = vld [vmem:[%s1 + $0xb4] sm:$0xf]
  %v70 = vld [vmem:[%s1 + $0xb8] sm:$0xf]
  %v71 = vld [vmem:[%s1 + $0xbc] sm:$0xf]
  %v72 = vld [vmem:[%s1 + $0xc0] sm:$0xf]
  %v73 = vld [vmem:[%s1 + $0xc4] sm:$0xf]
  %v74 = vld [vmem:[%s1 + $0xc8] sm:$0xf]
  %v75 = vld [vmem:[%s1 + $0xcc] sm:$0xf]
  %v76 = vld [vmem:[%s1 + $0xd0] sm:$0xf]
  %v77 = vld [vmem:[%s1 + $0xd4] sm:$0xf]
  %v78 = vld [vmem:[%s1 + $0xd8] sm:$0xf]
  %v79 = vld [vmem:[%s1 + $0xdc] sm:$0xf]
  %v80 = vld [vmem:[%s1 + $0xe0] sm:$0xf]
  %v81 = vld [vmem:[%s1 + $0xe4] sm:$0xf]
  %v82 = vld [vmem:[%s1 + $0xe8] sm:$0xf]
  %v83 = vld [vmem:[%s1 + $0xec] sm:$0xf]
  %v84 = vld [vmem:[%s1 + $0xf0] sm:$0xf]
  %v85 = vld [vmem:[%s1 + $0xf4] sm:$0xf]
  %v86 = vld [vmem:[%s1 + $0xf8] sm:$0xf]
  %v87 = vld [vmem:[%s1 + $0xfc] sm:$0xf]
  %v88 = vld [vmem:[%s1 + $0x100] sm:$0xf]
  %v89 = vld [vmem:[%s1 + $0x104] sm:$0xf]
  %v90 = vld [vmem:[%s1 + $0x108] sm:$0xf]
  %v91 = vld [vmem:[%s1 + $0x10c] sm:$0xf]
  %v92 = vld [vmem:[%s1 + $0x110] sm:$0xf]
  %v93 = vld [vmem:[%s1 + $0x114] sm:$0xf]
  %v94 = vld [vmem:[%s1 + $0x118] sm:$0xf]
  %v95 = vld [vmem:[%s1 + $0x11c] sm:$0xf]
  %v96 = vld [vmem:[%s1 + $0x120] sm:$0xf]
  %v97 = vld [vmem:[%s1 + $0x124] sm:$0xf]
  %v98 = vld [vmem:[%s1 + $0x128] sm:$0xf]
  %v99 = vld [vmem:[%s1 + $0x12c] sm:$0xf]
  %v100 = vld [vmem:[%s1 + $0x130] sm:$0xf]
  %v101 = vld [vmem:[%s1 + $0x134] sm:$0xf]
  %v102 = vld [vmem:[%s1 + $0x138] sm:$0xf]
  %v103 = vld [vmem:[%s1 + $0x13c] sm:$0xf]
  %v104 = vld [vmem:[%s1 + $0x140] sm:$0xf]
  %v105 = vld [vmem:[%s1 + $0x144] sm:$0xf]
  %v106 = vld [vmem:[%s1 + $0x148] sm:$0xf]
  %v107 = vld [vmem:[%s1 + $0x14c] sm:$0xf]
  %v108 = vld [vmem:[%s1 + $0x150] sm:$0xf]
  %v109 = vld [vmem:[%s1 + $0x154] sm:$0xf]
  %v110 = vld [vmem:[%s1 + $0x158] sm:$0xf]
  %v111 = vld [vmem:[%s1 + $0x15c] sm:$0xf]
  %v112 = vld [vmem:[%s1 + $0x160] sm:$0xf]
  %v113 = vld [vmem:[%s1 + $0x164] sm:$0xf]
  %v114 = vld [vmem:[%s1 + $0x168] sm:$0xf]
  %v115 = vld [vmem:[%s1 + $0x16c] sm:$0xf]
  %v116 = vld [vmem:[%s1 + $0x170] sm:$0xf]
  %v117 = vld [vmem:[%s1 + $0x174] sm:$0xf]
  %v118 = vld [vmem:[%s1 + $0x178] sm:$0xf]
  %v119 = vld [vmem:[%s1 + $0x17c] sm:$0xf]
  %v120 = vld [vmem:[%s1 + $0x180] sm:$0xf]
  %v121 = vld [vmem:[%s1 + $0x184] sm:$0xf]
  %v122 = vld [vmem:[%s1 + $0x188] sm:$0xf]
  %v123 = vld [vmem:[%s1 + $0x18c] sm:$0xf]
  %v124 = vld [vmem:[%s1 + $0x190] sm:$0xf]
  %v125 = vld [vmem:[%s1 + $0x194] sm:$0xf]
  %v126 = vld [vmem:[%s1 + $0x198] sm:$0xf]
  %v127 = vld [vmem:[%s1 + $0x19c] sm:$0xf]
  %v128 = vld [vmem:[%s1 + $0x1a0] sm:$0xf]
  %v129 = vld [vmem:[%s1 + $0x1a4] sm:$0xf]
  %v130 = vld [vmem:[%s1 + $0x1a8] sm:$0xf]
  %v131 = vld [vmem:[%s1 + $0x1ac] sm:$0xf]
  %v132 = vld [vmem:[%s1 + $0x1b0] sm:$0xf]
  %v133 = vld [vmem:[%s1 + $0x1b4] sm:$0xf]
  %v134 = vld [vmem:[%s1 + $0x1b8] sm:$0xf]
  %v135 = vld [vmem:[%s1 + $0x1bc] sm:$0xf]
  %v136 = vld [vmem:[%s1 + $0x1c0] sm:$0xf]
  %v137 = vld [vmem:[%s1 + $0x1c4] sm:$0xf]
  %v138 = vld [vmem:[%s1 + $0x1c8] sm:$0xf]
  %v139 = vld [vmem:[%s1 + $0x1cc] sm:$0xf]
  %v140 = vld [vmem:[%s1 + $0x1d0] sm:$0xf]
  %v141 = vld [vmem:[%s1 + $0x1d4] sm:$0xf]
  %v142 = vld [vmem:[%s1 + $0x1d8] sm:$0xf]
  %v143 = vld [vmem:[%s1 + $0x1dc] sm:$0xf]
  %v144 = vld [vmem:[%s1 + $0x1e0] sm:$0xf]
  %v145 = vld [vmem:[%s1 + $0x1e4] sm:$0xf]
  %v146 = vld [vmem:[%s1 + $0x1e8] sm:$0xf]
  %v147 = vld [vmem:[%s1 + $0x1ec] sm:$0xf]
  %v148 = vld [vmem:[%s1 + $0x1f0] sm:$0xf]
  %v149 = vld [vmem:[%s1 + $0x1f4] sm:$0xf]
  %v150 = vld [vmem:[%s1 + $0x1f8] sm:$0xf]
  %v151 = vld [vmem:[%s1 + $0x1fc] sm:$0xf]
  %v152 = vld [vmem:[%s1 + $0x200] sm:$0xf]
  %v153 = vld [vmem:[%s1 + $0x204] sm:$0xf]
  %v154 = vld [vmem:[%s1 + $0x208] sm:$0xf]
  %v155 = vld [vmem:[%s1 + $0x20c] sm:$0xf]
  %v156 = vld [vmem:[%s1 + $0x210] sm:$0xf]
  %v157 = vld [vmem:[%s1 + $0x214] sm:$0xf]
  %v158 = vld [vmem:[%s1 + $0x218] sm:$0xf]
  %v159 = vld [vmem:[%s1 + $0x21c] sm:$0xf]
  %v160 = vld [vmem:[%s1 + $0x220] sm:$0xf]
  %v161 = vld [vmem:[%s1 + $0x224] sm:$0xf]
  %v162 = vld [vmem:[%s1 + $0x228] sm:$0xf]
  %v163 = vld [vmem:[%s1 + $0x22c] sm:$0xf]
  %v164 = vld [vmem:[%s1 + $0x230] sm:$0xf]
  %v165 = vld [vmem:[%s1 + $0x234] sm:$0xf]
  %v166 = vld [vmem:[%s1 + $0x238] sm:$0xf]
  %v167 = vld [vmem:[%s1 + $0x23c] sm:$0xf]
  %v168 = vld [vmem:[%s1 + $0x240] sm:$0xf]
  %v169 = vld [vmem:[%s1 + $0x244] sm:$0xf]
  %v170 = vld [vmem:[%s1 + $0x248] sm:$0xf]
  %v171 = vld [vmem:[%s1 + $0x24c] sm:$0xf]
  %v172 = vld [vmem:[%s1 + $0x250] sm:$0xf]
  %v173 = vld [vmem:[%s1 + $0x254] sm:$0xf]
  %v174 = vld [vmem:[%s1 + $0x258] sm:$0xf]
  %v175 = vld [vmem:[%s1 + $0x25c] sm:$0xf]
  %v176 = vld [vmem:[%s1 + $0x260] sm:$0xf]
  %v177 = vld [vmem:[%s1 + $0x264] sm:$0xf]
  %v178 = vld [vmem:[%s1 + $0x268] sm:$0xf]
  %v179 = vld [vmem:[%s1 + $0x26c] sm:$0xf]
  %v180 = vld [vmem:[%s1 + $0x270] sm:$0xf]
  %v181 = vld [vmem:[%s1 + $0x274] sm:$0xf]
  %v182 = vld [vmem:[%s1 + $0x278] sm:$0xf]
  %v183 = vld [vmem:[%s1 + $0x27c] sm:$0xf]
  %v184 = vld [vmem:[%s1 + $0x280] sm:$0xf]
  %v185 = vld [vmem:[%s1 + $0x284] sm:$0xf]
  %v186 = vld [vmem:[%s1 + $0x288] sm:$0xf]
  %v187 = vld [vmem:[%s1 + $0x28c] sm:$0xf]
  %v188 = vld [vmem:[%s1 + $0x290] sm:$0xf]
  %v189 = vld [vmem:[%s1 + $0x294] sm:$0xf]
  %v190 = vld [vmem:[%s1 + $0x298] sm:$0xf]
  %v191 = vld [vmem:[%s1 + $0x29c] sm:$0xf]
  %v192 = vld [vmem:[%s1 + $0x2a0] sm:$0xf]
  %v193 = vld [vmem:[%s1 + $0x2a4] sm:$0xf]
  %v194 = vld [vmem:[%s1 + $0x2a8] sm:$0xf]
  %v195 = vld [vmem:[%s1 + $0x2ac] sm:$0xf]
  %v196 = vld [vmem:[%s1 + $0x2b0] sm:$0xf]
  %v197 = vld [vmem:[%s1 + $0x2b4] sm:$0xf]
  %v198 = vld [vmem:[%s1 + $0x2b8] sm:$0xf]
  %v199 = vld [vmem:[%s1 + $0x2bc] sm:$0xf]
  %v200 = vld [vmem:[%s1 + $0x2c0] sm:$0xf]
  %v201 = vld [vmem:[%s1 + $0x2c4] sm:$0xf]
  %v202 = vld [vmem:[%s1 + $0x2c8] sm:$0xf]
  %v203 = vld [vmem:[%s1 + $0x2cc] sm:$0xf]
  %v204 = vld [vmem:[%s1 + $0x2d0] sm:$0xf]
  %v205 = vld [vmem:[%s1 + $0x2d4] sm:$0xf]
  %v206 = vld [vmem:[%s1 + $0x2d8] sm:$0xf]
  %v207 = vld [vmem:[%s1 + $0x2dc] sm:$0xf]
  %v208 = vld [vmem:[%s1 + $0x2e0] sm:$0xf]
  %v209 = vld [vmem:[%s1 + $0x2e4] sm:$0xf]
  %v210 = vld [vmem:[%s1 + $0x2e8] sm:$0xf]
  %v211 = vld [vmem:[%s1 + $0x2ec] sm:$0xf]
  %v212 = vld [vmem:[%s1 + $0x2f0] sm:$0xf]
  %v213 = vld [vmem:[%s1 + $0x2f4] sm:$0xf]
  %v214 = vld [vmem:[%s1 + $0x2f8] sm:$0xf]
  %v215 = vld [vmem:[%s1 + $0x2fc] sm:$0xf]
  %v216 = vld [vmem:[%s1 + $0x300] sm:$0xf]
  %v217 = vld [vmem:[%s1 + $0x304] sm:$0xf]
  %v218 = vld [vmem:[%s1 + $0x308] sm:$0xf]
  %v219 = vld [vmem:[%s1 + $0x30c] sm:$0xf]
  %v220 = vld [vmem:[%s1 + $0x310] sm:$0xf]
  %v221 = vld [vmem:[%s1 + $0x314] sm:$0xf]
  %v222 = vld [vmem:[%s1 + $0x318] sm:$0xf]
  %v223 = vld [vmem:[%s1 + $0x31c] sm:$0xf]
  %v224 = vld [vmem:[%s1 + $0x320] sm:$0xf]
  %v225 = vld [vmem:[%s1 + $0x324] sm:$0xf]
  %v226 = vld [vmem:[%s1 + $0x328] sm:$0xf]
  %v227 = vld [vmem:[%s1 + $0x32c] sm:$0xf]
  %v228 = vld [vmem:[%s1 + $0x330] sm:$0xf]
  %v229 = vld [vmem:[%s1 + $0x334] sm:$0xf]
  %v230 = vld [vmem:[%s1 + $0x338] sm:$0xf]
  %v231 = vld [vmem:[%s1 + $0x33c] sm:$0xf]
  %v232 = vld [vmem:[%s1 + $0x340] sm:$0xf]
  %v233 = vld [vmem:[%s1 + $0x344] sm:$0xf]
  %v234 = vld [vmem:[%s1 + $0x348] sm:$0xf]
  %v235 = vld [vmem:[%s1 + $0x34c] sm:$0xf]
  %v236 = vld [vmem:[%s1 + $0x350] sm:$0xf]
  %v237 = vld [vmem:[%s1 + $0x354] sm:$0xf]
  %v238 = vld [vmem:[%s1 + $0x358] sm:$0xf]
  %v239 = vld [vmem:[%s1 + $0x35c] sm:$0xf]
  %v240 = vld [vmem:[%s1 + $0x360] sm:$0xf]
  %v241 = vld [vmem:[%s1 + $0x364] sm:$0xf]
  %v242 = vld [vmem:[%s1 + $0x368] sm:$0xf]
  %v243 = vld [vmem:[%s1 + $0x36c] sm:$0xf]
  %v244 = vld [vmem:[%s1 + $0x370] sm:$0xf]
  %v245 = vld [vmem:[%s1 + $0x374] sm:$0xf]
  %v246 = vld [vmem:[%s1 + $0x378] sm:$0xf]
  %v247 = vld [vmem:[%s1 + $0x37c] sm:$0xf]
  %v248 = vld [vmem:[%s1 + $0x380] sm:$0xf]
  %v249 = vld [vmem:[%s1 + $0x384] sm:$0xf]
  %v250 = vld [vmem:[%s1 + $0x388] sm:$0xf]
  %v251 = vld [vmem:[%s1 + $0x38c] sm:$0xf]
  %v252 = vld [vmem:[%s1 + $0x390] sm:$0xf]
  %v253 = vld [vmem:[%s1 + $0x394] sm:$0xf]
  %v254 = vld [vmem:[%s1 + $0x398] sm:$0xf]
  %v255 = vld [vmem:[%s1 + $0x39c] sm:$0xf]
  %v256 = vld [vmem:[%s1 + $0x3a0] sm:$0xf]
  %v257 = vld [vmem:[%s1 + $0x3a4] sm:$0xf]
  %v258 = vld [vmem:[%s1 + $0x3a8] sm:$0xf]
  %v259 = vld [vmem:[%s1 + $0x3ac] sm:$0xf]
  %v260 = vld [vmem:[%s1 + $0x3b0] sm:$0xf]
  %v261 = vld [vmem:[%s1 + $0x3b4] sm:$0xf]
  %v262 = vld [vmem:[%s1 + $0x3b8] sm:$0xf]
  %v263 = vld [vmem:[%s1 + $0x3bc] sm:$0xf]
  %v264 = vld [vmem:[%s1 + $0x3c0] sm:$0xf]
  %v265 = vld [vmem:[%s1 + $0x3c4] sm:$0xf]
  %v266 = vld [vmem:[%s1 + $0x3c8] sm:$0xf]
  %v267 = vld [vmem:[%s1 + $0x3cc] sm:$0xf]
  %v268 = vld [vmem:[%s1 + $0x3d0] sm:$0xf]
  %v269 = vld [vmem:[%s1 + $0x3d4] sm:$0xf]
  %v270 = vld [vmem:[%s1 + $0x3d8] sm:$0xf]
  %v271 = vld [vmem:[%s1 + $0x3dc] sm:$0xf]
  %v272 = vld [vmem:[%s1 + $0x3e0] sm:$0xf]
  %v273 = vld [vmem:[%s1 + $0x3e4] sm:$0xf]
  %v274 = vld [vmem:[%s1 + $0x3e8] sm:$0xf]
  %v275 = vld [vmem:[%s1 + $0x3ec] sm:$0xf]
  %v276 = vld [vmem:[%s1 + $0x3f0] sm:$0xf]
  %v277 = vld [vmem:[%s1 + $0x3f4] sm:$0xf]
  %v278 = vld [vmem:[%s1 + $0x3f8] sm:$0xf]
  %v279 = vld [vmem:[%s1 + $0x3fc] sm:$0xf]
  %v280 = vld [vmem:[%s1 + $0x400] sm:$0xf]
  %v281 = vld [vmem:[%s1 + $0x404] sm:$0xf]
  %v282 = vld [vmem:[%s1 + $0x408] sm:$0xf]
  %v283 = vld [vmem:[%s1 + $0x40c] sm:$0xf]
  %v284 = vld [vmem:[%s1 + $0x410] sm:$0xf]
  %v285 = vld [vmem:[%s1 + $0x414] sm:$0xf]
  %v286 = vld [vmem:[%s1 + $0x418] sm:$0xf]
  %v287 = vld [vmem:[%s1 + $0x41c] sm:$0xf]
  %v288 = vld [vmem:[%s1 + $0x420] sm:$0xf]
  %v289 = vld [vmem:[%s1 + $0x424] sm:$0xf]
  %v290 = vld [vmem:[%s1 + $0x428] sm:$0xf]
  %v291 = vld [vmem:[%s1 + $0x42c] sm:$0xf]
  %v292 = vld [vmem:[%s1 + $0x430] sm:$0xf]
  %v293 = vld [vmem:[%s1 + $0x434] sm:$0xf]
  %v294 = vld [vmem:[%s1 + $0x438] sm:$0xf]
  %v295 = vld [vmem:[%s1 + $0x43c] sm:$0xf]
  %v296 = vld [vmem:[%s1 + $0x440] sm:$0xf]
  %v297 = vld [vmem:[%s1 + $0x444] sm:$0xf]
  %v298 = vld [vmem:[%s1 + $0x448] sm:$0xf]
  %v299 = vld [vmem:[%s1 + $0x44c] sm:$0xf]
  %v300 = vld [vmem:[%s1 + $0x450] sm:$0xf]
  %v301 = vld [vmem:[%s1 + $0x454] sm:$0xf]
  %v302 = vld [vmem:[%s1 + $0x458] sm:$0xf]
  %v303 = vld [vmem:[%s1 + $0x45c] sm:$0xf]
  %v304 = vld [vmem:[%s1 + $0x460] sm:$0xf]
  %v305 = vld [vmem:[%s1 + $0x464] sm:$0xf]
  %v306 = vld [vmem:[%s1 + $0x468] sm:$0xf]
  %v307 = vld [vmem:[%s1 + $0x46c] sm:$0xf]
  %v308 = vld [vmem:[%s1 + $0x470] sm:$0xf]
  %v309 = vld [vmem:[%s1 + $0x474] sm:$0xf]
  %v310 = vld [vmem:[%s1 + $0x478] sm:$0xf]
  %v311 = vld [vmem:[%s1 + $0x47c] sm:$0xf]
  %v312 = vld [vmem:[%s2] sm:$0x1]
  %v314 = vlaneseq
  %v315 = vshrl.u32 %v314, 7
  %v316 = vsub.s32 0, %v315
  %v317 = vrot.slane %v312, %v316
  %v328 = vunpack.c.l.b16 %v15
  %v329 = vunpack.c.h.b16 %v15
  %v330 = vunpack.c.l.b16 %v16
  %v331 = vunpack.c.h.b16 %v16
  %v332 = vunpack.c.l.b16 %v17
  %v333 = vunpack.c.h.b16 %v17
  %v334 = vunpack.c.l.b16 %v18
  %v335 = vunpack.c.h.b16 %v18
  %v336 = vunpack.c.l.b16 %v19
  %v337 = vunpack.c.h.b16 %v19
  %v338 = vunpack.c.l.b16 %v20
  %v339 = vunpack.c.h.b16 %v20
  %v340 = vunpack.c.l.b16 %v21
  %v341 = vunpack.c.h.b16 %v21
  %v342 = vunpack.c.l.b16 %v22
  %v343 = vunpack.c.h.b16 %v22
  %v344 = vunpack.c.l.b16 %v23
  %v345 = vunpack.c.h.b16 %v23
  %v346 = vpack.c.b16 %v328, %v328
  %v347 = vpack.c.b16 %v329, %v329
  %v348 = vpack.c.b16 %v330, %v330
  %v349 = vpack.c.b16 %v331, %v331
  %v350 = vpack.c.b16 %v332, %v332
  %v351 = vpack.c.b16 %v333, %v333
  %v352 = vpack.c.b16 %v334, %v334
  %v353 = vpack.c.b16 %v335, %v335
  %v354 = vpack.c.b16 %v336, %v336
  %v355 = vpack.c.b16 %v337, %v337
  %v356 = vpack.c.b16 %v338, %v338
  %v357 = vpack.c.b16 %v339, %v339
  %v358 = vpack.c.b16 %v340, %v340
  %v359 = vpack.c.b16 %v341, %v341
  %v360 = vpack.c.b16 %v342, %v342
  %v361 = vpack.c.b16 %v343, %v343
  %v362 = vpack.c.b16 %v344, %v344
  %v363 = vpack.c.b16 %v345, %v345
  %v670 = vunpack.c.l.b16 %v24
  %v671 = vunpack.c.l.b16 %v25
  %v672 = vunpack.c.l.b16 %v26
  %v673 = vunpack.c.l.b16 %v27
  %v674 = vunpack.c.l.b16 %v28
  %v675 = vunpack.c.l.b16 %v29
  %v676 = vunpack.c.l.b16 %v30
  %v677 = vunpack.c.l.b16 %v31
  %v678 = vunpack.c.l.b16 %v32
  %v679 = vunpack.c.l.b16 %v33
  %v680 = vunpack.c.l.b16 %v34
  %v681 = vunpack.c.l.b16 %v35
  %v682 = vunpack.c.l.b16 %v36
  %v683 = vunpack.c.l.b16 %v37
  %v684 = vunpack.c.l.b16 %v38
  %v685 = vunpack.c.l.b16 %v39
  %v686 = vunpack.c.l.b16 %v40
  %v687 = vunpack.c.l.b16 %v41
  %v688 = vunpack.c.l.b16 %v42
  %v689 = vunpack.c.l.b16 %v43
  %v690 = vunpack.c.l.b16 %v44
  %v691 = vunpack.c.l.b16 %v45
  %v692 = vunpack.c.l.b16 %v46
  %v693 = vunpack.c.l.b16 %v47
  %v694 = vunpack.c.l.b16 %v48
  %v695 = vunpack.c.l.b16 %v49
  %v696 = vunpack.c.l.b16 %v50
  %v697 = vunpack.c.l.b16 %v51
  %v698 = vunpack.c.l.b16 %v52
  %v699 = vunpack.c.l.b16 %v53
  %v700 = vunpack.c.l.b16 %v54
  %v701 = vunpack.c.l.b16 %v55
  %v702 = vunpack.c.l.b16 %v56
  %v703 = vunpack.c.l.b16 %v57
  %v704 = vunpack.c.l.b16 %v58
  %v705 = vunpack.c.l.b16 %v59
  %v706 = vunpack.c.l.b16 %v60
  %v707 = vunpack.c.l.b16 %v61
  %v708 = vunpack.c.l.b16 %v62
  %v709 = vunpack.c.l.b16 %v63
  %v710 = vunpack.c.l.b16 %v64
  %v711 = vunpack.c.l.b16 %v65
  %v712 = vunpack.c.l.b16 %v66
  %v713 = vunpack.c.l.b16 %v67
  %v714 = vunpack.c.l.b16 %v68
  %v715 = vunpack.c.l.b16 %v69
  %v716 = vunpack.c.l.b16 %v70
  %v717 = vunpack.c.l.b16 %v71
  %v718 = vunpack.c.l.b16 %v72
  %v719 = vunpack.c.l.b16 %v73
  %v720 = vunpack.c.l.b16 %v74
  %v721 = vunpack.c.l.b16 %v75
  %v722 = vunpack.c.l.b16 %v76
  %v723 = vunpack.c.l.b16 %v77
  %v724 = vunpack.c.l.b16 %v78
  %v725 = vunpack.c.l.b16 %v79
  %v726 = vunpack.c.l.b16 %v80
  %v727 = vunpack.c.l.b16 %v81
  %v728 = vunpack.c.l.b16 %v82
  %v729 = vunpack.c.l.b16 %v83
  %v730 = vunpack.c.l.b16 %v84
  %v731 = vunpack.c.l.b16 %v85
  %v732 = vunpack.c.l.b16 %v86
  %v733 = vunpack.c.l.b16 %v87
  %v734 = vunpack.c.l.b16 %v88
  %v735 = vunpack.c.l.b16 %v89
  %v736 = vunpack.c.l.b16 %v90
  %v737 = vunpack.c.l.b16 %v91
  %v738 = vunpack.c.l.b16 %v92
  %v739 = vunpack.c.l.b16 %v93
  %v740 = vunpack.c.l.b16 %v94
  %v741 = vunpack.c.l.b16 %v95
  %v742 = vunpack.c.l.b16 %v96
  %v743 = vunpack.c.l.b16 %v97
  %v744 = vunpack.c.l.b16 %v98
  %v745 = vunpack.c.l.b16 %v99
  %v746 = vunpack.c.l.b16 %v100
  %v747 = vunpack.c.l.b16 %v101
  %v748 = vunpack.c.l.b16 %v102
  %v749 = vunpack.c.l.b16 %v103
  %v750 = vunpack.c.l.b16 %v104
  %v751 = vunpack.c.l.b16 %v105
  %v752 = vunpack.c.l.b16 %v106
  %v753 = vunpack.c.l.b16 %v107
  %v754 = vunpack.c.l.b16 %v108
  %v755 = vunpack.c.l.b16 %v109
  %v756 = vunpack.c.l.b16 %v110
  %v757 = vunpack.c.l.b16 %v111
  %v758 = vunpack.c.l.b16 %v112
  %v759 = vunpack.c.l.b16 %v113
  %v760 = vunpack.c.l.b16 %v114
  %v761 = vunpack.c.l.b16 %v115
  %v762 = vunpack.c.l.b16 %v116
  %v763 = vunpack.c.l.b16 %v117
  %v764 = vunpack.c.l.b16 %v118
  %v765 = vunpack.c.l.b16 %v119
  %v766 = vunpack.c.l.b16 %v120
  %v767 = vunpack.c.l.b16 %v121
  %v768 = vunpack.c.l.b16 %v122
  %v769 = vunpack.c.l.b16 %v123
  %v770 = vunpack.c.l.b16 %v124
  %v771 = vunpack.c.l.b16 %v125
  %v772 = vunpack.c.l.b16 %v126
  %v773 = vunpack.c.l.b16 %v127
  %v774 = vunpack.c.l.b16 %v128
  %v775 = vunpack.c.l.b16 %v129
  %v776 = vunpack.c.l.b16 %v130
  %v777 = vunpack.c.l.b16 %v131
  %v778 = vunpack.c.l.b16 %v132
  %v779 = vunpack.c.l.b16 %v133
  %v780 = vunpack.c.l.b16 %v134
  %v781 = vunpack.c.l.b16 %v135
  %v782 = vunpack.c.l.b16 %v136
  %v783 = vunpack.c.l.b16 %v137
  %v784 = vunpack.c.l.b16 %v138
  %v785 = vunpack.c.l.b16 %v139
  %v786 = vunpack.c.l.b16 %v140
  %v787 = vunpack.c.l.b16 %v141
  %v788 = vunpack.c.l.b16 %v142
  %v789 = vunpack.c.l.b16 %v143
  %v790 = vunpack.c.l.b16 %v144
  %v791 = vunpack.c.l.b16 %v145
  %v792 = vunpack.c.l.b16 %v146
  %v793 = vunpack.c.l.b16 %v147
  %v794 = vunpack.c.l.b16 %v148
  %v795 = vunpack.c.l.b16 %v149
  %v796 = vunpack.c.l.b16 %v150
  %v797 = vunpack.c.l.b16 %v151
  %v798 = vunpack.c.l.b16 %v152
  %v799 = vunpack.c.l.b16 %v153
  %v800 = vunpack.c.l.b16 %v154
  %v801 = vunpack.c.l.b16 %v155
  %v802 = vunpack.c.l.b16 %v156
  %v803 = vunpack.c.l.b16 %v157
  %v804 = vunpack.c.l.b16 %v158
  %v805 = vunpack.c.l.b16 %v159
  %v806 = vunpack.c.l.b16 %v160
  %v807 = vunpack.c.l.b16 %v161
  %v808 = vunpack.c.l.b16 %v162
  %v809 = vunpack.c.l.b16 %v163
  %v810 = vunpack.c.l.b16 %v164
  %v811 = vunpack.c.l.b16 %v165
  %v812 = vunpack.c.l.b16 %v166
  %v813 = vunpack.c.l.b16 %v167
  %v814 = vunpack.c.l.b16 %v168
  %v815 = vunpack.c.l.b16 %v169
  %v816 = vunpack.c.l.b16 %v170
  %v817 = vunpack.c.l.b16 %v171
  %v818 = vunpack.c.l.b16 %v172
  %v819 = vunpack.c.l.b16 %v173
  %v820 = vunpack.c.l.b16 %v174
  %v821 = vunpack.c.l.b16 %v175
  %v822 = vunpack.c.l.b16 %v176
  %v823 = vunpack.c.l.b16 %v177
  %v824 = vunpack.c.l.b16 %v178
  %v825 = vunpack.c.l.b16 %v179
  %v826 = vunpack.c.l.b16 %v180
  %v827 = vunpack.c.l.b16 %v181
  %v828 = vunpack.c.l.b16 %v182
  %v829 = vunpack.c.l.b16 %v183
  %v830 = vunpack.c.l.b16 %v184
  %v831 = vunpack.c.l.b16 %v185
  %v832 = vunpack.c.l.b16 %v186
  %v833 = vunpack.c.l.b16 %v187
  %v834 = vunpack.c.l.b16 %v188
  %v835 = vunpack.c.l.b16 %v189
  %v836 = vunpack.c.l.b16 %v190
  %v837 = vunpack.c.l.b16 %v191
  %v838 = vunpack.c.l.b16 %v192
  %v839 = vunpack.c.l.b16 %v193
  %v840 = vunpack.c.l.b16 %v194
  %v841 = vunpack.c.l.b16 %v195
  %v842 = vunpack.c.l.b16 %v196
  %v843 = vunpack.c.l.b16 %v197
  %v844 = vunpack.c.l.b16 %v198
  %v845 = vunpack.c.l.b16 %v199
  %v846 = vunpack.c.l.b16 %v200
  %v847 = vunpack.c.l.b16 %v201
  %v848 = vunpack.c.l.b16 %v202
  %v849 = vunpack.c.l.b16 %v203
  %v850 = vunpack.c.l.b16 %v204
  %v851 = vunpack.c.l.b16 %v205
  %v852 = vunpack.c.l.b16 %v206
  %v853 = vunpack.c.l.b16 %v207
  %v854 = vunpack.c.l.b16 %v208
  %v855 = vunpack.c.l.b16 %v209
  %v856 = vunpack.c.l.b16 %v210
  %v857 = vunpack.c.l.b16 %v211
  %v858 = vunpack.c.l.b16 %v212
  %v859 = vunpack.c.l.b16 %v213
  %v860 = vunpack.c.l.b16 %v214
  %v861 = vunpack.c.l.b16 %v215
  %v862 = vunpack.c.l.b16 %v216
  %v863 = vunpack.c.l.b16 %v217
  %v864 = vunpack.c.l.b16 %v218
  %v865 = vunpack.c.l.b16 %v219
  %v866 = vunpack.c.l.b16 %v220
  %v867 = vunpack.c.l.b16 %v221
  %v868 = vunpack.c.l.b16 %v222
  %v869 = vunpack.c.l.b16 %v223
  %v870 = vunpack.c.l.b16 %v224
  %v871 = vunpack.c.l.b16 %v225
  %v872 = vunpack.c.l.b16 %v226
  %v873 = vunpack.c.l.b16 %v227
  %v874 = vunpack.c.l.b16 %v228
  %v875 = vunpack.c.l.b16 %v229
  %v876 = vunpack.c.l.b16 %v230
  %v877 = vunpack.c.l.b16 %v231
  %v878 = vunpack.c.l.b16 %v232
  %v879 = vunpack.c.l.b16 %v233
  %v880 = vunpack.c.l.b16 %v234
  %v881 = vunpack.c.l.b16 %v235
  %v882 = vunpack.c.l.b16 %v236
  %v883 = vunpack.c.l.b16 %v237
  %v884 = vunpack.c.l.b16 %v238
  %v885 = vunpack.c.l.b16 %v239
  %v886 = vunpack.c.l.b16 %v240
  %v887 = vunpack.c.l.b16 %v241
  %v888 = vunpack.c.l.b16 %v242
  %v889 = vunpack.c.l.b16 %v243
  %v890 = vunpack.c.l.b16 %v244
  %v891 = vunpack.c.l.b16 %v245
  %v892 = vunpack.c.l.b16 %v246
  %v893 = vunpack.c.l.b16 %v247
  %v894 = vunpack.c.l.b16 %v248
  %v895 = vunpack.c.l.b16 %v249
  %v896 = vunpack.c.l.b16 %v250
  %v897 = vunpack.c.l.b16 %v251
  %v898 = vunpack.c.l.b16 %v252
  %v899 = vunpack.c.l.b16 %v253
  %v900 = vunpack.c.l.b16 %v254
  %v901 = vunpack.c.l.b16 %v255
  %v902 = vunpack.c.l.b16 %v256
  %v903 = vunpack.c.l.b16 %v257
  %v904 = vunpack.c.l.b16 %v258
  %v905 = vunpack.c.l.b16 %v259
  %v906 = vunpack.c.l.b16 %v260
  %v907 = vunpack.c.l.b16 %v261
  %v908 = vunpack.c.l.b16 %v262
  %v909 = vunpack.c.l.b16 %v263
  %v910 = vunpack.c.l.b16 %v264
  %v911 = vunpack.c.l.b16 %v265
  %v912 = vunpack.c.l.b16 %v266
  %v913 = vunpack.c.l.b16 %v267
  %v914 = vunpack.c.l.b16 %v268
  %v915 = vunpack.c.l.b16 %v269
  %v916 = vunpack.c.l.b16 %v270
  %v917 = vunpack.c.l.b16 %v271
  %v918 = vunpack.c.l.b16 %v272
  %v919 = vunpack.c.l.b16 %v273
  %v920 = vunpack.c.l.b16 %v274
  %v921 = vunpack.c.l.b16 %v275
  %v922 = vunpack.c.l.b16 %v276
  %v923 = vunpack.c.l.b16 %v277
  %v924 = vunpack.c.l.b16 %v278
  %v925 = vunpack.c.l.b16 %v279
  %v926 = vunpack.c.l.b16 %v280
  %v927 = vunpack.c.l.b16 %v281
  %v928 = vunpack.c.l.b16 %v282
  %v929 = vunpack.c.l.b16 %v283
  %v930 = vunpack.c.l.b16 %v284
  %v931 = vunpack.c.l.b16 %v285
  %v932 = vunpack.c.l.b16 %v286
  %v933 = vunpack.c.l.b16 %v287
  %v934 = vunpack.c.l.b16 %v288
  %v935 = vunpack.c.l.b16 %v289
  %v936 = vunpack.c.l.b16 %v290
  %v937 = vunpack.c.l.b16 %v291
  %v938 = vunpack.c.l.b16 %v292
  %v939 = vunpack.c.l.b16 %v293
  %v940 = vunpack.c.l.b16 %v294
  %v941 = vunpack.c.l.b16 %v295
  %v942 = vunpack.c.l.b16 %v296
  %v943 = vunpack.c.l.b16 %v297
  %v944 = vunpack.c.l.b16 %v298
  %v945 = vunpack.c.l.b16 %v299
  %v946 = vunpack.c.l.b16 %v300
  %v947 = vunpack.c.l.b16 %v301
  %v948 = vunpack.c.l.b16 %v302
  %v949 = vunpack.c.l.b16 %v303
  %v950 = vunpack.c.l.b16 %v304
  %v951 = vunpack.c.l.b16 %v305
  %v952 = vunpack.c.l.b16 %v306
  %v953 = vunpack.c.l.b16 %v307
  %v954 = vunpack.c.l.b16 %v308
  %v955 = vunpack.c.l.b16 %v309
  %v956 = vunpack.c.l.b16 %v310
  %v957 = vunpack.c.l.b16 %v311
  %v958 = vpack.c.b16 %v671, %v670
  %v959 = vpack.c.b16 %v673, %v672
  %v960 = vpack.c.b16 %v675, %v674
  %v961 = vpack.c.b16 %v677, %v676
  %v962 = vpack.c.b16 %v679, %v678
  %v963 = vpack.c.b16 %v681, %v680
  %v964 = vpack.c.b16 %v683, %v682
  %v965 = vpack.c.b16 %v685, %v684
  %v966 = vpack.c.b16 %v687, %v686
  %v967 = vpack.c.b16 %v689, %v688
  %v968 = vpack.c.b16 %v691, %v690
  %v969 = vpack.c.b16 %v693, %v692
  %v970 = vpack.c.b16 %v695, %v694
  %v971 = vpack.c.b16 %v697, %v696
  %v972 = vpack.c.b16 %v699, %v698
  %v973 = vpack.c.b16 %v701, %v700
  %v974 = vpack.c.b16 %v703, %v702
  %v975 = vpack.c.b16 %v705, %v704
  %v976 = vpack.c.b16 %v707, %v706
  %v977 = vpack.c.b16 %v709, %v708
  %v978 = vpack.c.b16 %v711, %v710
  %v979 = vpack.c.b16 %v713, %v712
  %v980 = vpack.c.b16 %v715, %v714
  %v981 = vpack.c.b16 %v717, %v716
  %v982 = vpack.c.b16 %v719, %v718
  %v983 = vpack.c.b16 %v721, %v720
  %v984 = vpack.c.b16 %v723, %v722
  %v985 = vpack.c.b16 %v725, %v724
  %v986 = vpack.c.b16 %v727, %v726
  %v987 = vpack.c.b16 %v729, %v728
  %v988 = vpack.c.b16 %v731, %v730
  %v989 = vpack.c.b16 %v733, %v732
  %v990 = vpack.c.b16 %v735, %v734
  %v991 = vpack.c.b16 %v737, %v736
  %v992 = vpack.c.b16 %v739, %v738
  %v993 = vpack.c.b16 %v741, %v740
  %v994 = vpack.c.b16 %v743, %v742
  %v995 = vpack.c.b16 %v745, %v744
  %v996 = vpack.c.b16 %v747, %v746
  %v997 = vpack.c.b16 %v749, %v748
  %v998 = vpack.c.b16 %v751, %v750
  %v999 = vpack.c.b16 %v753, %v752
  %v1000 = vpack.c.b16 %v755, %v754
  %v1001 = vpack.c.b16 %v757, %v756
  %v1002 = vpack.c.b16 %v759, %v758
  %v1003 = vpack.c.b16 %v761, %v760
  %v1004 = vpack.c.b16 %v763, %v762
  %v1005 = vpack.c.b16 %v765, %v764
  %v1006 = vpack.c.b16 %v767, %v766
  %v1007 = vpack.c.b16 %v769, %v768
  %v1008 = vpack.c.b16 %v771, %v770
  %v1009 = vpack.c.b16 %v773, %v772
  %v1010 = vpack.c.b16 %v775, %v774
  %v1011 = vpack.c.b16 %v777, %v776
  %v1012 = vpack.c.b16 %v779, %v778
  %v1013 = vpack.c.b16 %v781, %v780
  %v1014 = vpack.c.b16 %v783, %v782
  %v1015 = vpack.c.b16 %v785, %v784
  %v1016 = vpack.c.b16 %v787, %v786
  %v1017 = vpack.c.b16 %v789, %v788
  %v1018 = vpack.c.b16 %v791, %v790
  %v1019 = vpack.c.b16 %v793, %v792
  %v1020 = vpack.c.b16 %v795, %v794
  %v1021 = vpack.c.b16 %v797, %v796
  %v1022 = vpack.c.b16 %v799, %v798
  %v1023 = vpack.c.b16 %v801, %v800
  %v1024 = vpack.c.b16 %v803, %v802
  %v1025 = vpack.c.b16 %v805, %v804
  %v1026 = vpack.c.b16 %v807, %v806
  %v1027 = vpack.c.b16 %v809, %v808
  %v1028 = vpack.c.b16 %v811, %v810
  %v1029 = vpack.c.b16 %v813, %v812
  %v1030 = vpack.c.b16 %v815, %v814
  %v1031 = vpack.c.b16 %v817, %v816
  %v1032 = vpack.c.b16 %v819, %v818
  %v1033 = vpack.c.b16 %v821, %v820
  %v1034 = vpack.c.b16 %v823, %v822
  %v1035 = vpack.c.b16 %v825, %v824
  %v1036 = vpack.c.b16 %v827, %v826
  %v1037 = vpack.c.b16 %v829, %v828
  %v1038 = vpack.c.b16 %v831, %v830
  %v1039 = vpack.c.b16 %v833, %v832
  %v1040 = vpack.c.b16 %v835, %v834
  %v1041 = vpack.c.b16 %v837, %v836
  %v1042 = vpack.c.b16 %v839, %v838
  %v1043 = vpack.c.b16 %v841, %v840
  %v1044 = vpack.c.b16 %v843, %v842
  %v1045 = vpack.c.b16 %v845, %v844
  %v1046 = vpack.c.b16 %v847, %v846
  %v1047 = vpack.c.b16 %v849, %v848
  %v1048 = vpack.c.b16 %v851, %v850
  %v1049 = vpack.c.b16 %v853, %v852
  %v1050 = vpack.c.b16 %v855, %v854
  %v1051 = vpack.c.b16 %v857, %v856
  %v1052 = vpack.c.b16 %v859, %v858
  %v1053 = vpack.c.b16 %v861, %v860
  %v1054 = vpack.c.b16 %v863, %v862
  %v1055 = vpack.c.b16 %v865, %v864
  %v1056 = vpack.c.b16 %v867, %v866
  %v1057 = vpack.c.b16 %v869, %v868
  %v1058 = vpack.c.b16 %v871, %v870
  %v1059 = vpack.c.b16 %v873, %v872
  %v1060 = vpack.c.b16 %v875, %v874
  %v1061 = vpack.c.b16 %v877, %v876
  %v1062 = vpack.c.b16 %v879, %v878
  %v1063 = vpack.c.b16 %v881, %v880
  %v1064 = vpack.c.b16 %v883, %v882
  %v1065 = vpack.c.b16 %v885, %v884
  %v1066 = vpack.c.b16 %v887, %v886
  %v1067 = vpack.c.b16 %v889, %v888
  %v1068 = vpack.c.b16 %v891, %v890
  %v1069 = vpack.c.b16 %v893, %v892
  %v1070 = vpack.c.b16 %v895, %v894
  %v1071 = vpack.c.b16 %v897, %v896
  %v1072 = vpack.c.b16 %v899, %v898
  %v1073 = vpack.c.b16 %v901, %v900
  %v1074 = vpack.c.b16 %v903, %v902
  %v1075 = vpack.c.b16 %v905, %v904
  %v1076 = vpack.c.b16 %v907, %v906
  %v1077 = vpack.c.b16 %v909, %v908
  %v1078 = vpack.c.b16 %v911, %v910
  %v1079 = vpack.c.b16 %v913, %v912
  %v1080 = vpack.c.b16 %v915, %v914
  %v1081 = vpack.c.b16 %v917, %v916
  %v1082 = vpack.c.b16 %v919, %v918
  %v1083 = vpack.c.b16 %v921, %v920
  %v1084 = vpack.c.b16 %v923, %v922
  %v1085 = vpack.c.b16 %v925, %v924
  %v1086 = vpack.c.b16 %v927, %v926
  %v1087 = vpack.c.b16 %v929, %v928
  %v1088 = vpack.c.b16 %v931, %v930
  %v1089 = vpack.c.b16 %v933, %v932
  %v1090 = vpack.c.b16 %v935, %v934
  %v1091 = vpack.c.b16 %v937, %v936
  %v1092 = vpack.c.b16 %v939, %v938
  %v1093 = vpack.c.b16 %v941, %v940
  %v1094 = vpack.c.b16 %v943, %v942
  %v1095 = vpack.c.b16 %v945, %v944
  %v1096 = vpack.c.b16 %v947, %v946
  %v1097 = vpack.c.b16 %v949, %v948
  %v1098 = vpack.c.b16 %v951, %v950
  %v1099 = vpack.c.b16 %v953, %v952
  %v1100 = vpack.c.b16 %v955, %v954
  %v1101 = vpack.c.b16 %v957, %v956
  %1246 = vmatprep.subr.bf16.mxu0 0
  %1247 = vmatpush1.bf16.msra.mxu0 %v958
  %1248 = vmatprep.subr.bf16.mxu0 0
  %1249 = vmatpush1.bf16.msra.mxu0 %v959
  %1250 = vmatprep.subr.bf16.mxu0 0
  %1251 = vmatpush1.bf16.msra.mxu0 %v960
  %1252 = vmatprep.subr.bf16.mxu0 0
  %1253 = vmatpush1.bf16.msra.mxu0 %v961
  %1254 = vmatprep.subr.bf16.mxu0 0
  %1255 = vmatpush1.bf16.msra.mxu0 %v962
  %1256 = vmatprep.subr.bf16.mxu0 0
  %1257 = vmatpush1.bf16.msra.mxu0 %v963
  %1258 = vmatprep.subr.bf16.mxu0 0
  %1259 = vmatpush1.bf16.msra.mxu0 %v964
  %1260 = vmatprep.subr.bf16.mxu0 0
  %1261 = vmatpush1.bf16.msra.mxu0 %v965
  %1262 = vmatprep.subr.bf16.mxu0 0
  %1263 = vmatpush1.bf16.msra.mxu0 %v966
  %1264 = vmatprep.subr.bf16.mxu0 0
  %1265 = vmatpush1.bf16.msra.mxu0 %v967
  %1266 = vmatprep.subr.bf16.mxu0 0
  %1267 = vmatpush1.bf16.msra.mxu0 %v968
  %1268 = vmatprep.subr.bf16.mxu0 0
  %1269 = vmatpush1.bf16.msra.mxu0 %v969
  %1270 = vmatprep.subr.bf16.mxu0 0
  %1271 = vmatpush1.bf16.msra.mxu0 %v970
  %1272 = vmatprep.subr.bf16.mxu0 0
  %1273 = vmatpush1.bf16.msra.mxu0 %v971
  %1274 = vmatprep.subr.bf16.mxu0 0
  %1275 = vmatpush1.bf16.msra.mxu0 %v972
  %1276 = vmatprep.subr.bf16.mxu0 0
  %1277 = vmatpush1.bf16.msra.mxu0 %v973
  %1278 = vmatprep.mubr.bf16.mxu0 %v347
  %1279 = vmatmul.mubr.bf16.gmra.mrb[0].mxu0 %v346
  %v1280 = vpop.f32.mrb[0].mxu0
  %v1281 = vadd.f32 %v317, %v1280
  %v1282 = vpop.f32.mrb[0].mxu0
  %v1283 = vpop.f32.mrb[0].mxu0
  %v1284 = vpop.f32.mrb[0].mxu0
  %1285 = vdwg.mxu0
  %1286 = vmatprep.subr.bf16.mxu0 0
  %1287 = vmatpush1.bf16.msra.mxu0 %v974
  %1288 = vmatprep.subr.bf16.mxu0 0
  %1289 = vmatpush1.bf16.msra.mxu0 %v975
  %1290 = vmatprep.subr.bf16.mxu0 0
  %1291 = vmatpush1.bf16.msra.mxu0 %v976
  %1292 = vmatprep.subr.bf16.mxu0 0
  %1293 = vmatpush1.bf16.msra.mxu0 %v977
  %1294 = vmatprep.subr.bf16.mxu0 0
  %1295 = vmatpush1.bf16.msra.mxu0 %v978
  %1296 = vmatprep.subr.bf16.mxu0 0
  %1297 = vmatpush1.bf16.msra.mxu0 %v979
  %1298 = vmatprep.subr.bf16.mxu0 0
  %1299 = vmatpush1.bf16.msra.mxu0 %v980
  %1300 = vmatprep.subr.bf16.mxu0 0
  %1301 = vmatpush1.bf16.msra.mxu0 %v981
  %1302 = vmatprep.subr.bf16.mxu0 0
  %1303 = vmatpush1.bf16.msra.mxu0 %v982
  %1304 = vmatprep.subr.bf16.mxu0 0
  %1305 = vmatpush1.bf16.msra.mxu0 %v983
  %1306 = vmatprep.subr.bf16.mxu0 0
  %1307 = vmatpush1.bf16.msra.mxu0 %v984
  %1308 = vmatprep.subr.bf16.mxu0 0
  %1309 = vmatpush1.bf16.msra.mxu0 %v985
  %1310 = vmatprep.subr.bf16.mxu0 0
  %1311 = vmatpush1.bf16.msra.mxu0 %v986
  %1312 = vmatprep.subr.bf16.mxu0 0
  %1313 = vmatpush1.bf16.msra.mxu0 %v987
  %1314 = vmatprep.subr.bf16.mxu0 0
  %1315 = vmatpush1.bf16.msra.mxu0 %v988
  %1316 = vmatprep.subr.bf16.mxu0 0
  %1317 = vmatpush1.bf16.msra.mxu0 %v989
  %1318 = vmatprep.mubr.bf16.mxu0 %v349
  %1319 = vmatmul.mubr.bf16.gmra.mrb[0].mxu0 %v348
  %v1320 = vpop.f32.mrb[0].mxu0
  %v1321 = vadd.f32 %v1281, %v1320
  %v1322 = vpop.f32.mrb[0].mxu0
  %v1323 = vpop.f32.mrb[0].mxu0
  %v1324 = vpop.f32.mrb[0].mxu0
  %1325 = vdwg.mxu0
  %1326 = vmatprep.subr.bf16.mxu0 0
  %1327 = vmatpush1.bf16.msra.mxu0 %v990
  %1328 = vmatprep.subr.bf16.mxu0 0
  %1329 = vmatpush1.bf16.msra.mxu0 %v991
  %1330 = vmatprep.subr.bf16.mxu0 0
  %1331 = vmatpush1.bf16.msra.mxu0 %v992
  %1332 = vmatprep.subr.bf16.mxu0 0
  %1333 = vmatpush1.bf16.msra.mxu0 %v993
  %1334 = vmatprep.subr.bf16.mxu0 0
  %1335 = vmatpush1.bf16.msra.mxu0 %v994
  %1336 = vmatprep.subr.bf16.mxu0 0
  %1337 = vmatpush1.bf16.msra.mxu0 %v995
  %1338 = vmatprep.subr.bf16.mxu0 0
  %1339 = vmatpush1.bf16.msra.mxu0 %v996
  %1340 = vmatprep.subr.bf16.mxu0 0
  %1341 = vmatpush1.bf16.msra.mxu0 %v997
  %1342 = vmatprep.subr.bf16.mxu0 0
  %1343 = vmatpush1.bf16.msra.mxu0 %v998
  %1344 = vmatprep.subr.bf16.mxu0 0
  %1345 = vmatpush1.bf16.msra.mxu0 %v999
  %1346 = vmatprep.subr.bf16.mxu0 0
  %1347 = vmatpush1.bf16.msra.mxu0 %v1000
  %1348 = vmatprep.subr.bf16.mxu0 0
  %1349 = vmatpush1.bf16.msra.mxu0 %v1001
  %1350 = vmatprep.subr.bf16.mxu0 0
  %1351 = vmatpush1.bf16.msra.mxu0 %v1002
  %1352 = vmatprep.subr.bf16.mxu0 0
  %1353 = vmatpush1.bf16.msra.mxu0 %v1003
  %1354 = vmatprep.subr.bf16.mxu0 0
  %1355 = vmatpush1.bf16.msra.mxu0 %v1004
  %1356 = vmatprep.subr.bf16.mxu0 0
  %1357 = vmatpush1.bf16.msra.mxu0 %v1005
  %1358 = vmatprep.mubr.bf16.mxu0 %v351
  %1359 = vmatmul.mubr.bf16.gmra.mrb[0].mxu0 %v350
  %v1360 = vpop.f32.mrb[0].mxu0
  %v1361 = vadd.f32 %v1321, %v1360
  %v1362 = vpop.f32.mrb[0].mxu0
  %v1363 = vpop.f32.mrb[0].mxu0
  %v1364 = vpop.f32.mrb[0].mxu0
  %1365 = vdwg.mxu0
  %1366 = vmatprep.subr.bf16.mxu0 0
  %1367 = vmatpush1.bf16.msra.mxu0 %v1006
  %1368 = vmatprep.subr.bf16.mxu0 0
  %1369 = vmatpush1.bf16.msra.mxu0 %v1007
  %1370 = vmatprep.subr.bf16.mxu0 0
  %1371 = vmatpush1.bf16.msra.mxu0 %v1008
  %1372 = vmatprep.subr.bf16.mxu0 0
  %1373 = vmatpush1.bf16.msra.mxu0 %v1009
  %1374 = vmatprep.subr.bf16.mxu0 0
  %1375 = vmatpush1.bf16.msra.mxu0 %v1010
  %1376 = vmatprep.subr.bf16.mxu0 0
  %1377 = vmatpush1.bf16.msra.mxu0 %v1011
  %1378 = vmatprep.subr.bf16.mxu0 0
  %1379 = vmatpush1.bf16.msra.mxu0 %v1012
  %1380 = vmatprep.subr.bf16.mxu0 0
  %1381 = vmatpush1.bf16.msra.mxu0 %v1013
  %1382 = vmatprep.subr.bf16.mxu0 0
  %1383 = vmatpush1.bf16.msra.mxu0 %v1014
  %1384 = vmatprep.subr.bf16.mxu0 0
  %1385 = vmatpush1.bf16.msra.mxu0 %v1015
  %1386 = vmatprep.subr.bf16.mxu0 0
  %1387 = vmatpush1.bf16.msra.mxu0 %v1016
  %1388 = vmatprep.subr.bf16.mxu0 0
  %1389 = vmatpush1.bf16.msra.mxu0 %v1017
  %1390 = vmatprep.subr.bf16.mxu0 0
  %1391 = vmatpush1.bf16.msra.mxu0 %v1018
  %1392 = vmatprep.subr.bf16.mxu0 0
  %1393 = vmatpush1.bf16.msra.mxu0 %v1019
  %1394 = vmatprep.subr.bf16.mxu0 0
  %1395 = vmatpush1.bf16.msra.mxu0 %v1020
  %1396 = vmatprep.subr.bf16.mxu0 0
  %1397 = vmatpush1.bf16.msra.mxu0 %v1021
  %1398 = vmatprep.mubr.bf16.mxu0 %v353
  %1399 = vmatmul.mubr.bf16.gmra.mrb[0].mxu0 %v352
  %v1400 = vpop.f32.mrb[0].mxu0
  %v1401 = vadd.f32 %v1361, %v1400
  %v1402 = vpop.f32.mrb[0].mxu0
  %v1403 = vpop.f32.mrb[0].mxu0
  %v1404 = vpop.f32.mrb[0].mxu0
  %1405 = vdwg.mxu0
  %1406 = vmatprep.subr.bf16.mxu0 0
  %1407 = vmatpush1.bf16.msra.mxu0 %v1022
  %1408 = vmatprep.subr.bf16.mxu0 0
  %1409 = vmatpush1.bf16.msra.mxu0 %v1023
  %1410 = vmatprep.subr.bf16.mxu0 0
  %1411 = vmatpush1.bf16.msra.mxu0 %v1024
  %1412 = vmatprep.subr.bf16.mxu0 0
  %1413 = vmatpush1.bf16.msra.mxu0 %v1025
  %1414 = vmatprep.subr.bf16.mxu0 0
  %1415 = vmatpush1.bf16.msra.mxu0 %v1026
  %1416 = vmatprep.subr.bf16.mxu0 0
  %1417 = vmatpush1.bf16.msra.mxu0 %v1027
  %1418 = vmatprep.subr.bf16.mxu0 0
  %1419 = vmatpush1.bf16.msra.mxu0 %v1028
  %1420 = vmatprep.subr.bf16.mxu0 0
  %1421 = vmatpush1.bf16.msra.mxu0 %v1029
  %1422 = vmatprep.subr.bf16.mxu0 0
  %1423 = vmatpush1.bf16.msra.mxu0 %v1030
  %1424 = vmatprep.subr.bf16.mxu0 0
  %1425 = vmatpush1.bf16.msra.mxu0 %v1031
  %1426 = vmatprep.subr.bf16.mxu0 0
  %1427 = vmatpush1.bf16.msra.mxu0 %v1032
  %1428 = vmatprep.subr.bf16.mxu0 0
  %1429 = vmatpush1.bf16.msra.mxu0 %v1033
  %1430 = vmatprep.subr.bf16.mxu0 0
  %1431 = vmatpush1.bf16.msra.mxu0 %v1034
  %1432 = vmatprep.subr.bf16.mxu0 0
  %1433 = vmatpush1.bf16.msra.mxu0 %v1035
  %1434 = vmatprep.subr.bf16.mxu0 0
  %1435 = vmatpush1.bf16.msra.mxu0 %v1036
  %1436 = vmatprep.subr.bf16.mxu0 0
  %1437 = vmatpush1.bf16.msra.mxu0 %v1037
  %1438 = vmatprep.mubr.bf16.mxu0 %v355
  %1439 = vmatmul.mubr.bf16.gmra.mrb[0].mxu0 %v354
  %v1440 = vpop.f32.mrb[0].mxu0
  %v1441 = vadd.f32 %v1401, %v1440
  %v1442 = vpop.f32.mrb[0].mxu0
  %v1443 = vpop.f32.mrb[0].mxu0
  %v1444 = vpop.f32.mrb[0].mxu0
  %1445 = vdwg.mxu0
  %1446 = vmatprep.subr.bf16.mxu0 0
  %1447 = vmatpush1.bf16.msra.mxu0 %v1038
  %1448 = vmatprep.subr.bf16.mxu0 0
  %1449 = vmatpush1.bf16.msra.mxu0 %v1039
  %1450 = vmatprep.subr.bf16.mxu0 0
  %1451 = vmatpush1.bf16.msra.mxu0 %v1040
  %1452 = vmatprep.subr.bf16.mxu0 0
  %1453 = vmatpush1.bf16.msra.mxu0 %v1041
  %1454 = vmatprep.subr.bf16.mxu0 0
  %1455 = vmatpush1.bf16.msra.mxu0 %v1042
  %1456 = vmatprep.subr.bf16.mxu0 0
  %1457 = vmatpush1.bf16.msra.mxu0 %v1043
  %1458 = vmatprep.subr.bf16.mxu0 0
  %1459 = vmatpush1.bf16.msra.mxu0 %v1044
  %1460 = vmatprep.subr.bf16.mxu0 0
  %1461 = vmatpush1.bf16.msra.mxu0 %v1045
  %1462 = vmatprep.subr.bf16.mxu0 0
  %1463 = vmatpush1.bf16.msra.mxu0 %v1046
  %1464 = vmatprep.subr.bf16.mxu0 0
  %1465 = vmatpush1.bf16.msra.mxu0 %v1047
  %1466 = vmatprep.subr.bf16.mxu0 0
  %1467 = vmatpush1.bf16.msra.mxu0 %v1048
  %1468 = vmatprep.subr.bf16.mxu0 0
  %1469 = vmatpush1.bf16.msra.mxu0 %v1049
  %1470 = vmatprep.subr.bf16.mxu0 0
  %1471 = vmatpush1.bf16.msra.mxu0 %v1050
  %1472 = vmatprep.subr.bf16.mxu0 0
  %1473 = vmatpush1.bf16.msra.mxu0 %v1051
  %1474 = vmatprep.subr.bf16.mxu0 0
  %1475 = vmatpush1.bf16.msra.mxu0 %v1052
  %1476 = vmatprep.subr.bf16.mxu0 0
  %1477 = vmatpush1.bf16.msra.mxu0 %v1053
  %1478 = vmatprep.mubr.bf16.mxu0 %v357
  %1479 = vmatmul.mubr.bf16.gmra.mrb[0].mxu0 %v356
  %v1480 = vpop.f32.mrb[0].mxu0
  %v1481 = vadd.f32 %v1441, %v1480
  %v1482 = vpop.f32.mrb[0].mxu0
  %v1483 = vpop.f32.mrb[0].mxu0
  %v1484 = vpop.f32.mrb[0].mxu0
  %1485 = vdwg.mxu0
  %1486 = vmatprep.subr.bf16.mxu0 0
  %1487 = vmatpush1.bf16.msra.mxu0 %v1054
  %1488 = vmatprep.subr.bf16.mxu0 0
  %1489 = vmatpush1.bf16.msra.mxu0 %v1055
  %1490 = vmatprep.subr.bf16.mxu0 0
  %1491 = vmatpush1.bf16.msra.mxu0 %v1056
  %1492 = vmatprep.subr.bf16.mxu0 0
  %1493 = vmatpush1.bf16.msra.mxu0 %v1057
  %1494 = vmatprep.subr.bf16.mxu0 0
  %1495 = vmatpush1.bf16.msra.mxu0 %v1058
  %1496 = vmatprep.subr.bf16.mxu0 0
  %1497 = vmatpush1.bf16.msra.mxu0 %v1059
  %1498 = vmatprep.subr.bf16.mxu0 0
  %1499 = vmatpush1.bf16.msra.mxu0 %v1060
  %1500 = vmatprep.subr.bf16.mxu0 0
  %1501 = vmatpush1.bf16.msra.mxu0 %v1061
  %1502 = vmatprep.subr.bf16.mxu0 0
  %1503 = vmatpush1.bf16.msra.mxu0 %v1062
  %1504 = vmatprep.subr.bf16.mxu0 0
  %1505 = vmatpush1.bf16.msra.mxu0 %v1063
  %1506 = vmatprep.subr.bf16.mxu0 0
  %1507 = vmatpush1.bf16.msra.mxu0 %v1064
  %1508 = vmatprep.subr.bf16.mxu0 0
  %1509 = vmatpush1.bf16.msra.mxu0 %v1065
  %1510 = vmatprep.subr.bf16.mxu0 0
  %1511 = vmatpush1.bf16.msra.mxu0 %v1066
  %1512 = vmatprep.subr.bf16.mxu0 0
  %1513 = vmatpush1.bf16.msra.mxu0 %v1067
  %1514 = vmatprep.subr.bf16.mxu0 0
  %1515 = vmatpush1.bf16.msra.mxu0 %v1068
  %1516 = vmatprep.subr.bf16.mxu0 0
  %1517 = vmatpush1.bf16.msra.mxu0 %v1069
  %1518 = vmatprep.mubr.bf16.mxu0 %v359
  %1519 = vmatmul.mubr.bf16.gmra.mrb[0].mxu0 %v358
  %v1520 = vpop.f32.mrb[0].mxu0
  %v1521 = vadd.f32 %v1481, %v1520
  %v1522 = vpop.f32.mrb[0].mxu0
  %v1523 = vpop.f32.mrb[0].mxu0
  %v1524 = vpop.f32.mrb[0].mxu0
  %1525 = vdwg.mxu0
  %1526 = vmatprep.subr.bf16.mxu0 0
  %1527 = vmatpush1.bf16.msra.mxu0 %v1070
  %1528 = vmatprep.subr.bf16.mxu0 0
  %1529 = vmatpush1.bf16.msra.mxu0 %v1071
  %1530 = vmatprep.subr.bf16.mxu0 0
  %1531 = vmatpush1.bf16.msra.mxu0 %v1072
  %1532 = vmatprep.subr.bf16.mxu0 0
  %1533 = vmatpush1.bf16.msra.mxu0 %v1073
  %1534 = vmatprep.subr.bf16.mxu0 0
  %1535 = vmatpush1.bf16.msra.mxu0 %v1074
  %1536 = vmatprep.subr.bf16.mxu0 0
  %1537 = vmatpush1.bf16.msra.mxu0 %v1075
  %1538 = vmatprep.subr.bf16.mxu0 0
  %1539 = vmatpush1.bf16.msra.mxu0 %v1076
  %1540 = vmatprep.subr.bf16.mxu0 0
  %1541 = vmatpush1.bf16.msra.mxu0 %v1077
  %1542 = vmatprep.subr.bf16.mxu0 0
  %1543 = vmatpush1.bf16.msra.mxu0 %v1078
  %1544 = vmatprep.subr.bf16.mxu0 0
  %1545 = vmatpush1.bf16.msra.mxu0 %v1079
  %1546 = vmatprep.subr.bf16.mxu0 0
  %1547 = vmatpush1.bf16.msra.mxu0 %v1080
  %1548 = vmatprep.subr.bf16.mxu0 0
  %1549 = vmatpush1.bf16.msra.mxu0 %v1081
  %1550 = vmatprep.subr.bf16.mxu0 0
  %1551 = vmatpush1.bf16.msra.mxu0 %v1082
  %1552 = vmatprep.subr.bf16.mxu0 0
  %1553 = vmatpush1.bf16.msra.mxu0 %v1083
  %1554 = vmatprep.subr.bf16.mxu0 0
  %1555 = vmatpush1.bf16.msra.mxu0 %v1084
  %1556 = vmatprep.subr.bf16.mxu0 0
  %1557 = vmatpush1.bf16.msra.mxu0 %v1085
  %1558 = vmatprep.mubr.bf16.mxu0 %v361
  %1559 = vmatmul.mubr.bf16.gmra.mrb[0].mxu0 %v360
  %v1560 = vpop.f32.mrb[0].mxu0
  %v1561 = vadd.f32 %v1521, %v1560
  %v1562 = vpop.f32.mrb[0].mxu0
  %v1563 = vpop.f32.mrb[0].mxu0
  %v1564 = vpop.f32.mrb[0].mxu0
  %1565 = vdwg.mxu0
  %1566 = vmatprep.subr.bf16.mxu0 0
  %1567 = vmatpush1.bf16.msra.mxu0 %v1086
  %1568 = vmatprep.subr.bf16.mxu0 0
  %1569 = vmatpush1.bf16.msra.mxu0 %v1087
  %1570 = vmatprep.subr.bf16.mxu0 0
  %1571 = vmatpush1.bf16.msra.mxu0 %v1088
  %1572 = vmatprep.subr.bf16.mxu0 0
  %1573 = vmatpush1.bf16.msra.mxu0 %v1089
  %1574 = vmatprep.subr.bf16.mxu0 0
  %1575 = vmatpush1.bf16.msra.mxu0 %v1090
  %1576 = vmatprep.subr.bf16.mxu0 0
  %1577 = vmatpush1.bf16.msra.mxu0 %v1091
  %1578 = vmatprep.subr.bf16.mxu0 0
  %1579 = vmatpush1.bf16.msra.mxu0 %v1092
  %1580 = vmatprep.subr.bf16.mxu0 0
  %1581 = vmatpush1.bf16.msra.mxu0 %v1093
  %1582 = vmatprep.subr.bf16.mxu0 0
  %1583 = vmatpush1.bf16.msra.mxu0 %v1094
  %1584 = vmatprep.subr.bf16.mxu0 0
  %1585 = vmatpush1.bf16.msra.mxu0 %v1095
  %1586 = vmatprep.subr.bf16.mxu0 0
  %1587 = vmatpush1.bf16.msra.mxu0 %v1096
  %1588 = vmatprep.subr.bf16.mxu0 0
  %1589 = vmatpush1.bf16.msra.mxu0 %v1097
  %1590 = vmatprep.subr.bf16.mxu0 0
  %1591 = vmatpush1.bf16.msra.mxu0 %v1098
  %1592 = vmatprep.subr.bf16.mxu0 0
  %1593 = vmatpush1.bf16.msra.mxu0 %v1099
  %1594 = vmatprep.subr.bf16.mxu0 0
  %1595 = vmatpush1.bf16.msra.mxu0 %v1100
  %1596 = vmatprep.subr.bf16.mxu0 0
  %1597 = vmatpush1.bf16.msra.mxu0 %v1101
  %1598 = vmatprep.mubr.bf16.mxu0 %v363
  %1599 = vmatmul.mubr.bf16.gmra.mrb[0].mxu0 %v362
  %v1600 = vpop.f32.mrb[0].mxu0
  %v1601 = vadd.f32 %v1561, %v1600
  %v1602 = vpop.f32.mrb[0].mxu0
  %v1603 = vpop.f32.mrb[0].mxu0
  %v1604 = vpop.f32.mrb[0].mxu0
  %1605 = vdwg.mxu0
  %1606 = vst [vmem:[%s3] sm:$0xff] %v1601
  // Predicated region
  $region14: #{encoder_forward.7} parent=0 // pred_check
    _
  $region15: #{encoder_forward.7} parent=0 // pred_check_branch
    %1608 = sbr.rel (0) target = $region17
  $region16: #{encoder_forward.7} parent=0 // pred_region
    _
  $region17: #{encoder_forward.7} parent=0 // pred_fallthru
    _
  // Predicated region
  $region18: #{encoder_forward.7} parent=0 // pred_check
    _
  $region19: #{encoder_forward.7} parent=0 // pred_check_branch
    %1610 = sbr.rel (0) target = $region21
  $region20: #{encoder_forward.7} parent=0 // pred_region
    _
  $region21: #{encoder_forward.7} parent=0 // pred_fallthru
    _

</llo_original>
